<compile_context>
chip_gen: v7x
topology: tpu7x:2x2x1
jax: 0.10.0
libtpu: 0.0.40
codegen_flags: <defaults>
</compile_context>

<pallas_src>
import numpy as np

import jax
import jax.numpy as jnp
from jax.experimental import pallas as pl
from jax.experimental.pallas import tpu as pltpu

NEG_SLOPE = 0.2
BN_EPS = 1e-5


# ---------------------------------------------------------------------------
# Fused kernel: conv1 -> conv2+BN2d -> fc1+BN1d -> fc2+sigmoid
# ---------------------------------------------------------------------------
def _disc_fused_kernel(patches_ref, w1_ref, sel2_ref, w2t_ref, g2_ref, b2_ref,
                       rsel_ref, w1r_ref, fb1_ref, g1_ref, bt1_ref,
                       w2fc_ref, b2fc_ref, lth_ref, out_ref):
    f32 = jnp.float32

    # ---- conv1 (im2col matmul) + LeakyReLU: (N*8*8, Cin*k*k) @ (Cin*k*k, H1)
    y1 = jnp.dot(patches_ref[...], w1_ref[...], preferred_element_type=f32)
    y1 = jnp.where(y1 >= 0, y1, NEG_SLOPE * y1)                      # (128, 8)

    # ---- conv2: gather-by-matmul per kernel tap, accumulated on the MXU
    n_taps = sel2_ref.shape[0]
    rows2 = sel2_ref.shape[1]
    cout2 = w2t_ref.shape[2]
    z2 = jnp.zeros((rows2, cout2), f32)                              # (32, 16)
    for t in range(n_taps):
        xt = jnp.dot(sel2_ref[t], y1, preferred_element_type=f32)    # (32, 8)
        z2 = z2 + jnp.dot(xt, w2t_ref[t], preferred_element_type=f32)

    # ---- BatchNorm2d (batch stats over N*H*W rows) folded into one FMA
    m2 = jnp.mean(z2, axis=0, keepdims=True)
    d2 = z2 - m2
    v2 = jnp.mean(d2 * d2, axis=0, keepdims=True)
    h2 = d2 * (g2_ref[...] * jax.lax.rsqrt(v2 + BN_EPS)) + b2_ref[...]
    h2 = jnp.where(h2 >= 0, h2, NEG_SLOPE * h2)                      # (32, 16)

    # ---- Linear(256 -> 512) fused with the NCHW-flatten reorder
    batch = rsel_ref.shape[1]
    fc_out = w1r_ref.shape[2]
    n_spatial = rsel_ref.shape[0]
    z3 = jnp.zeros((batch, fc_out), f32)                             # (2, 512)
    for s in range(n_spatial):
        hs = jnp.dot(rsel_ref[s], h2, preferred_element_type=f32)    # (2, 16)
        z3 = z3 + jnp.dot(hs, w1r_ref[s], preferred_element_type=f32)
    z3 = z3 + fb1_ref[...]

    # ---- BatchNorm1d + LeakyReLU
    m3 = jnp.mean(z3, axis=0, keepdims=True)
    d3 = z3 - m3
    v3 = jnp.mean(d3 * d3, axis=0, keepdims=True)
    lth = d3 * (g1_ref[...] * jax.lax.rsqrt(v3 + BN_EPS)) + bt1_ref[...]
    lth = jnp.where(lth >= 0, lth, NEG_SLOPE * lth)                  # (2, 512)
    lth_ref[...] = lth

    # ---- Linear(512 -> 1) as VPU multiply + lane reduction, then Sigmoid.
    # The sigmoid value is broadcast to a lane-dense (N, 128) slab.
    logit = jnp.sum(lth * w2fc_ref[...], axis=1, keepdims=True) + b2fc_ref[...]
    out_ref[...] = jnp.broadcast_to(jax.nn.sigmoid(logit), out_ref.shape)


# ---------------------------------------------------------------------------
# Host-side (jit-fused) helpers: im2col of the raw input, constant selectors
# ---------------------------------------------------------------------------
def im2col(x, k, s, p):
    """x: (N, C, H, W) -> patches (N*Ho*Wo, C*k*k), feature order (ci, kh, kw)."""
    n, c, h, w = x.shape
    xp = jnp.pad(x, ((0, 0), (0, 0), (p, p), (p, p)))
    ho = (h + 2 * p - k) // s + 1
    wo = (w + 2 * p - k) // s + 1
    cols = []
    for kh in range(k):
        for kw in range(k):
            cols.append(xp[:, :, kh:kh + s * ho:s, kw:kw + s * wo:s])  # (N,C,Ho,Wo)
    patches = jnp.stack(cols, axis=0).reshape(k, k, n, c, ho, wo)
    patches = patches.transpose(2, 4, 5, 3, 0, 1)                     # (N,Ho,Wo,C,kh,kw)
    return patches.reshape(n * ho * wo, c * k * k), (n, ho, wo)


def _conv_tap_selectors(batch, h_in, w_in, k, s, p):
    """0/1 gather matrices: sel[t] @ act picks the input pixel of tap t=(kh,kw)
    for every output position (zero row => zero padding)."""
    ho = (h_in + 2 * p - k) // s + 1
    wo = (w_in + 2 * p - k) // s + 1
    sel = np.zeros((k * k, batch * ho * wo, batch * h_in * w_in), np.float32)
    for kh in range(k):
        for kw in range(k):
            t = kh * k + kw
            for n in range(batch):
                for oh in range(ho):
                    for ow in range(wo):
                        ih = oh * s + kh - p
                        iw = ow * s + kw - p
                        if 0 <= ih < h_in and 0 <= iw < w_in:
                            sel[t, n * ho * wo + oh * wo + ow,
                                n * h_in * w_in + ih * w_in + iw] = 1.0
    return jnp.asarray(sel)


def _row_selectors(batch, n_spatial):
    """rsel[s] @ h2 picks row (n*n_spatial + s) of h2 for every sample n."""
    rsel = np.zeros((n_spatial, batch, batch * n_spatial), np.float32)
    for s in range(n_spatial):
        for n in range(batch):
            rsel[s, n, n * n_spatial + s] = 1.0
    return jnp.asarray(rsel)


# ---------------------------------------------------------------------------
# Parameters (PyTorch layouts) + one-time packing into kernel operands
# ---------------------------------------------------------------------------
def make_params(key, image_size=16, n_chan=4, n_hidden=8):
    assert image_size % 16 == 0
    keys = jax.random.split(key, 8)
    params = {}
    params["w1"] = 0.05 * jax.random.normal(keys[0], (n_hidden, n_chan, 4, 4), jnp.float32)
    convs = []
    cur_size, hid, ki = image_size // 2, n_hidden, 1
    while cur_size > 4:
        w = 0.05 * jax.random.normal(keys[ki], (hid * 2, hid, 4, 4), jnp.float32)
        g = jnp.ones((hid * 2,), jnp.float32)
        b = jnp.zeros((hid * 2,), jnp.float32)
        convs.append((w, g, b))
        hid *= 2
        cur_size //= 2
        ki += 1
    params["convs"] = convs
    fc_in = hid * 4 * 4
    fc_out = 512
    params["fc1_w"] = 0.05 * jax.random.normal(keys[5], (fc_out, fc_in), jnp.float32)
    params["fc1_b"] = 0.01 * jax.random.normal(keys[6], (fc_out,), jnp.float32)
    params["bn1_g"] = jnp.ones((fc_out,), jnp.float32)
    params["bn1_b"] = jnp.zeros((fc_out,), jnp.float32)
    params["fc2_w"] = 0.05 * jax.random.normal(keys[7], (1, fc_out), jnp.float32)
    params["fc2_b"] = jnp.zeros((1,), jnp.float32)
    return params


def pack_params(params, *, image_size, batch):
    """Precompute all kernel operands once (pre-transposed weights, selectors)."""
    assert image_size == 16, "fused kernel is specialized to image_size=16"
    # TODO(synk): image_size > 16 adds more conv stages; each would need one more
    # fused selector/tap-matmul stage of the same pattern (not implemented here).
    k, s, p = 4, 2, 1
    w1 = params["w1"]                                    # (H1, Cin, 4, 4)
    h1 = w1.shape[0]
    (w2, g2, b2), = params["convs"]                      # exactly one BN conv at 16
    cout2 = w2.shape[0]
    h_mid = image_size // 2                              # 8
    n_spatial = (h_mid // 2) * (h_mid // 2)              # 16
    fc_out = params["fc1_w"].shape[0]

    return {
        "w1mat": w1.reshape(h1, -1).T,                                       # (Cin*k*k, H1)
        "sel2": _conv_tap_selectors(batch, h_mid, h_mid, k, s, p),           # (16, N*16, N*64)
        "w2taps": jnp.transpose(w2, (2, 3, 1, 0)).reshape(k * k, h1, cout2), # (16, H1, 2*H1)
        "bn2_g": g2.reshape(1, -1),
        "bn2_b": b2.reshape(1, -1),
        "rowsel": _row_selectors(batch, n_spatial),                          # (16, N, N*16)
        "w1r": jnp.transpose(params["fc1_w"].reshape(fc_out, cout2, n_spatial),
                             (2, 1, 0)),                                     # (16, 16, 512)
        "fc1_b": params["fc1_b"].reshape(1, -1),
        "bn1_g": params["bn1_g"].reshape(1, -1),
        "bn1_b": params["bn1_b"].reshape(1, -1),
        "fc2_w": params["fc2_w"].reshape(1, -1),
        "fc2_b": params["fc2_b"].reshape(1, 1),
    }


# ---------------------------------------------------------------------------
# Forward
# ---------------------------------------------------------------------------
def _fused_call(packed, patches, batch):
    fc_out = packed["w1r"].shape[2]
    vspec = pl.BlockSpec(memory_space=pltpu.MemorySpace.VMEM)
    args = (patches, packed["w1mat"], packed["sel2"], packed["w2taps"],
            packed["bn2_g"], packed["bn2_b"], packed["rowsel"], packed["w1r"],
            packed["fc1_b"], packed["bn1_g"], packed["bn1_b"],
            packed["fc2_w"], packed["fc2_b"])
    lth, out_pad = pl.pallas_call(
        _disc_fused_kernel,
        out_shape=(jax.ShapeDtypeStruct((batch, fc_out), jnp.float32),
                   jax.ShapeDtypeStruct((batch, 128), jnp.float32)),
        in_specs=[vspec] * len(args),
        out_specs=(vspec, vspec),
    )(*args)
    return out_pad[:, :1], lth


@jax.jit
def discriminator_forward(packed, x):
    # x: (N, C, H, W), NCHW like PyTorch. Only the raw-input im2col (pure data
    # movement on a 4 KiB tensor) happens outside the fused kernel, under jit.
    patches, _ = im2col(x, k=4, s=2, p=1)
    out, lth = _fused_call(packed, patches, x.shape[0])
    return out, lth


# ---------------------------------------------------------------------------
# Pure-JAX reference (for a runtime correctness cross-check)
# ---------------------------------------------------------------------------
def reference_forward(params, x):
    hi = jax.lax.Precision.HIGHEST
    y = jax.lax.conv_general_dilated(
        x, params["w1"], window_strides=(2, 2), padding=((1, 1), (1, 1)),
        dimension_numbers=("NCHW", "OIHW", "NCHW"), precision=hi)
    y = jnp.where(y >= 0, y, NEG_SLOPE * y)
    for (w, g, b) in params["convs"]:
        y = jax.lax.conv_general_dilated(
            y, w, window_strides=(2, 2), padding=((1, 1), (1, 1)),
            dimension_numbers=("NCHW", "OIHW", "NCHW"), precision=hi)
        m = jnp.mean(y, axis=(0, 2, 3), keepdims=True)
        v = jnp.mean((y - m) ** 2, axis=(0, 2, 3), keepdims=True)
        y = (y - m) * jax.lax.rsqrt(v + BN_EPS)
        y = y * g.reshape(1, -1, 1, 1) + b.reshape(1, -1, 1, 1)
        y = jnp.where(y >= 0, y, NEG_SLOPE * y)
    flat = y.reshape(y.shape[0], -1)
    z = jnp.dot(flat, params["fc1_w"].T, precision=hi) + params["fc1_b"]
    m = jnp.mean(z, axis=0, keepdims=True)
    v = jnp.mean((z - m) ** 2, axis=0, keepdims=True)
    lth = (z - m) * jax.lax.rsqrt(v + BN_EPS) * params["bn1_g"] + params["bn1_b"]
    lth = jnp.where(lth >= 0, lth, NEG_SLOPE * lth)
    logit = jnp.dot(lth, params["fc2_w"].T, precision=hi) + params["fc2_b"]
    return jax.nn.sigmoid(logit).reshape(-1, 1), lth


if __name__ == "__main__":
    key = jax.random.PRNGKey(0)
    pkey, xkey = jax.random.split(key)

    image_size, n_chan, n_hidden, batch = 16, 4, 8, 2
    params = make_params(pkey, image_size, n_chan, n_hidden)
    packed = pack_params(params, image_size=image_size, batch=batch)
    x = jax.random.normal(xkey, (batch, n_chan, image_size, image_size), jnp.float32)

    out, lth = discriminator_forward(packed, x)
    out = jax.block_until_ready(out)
    lth = jax.block_until_ready(lth)

    assert out.shape == (batch, 1), out.shape
    assert lth.shape == (batch, 512), lth.shape
    assert bool(jnp.all(jnp.isfinite(out))) and bool(jnp.all(jnp.isfinite(lth)))
    assert bool(jnp.all((out >= 0.0) & (out <= 1.0)))

    # Cross-check against a plain-XLA reference of the same forward pass.
    out_ref, lth_ref = reference_forward(params, x)
    err_out = float(jnp.max(jnp.abs(out - out_ref)))
    err_lth = float(jnp.max(jnp.abs(lth - lth_ref)))
    assert err_out < 5e-2 and err_lth < 1e-1, (err_out, err_lth)

    print("KERNEL_OK")
</pallas_src>

<mosaic_0001>
module attributes {stable_mosaic.version = 11 : i64} {
  func.func @_disc_fused_kernel(%arg0: memref<128x64xf32, #tpu.memory_space<vmem>>, %arg1: memref<64x8xf32, #tpu.memory_space<vmem>>, %arg2: memref<16x32x128xf32, #tpu.memory_space<vmem>>, %arg3: memref<16x8x16xf32, #tpu.memory_space<vmem>>, %arg4: memref<1x16xf32, #tpu.memory_space<vmem>>, %arg5: memref<1x16xf32, #tpu.memory_space<vmem>>, %arg6: memref<16x2x32xf32, #tpu.memory_space<vmem>>, %arg7: memref<16x16x512xf32, #tpu.memory_space<vmem>>, %arg8: memref<1x512xf32, #tpu.memory_space<vmem>>, %arg9: memref<1x512xf32, #tpu.memory_space<vmem>>, %arg10: memref<1x512xf32, #tpu.memory_space<vmem>>, %arg11: memref<1x512xf32, #tpu.memory_space<vmem>>, %arg12: memref<1x1xf32, #tpu.memory_space<vmem>>, %arg13: memref<2x512xf32, #tpu.memory_space<vmem>>, %arg14: memref<2x128xf32, #tpu.memory_space<vmem>>) attributes {dimension_semantics = [], scalar_prefetch = 0 : i64, scratch_operands = 0 : i64, tpu.core_type = #tpu.core_type<tc>} {
    %c0 = arith.constant 0 : index
    %c0_0 = arith.constant 0 : index
    %0 = vector.load %arg0[%c0, %c0_0] : memref<128x64xf32, #tpu.memory_space<vmem>>, vector<128x64xf32>
    %c0_1 = arith.constant 0 : index
    %c0_2 = arith.constant 0 : index
    %1 = vector.load %arg1[%c0_1, %c0_2] : memref<64x8xf32, #tpu.memory_space<vmem>>, vector<64x8xf32>
    %cst = arith.constant dense<0.000000e+00> : vector<128x8xf32>
    %2 = tpu.matmul %0, %1, %cst {dimension_numbers = #tpu.dot_dimension_numbers<[1], [0], [0], [1], [0, 0, 1, 1], [], []>} : vector<128x64xf32>, vector<64x8xf32>, vector<128x8xf32> -> vector<128x8xf32>
    %cst_3 = arith.constant 0.000000e+00 : f32
    %3 = vector.broadcast %cst_3 : f32 to vector<128x8xf32>
    %4 = arith.cmpf oge, %2, %3 : vector<128x8xf32>
    %cst_4 = arith.constant 2.000000e-01 : f32
    %5 = vector.broadcast %cst_4 : f32 to vector<128x8xf32>
    %6 = arith.mulf %5, %2 : vector<128x8xf32>
    %7 = arith.select %4, %2, %6 : vector<128x8xi1>, vector<128x8xf32>
    %cst_5 = arith.constant 0.000000e+00 : f32
    %8 = vector.broadcast %cst_5 : f32 to vector<32x16xf32>
    %c0_6 = arith.constant 0 : index
    %c0_7 = arith.constant 0 : index
    %c0_8 = arith.constant 0 : index
    %9 = vector.load %arg2[%c0_6, %c0_7, %c0_8] : memref<16x32x128xf32, #tpu.memory_space<vmem>>, vector<1x32x128xf32>
    %10 = vector.shape_cast %9 : vector<1x32x128xf32> to vector<32x128xf32>
    %cst_9 = arith.constant dense<0.000000e+00> : vector<32x8xf32>
    %11 = tpu.matmul %10, %7, %cst_9 {dimension_numbers = #tpu.dot_dimension_numbers<[1], [0], [0], [1], [0, 0, 1, 1], [], []>} : vector<32x128xf32>, vector<128x8xf32>, vector<32x8xf32> -> vector<32x8xf32>
    %c0_10 = arith.constant 0 : index
    %c0_11 = arith.constant 0 : index
    %c0_12 = arith.constant 0 : index
    %12 = vector.load %arg3[%c0_10, %c0_11, %c0_12] : memref<16x8x16xf32, #tpu.memory_space<vmem>>, vector<1x8x16xf32>
    %13 = vector.shape_cast %12 : vector<1x8x16xf32> to vector<8x16xf32>
    %cst_13 = arith.constant dense<0.000000e+00> : vector<32x16xf32>
    %14 = tpu.matmul %11, %13, %cst_13 {dimension_numbers = #tpu.dot_dimension_numbers<[1], [0], [0], [1], [0, 0, 1, 1], [], []>} : vector<32x8xf32>, vector<8x16xf32>, vector<32x16xf32> -> vector<32x16xf32>
    %15 = arith.addf %8, %14 : vector<32x16xf32>
    %c1 = arith.constant 1 : index
    %c0_14 = arith.constant 0 : index
    %c0_15 = arith.constant 0 : index
    %16 = vector.load %arg2[%c1, %c0_14, %c0_15] : memref<16x32x128xf32, #tpu.memory_space<vmem>>, vector<1x32x128xf32>
    %17 = vector.shape_cast %16 : vector<1x32x128xf32> to vector<32x128xf32>
    %cst_16 = arith.constant dense<0.000000e+00> : vector<32x8xf32>
    %18 = tpu.matmul %17, %7, %cst_16 {dimension_numbers = #tpu.dot_dimension_numbers<[1], [0], [0], [1], [0, 0, 1, 1], [], []>} : vector<32x128xf32>, vector<128x8xf32>, vector<32x8xf32> -> vector<32x8xf32>
    %c1_17 = arith.constant 1 : index
    %c0_18 = arith.constant 0 : index
    %c0_19 = arith.constant 0 : index
    %19 = vector.load %arg3[%c1_17, %c0_18, %c0_19] : memref<16x8x16xf32, #tpu.memory_space<vmem>>, vector<1x8x16xf32>
    %20 = vector.shape_cast %19 : vector<1x8x16xf32> to vector<8x16xf32>
    %cst_20 = arith.constant dense<0.000000e+00> : vector<32x16xf32>
    %21 = tpu.matmul %18, %20, %cst_20 {dimension_numbers = #tpu.dot_dimension_numbers<[1], [0], [0], [1], [0, 0, 1, 1], [], []>} : vector<32x8xf32>, vector<8x16xf32>, vector<32x16xf32> -> vector<32x16xf32>
    %22 = arith.addf %15, %21 : vector<32x16xf32>
    %c2 = arith.constant 2 : index
    %c0_21 = arith.constant 0 : index
    %c0_22 = arith.constant 0 : index
    %23 = vector.load %arg2[%c2, %c0_21, %c0_22] : memref<16x32x128xf32, #tpu.memory_space<vmem>>, vector<1x32x128xf32>
    %24 = vector.shape_cast %23 : vector<1x32x128xf32> to vector<32x128xf32>
    %cst_23 = arith.constant dense<0.000000e+00> : vector<32x8xf32>
    %25 = tpu.matmul %24, %7, %cst_23 {dimension_numbers = #tpu.dot_dimension_numbers<[1], [0], [0], [1], [0, 0, 1, 1], [], []>} : vector<32x128xf32>, vector<128x8xf32>, vector<32x8xf32> -> vector<32x8xf32>
    %c2_24 = arith.constant 2 : index
    %c0_25 = arith.constant 0 : index
    %c0_26 = arith.constant 0 : index
    %26 = vector.load %arg3[%c2_24, %c0_25, %c0_26] : memref<16x8x16xf32, #tpu.memory_space<vmem>>, vector<1x8x16xf32>
    %27 = vector.shape_cast %26 : vector<1x8x16xf32> to vector<8x16xf32>
    %cst_27 = arith.constant dense<0.000000e+00> : vector<32x16xf32>
    %28 = tpu.matmul %25, %27, %cst_27 {dimension_numbers = #tpu.dot_dimension_numbers<[1], [0], [0], [1], [0, 0, 1, 1], [], []>} : vector<32x8xf32>, vector<8x16xf32>, vector<32x16xf32> -> vector<32x16xf32>
    %29 = arith.addf %22, %28 : vector<32x16xf32>
    %c3 = arith.constant 3 : index
    %c0_28 = arith.constant 0 : index
    %c0_29 = arith.constant 0 : index
    %30 = vector.load %arg2[%c3, %c0_28, %c0_29] : memref<16x32x128xf32, #tpu.memory_space<vmem>>, vector<1x32x128xf32>
    %31 = vector.shape_cast %30 : vector<1x32x128xf32> to vector<32x128xf32>
    %cst_30 = arith.constant dense<0.000000e+00> : vector<32x8xf32>
    %32 = tpu.matmul %31, %7, %cst_30 {dimension_numbers = #tpu.dot_dimension_numbers<[1], [0], [0], [1], [0, 0, 1, 1], [], []>} : vector<32x128xf32>, vector<128x8xf32>, vector<32x8xf32> -> vector<32x8xf32>
    %c3_31 = arith.constant 3 : index
    %c0_32 = arith.constant 0 : index
    %c0_33 = arith.constant 0 : index
    %33 = vector.load %arg3[%c3_31, %c0_32, %c0_33] : memref<16x8x16xf32, #tpu.memory_space<vmem>>, vector<1x8x16xf32>
    %34 = vector.shape_cast %33 : vector<1x8x16xf32> to vector<8x16xf32>
    %cst_34 = arith.constant dense<0.000000e+00> : vector<32x16xf32>
    %35 = tpu.matmul %32, %34, %cst_34 {dimension_numbers = #tpu.dot_dimension_numbers<[1], [0], [0], [1], [0, 0, 1, 1], [], []>} : vector<32x8xf32>, vector<8x16xf32>, vector<32x16xf32> -> vector<32x16xf32>
    %36 = arith.addf %29, %35 : vector<32x16xf32>
    %c4 = arith.constant 4 : index
    %c0_35 = arith.constant 0 : index
    %c0_36 = arith.constant 0 : index
    %37 = vector.load %arg2[%c4, %c0_35, %c0_36] : memref<16x32x128xf32, #tpu.memory_space<vmem>>, vector<1x32x128xf32>
    %38 = vector.shape_cast %37 : vector<1x32x128xf32> to vector<32x128xf32>
    %cst_37 = arith.constant dense<0.000000e+00> : vector<32x8xf32>
    %39 = tpu.matmul %38, %7, %cst_37 {dimension_numbers = #tpu.dot_dimension_numbers<[1], [0], [0], [1], [0, 0, 1, 1], [], []>} : vector<32x128xf32>, vector<128x8xf32>, vector<32x8xf32> -> vector<32x8xf32>
    %c4_38 = arith.constant 4 : index
    %c0_39 = arith.constant 0 : index
    %c0_40 = arith.constant 0 : index
    %40 = vector.load %arg3[%c4_38, %c0_39, %c0_40] : memref<16x8x16xf32, #tpu.memory_space<vmem>>, vector<1x8x16xf32>
    %41 = vector.shape_cast %40 : vector<1x8x16xf32> to vector<8x16xf32>
    %cst_41 = arith.constant dense<0.000000e+00> : vector<32x16xf32>
    %42 = tpu.matmul %39, %41, %cst_41 {dimension_numbers = #tpu.dot_dimension_numbers<[1], [0], [0], [1], [0, 0, 1, 1], [], []>} : vector<32x8xf32>, vector<8x16xf32>, vector<32x16xf32> -> vector<32x16xf32>
    %43 = arith.addf %36, %42 : vector<32x16xf32>
    %c5 = arith.constant 5 : index
    %c0_42 = arith.constant 0 : index
    %c0_43 = arith.constant 0 : index
    %44 = vector.load %arg2[%c5, %c0_42, %c0_43] : memref<16x32x128xf32, #tpu.memory_space<vmem>>, vector<1x32x128xf32>
    %45 = vector.shape_cast %44 : vector<1x32x128xf32> to vector<32x128xf32>
    %cst_44 = arith.constant dense<0.000000e+00> : vector<32x8xf32>
    %46 = tpu.matmul %45, %7, %cst_44 {dimension_numbers = #tpu.dot_dimension_numbers<[1], [0], [0], [1], [0, 0, 1, 1], [], []>} : vector<32x128xf32>, vector<128x8xf32>, vector<32x8xf32> -> vector<32x8xf32>
    %c5_45 = arith.constant 5 : index
    %c0_46 = arith.constant 0 : index
    %c0_47 = arith.constant 0 : index
    %47 = vector.load %arg3[%c5_45, %c0_46, %c0_47] : memref<16x8x16xf32, #tpu.memory_space<vmem>>, vector<1x8x16xf32>
    %48 = vector.shape_cast %47 : vector<1x8x16xf32> to vector<8x16xf32>
    %cst_48 = arith.constant dense<0.000000e+00> : vector<32x16xf32>
    %49 = tpu.matmul %46, %48, %cst_48 {dimension_numbers = #tpu.dot_dimension_numbers<[1], [0], [0], [1], [0, 0, 1, 1], [], []>} : vector<32x8xf32>, vector<8x16xf32>, vector<32x16xf32> -> vector<32x16xf32>
    %50 = arith.addf %43, %49 : vector<32x16xf32>
    %c6 = arith.constant 6 : index
    %c0_49 = arith.constant 0 : index
    %c0_50 = arith.constant 0 : index
    %51 = vector.load %arg2[%c6, %c0_49, %c0_50] : memref<16x32x128xf32, #tpu.memory_space<vmem>>, vector<1x32x128xf32>
    %52 = vector.shape_cast %51 : vector<1x32x128xf32> to vector<32x128xf32>
    %cst_51 = arith.constant dense<0.000000e+00> : vector<32x8xf32>
    %53 = tpu.matmul %52, %7, %cst_51 {dimension_numbers = #tpu.dot_dimension_numbers<[1], [0], [0], [1], [0, 0, 1, 1], [], []>} : vector<32x128xf32>, vector<128x8xf32>, vector<32x8xf32> -> vector<32x8xf32>
    %c6_52 = arith.constant 6 : index
    %c0_53 = arith.constant 0 : index
    %c0_54 = arith.constant 0 : index
    %54 = vector.load %arg3[%c6_52, %c0_53, %c0_54] : memref<16x8x16xf32, #tpu.memory_space<vmem>>, vector<1x8x16xf32>
    %55 = vector.shape_cast %54 : vector<1x8x16xf32> to vector<8x16xf32>
    %cst_55 = arith.constant dense<0.000000e+00> : vector<32x16xf32>
    %56 = tpu.matmul %53, %55, %cst_55 {dimension_numbers = #tpu.dot_dimension_numbers<[1], [0], [0], [1], [0, 0, 1, 1], [], []>} : vector<32x8xf32>, vector<8x16xf32>, vector<32x16xf32> -> vector<32x16xf32>
    %57 = arith.addf %50, %56 : vector<32x16xf32>
    %c7 = arith.constant 7 : index
    %c0_56 = arith.constant 0 : index
    %c0_57 = arith.constant 0 : index
    %58 = vector.load %arg2[%c7, %c0_56, %c0_57] : memref<16x32x128xf32, #tpu.memory_space<vmem>>, vector<1x32x128xf32>
    %59 = vector.shape_cast %58 : vector<1x32x128xf32> to vector<32x128xf32>
    %cst_58 = arith.constant dense<0.000000e+00> : vector<32x8xf32>
    %60 = tpu.matmul %59, %7, %cst_58 {dimension_numbers = #tpu.dot_dimension_numbers<[1], [0], [0], [1], [0, 0, 1, 1], [], []>} : vector<32x128xf32>, vector<128x8xf32>, vector<32x8xf32> -> vector<32x8xf32>
    %c7_59 = arith.constant 7 : index
    %c0_60 = arith.constant 0 : index
    %c0_61 = arith.constant 0 : index
    %61 = vector.load %arg3[%c7_59, %c0_60, %c0_61] : memref<16x8x16xf32, #tpu.memory_space<vmem>>, vector<1x8x16xf32>
    %62 = vector.shape_cast %61 : vector<1x8x16xf32> to vector<8x16xf32>
    %cst_62 = arith.constant dense<0.000000e+00> : vector<32x16xf32>
    %63 = tpu.matmul %60, %62, %cst_62 {dimension_numbers = #tpu.dot_dimension_numbers<[1], [0], [0], [1], [0, 0, 1, 1], [], []>} : vector<32x8xf32>, vector<8x16xf32>, vector<32x16xf32> -> vector<32x16xf32>
    %64 = arith.addf %57, %63 : vector<32x16xf32>
    %c8 = arith.constant 8 : index
    %c0_63 = arith.constant 0 : index
    %c0_64 = arith.constant 0 : index
    %65 = vector.load %arg2[%c8, %c0_63, %c0_64] : memref<16x32x128xf32, #tpu.memory_space<vmem>>, vector<1x32x128xf32>
    %66 = vector.shape_cast %65 : vector<1x32x128xf32> to vector<32x128xf32>
    %cst_65 = arith.constant dense<0.000000e+00> : vector<32x8xf32>
    %67 = tpu.matmul %66, %7, %cst_65 {dimension_numbers = #tpu.dot_dimension_numbers<[1], [0], [0], [1], [0, 0, 1, 1], [], []>} : vector<32x128xf32>, vector<128x8xf32>, vector<32x8xf32> -> vector<32x8xf32>
    %c8_66 = arith.constant 8 : index
    %c0_67 = arith.constant 0 : index
    %c0_68 = arith.constant 0 : index
    %68 = vector.load %arg3[%c8_66, %c0_67, %c0_68] : memref<16x8x16xf32, #tpu.memory_space<vmem>>, vector<1x8x16xf32>
    %69 = vector.shape_cast %68 : vector<1x8x16xf32> to vector<8x16xf32>
    %cst_69 = arith.constant dense<0.000000e+00> : vector<32x16xf32>
    %70 = tpu.matmul %67, %69, %cst_69 {dimension_numbers = #tpu.dot_dimension_numbers<[1], [0], [0], [1], [0, 0, 1, 1], [], []>} : vector<32x8xf32>, vector<8x16xf32>, vector<32x16xf32> -> vector<32x16xf32>
    %71 = arith.addf %64, %70 : vector<32x16xf32>
    %c9 = arith.constant 9 : index
    %c0_70 = arith.constant 0 : index
    %c0_71 = arith.constant 0 : index
    %72 = vector.load %arg2[%c9, %c0_70, %c0_71] : memref<16x32x128xf32, #tpu.memory_space<vmem>>, vector<1x32x128xf32>
    %73 = vector.shape_cast %72 : vector<1x32x128xf32> to vector<32x128xf32>
    %cst_72 = arith.constant dense<0.000000e+00> : vector<32x8xf32>
    %74 = tpu.matmul %73, %7, %cst_72 {dimension_numbers = #tpu.dot_dimension_numbers<[1], [0], [0], [1], [0, 0, 1, 1], [], []>} : vector<32x128xf32>, vector<128x8xf32>, vector<32x8xf32> -> vector<32x8xf32>
    %c9_73 = arith.constant 9 : index
    %c0_74 = arith.constant 0 : index
    %c0_75 = arith.constant 0 : index
    %75 = vector.load %arg3[%c9_73, %c0_74, %c0_75] : memref<16x8x16xf32, #tpu.memory_space<vmem>>, vector<1x8x16xf32>
    %76 = vector.shape_cast %75 : vector<1x8x16xf32> to vector<8x16xf32>
    %cst_76 = arith.constant dense<0.000000e+00> : vector<32x16xf32>
    %77 = tpu.matmul %74, %76, %cst_76 {dimension_numbers = #tpu.dot_dimension_numbers<[1], [0], [0], [1], [0, 0, 1, 1], [], []>} : vector<32x8xf32>, vector<8x16xf32>, vector<32x16xf32> -> vector<32x16xf32>
    %78 = arith.addf %71, %77 : vector<32x16xf32>
    %c10 = arith.constant 10 : index
    %c0_77 = arith.constant 0 : index
    %c0_78 = arith.constant 0 : index
    %79 = vector.load %arg2[%c10, %c0_77, %c0_78] : memref<16x32x128xf32, #tpu.memory_space<vmem>>, vector<1x32x128xf32>
    %80 = vector.shape_cast %79 : vector<1x32x128xf32> to vector<32x128xf32>
    %cst_79 = arith.constant dense<0.000000e+00> : vector<32x8xf32>
    %81 = tpu.matmul %80, %7, %cst_79 {dimension_numbers = #tpu.dot_dimension_numbers<[1], [0], [0], [1], [0, 0, 1, 1], [], []>} : vector<32x128xf32>, vector<128x8xf32>, vector<32x8xf32> -> vector<32x8xf32>
    %c10_80 = arith.constant 10 : index
    %c0_81 = arith.constant 0 : index
    %c0_82 = arith.constant 0 : index
    %82 = vector.load %arg3[%c10_80, %c0_81, %c0_82] : memref<16x8x16xf32, #tpu.memory_space<vmem>>, vector<1x8x16xf32>
    %83 = vector.shape_cast %82 : vector<1x8x16xf32> to vector<8x16xf32>
    %cst_83 = arith.constant dense<0.000000e+00> : vector<32x16xf32>
    %84 = tpu.matmul %81, %83, %cst_83 {dimension_numbers = #tpu.dot_dimension_numbers<[1], [0], [0], [1], [0, 0, 1, 1], [], []>} : vector<32x8xf32>, vector<8x16xf32>, vector<32x16xf32> -> vector<32x16xf32>
    %85 = arith.addf %78, %84 : vector<32x16xf32>
    %c11 = arith.constant 11 : index
    %c0_84 = arith.constant 0 : index
    %c0_85 = arith.constant 0 : index
    %86 = vector.load %arg2[%c11, %c0_84, %c0_85] : memref<16x32x128xf32, #tpu.memory_space<vmem>>, vector<1x32x128xf32>
    %87 = vector.shape_cast %86 : vector<1x32x128xf32> to vector<32x128xf32>
    %cst_86 = arith.constant dense<0.000000e+00> : vector<32x8xf32>
    %88 = tpu.matmul %87, %7, %cst_86 {dimension_numbers = #tpu.dot_dimension_numbers<[1], [0], [0], [1], [0, 0, 1, 1], [], []>} : vector<32x128xf32>, vector<128x8xf32>, vector<32x8xf32> -> vector<32x8xf32>
    %c11_87 = arith.constant 11 : index
    %c0_88 = arith.constant 0 : index
    %c0_89 = arith.constant 0 : index
    %89 = vector.load %arg3[%c11_87, %c0_88, %c0_89] : memref<16x8x16xf32, #tpu.memory_space<vmem>>, vector<1x8x16xf32>
    %90 = vector.shape_cast %89 : vector<1x8x16xf32> to vector<8x16xf32>
    %cst_90 = arith.constant dense<0.000000e+00> : vector<32x16xf32>
    %91 = tpu.matmul %88, %90, %cst_90 {dimension_numbers = #tpu.dot_dimension_numbers<[1], [0], [0], [1], [0, 0, 1, 1], [], []>} : vector<32x8xf32>, vector<8x16xf32>, vector<32x16xf32> -> vector<32x16xf32>
    %92 = arith.addf %85, %91 : vector<32x16xf32>
    %c12 = arith.constant 12 : index
    %c0_91 = arith.constant 0 : index
    %c0_92 = arith.constant 0 : index
    %93 = vector.load %arg2[%c12, %c0_91, %c0_92] : memref<16x32x128xf32, #tpu.memory_space<vmem>>, vector<1x32x128xf32>
    %94 = vector.shape_cast %93 : vector<1x32x128xf32> to vector<32x128xf32>
    %cst_93 = arith.constant dense<0.000000e+00> : vector<32x8xf32>
    %95 = tpu.matmul %94, %7, %cst_93 {dimension_numbers = #tpu.dot_dimension_numbers<[1], [0], [0], [1], [0, 0, 1, 1], [], []>} : vector<32x128xf32>, vector<128x8xf32>, vector<32x8xf32> -> vector<32x8xf32>
    %c12_94 = arith.constant 12 : index
    %c0_95 = arith.constant 0 : index
    %c0_96 = arith.constant 0 : index
    %96 = vector.load %arg3[%c12_94, %c0_95, %c0_96] : memref<16x8x16xf32, #tpu.memory_space<vmem>>, vector<1x8x16xf32>
    %97 = vector.shape_cast %96 : vector<1x8x16xf32> to vector<8x16xf32>
    %cst_97 = arith.constant dense<0.000000e+00> : vector<32x16xf32>
    %98 = tpu.matmul %95, %97, %cst_97 {dimension_numbers = #tpu.dot_dimension_numbers<[1], [0], [0], [1], [0, 0, 1, 1], [], []>} : vector<32x8xf32>, vector<8x16xf32>, vector<32x16xf32> -> vector<32x16xf32>
    %99 = arith.addf %92, %98 : vector<32x16xf32>
    %c13 = arith.constant 13 : index
    %c0_98 = arith.constant 0 : index
    %c0_99 = arith.constant 0 : index
    %100 = vector.load %arg2[%c13, %c0_98, %c0_99] : memref<16x32x128xf32, #tpu.memory_space<vmem>>, vector<1x32x128xf32>
    %101 = vector.shape_cast %100 : vector<1x32x128xf32> to vector<32x128xf32>
    %cst_100 = arith.constant dense<0.000000e+00> : vector<32x8xf32>
    %102 = tpu.matmul %101, %7, %cst_100 {dimension_numbers = #tpu.dot_dimension_numbers<[1], [0], [0], [1], [0, 0, 1, 1], [], []>} : vector<32x128xf32>, vector<128x8xf32>, vector<32x8xf32> -> vector<32x8xf32>
    %c13_101 = arith.constant 13 : index
    %c0_102 = arith.constant 0 : index
    %c0_103 = arith.constant 0 : index
    %103 = vector.load %arg3[%c13_101, %c0_102, %c0_103] : memref<16x8x16xf32, #tpu.memory_space<vmem>>, vector<1x8x16xf32>
    %104 = vector.shape_cast %103 : vector<1x8x16xf32> to vector<8x16xf32>
    %cst_104 = arith.constant dense<0.000000e+00> : vector<32x16xf32>
    %105 = tpu.matmul %102, %104, %cst_104 {dimension_numbers = #tpu.dot_dimension_numbers<[1], [0], [0], [1], [0, 0, 1, 1], [], []>} : vector<32x8xf32>, vector<8x16xf32>, vector<32x16xf32> -> vector<32x16xf32>
    %106 = arith.addf %99, %105 : vector<32x16xf32>
    %c14 = arith.constant 14 : index
    %c0_105 = arith.constant 0 : index
    %c0_106 = arith.constant 0 : index
    %107 = vector.load %arg2[%c14, %c0_105, %c0_106] : memref<16x32x128xf32, #tpu.memory_space<vmem>>, vector<1x32x128xf32>
    %108 = vector.shape_cast %107 : vector<1x32x128xf32> to vector<32x128xf32>
    %cst_107 = arith.constant dense<0.000000e+00> : vector<32x8xf32>
    %109 = tpu.matmul %108, %7, %cst_107 {dimension_numbers = #tpu.dot_dimension_numbers<[1], [0], [0], [1], [0, 0, 1, 1], [], []>} : vector<32x128xf32>, vector<128x8xf32>, vector<32x8xf32> -> vector<32x8xf32>
    %c14_108 = arith.constant 14 : index
    %c0_109 = arith.constant 0 : index
    %c0_110 = arith.constant 0 : index
    %110 = vector.load %arg3[%c14_108, %c0_109, %c0_110] : memref<16x8x16xf32, #tpu.memory_space<vmem>>, vector<1x8x16xf32>
    %111 = vector.shape_cast %110 : vector<1x8x16xf32> to vector<8x16xf32>
    %cst_111 = arith.constant dense<0.000000e+00> : vector<32x16xf32>
    %112 = tpu.matmul %109, %111, %cst_111 {dimension_numbers = #tpu.dot_dimension_numbers<[1], [0], [0], [1], [0, 0, 1, 1], [], []>} : vector<32x8xf32>, vector<8x16xf32>, vector<32x16xf32> -> vector<32x16xf32>
    %113 = arith.addf %106, %112 : vector<32x16xf32>
    %c15 = arith.constant 15 : index
    %c0_112 = arith.constant 0 : index
    %c0_113 = arith.constant 0 : index
    %114 = vector.load %arg2[%c15, %c0_112, %c0_113] : memref<16x32x128xf32, #tpu.memory_space<vmem>>, vector<1x32x128xf32>
    %115 = vector.shape_cast %114 : vector<1x32x128xf32> to vector<32x128xf32>
    %cst_114 = arith.constant dense<0.000000e+00> : vector<32x8xf32>
    %116 = tpu.matmul %115, %7, %cst_114 {dimension_numbers = #tpu.dot_dimension_numbers<[1], [0], [0], [1], [0, 0, 1, 1], [], []>} : vector<32x128xf32>, vector<128x8xf32>, vector<32x8xf32> -> vector<32x8xf32>
    %c15_115 = arith.constant 15 : index
    %c0_116 = arith.constant 0 : index
    %c0_117 = arith.constant 0 : index
    %117 = vector.load %arg3[%c15_115, %c0_116, %c0_117] : memref<16x8x16xf32, #tpu.memory_space<vmem>>, vector<1x8x16xf32>
    %118 = vector.shape_cast %117 : vector<1x8x16xf32> to vector<8x16xf32>
    %cst_118 = arith.constant dense<0.000000e+00> : vector<32x16xf32>
    %119 = tpu.matmul %116, %118, %cst_118 {dimension_numbers = #tpu.dot_dimension_numbers<[1], [0], [0], [1], [0, 0, 1, 1], [], []>} : vector<32x8xf32>, vector<8x16xf32>, vector<32x16xf32> -> vector<32x16xf32>
    %120 = arith.addf %113, %119 : vector<32x16xf32>
    %cst_119 = arith.constant dense<0.000000e+00> : vector<16xf32>
    %121 = vector.multi_reduction <add>, %120, %cst_119 [0] : vector<32x16xf32> to vector<16xf32>
    %122 = vector.shape_cast %121 : vector<16xf32> to vector<1x16xf32>
    %cst_120 = arith.constant 3.200000e+01 : f32
    %123 = vector.broadcast %cst_120 : f32 to vector<1x16xf32>
    %124 = arith.divf %122, %123 : vector<1x16xf32>
    %125 = vector.broadcast %124 : vector<1x16xf32> to vector<32x16xf32>
    %126 = arith.subf %120, %125 : vector<32x16xf32>
    %127 = arith.mulf %126, %126 : vector<32x16xf32>
    %cst_121 = arith.constant dense<0.000000e+00> : vector<16xf32>
    %128 = vector.multi_reduction <add>, %127, %cst_121 [0] : vector<32x16xf32> to vector<16xf32>
    %129 = vector.shape_cast %128 : vector<16xf32> to vector<1x16xf32>
    %cst_122 = arith.constant 3.200000e+01 : f32
    %130 = vector.broadcast %cst_122 : f32 to vector<1x16xf32>
    %131 = arith.divf %129, %130 : vector<1x16xf32>
    %c0_123 = arith.constant 0 : index
    %c0_124 = arith.constant 0 : index
    %132 = vector.load %arg4[%c0_123, %c0_124] : memref<1x16xf32, #tpu.memory_space<vmem>>, vector<1x16xf32>
    %cst_125 = arith.constant 9.99999974E-6 : f32
    %133 = vector.broadcast %cst_125 : f32 to vector<1x16xf32>
    %134 = arith.addf %131, %133 : vector<1x16xf32>
    %135 = math.rsqrt %134 : vector<1x16xf32>
    %136 = arith.mulf %132, %135 : vector<1x16xf32>
    %137 = vector.broadcast %136 : vector<1x16xf32> to vector<32x16xf32>
    %138 = arith.mulf %126, %137 : vector<32x16xf32>
    %c0_126 = arith.constant 0 : index
    %c0_127 = arith.constant 0 : index
    %139 = vector.load %arg5[%c0_126, %c0_127] : memref<1x16xf32, #tpu.memory_space<vmem>>, vector<1x16xf32>
    %140 = vector.broadcast %139 : vector<1x16xf32> to vector<32x16xf32>
    %141 = arith.addf %138, %140 : vector<32x16xf32>
    %cst_128 = arith.constant 0.000000e+00 : f32
    %142 = vector.broadcast %cst_128 : f32 to vector<32x16xf32>
    %143 = arith.cmpf oge, %141, %142 : vector<32x16xf32>
    %cst_129 = arith.constant 2.000000e-01 : f32
    %144 = vector.broadcast %cst_129 : f32 to vector<32x16xf32>
    %145 = arith.mulf %144, %141 : vector<32x16xf32>
    %146 = arith.select %143, %141, %145 : vector<32x16xi1>, vector<32x16xf32>
    %cst_130 = arith.constant 0.000000e+00 : f32
    %147 = vector.broadcast %cst_130 : f32 to vector<2x512xf32>
    %c0_131 = arith.constant 0 : index
    %c0_132 = arith.constant 0 : index
    %c0_133 = arith.constant 0 : index
    %148 = vector.load %arg6[%c0_131, %c0_132, %c0_133] : memref<16x2x32xf32, #tpu.memory_space<vmem>>, vector<1x2x32xf32>
    %149 = vector.shape_cast %148 : vector<1x2x32xf32> to vector<2x32xf32>
    %cst_134 = arith.constant dense<0.000000e+00> : vector<2x16xf32>
    %150 = tpu.matmul %149, %146, %cst_134 {dimension_numbers = #tpu.dot_dimension_numbers<[1], [0], [0], [1], [0, 0, 1, 1], [], []>} : vector<2x32xf32>, vector<32x16xf32>, vector<2x16xf32> -> vector<2x16xf32>
    %c0_135 = arith.constant 0 : index
    %c0_136 = arith.constant 0 : index
    %c0_137 = arith.constant 0 : index
    %151 = vector.load %arg7[%c0_135, %c0_136, %c0_137] : memref<16x16x512xf32, #tpu.memory_space<vmem>>, vector<1x16x512xf32>
    %152 = vector.shape_cast %151 : vector<1x16x512xf32> to vector<16x512xf32>
    %cst_138 = arith.constant dense<0.000000e+00> : vector<2x512xf32>
    %153 = tpu.matmul %150, %152, %cst_138 {dimension_numbers = #tpu.dot_dimension_numbers<[1], [0], [0], [1], [0, 0, 1, 1], [], []>} : vector<2x16xf32>, vector<16x512xf32>, vector<2x512xf32> -> vector<2x512xf32>
    %154 = arith.addf %147, %153 : vector<2x512xf32>
    %c1_139 = arith.constant 1 : index
    %c0_140 = arith.constant 0 : index
    %c0_141 = arith.constant 0 : index
    %155 = vector.load %arg6[%c1_139, %c0_140, %c0_141] : memref<16x2x32xf32, #tpu.memory_space<vmem>>, vector<1x2x32xf32>
    %156 = vector.shape_cast %155 : vector<1x2x32xf32> to vector<2x32xf32>
    %cst_142 = arith.constant dense<0.000000e+00> : vector<2x16xf32>
    %157 = tpu.matmul %156, %146, %cst_142 {dimension_numbers = #tpu.dot_dimension_numbers<[1], [0], [0], [1], [0, 0, 1, 1], [], []>} : vector<2x32xf32>, vector<32x16xf32>, vector<2x16xf32> -> vector<2x16xf32>
    %c1_143 = arith.constant 1 : index
    %c0_144 = arith.constant 0 : index
    %c0_145 = arith.constant 0 : index
    %158 = vector.load %arg7[%c1_143, %c0_144, %c0_145] : memref<16x16x512xf32, #tpu.memory_space<vmem>>, vector<1x16x512xf32>
    %159 = vector.shape_cast %158 : vector<1x16x512xf32> to vector<16x512xf32>
    %cst_146 = arith.constant dense<0.000000e+00> : vector<2x512xf32>
    %160 = tpu.matmul %157, %159, %cst_146 {dimension_numbers = #tpu.dot_dimension_numbers<[1], [0], [0], [1], [0, 0, 1, 1], [], []>} : vector<2x16xf32>, vector<16x512xf32>, vector<2x512xf32> -> vector<2x512xf32>
    %161 = arith.addf %154, %160 : vector<2x512xf32>
    %c2_147 = arith.constant 2 : index
    %c0_148 = arith.constant 0 : index
    %c0_149 = arith.constant 0 : index
    %162 = vector.load %arg6[%c2_147, %c0_148, %c0_149] : memref<16x2x32xf32, #tpu.memory_space<vmem>>, vector<1x2x32xf32>
    %163 = vector.shape_cast %162 : vector<1x2x32xf32> to vector<2x32xf32>
    %cst_150 = arith.constant dense<0.000000e+00> : vector<2x16xf32>
    %164 = tpu.matmul %163, %146, %cst_150 {dimension_numbers = #tpu.dot_dimension_numbers<[1], [0], [0], [1], [0, 0, 1, 1], [], []>} : vector<2x32xf32>, vector<32x16xf32>, vector<2x16xf32> -> vector<2x16xf32>
    %c2_151 = arith.constant 2 : index
    %c0_152 = arith.constant 0 : index
    %c0_153 = arith.constant 0 : index
    %165 = vector.load %arg7[%c2_151, %c0_152, %c0_153] : memref<16x16x512xf32, #tpu.memory_space<vmem>>, vector<1x16x512xf32>
    %166 = vector.shape_cast %165 : vector<1x16x512xf32> to vector<16x512xf32>
    %cst_154 = arith.constant dense<0.000000e+00> : vector<2x512xf32>
    %167 = tpu.matmul %164, %166, %cst_154 {dimension_numbers = #tpu.dot_dimension_numbers<[1], [0], [0], [1], [0, 0, 1, 1], [], []>} : vector<2x16xf32>, vector<16x512xf32>, vector<2x512xf32> -> vector<2x512xf32>
    %168 = arith.addf %161, %167 : vector<2x512xf32>
    %c3_155 = arith.constant 3 : index
    %c0_156 = arith.constant 0 : index
    %c0_157 = arith.constant 0 : index
    %169 = vector.load %arg6[%c3_155, %c0_156, %c0_157] : memref<16x2x32xf32, #tpu.memory_space<vmem>>, vector<1x2x32xf32>
    %170 = vector.shape_cast %169 : vector<1x2x32xf32> to vector<2x32xf32>
    %cst_158 = arith.constant dense<0.000000e+00> : vector<2x16xf32>
    %171 = tpu.matmul %170, %146, %cst_158 {dimension_numbers = #tpu.dot_dimension_numbers<[1], [0], [0], [1], [0, 0, 1, 1], [], []>} : vector<2x32xf32>, vector<32x16xf32>, vector<2x16xf32> -> vector<2x16xf32>
    %c3_159 = arith.constant 3 : index
    %c0_160 = arith.constant 0 : index
    %c0_161 = arith.constant 0 : index
    %172 = vector.load %arg7[%c3_159, %c0_160, %c0_161] : memref<16x16x512xf32, #tpu.memory_space<vmem>>, vector<1x16x512xf32>
    %173 = vector.shape_cast %172 : vector<1x16x512xf32> to vector<16x512xf32>
    %cst_162 = arith.constant dense<0.000000e+00> : vector<2x512xf32>
    %174 = tpu.matmul %171, %173, %cst_162 {dimension_numbers = #tpu.dot_dimension_numbers<[1], [0], [0], [1], [0, 0, 1, 1], [], []>} : vector<2x16xf32>, vector<16x512xf32>, vector<2x512xf32> -> vector<2x512xf32>
    %175 = arith.addf %168, %174 : vector<2x512xf32>
    %c4_163 = arith.constant 4 : index
    %c0_164 = arith.constant 0 : index
    %c0_165 = arith.constant 0 : index
    %176 = vector.load %arg6[%c4_163, %c0_164, %c0_165] : memref<16x2x32xf32, #tpu.memory_space<vmem>>, vector<1x2x32xf32>
    %177 = vector.shape_cast %176 : vector<1x2x32xf32> to vector<2x32xf32>
    %cst_166 = arith.constant dense<0.000000e+00> : vector<2x16xf32>
    %178 = tpu.matmul %177, %146, %cst_166 {dimension_numbers = #tpu.dot_dimension_numbers<[1], [0], [0], [1], [0, 0, 1, 1], [], []>} : vector<2x32xf32>, vector<32x16xf32>, vector<2x16xf32> -> vector<2x16xf32>
    %c4_167 = arith.constant 4 : index
    %c0_168 = arith.constant 0 : index
    %c0_169 = arith.constant 0 : index
    %179 = vector.load %arg7[%c4_167, %c0_168, %c0_169] : memref<16x16x512xf32, #tpu.memory_space<vmem>>, vector<1x16x512xf32>
    %180 = vector.shape_cast %179 : vector<1x16x512xf32> to vector<16x512xf32>
    %cst_170 = arith.constant dense<0.000000e+00> : vector<2x512xf32>
    %181 = tpu.matmul %178, %180, %cst_170 {dimension_numbers = #tpu.dot_dimension_numbers<[1], [0], [0], [1], [0, 0, 1, 1], [], []>} : vector<2x16xf32>, vector<16x512xf32>, vector<2x512xf32> -> vector<2x512xf32>
    %182 = arith.addf %175, %181 : vector<2x512xf32>
    %c5_171 = arith.constant 5 : index
    %c0_172 = arith.constant 0 : index
    %c0_173 = arith.constant 0 : index
    %183 = vector.load %arg6[%c5_171, %c0_172, %c0_173] : memref<16x2x32xf32, #tpu.memory_space<vmem>>, vector<1x2x32xf32>
    %184 = vector.shape_cast %183 : vector<1x2x32xf32> to vector<2x32xf32>
    %cst_174 = arith.constant dense<0.000000e+00> : vector<2x16xf32>
    %185 = tpu.matmul %184, %146, %cst_174 {dimension_numbers = #tpu.dot_dimension_numbers<[1], [0], [0], [1], [0, 0, 1, 1], [], []>} : vector<2x32xf32>, vector<32x16xf32>, vector<2x16xf32> -> vector<2x16xf32>
    %c5_175 = arith.constant 5 : index
    %c0_176 = arith.constant 0 : index
    %c0_177 = arith.constant 0 : index
    %186 = vector.load %arg7[%c5_175, %c0_176, %c0_177] : memref<16x16x512xf32, #tpu.memory_space<vmem>>, vector<1x16x512xf32>
    %187 = vector.shape_cast %186 : vector<1x16x512xf32> to vector<16x512xf32>
    %cst_178 = arith.constant dense<0.000000e+00> : vector<2x512xf32>
    %188 = tpu.matmul %185, %187, %cst_178 {dimension_numbers = #tpu.dot_dimension_numbers<[1], [0], [0], [1], [0, 0, 1, 1], [], []>} : vector<2x16xf32>, vector<16x512xf32>, vector<2x512xf32> -> vector<2x512xf32>
    %189 = arith.addf %182, %188 : vector<2x512xf32>
    %c6_179 = arith.constant 6 : index
    %c0_180 = arith.constant 0 : index
    %c0_181 = arith.constant 0 : index
    %190 = vector.load %arg6[%c6_179, %c0_180, %c0_181] : memref<16x2x32xf32, #tpu.memory_space<vmem>>, vector<1x2x32xf32>
    %191 = vector.shape_cast %190 : vector<1x2x32xf32> to vector<2x32xf32>
    %cst_182 = arith.constant dense<0.000000e+00> : vector<2x16xf32>
    %192 = tpu.matmul %191, %146, %cst_182 {dimension_numbers = #tpu.dot_dimension_numbers<[1], [0], [0], [1], [0, 0, 1, 1], [], []>} : vector<2x32xf32>, vector<32x16xf32>, vector<2x16xf32> -> vector<2x16xf32>
    %c6_183 = arith.constant 6 : index
    %c0_184 = arith.constant 0 : index
    %c0_185 = arith.constant 0 : index
    %193 = vector.load %arg7[%c6_183, %c0_184, %c0_185] : memref<16x16x512xf32, #tpu.memory_space<vmem>>, vector<1x16x512xf32>
    %194 = vector.shape_cast %193 : vector<1x16x512xf32> to vector<16x512xf32>
    %cst_186 = arith.constant dense<0.000000e+00> : vector<2x512xf32>
    %195 = tpu.matmul %192, %194, %cst_186 {dimension_numbers = #tpu.dot_dimension_numbers<[1], [0], [0], [1], [0, 0, 1, 1], [], []>} : vector<2x16xf32>, vector<16x512xf32>, vector<2x512xf32> -> vector<2x512xf32>
    %196 = arith.addf %189, %195 : vector<2x512xf32>
    %c7_187 = arith.constant 7 : index
    %c0_188 = arith.constant 0 : index
    %c0_189 = arith.constant 0 : index
    %197 = vector.load %arg6[%c7_187, %c0_188, %c0_189] : memref<16x2x32xf32, #tpu.memory_space<vmem>>, vector<1x2x32xf32>
    %198 = vector.shape_cast %197 : vector<1x2x32xf32> to vector<2x32xf32>
    %cst_190 = arith.constant dense<0.000000e+00> : vector<2x16xf32>
    %199 = tpu.matmul %198, %146, %cst_190 {dimension_numbers = #tpu.dot_dimension_numbers<[1], [0], [0], [1], [0, 0, 1, 1], [], []>} : vector<2x32xf32>, vector<32x16xf32>, vector<2x16xf32> -> vector<2x16xf32>
    %c7_191 = arith.constant 7 : index
    %c0_192 = arith.constant 0 : index
    %c0_193 = arith.constant 0 : index
    %200 = vector.load %arg7[%c7_191, %c0_192, %c0_193] : memref<16x16x512xf32, #tpu.memory_space<vmem>>, vector<1x16x512xf32>
    %201 = vector.shape_cast %200 : vector<1x16x512xf32> to vector<16x512xf32>
    %cst_194 = arith.constant dense<0.000000e+00> : vector<2x512xf32>
    %202 = tpu.matmul %199, %201, %cst_194 {dimension_numbers = #tpu.dot_dimension_numbers<[1], [0], [0], [1], [0, 0, 1, 1], [], []>} : vector<2x16xf32>, vector<16x512xf32>, vector<2x512xf32> -> vector<2x512xf32>
    %203 = arith.addf %196, %202 : vector<2x512xf32>
    %c8_195 = arith.constant 8 : index
    %c0_196 = arith.constant 0 : index
    %c0_197 = arith.constant 0 : index
    %204 = vector.load %arg6[%c8_195, %c0_196, %c0_197] : memref<16x2x32xf32, #tpu.memory_space<vmem>>, vector<1x2x32xf32>
    %205 = vector.shape_cast %204 : vector<1x2x32xf32> to vector<2x32xf32>
    %cst_198 = arith.constant dense<0.000000e+00> : vector<2x16xf32>
    %206 = tpu.matmul %205, %146, %cst_198 {dimension_numbers = #tpu.dot_dimension_numbers<[1], [0], [0], [1], [0, 0, 1, 1], [], []>} : vector<2x32xf32>, vector<32x16xf32>, vector<2x16xf32> -> vector<2x16xf32>
    %c8_199 = arith.constant 8 : index
    %c0_200 = arith.constant 0 : index
    %c0_201 = arith.constant 0 : index
    %207 = vector.load %arg7[%c8_199, %c0_200, %c0_201] : memref<16x16x512xf32, #tpu.memory_space<vmem>>, vector<1x16x512xf32>
    %208 = vector.shape_cast %207 : vector<1x16x512xf32> to vector<16x512xf32>
    %cst_202 = arith.constant dense<0.000000e+00> : vector<2x512xf32>
    %209 = tpu.matmul %206, %208, %cst_202 {dimension_numbers = #tpu.dot_dimension_numbers<[1], [0], [0], [1], [0, 0, 1, 1], [], []>} : vector<2x16xf32>, vector<16x512xf32>, vector<2x512xf32> -> vector<2x512xf32>
    %210 = arith.addf %203, %209 : vector<2x512xf32>
    %c9_203 = arith.constant 9 : index
    %c0_204 = arith.constant 0 : index
    %c0_205 = arith.constant 0 : index
    %211 = vector.load %arg6[%c9_203, %c0_204, %c0_205] : memref<16x2x32xf32, #tpu.memory_space<vmem>>, vector<1x2x32xf32>
    %212 = vector.shape_cast %211 : vector<1x2x32xf32> to vector<2x32xf32>
    %cst_206 = arith.constant dense<0.000000e+00> : vector<2x16xf32>
    %213 = tpu.matmul %212, %146, %cst_206 {dimension_numbers = #tpu.dot_dimension_numbers<[1], [0], [0], [1], [0, 0, 1, 1], [], []>} : vector<2x32xf32>, vector<32x16xf32>, vector<2x16xf32> -> vector<2x16xf32>
    %c9_207 = arith.constant 9 : index
    %c0_208 = arith.constant 0 : index
    %c0_209 = arith.constant 0 : index
    %214 = vector.load %arg7[%c9_207, %c0_208, %c0_209] : memref<16x16x512xf32, #tpu.memory_space<vmem>>, vector<1x16x512xf32>
    %215 = vector.shape_cast %214 : vector<1x16x512xf32> to vector<16x512xf32>
    %cst_210 = arith.constant dense<0.000000e+00> : vector<2x512xf32>
    %216 = tpu.matmul %213, %215, %cst_210 {dimension_numbers = #tpu.dot_dimension_numbers<[1], [0], [0], [1], [0, 0, 1, 1], [], []>} : vector<2x16xf32>, vector<16x512xf32>, vector<2x512xf32> -> vector<2x512xf32>
    %217 = arith.addf %210, %216 : vector<2x512xf32>
    %c10_211 = arith.constant 10 : index
    %c0_212 = arith.constant 0 : index
    %c0_213 = arith.constant 0 : index
    %218 = vector.load %arg6[%c10_211, %c0_212, %c0_213] : memref<16x2x32xf32, #tpu.memory_space<vmem>>, vector<1x2x32xf32>
    %219 = vector.shape_cast %218 : vector<1x2x32xf32> to vector<2x32xf32>
    %cst_214 = arith.constant dense<0.000000e+00> : vector<2x16xf32>
    %220 = tpu.matmul %219, %146, %cst_214 {dimension_numbers = #tpu.dot_dimension_numbers<[1], [0], [0], [1], [0, 0, 1, 1], [], []>} : vector<2x32xf32>, vector<32x16xf32>, vector<2x16xf32> -> vector<2x16xf32>
    %c10_215 = arith.constant 10 : index
    %c0_216 = arith.constant 0 : index
    %c0_217 = arith.constant 0 : index
    %221 = vector.load %arg7[%c10_215, %c0_216, %c0_217] : memref<16x16x512xf32, #tpu.memory_space<vmem>>, vector<1x16x512xf32>
    %222 = vector.shape_cast %221 : vector<1x16x512xf32> to vector<16x512xf32>
    %cst_218 = arith.constant dense<0.000000e+00> : vector<2x512xf32>
    %223 = tpu.matmul %220, %222, %cst_218 {dimension_numbers = #tpu.dot_dimension_numbers<[1], [0], [0], [1], [0, 0, 1, 1], [], []>} : vector<2x16xf32>, vector<16x512xf32>, vector<2x512xf32> -> vector<2x512xf32>
    %224 = arith.addf %217, %223 : vector<2x512xf32>
    %c11_219 = arith.constant 11 : index
    %c0_220 = arith.constant 0 : index
    %c0_221 = arith.constant 0 : index
    %225 = vector.load %arg6[%c11_219, %c0_220, %c0_221] : memref<16x2x32xf32, #tpu.memory_space<vmem>>, vector<1x2x32xf32>
    %226 = vector.shape_cast %225 : vector<1x2x32xf32> to vector<2x32xf32>
    %cst_222 = arith.constant dense<0.000000e+00> : vector<2x16xf32>
    %227 = tpu.matmul %226, %146, %cst_222 {dimension_numbers = #tpu.dot_dimension_numbers<[1], [0], [0], [1], [0, 0, 1, 1], [], []>} : vector<2x32xf32>, vector<32x16xf32>, vector<2x16xf32> -> vector<2x16xf32>
    %c11_223 = arith.constant 11 : index
    %c0_224 = arith.constant 0 : index
    %c0_225 = arith.constant 0 : index
    %228 = vector.load %arg7[%c11_223, %c0_224, %c0_225] : memref<16x16x512xf32, #tpu.memory_space<vmem>>, vector<1x16x512xf32>
    %229 = vector.shape_cast %228 : vector<1x16x512xf32> to vector<16x512xf32>
    %cst_226 = arith.constant dense<0.000000e+00> : vector<2x512xf32>
    %230 = tpu.matmul %227, %229, %cst_226 {dimension_numbers = #tpu.dot_dimension_numbers<[1], [0], [0], [1], [0, 0, 1, 1], [], []>} : vector<2x16xf32>, vector<16x512xf32>, vector<2x512xf32> -> vector<2x512xf32>
    %231 = arith.addf %224, %230 : vector<2x512xf32>
    %c12_227 = arith.constant 12 : index
    %c0_228 = arith.constant 0 : index
    %c0_229 = arith.constant 0 : index
    %232 = vector.load %arg6[%c12_227, %c0_228, %c0_229] : memref<16x2x32xf32, #tpu.memory_space<vmem>>, vector<1x2x32xf32>
    %233 = vector.shape_cast %232 : vector<1x2x32xf32> to vector<2x32xf32>
    %cst_230 = arith.constant dense<0.000000e+00> : vector<2x16xf32>
    %234 = tpu.matmul %233, %146, %cst_230 {dimension_numbers = #tpu.dot_dimension_numbers<[1], [0], [0], [1], [0, 0, 1, 1], [], []>} : vector<2x32xf32>, vector<32x16xf32>, vector<2x16xf32> -> vector<2x16xf32>
    %c12_231 = arith.constant 12 : index
    %c0_232 = arith.constant 0 : index
    %c0_233 = arith.constant 0 : index
    %235 = vector.load %arg7[%c12_231, %c0_232, %c0_233] : memref<16x16x512xf32, #tpu.memory_space<vmem>>, vector<1x16x512xf32>
    %236 = vector.shape_cast %235 : vector<1x16x512xf32> to vector<16x512xf32>
    %cst_234 = arith.constant dense<0.000000e+00> : vector<2x512xf32>
    %237 = tpu.matmul %234, %236, %cst_234 {dimension_numbers = #tpu.dot_dimension_numbers<[1], [0], [0], [1], [0, 0, 1, 1], [], []>} : vector<2x16xf32>, vector<16x512xf32>, vector<2x512xf32> -> vector<2x512xf32>
    %238 = arith.addf %231, %237 : vector<2x512xf32>
    %c13_235 = arith.constant 13 : index
    %c0_236 = arith.constant 0 : index
    %c0_237 = arith.constant 0 : index
    %239 = vector.load %arg6[%c13_235, %c0_236, %c0_237] : memref<16x2x32xf32, #tpu.memory_space<vmem>>, vector<1x2x32xf32>
    %240 = vector.shape_cast %239 : vector<1x2x32xf32> to vector<2x32xf32>
    %cst_238 = arith.constant dense<0.000000e+00> : vector<2x16xf32>
    %241 = tpu.matmul %240, %146, %cst_238 {dimension_numbers = #tpu.dot_dimension_numbers<[1], [0], [0], [1], [0, 0, 1, 1], [], []>} : vector<2x32xf32>, vector<32x16xf32>, vector<2x16xf32> -> vector<2x16xf32>
    %c13_239 = arith.constant 13 : index
    %c0_240 = arith.constant 0 : index
    %c0_241 = arith.constant 0 : index
    %242 = vector.load %arg7[%c13_239, %c0_240, %c0_241] : memref<16x16x512xf32, #tpu.memory_space<vmem>>, vector<1x16x512xf32>
    %243 = vector.shape_cast %242 : vector<1x16x512xf32> to vector<16x512xf32>
    %cst_242 = arith.constant dense<0.000000e+00> : vector<2x512xf32>
    %244 = tpu.matmul %241, %243, %cst_242 {dimension_numbers = #tpu.dot_dimension_numbers<[1], [0], [0], [1], [0, 0, 1, 1], [], []>} : vector<2x16xf32>, vector<16x512xf32>, vector<2x512xf32> -> vector<2x512xf32>
    %245 = arith.addf %238, %244 : vector<2x512xf32>
    %c14_243 = arith.constant 14 : index
    %c0_244 = arith.constant 0 : index
    %c0_245 = arith.constant 0 : index
    %246 = vector.load %arg6[%c14_243, %c0_244, %c0_245] : memref<16x2x32xf32, #tpu.memory_space<vmem>>, vector<1x2x32xf32>
    %247 = vector.shape_cast %246 : vector<1x2x32xf32> to vector<2x32xf32>
    %cst_246 = arith.constant dense<0.000000e+00> : vector<2x16xf32>
    %248 = tpu.matmul %247, %146, %cst_246 {dimension_numbers = #tpu.dot_dimension_numbers<[1], [0], [0], [1], [0, 0, 1, 1], [], []>} : vector<2x32xf32>, vector<32x16xf32>, vector<2x16xf32> -> vector<2x16xf32>
    %c14_247 = arith.constant 14 : index
    %c0_248 = arith.constant 0 : index
    %c0_249 = arith.constant 0 : index
    %249 = vector.load %arg7[%c14_247, %c0_248, %c0_249] : memref<16x16x512xf32, #tpu.memory_space<vmem>>, vector<1x16x512xf32>
    %250 = vector.shape_cast %249 : vector<1x16x512xf32> to vector<16x512xf32>
    %cst_250 = arith.constant dense<0.000000e+00> : vector<2x512xf32>
    %251 = tpu.matmul %248, %250, %cst_250 {dimension_numbers = #tpu.dot_dimension_numbers<[1], [0], [0], [1], [0, 0, 1, 1], [], []>} : vector<2x16xf32>, vector<16x512xf32>, vector<2x512xf32> -> vector<2x512xf32>
    %252 = arith.addf %245, %251 : vector<2x512xf32>
    %c15_251 = arith.constant 15 : index
    %c0_252 = arith.constant 0 : index
    %c0_253 = arith.constant 0 : index
    %253 = vector.load %arg6[%c15_251, %c0_252, %c0_253] : memref<16x2x32xf32, #tpu.memory_space<vmem>>, vector<1x2x32xf32>
    %254 = vector.shape_cast %253 : vector<1x2x32xf32> to vector<2x32xf32>
    %cst_254 = arith.constant dense<0.000000e+00> : vector<2x16xf32>
    %255 = tpu.matmul %254, %146, %cst_254 {dimension_numbers = #tpu.dot_dimension_numbers<[1], [0], [0], [1], [0, 0, 1, 1], [], []>} : vector<2x32xf32>, vector<32x16xf32>, vector<2x16xf32> -> vector<2x16xf32>
    %c15_255 = arith.constant 15 : index
    %c0_256 = arith.constant 0 : index
    %c0_257 = arith.constant 0 : index
    %256 = vector.load %arg7[%c15_255, %c0_256, %c0_257] : memref<16x16x512xf32, #tpu.memory_space<vmem>>, vector<1x16x512xf32>
    %257 = vector.shape_cast %256 : vector<1x16x512xf32> to vector<16x512xf32>
    %cst_258 = arith.constant dense<0.000000e+00> : vector<2x512xf32>
    %258 = tpu.matmul %255, %257, %cst_258 {dimension_numbers = #tpu.dot_dimension_numbers<[1], [0], [0], [1], [0, 0, 1, 1], [], []>} : vector<2x16xf32>, vector<16x512xf32>, vector<2x512xf32> -> vector<2x512xf32>
    %259 = arith.addf %252, %258 : vector<2x512xf32>
    %c0_259 = arith.constant 0 : index
    %c0_260 = arith.constant 0 : index
    %260 = vector.load %arg8[%c0_259, %c0_260] : memref<1x512xf32, #tpu.memory_space<vmem>>, vector<1x512xf32>
    %261 = vector.broadcast %260 : vector<1x512xf32> to vector<2x512xf32>
    %262 = arith.addf %259, %261 : vector<2x512xf32>
    %cst_261 = arith.constant dense<0.000000e+00> : vector<512xf32>
    %263 = vector.multi_reduction <add>, %262, %cst_261 [0] : vector<2x512xf32> to vector<512xf32>
    %264 = vector.shape_cast %263 : vector<512xf32> to vector<1x512xf32>
    %cst_262 = arith.constant 2.000000e+00 : f32
    %265 = vector.broadcast %cst_262 : f32 to vector<1x512xf32>
    %266 = arith.divf %264, %265 : vector<1x512xf32>
    %267 = vector.broadcast %266 : vector<1x512xf32> to vector<2x512xf32>
    %268 = arith.subf %262, %267 : vector<2x512xf32>
    %269 = arith.mulf %268, %268 : vector<2x512xf32>
    %cst_263 = arith.constant dense<0.000000e+00> : vector<512xf32>
    %270 = vector.multi_reduction <add>, %269, %cst_263 [0] : vector<2x512xf32> to vector<512xf32>
    %271 = vector.shape_cast %270 : vector<512xf32> to vector<1x512xf32>
    %cst_264 = arith.constant 2.000000e+00 : f32
    %272 = vector.broadcast %cst_264 : f32 to vector<1x512xf32>
    %273 = arith.divf %271, %272 : vector<1x512xf32>
    %c0_265 = arith.constant 0 : index
    %c0_266 = arith.constant 0 : index
    %274 = vector.load %arg9[%c0_265, %c0_266] : memref<1x512xf32, #tpu.memory_space<vmem>>, vector<1x512xf32>
    %cst_267 = arith.constant 9.99999974E-6 : f32
    %275 = vector.broadcast %cst_267 : f32 to vector<1x512xf32>
    %276 = arith.addf %273, %275 : vector<1x512xf32>
    %277 = math.rsqrt %276 : vector<1x512xf32>
    %278 = arith.mulf %274, %277 : vector<1x512xf32>
    %279 = vector.broadcast %278 : vector<1x512xf32> to vector<2x512xf32>
    %280 = arith.mulf %268, %279 : vector<2x512xf32>
    %c0_268 = arith.constant 0 : index
    %c0_269 = arith.constant 0 : index
    %281 = vector.load %arg10[%c0_268, %c0_269] : memref<1x512xf32, #tpu.memory_space<vmem>>, vector<1x512xf32>
    %282 = vector.broadcast %281 : vector<1x512xf32> to vector<2x512xf32>
    %283 = arith.addf %280, %282 : vector<2x512xf32>
    %cst_270 = arith.constant 0.000000e+00 : f32
    %284 = vector.broadcast %cst_270 : f32 to vector<2x512xf32>
    %285 = arith.cmpf oge, %283, %284 : vector<2x512xf32>
    %cst_271 = arith.constant 2.000000e-01 : f32
    %286 = vector.broadcast %cst_271 : f32 to vector<2x512xf32>
    %287 = arith.mulf %286, %283 : vector<2x512xf32>
    %288 = arith.select %285, %283, %287 : vector<2x512xi1>, vector<2x512xf32>
    %c0_272 = arith.constant 0 : index
    %c0_273 = arith.constant 0 : index
    %289 = vector.load %arg13[%c0_272, %c0_273] : memref<2x512xf32, #tpu.memory_space<vmem>>, vector<2x512xf32>
    tpu.vector_store %arg13[%c0_272, %c0_273], %288 {strides = array<i32>} : memref<2x512xf32, #tpu.memory_space<vmem>>, vector<2x512xf32>,
    %c0_274 = arith.constant 0 : index
    %c0_275 = arith.constant 0 : index
    %290 = vector.load %arg11[%c0_274, %c0_275] : memref<1x512xf32, #tpu.memory_space<vmem>>, vector<1x512xf32>
    %291 = vector.broadcast %290 : vector<1x512xf32> to vector<2x512xf32>
    %292 = arith.mulf %288, %291 : vector<2x512xf32>
    %cst_276 = arith.constant dense<0.000000e+00> : vector<2xf32>
    %293 = vector.multi_reduction <add>, %292, %cst_276 [1] : vector<2x512xf32> to vector<2xf32>
    %294 = vector.shape_cast %293 : vector<2xf32> to vector<2x1xf32>
    %c0_277 = arith.constant 0 : index
    %c0_278 = arith.constant 0 : index
    %295 = vector.load %arg12[%c0_277, %c0_278] : memref<1x1xf32, #tpu.memory_space<vmem>>, vector<1x1xf32>
    %296 = vector.broadcast %295 : vector<1x1xf32> to vector<2x1xf32>
    %297 = arith.addf %294, %296 : vector<2x1xf32>
    %298 = arith.negf %297 : vector<2x1xf32>
    %299 = math.exp %298 : vector<2x1xf32>
    %cst_279 = arith.constant 1.000000e+00 : f32
    %300 = vector.broadcast %cst_279 : f32 to vector<2x1xf32>
    %301 = arith.addf %300, %299 : vector<2x1xf32>
    %302 = arith.divf %300, %301 : vector<2x1xf32>
    %303 = vector.shape_cast %302 : vector<2x1xf32> to vector<2x1xf32>
    %304 = vector.broadcast %303 : vector<2x1xf32> to vector<2x128xf32>
    %c0_280 = arith.constant 0 : index
    %c0_281 = arith.constant 0 : index
    %305 = vector.load %arg14[%c0_280, %c0_281] : memref<2x128xf32, #tpu.memory_space<vmem>>, vector<2x128xf32>
    tpu.vector_store %arg14[%c0_280, %c0_281], %304 {strides = array<i32>} : memref<2x128xf32, #tpu.memory_space<vmem>>, vector<2x128xf32>,
    return
  }
}

</mosaic_0001>

<llo_original>
// kernel: discriminator_forward.1
$region0: #{discriminator_forward.1}
  #allocation0 [shape = 'u32[]', space=smem, size = 0x4, offset = 0x4, fixed_abs, tag = 'smem constant byte address 0x4 - core index']
  #allocation1 [shape = 'u32[144,128]{1,0:T(1,128)}', space=vmem, size = 0x12000, scoped, tag = 'internal scratch']
  #allocation2 [shape = 'f32[1,1]{1,0:T(1,128)S(1)}', space=vmem, size = 0x200, scoped, tag = 'scoped memory for discriminator_forward.1']
  %s0 = inlined_call_operand.vmem [shape: f32[128,64], index: 0, kind: input, shape index: {}]
  %s1 = inlined_call_operand.vmem [shape: f32[64,8], index: 1, kind: input, shape index: {}]
  %s2 = inlined_call_operand.vmem [shape: f32[16,32,128], index: 2, kind: input, shape index: {}]
  %s3 = inlined_call_operand.vmem [shape: f32[16,8,16], index: 3, kind: input, shape index: {}]
  %s4 = inlined_call_operand.vmem [shape: f32[1,16], index: 4, kind: input, shape index: {}]
  %s5 = inlined_call_operand.vmem [shape: f32[1,16], index: 5, kind: input, shape index: {}]
  %s6 = inlined_call_operand.vmem [shape: f32[16,2,32], index: 6, kind: input, shape index: {}]
  %s7 = inlined_call_operand.vmem [shape: f32[16,16,512], index: 7, kind: input, shape index: {}]
  %s8 = inlined_call_operand.vmem [shape: f32[1,512], index: 8, kind: input, shape index: {}]
  %s9 = inlined_call_operand.vmem [shape: f32[1,512], index: 9, kind: input, shape index: {}]
  %s10 = inlined_call_operand.vmem [shape: f32[1,512], index: 10, kind: input, shape index: {}]
  %s11 = inlined_call_operand.vmem [shape: f32[1,512], index: 11, kind: input, shape index: {}]
  %s12 = inlined_call_operand.<no memory space> [shape: f32[1,1], index: 12, kind: input, shape index: {}]
  %s13 = inlined_call_operand.hbm [shape: f32[2,512], index: 13, kind: output, shape index: {0}]
  %s14 = inlined_call_operand.vmem [shape: f32[2,128], index: 14, kind: output, shape index: {1}]
  %15 = xla_tuple %s13, %s14
  %s16 = sld [smem:[#allocation0]]
  $region70: #{discriminator_forward.1} parent=0
    _
  %s18 = ssub.s32 1, %s16
  %s19 = scalar_select 0, %s18, %s16
  %v20 = vstv %s12
  %21 = vst [vmem:[#allocation2] sm:$0x1] %v20
  $region1: #{discriminator_forward.1} parent=0
    #allocation3 [shape = 'u8[4096]{0}', space=vmem, size = 0x1000, scoped, tag = 'output window, operand 0, single buffered']
    #allocation4 [shape = 's32[1]{0}', space=sflag, size = 0x4, scoped, tag = 'scoped memory for discriminator_forward.1']
    %22 = vsyncpa [#allocation4], 0
    // Predicated region
    $region2: #{discriminator_forward.1} parent=1 // pred_check
      _
    $region3: #{discriminator_forward.1} parent=1 // pred_check_branch
      %24 = sbr.rel (0) target = $region5
    $region4: #{discriminator_forward.1} parent=1 // pred_region
      _
    $region5: #{discriminator_forward.1} parent=1 // pred_fallthru
      _
    // Predicated region
    $region6: #{discriminator_forward.1} parent=1 // pred_check
      _
    $region7: #{discriminator_forward.1} parent=1 // pred_check_branch
      %26 = sbr.rel (0) target = $region9
    $region8: #{discriminator_forward.1} parent=1 // pred_region
      _
    $region9: #{discriminator_forward.1} parent=1 // pred_fallthru
      _
    // Predicated region
    $region10: #{discriminator_forward.1} parent=1 // pred_check
      _
    $region11: #{discriminator_forward.1} parent=1 // pred_check_branch
      %28 = sbr.rel (0) target = $region13
    $region12: #{discriminator_forward.1} parent=1 // pred_region
      _
    $region13: #{discriminator_forward.1} parent=1 // pred_fallthru
      _
    // Predicated region
    $region14: #{discriminator_forward.1} parent=1 // pred_check
      _
    $region15: #{discriminator_forward.1} parent=1 // pred_check_branch
      %30 = sbr.rel (0) target = $region17
    $region16: #{discriminator_forward.1} parent=1 // pred_region
      _
    $region17: #{discriminator_forward.1} parent=1 // pred_fallthru
      _
    // Predicated region
    $region18: #{discriminator_forward.1} parent=1 // pred_check
      _
    $region19: #{discriminator_forward.1} parent=1 // pred_check_branch
      %32 = sbr.rel (0) target = $region21
    $region20: #{discriminator_forward.1} parent=1 // pred_region
      _
    $region21: #{discriminator_forward.1} parent=1 // pred_fallthru
      _
    // Predicated region
    $region22: #{discriminator_forward.1} parent=1 // pred_check
      _
    $region23: #{discriminator_forward.1} parent=1 // pred_check_branch
      %34 = sbr.rel (0) target = $region25
    $region24: #{discriminator_forward.1} parent=1 // pred_region
      _
    $region25: #{discriminator_forward.1} parent=1 // pred_fallthru
      _
    // Predicated region
    $region26: #{discriminator_forward.1} parent=1 // pred_check
      _
    $region27: #{discriminator_forward.1} parent=1 // pred_check_branch
      %36 = sbr.rel (0) target = $region29
    $region28: #{discriminator_forward.1} parent=1 // pred_region
      _
    $region29: #{discriminator_forward.1} parent=1 // pred_fallthru
      _
    // Predicated region
    $region30: #{discriminator_forward.1} parent=1 // pred_check
      _
    $region31: #{discriminator_forward.1} parent=1 // pred_check_branch
      %38 = sbr.rel (0) target = $region33
    $region32: #{discriminator_forward.1} parent=1 // pred_region
      _
    $region33: #{discriminator_forward.1} parent=1 // pred_fallthru
      _
    // Predicated region
    $region34: #{discriminator_forward.1} parent=1 // pred_check
      _
    $region35: #{discriminator_forward.1} parent=1 // pred_check_branch
      %40 = sbr.rel (0) target = $region37
    $region36: #{discriminator_forward.1} parent=1 // pred_region
      _
    $region37: #{discriminator_forward.1} parent=1 // pred_fallthru
      _
    // Predicated region
    $region38: #{discriminator_forward.1} parent=1 // pred_check
      _
    $region39: #{discriminator_forward.1} parent=1 // pred_check_branch
      %42 = sbr.rel (0) target = $region41
    $region40: #{discriminator_forward.1} parent=1 // pred_region
      _
    $region41: #{discriminator_forward.1} parent=1 // pred_fallthru
      _
    // Predicated region
    $region42: #{discriminator_forward.1} parent=1 // pred_check
      _
    $region43: #{discriminator_forward.1} parent=1 // pred_check_branch
      %44 = sbr.rel (0) target = $region45
    $region44: #{discriminator_forward.1} parent=1 // pred_region
      _
    $region45: #{discriminator_forward.1} parent=1 // pred_fallthru
      _
    // Predicated region
    $region46: #{discriminator_forward.1} parent=1 // pred_check
      _
    $region47: #{discriminator_forward.1} parent=1 // pred_check_branch
      %46 = sbr.rel (0) target = $region49
    $region48: #{discriminator_forward.1} parent=1 // pred_region
      _
    $region49: #{discriminator_forward.1} parent=1 // pred_fallthru
      _
    // Predicated region
    $region50: #{discriminator_forward.1} parent=1 // pred_check
      _
    $region51: #{discriminator_forward.1} parent=1 // pred_check_branch
      %48 = sbr.rel (0) target = $region53
    $region52: #{discriminator_forward.1} parent=1 // pred_region
      _
    $region53: #{discriminator_forward.1} parent=1 // pred_fallthru
      _
    %v49 = vld [vmem:[%s0] sm:$0xff]
    %v50 = vld [vmem:[%s0 + $0x8] sm:$0xff]
    %v51 = vld [vmem:[%s0 + $0x10] sm:$0xff]
    %v52 = vld [vmem:[%s0 + $0x18] sm:$0xff]
    %v53 = vld [vmem:[%s0 + $0x20] sm:$0xff]
    %v54 = vld [vmem:[%s0 + $0x28] sm:$0xff]
    %v55 = vld [vmem:[%s0 + $0x30] sm:$0xff]
    %v56 = vld [vmem:[%s0 + $0x38] sm:$0xff]
    %v57 = vld [vmem:[%s0 + $0x40] sm:$0xff]
    %v58 = vld [vmem:[%s0 + $0x48] sm:$0xff]
    %v59 = vld [vmem:[%s0 + $0x50] sm:$0xff]
    %v60 = vld [vmem:[%s0 + $0x58] sm:$0xff]
    %v61 = vld [vmem:[%s0 + $0x60] sm:$0xff]
    %v62 = vld [vmem:[%s0 + $0x68] sm:$0xff]
    %v63 = vld [vmem:[%s0 + $0x70] sm:$0xff]
    %v64 = vld [vmem:[%s0 + $0x78] sm:$0xff]
    %v65 = vld [vmem:[%s1] sm:$0xff]
    %v66 = vld [vmem:[%s1 + $0x8] sm:$0xff]
    %v67 = vld [vmem:[%s1 + $0x10] sm:$0xff]
    %v68 = vld [vmem:[%s1 + $0x18] sm:$0xff]
    %v69 = vld [vmem:[%s1 + $0x20] sm:$0xff]
    %v70 = vld [vmem:[%s1 + $0x28] sm:$0xff]
    %v71 = vld [vmem:[%s1 + $0x30] sm:$0xff]
    %v72 = vld [vmem:[%s1 + $0x38] sm:$0xff]
    %vm73 = vcmask 523264
    %v75 = vsel %vm73, %v49, 0
    %v78 = vsel %vm73, %v50, 0
    %v81 = vsel %vm73, %v51, 0
    %v84 = vsel %vm73, %v52, 0
    %v87 = vsel %vm73, %v53, 0
    %v90 = vsel %vm73, %v54, 0
    %v93 = vsel %vm73, %v55, 0
    %v96 = vsel %vm73, %v56, 0
    %v99 = vsel %vm73, %v57, 0
    %v102 = vsel %vm73, %v58, 0
    %v105 = vsel %vm73, %v59, 0
    %v108 = vsel %vm73, %v60, 0
    %v111 = vsel %vm73, %v61, 0
    %v114 = vsel %vm73, %v62, 0
    %v117 = vsel %vm73, %v63, 0
    %v120 = vsel %vm73, %v64, 0
    %122 = vmatprep.subr.mxu0 0.0
    %123 = vmatpush1.msra.mxu0 %v65
    %124 = vmatprep.subr.mxu0 0.0
    %125 = vmatpush1.msra.mxu0 %v66
    %126 = vmatprep.subr.mxu0 0.0
    %127 = vmatpush1.msra.mxu0 %v67
    %128 = vmatprep.subr.mxu0 0.0
    %129 = vmatpush1.msra.mxu0 %v68
    %130 = vmatprep.subr.mxu0 0.0
    %131 = vmatpush1.msra.mxu0 %v69
    %132 = vmatprep.subr.mxu0 0.0
    %133 = vmatpush1.msra.mxu0 %v70
    %134 = vmatprep.subr.mxu0 0.0
    %135 = vmatpush1.msra.mxu0 %v71
    %136 = vmatprep.subr.mxu0 0.0
    %137 = vmatpush1.msra.mxu0 %v72
    %138 = vmatprep.subr.mxu0 0.0
    %139 = vmatpush1.msra.mxu0 0.0
    %140 = vmatprep.subr.mxu0 0.0
    %141 = vmatpush1.msra.mxu0 0.0
    %142 = vmatprep.subr.mxu0 0.0
    %143 = vmatpush1.msra.mxu0 0.0
    %144 = vmatprep.subr.mxu0 0.0
    %145 = vmatpush1.msra.mxu0 0.0
    %146 = vmatprep.subr.mxu0 0.0
    %147 = vmatpush1.msra.mxu0 0.0
    %148 = vmatprep.subr.mxu0 0.0
    %149 = vmatpush1.msra.mxu0 0.0
    %150 = vmatprep.subr.mxu0 0.0
    %151 = vmatpush1.msra.mxu0 0.0
    %152 = vmatprep.subr.mxu0 0.0
    %153 = vmatpush1.msra.mxu0 0.0
    %154 = vmatprep.subr.mxu0 0.0
    %155 = vmatpush1.msra.mxu0 0.0
    %156 = vmatprep.subr.mxu0 0.0
    %157 = vmatpush1.msra.mxu0 0.0
    %158 = vmatprep.subr.mxu0 0.0
    %159 = vmatpush1.msra.mxu0 0.0
    %160 = vmatprep.subr.mxu0 0.0
    %161 = vmatpush1.msra.mxu0 0.0
    %162 = vmatprep.subr.mxu0 0.0
    %163 = vmatpush1.msra.mxu0 0.0
    %164 = vmatprep.subr.mxu0 0.0
    %165 = vmatpush1.msra.mxu0 0.0
    %166 = vmatprep.subr.mxu0 0.0
    %167 = vmatpush1.msra.mxu0 0.0
    %168 = vmatprep.subr.mxu0 0.0
    %169 = vmatpush1.msra.mxu0 0.0
    %170 = vmatprep.subr.mxu0 0.0
    %171 = vmatpush1.msra.mxu0 0.0
    %172 = vmatprep.subr.mxu0 0.0
    %173 = vmatpush1.msra.mxu0 0.0
    %174 = vmatprep.subr.mxu0 0.0
    %175 = vmatpush1.msra.mxu0 0.0
    %176 = vmatprep.subr.mxu0 0.0
    %177 = vmatpush1.msra.mxu0 0.0
    %178 = vmatprep.subr.mxu0 0.0
    %179 = vmatpush1.msra.mxu0 0.0
    %180 = vmatprep.subr.mxu0 0.0
    %181 = vmatpush1.msra.mxu0 0.0
    %182 = vmatprep.subr.mxu0 0.0
    %183 = vmatpush1.msra.mxu0 0.0
    %184 = vmatprep.subr.mxu0 0.0
    %185 = vmatpush1.msra.mxu0 0.0
    %186 = vmatprep.mubr.f32.mxu0 0.0
    %187 = vmatmul.mubr.f32.gmra.mrb[0].mxu0 %v75
    %v188 = vpop.f32.mrb[0].mxu0
    %v189 = vadd.f32 0.0, %v188
    %v190 = vpop.f32.mrb[0].mxu0
    %191 = vmatprep.mubr.f32.mxu0 0.0
    %192 = vmatmul.mubr.f32.gmra.mrb[0].mxu0 %v78
    %v193 = vpop.f32.mrb[0].mxu0
    %v194 = vadd.f32 0.0, %v193
    %v195 = vpop.f32.mrb[0].mxu0
    %196 = vmatprep.mubr.f32.mxu0 0.0
    %197 = vmatmul.mubr.f32.gmra.mrb[0].mxu0 %v81
    %v198 = vpop.f32.mrb[0].mxu0
    %v199 = vadd.f32 0.0, %v198
    %v200 = vpop.f32.mrb[0].mxu0
    %201 = vmatprep.mubr.f32.mxu0 0.0
    %202 = vmatmul.mubr.f32.gmra.mrb[0].mxu0 %v84
    %v203 = vpop.f32.mrb[0].mxu0
    %v204 = vadd.f32 0.0, %v203
    %v205 = vpop.f32.mrb[0].mxu0
    %206 = vmatprep.mubr.f32.mxu0 0.0
    %207 = vmatmul.mubr.f32.gmra.mrb[0].mxu0 %v87
    %v208 = vpop.f32.mrb[0].mxu0
    %v209 = vadd.f32 0.0, %v208
    %v210 = vpop.f32.mrb[0].mxu0
    %211 = vmatprep.mubr.f32.mxu0 0.0
    %212 = vmatmul.mubr.f32.gmra.mrb[0].mxu0 %v90
    %v213 = vpop.f32.mrb[0].mxu0
    %v214 = vadd.f32 0.0, %v213
    %v215 = vpop.f32.mrb[0].mxu0
    %216 = vmatprep.mubr.f32.mxu0 0.0
    %217 = vmatmul.mubr.f32.gmra.mrb[0].mxu0 %v93
    %v218 = vpop.f32.mrb[0].mxu0
    %v219 = vadd.f32 0.0, %v218
    %v220 = vpop.f32.mrb[0].mxu0
    %221 = vmatprep.mubr.f32.mxu0 0.0
    %222 = vmatmul.mubr.f32.gmra.mrb[0].mxu0 %v96
    %v223 = vpop.f32.mrb[0].mxu0
    %v224 = vadd.f32 0.0, %v223
    %v225 = vpop.f32.mrb[0].mxu0
    %226 = vmatprep.mubr.f32.mxu0 0.0
    %227 = vmatmul.mubr.f32.gmra.mrb[0].mxu0 %v99
    %v228 = vpop.f32.mrb[0].mxu0
    %v229 = vadd.f32 0.0, %v228
    %v230 = vpop.f32.mrb[0].mxu0
    %231 = vmatprep.mubr.f32.mxu0 0.0
    %232 = vmatmul.mubr.f32.gmra.mrb[0].mxu0 %v102
    %v233 = vpop.f32.mrb[0].mxu0
    %v234 = vadd.f32 0.0, %v233
    %v235 = vpop.f32.mrb[0].mxu0
    %236 = vmatprep.mubr.f32.mxu0 0.0
    %237 = vmatmul.mubr.f32.gmra.mrb[0].mxu0 %v105
    %v238 = vpop.f32.mrb[0].mxu0
    %v239 = vadd.f32 0.0, %v238
    %v240 = vpop.f32.mrb[0].mxu0
    %241 = vmatprep.mubr.f32.mxu0 0.0
    %242 = vmatmul.mubr.f32.gmra.mrb[0].mxu0 %v108
    %v243 = vpop.f32.mrb[0].mxu0
    %v244 = vadd.f32 0.0, %v243
    %v245 = vpop.f32.mrb[0].mxu0
    %246 = vmatprep.mubr.f32.mxu0 0.0
    %247 = vmatmul.mubr.f32.gmra.mrb[0].mxu0 %v111
    %v248 = vpop.f32.mrb[0].mxu0
    %v249 = vadd.f32 0.0, %v248
    %v250 = vpop.f32.mrb[0].mxu0
    %251 = vmatprep.mubr.f32.mxu0 0.0
    %252 = vmatmul.mubr.f32.gmra.mrb[0].mxu0 %v114
    %v253 = vpop.f32.mrb[0].mxu0
    %v254 = vadd.f32 0.0, %v253
    %v255 = vpop.f32.mrb[0].mxu0
    %256 = vmatprep.mubr.f32.mxu0 0.0
    %257 = vmatmul.mubr.f32.gmra.mrb[0].mxu0 %v117
    %v258 = vpop.f32.mrb[0].mxu0
    %v259 = vadd.f32 0.0, %v258
    %v260 = vpop.f32.mrb[0].mxu0
    %261 = vmatprep.mubr.f32.mxu0 0.0
    %262 = vmatmul.mubr.f32.gmra.mrb[0].mxu0 %v120
    %v263 = vpop.f32.mrb[0].mxu0
    %v264 = vadd.f32 0.0, %v263
    %v265 = vpop.f32.mrb[0].mxu0
    %266 = vdwg.mxu0
    %vm267 = vcmp.ge.f32.partialorder %v189, 0.0
    %vm268 = vcmp.ge.f32.partialorder %v194, 0.0
    %vm269 = vcmp.ge.f32.partialorder %v199, 0.0
    %vm270 = vcmp.ge.f32.partialorder %v204, 0.0
    %vm271 = vcmp.ge.f32.partialorder %v209, 0.0
    %vm272 = vcmp.ge.f32.partialorder %v214, 0.0
    %vm273 = vcmp.ge.f32.partialorder %v219, 0.0
    %vm274 = vcmp.ge.f32.partialorder %v224, 0.0
    %vm275 = vcmp.ge.f32.partialorder %v229, 0.0
    %vm276 = vcmp.ge.f32.partialorder %v234, 0.0
    %vm277 = vcmp.ge.f32.partialorder %v239, 0.0
    %vm278 = vcmp.ge.f32.partialorder %v244, 0.0
    %vm279 = vcmp.ge.f32.partialorder %v249, 0.0
    %vm280 = vcmp.ge.f32.partialorder %v254, 0.0
    %vm281 = vcmp.ge.f32.partialorder %v259, 0.0
    %vm282 = vcmp.ge.f32.partialorder %v264, 0.0
    %v283 = vmul.f32 %v189, 0.2
    %v284 = vmul.f32 %v194, 0.2
    %v285 = vmul.f32 %v199, 0.2
    %v286 = vmul.f32 %v204, 0.2
    %v287 = vmul.f32 %v209, 0.2
    %v288 = vmul.f32 %v214, 0.2
    %v289 = vmul.f32 %v219, 0.2
    %v290 = vmul.f32 %v224, 0.2
    %v291 = vmul.f32 %v229, 0.2
    %v292 = vmul.f32 %v234, 0.2
    %v293 = vmul.f32 %v239, 0.2
    %v294 = vmul.f32 %v244, 0.2
    %v295 = vmul.f32 %v249, 0.2
    %v296 = vmul.f32 %v254, 0.2
    %v297 = vmul.f32 %v259, 0.2
    %v298 = vmul.f32 %v264, 0.2
    %v299 = vsel %vm267, %v189, %v283
    %v300 = vsel %vm268, %v194, %v284
    %v301 = vsel %vm269, %v199, %v285
    %v302 = vsel %vm270, %v204, %v286
    %v303 = vsel %vm271, %v209, %v287
    %v304 = vsel %vm272, %v214, %v288
    %v305 = vsel %vm273, %v219, %v289
    %v306 = vsel %vm274, %v224, %v290
    %v307 = vsel %vm275, %v229, %v291
    %v308 = vsel %vm276, %v234, %v292
    %v309 = vsel %vm277, %v239, %v293
    %v310 = vsel %vm278, %v244, %v294
    %v311 = vsel %vm279, %v249, %v295
    %v312 = vsel %vm280, %v254, %v296
    %v313 = vsel %vm281, %v259, %v297
    %v314 = vsel %vm282, %v264, %v298
    %v315 = vld [vmem:[%s2] sm:$0xff]
    %v316 = vld [vmem:[%s2 + $0x8] sm:$0xff]
    %v317 = vld [vmem:[%s2 + $0x10] sm:$0xff]
    %v318 = vld [vmem:[%s2 + $0x18] sm:$0xff]
    %319 = vmatprep.subr.mxu0 0.0
    %320 = vmatpush1.msra.mxu0 %v299
    %321 = vmatprep.subr.mxu0 0.0
    %322 = vmatpush1.msra.mxu0 %v300
    %323 = vmatprep.subr.mxu0 0.0
    %324 = vmatpush1.msra.mxu0 %v301
    %325 = vmatprep.subr.mxu0 0.0
    %326 = vmatpush1.msra.mxu0 %v302
    %327 = vmatprep.subr.mxu0 0.0
    %328 = vmatpush1.msra.mxu0 %v303
    %329 = vmatprep.subr.mxu0 0.0
    %330 = vmatpush1.msra.mxu0 %v304
    %331 = vmatprep.subr.mxu0 0.0
    %332 = vmatpush1.msra.mxu0 %v305
    %333 = vmatprep.subr.mxu0 0.0
    %334 = vmatpush1.msra.mxu0 %v306
    %335 = vmatprep.subr.mxu0 0.0
    %336 = vmatpush1.msra.mxu0 %v307
    %337 = vmatprep.subr.mxu0 0.0
    %338 = vmatpush1.msra.mxu0 %v308
    %339 = vmatprep.subr.mxu0 0.0
    %340 = vmatpush1.msra.mxu0 %v309
    %341 = vmatprep.subr.mxu0 0.0
    %342 = vmatpush1.msra.mxu0 %v310
    %343 = vmatprep.subr.mxu0 0.0
    %344 = vmatpush1.msra.mxu0 %v311
    %345 = vmatprep.subr.mxu0 0.0
    %346 = vmatpush1.msra.mxu0 %v312
    %347 = vmatprep.subr.mxu0 0.0
    %348 = vmatpush1.msra.mxu0 %v313
    %349 = vmatprep.subr.mxu0 0.0
    %350 = vmatpush1.msra.mxu0 %v314
    %351 = vmatprep.subr.mxu0 0.0
    %352 = vmatpush1.msra.mxu0 0.0
    %353 = vmatprep.subr.mxu0 0.0
    %354 = vmatpush1.msra.mxu0 0.0
    %355 = vmatprep.subr.mxu0 0.0
    %356 = vmatpush1.msra.mxu0 0.0
    %357 = vmatprep.subr.mxu0 0.0
    %358 = vmatpush1.msra.mxu0 0.0
    %359 = vmatprep.subr.mxu0 0.0
    %360 = vmatpush1.msra.mxu0 0.0
    %361 = vmatprep.subr.mxu0 0.0
    %362 = vmatpush1.msra.mxu0 0.0
    %363 = vmatprep.subr.mxu0 0.0
    %364 = vmatpush1.msra.mxu0 0.0
    %365 = vmatprep.subr.mxu0 0.0
    %366 = vmatpush1.msra.mxu0 0.0
    %367 = vmatprep.subr.mxu0 0.0
    %368 = vmatpush1.msra.mxu0 0.0
    %369 = vmatprep.subr.mxu0 0.0
    %370 = vmatpush1.msra.mxu0 0.0
    %371 = vmatprep.subr.mxu0 0.0
    %372 = vmatpush1.msra.mxu0 0.0
    %373 = vmatprep.subr.mxu0 0.0
    %374 = vmatpush1.msra.mxu0 0.0
    %375 = vmatprep.subr.mxu0 0.0
    %376 = vmatpush1.msra.mxu0 0.0
    %377 = vmatprep.subr.mxu0 0.0
    %378 = vmatpush1.msra.mxu0 0.0
    %379 = vmatprep.subr.mxu0 0.0
    %380 = vmatpush1.msra.mxu0 0.0
    %381 = vmatprep.subr.mxu0 0.0
    %382 = vmatpush1.msra.mxu0 0.0
    %383 = vmatprep.mubr.f32.mxu0 0.0
    %384 = vmatmul.mubr.f32.gmra.mrb[0].mxu0 %v315
    %v385 = vpop.f32.mrb[0].mxu0
    %v386 = vadd.f32 0.0, %v385
    %v387 = vpop.f32.mrb[0].mxu0
    %388 = vmatprep.mubr.f32.mxu0 0.0
    %389 = vmatmul.mubr.f32.gmra.mrb[0].mxu0 %v316
    %v390 = vpop.f32.mrb[0].mxu0
    %v391 = vadd.f32 0.0, %v390
    %v392 = vpop.f32.mrb[0].mxu0
    %393 = vmatprep.mubr.f32.mxu0 0.0
    %394 = vmatmul.mubr.f32.gmra.mrb[0].mxu0 %v317
    %v395 = vpop.f32.mrb[0].mxu0
    %v396 = vadd.f32 0.0, %v395
    %v397 = vpop.f32.mrb[0].mxu0
    %398 = vmatprep.mubr.f32.mxu0 0.0
    %399 = vmatmul.mubr.f32.gmra.mrb[0].mxu0 %v318
    %v400 = vpop.f32.mrb[0].mxu0
    %v401 = vadd.f32 0.0, %v400
    %v402 = vpop.f32.mrb[0].mxu0
    %403 = vdwg.mxu0
    %v404 = vld [vmem:[%s3] sm:$0xff]
    %s405 = scalar_lea.vmem %s2, 32
    %v406 = vld [vmem:[%s405] sm:$0xff]
    %v407 = vld [vmem:[%s405 + $0x8] sm:$0xff]
    %v408 = vld [vmem:[%s405 + $0x10] sm:$0xff]
    %v409 = vld [vmem:[%s405 + $0x18] sm:$0xff]
    %410 = vmatprep.subr.mxu0 0.0
    %411 = vmatpush1.msra.mxu0 %v299
    %412 = vmatprep.subr.mxu0 0.0
    %413 = vmatpush1.msra.mxu0 %v300
    %414 = vmatprep.subr.mxu0 0.0
    %415 = vmatpush1.msra.mxu0 %v301
    %416 = vmatprep.subr.mxu0 0.0
    %417 = vmatpush1.msra.mxu0 %v302
    %418 = vmatprep.subr.mxu0 0.0
    %419 = vmatpush1.msra.mxu0 %v303
    %420 = vmatprep.subr.mxu0 0.0
    %421 = vmatpush1.msra.mxu0 %v304
    %422 = vmatprep.subr.mxu0 0.0
    %423 = vmatpush1.msra.mxu0 %v305
    %424 = vmatprep.subr.mxu0 0.0
    %425 = vmatpush1.msra.mxu0 %v306
    %426 = vmatprep.subr.mxu0 0.0
    %427 = vmatpush1.msra.mxu0 %v307
    %428 = vmatprep.subr.mxu0 0.0
    %429 = vmatpush1.msra.mxu0 %v308
    %430 = vmatprep.subr.mxu0 0.0
    %431 = vmatpush1.msra.mxu0 %v309
    %432 = vmatprep.subr.mxu0 0.0
    %433 = vmatpush1.msra.mxu0 %v310
    %434 = vmatprep.subr.mxu0 0.0
    %435 = vmatpush1.msra.mxu0 %v311
    %436 = vmatprep.subr.mxu0 0.0
    %437 = vmatpush1.msra.mxu0 %v312
    %438 = vmatprep.subr.mxu0 0.0
    %439 = vmatpush1.msra.mxu0 %v313
    %440 = vmatprep.subr.mxu0 0.0
    %441 = vmatpush1.msra.mxu0 %v314
    %442 = vmatprep.subr.mxu0 0.0
    %443 = vmatpush1.msra.mxu0 0.0
    %444 = vmatprep.subr.mxu0 0.0
    %445 = vmatpush1.msra.mxu0 0.0
    %446 = vmatprep.subr.mxu0 0.0
    %447 = vmatpush1.msra.mxu0 0.0
    %448 = vmatprep.subr.mxu0 0.0
    %449 = vmatpush1.msra.mxu0 0.0
    %450 = vmatprep.subr.mxu0 0.0
    %451 = vmatpush1.msra.mxu0 0.0
    %452 = vmatprep.subr.mxu0 0.0
    %453 = vmatpush1.msra.mxu0 0.0
    %454 = vmatprep.subr.mxu0 0.0
    %455 = vmatpush1.msra.mxu0 0.0
    %456 = vmatprep.subr.mxu0 0.0
    %457 = vmatpush1.msra.mxu0 0.0
    %458 = vmatprep.subr.mxu0 0.0
    %459 = vmatpush1.msra.mxu0 0.0
    %460 = vmatprep.subr.mxu0 0.0
    %461 = vmatpush1.msra.mxu0 0.0
    %462 = vmatprep.subr.mxu0 0.0
    %463 = vmatpush1.msra.mxu0 0.0
    %464 = vmatprep.subr.mxu0 0.0
    %465 = vmatpush1.msra.mxu0 0.0
    %466 = vmatprep.subr.mxu0 0.0
    %467 = vmatpush1.msra.mxu0 0.0
    %468 = vmatprep.subr.mxu0 0.0
    %469 = vmatpush1.msra.mxu0 0.0
    %470 = vmatprep.subr.mxu0 0.0
    %471 = vmatpush1.msra.mxu0 0.0
    %472 = vmatprep.subr.mxu0 0.0
    %473 = vmatpush1.msra.mxu0 0.0
    %474 = vmatprep.mubr.f32.mxu0 0.0
    %475 = vmatmul.mubr.f32.gmra.mrb[0].mxu0 %v406
    %v476 = vpop.f32.mrb[0].mxu0
    %v477 = vadd.f32 0.0, %v476
    %v478 = vpop.f32.mrb[0].mxu0
    %479 = vmatprep.mubr.f32.mxu0 0.0
    %480 = vmatmul.mubr.f32.gmra.mrb[0].mxu0 %v407
    %v481 = vpop.f32.mrb[0].mxu0
    %v482 = vadd.f32 0.0, %v481
    %v483 = vpop.f32.mrb[0].mxu0
    %484 = vmatprep.mubr.f32.mxu0 0.0
    %485 = vmatmul.mubr.f32.gmra.mrb[0].mxu0 %v408
    %v486 = vpop.f32.mrb[0].mxu0
    %v487 = vadd.f32 0.0, %v486
    %v488 = vpop.f32.mrb[0].mxu0
    %489 = vmatprep.mubr.f32.mxu0 0.0
    %490 = vmatmul.mubr.f32.gmra.mrb[0].mxu0 %v409
    %v491 = vpop.f32.mrb[0].mxu0
    %v492 = vadd.f32 0.0, %v491
    %v493 = vpop.f32.mrb[0].mxu0
    %494 = vdwg.mxu0
    %s495 = scalar_lea.vmem %s3, 8
    %v496 = vld [vmem:[%s495] sm:$0xff]
    %vm497 = vcmask 64512
    %v499 = vsel %vm497, %v477, 0
    %v502 = vsel %vm497, %v482, 0
    %v505 = vsel %vm497, %v487, 0
    %v508 = vsel %vm497, %v492, 0
    %510 = vmatprep.subr.mxu0 0.0
    %511 = vmatpush1.msra.mxu0 %v496
    %512 = vmatprep.subr.mxu0 0.0
    %513 = vmatpush1.msra.mxu0 0.0
    %514 = vmatprep.subr.mxu0 0.0
    %515 = vmatpush1.msra.mxu0 0.0
    %516 = vmatprep.subr.mxu0 0.0
    %517 = vmatpush1.msra.mxu0 0.0
    %518 = vmatprep.subr.mxu0 0.0
    %519 = vmatpush1.msra.mxu0 0.0
    %520 = vmatprep.subr.mxu0 0.0
    %521 = vmatpush1.msra.mxu0 0.0
    %522 = vmatprep.subr.mxu0 0.0
    %523 = vmatpush1.msra.mxu0 0.0
    %524 = vmatprep.subr.mxu0 0.0
    %525 = vmatpush1.msra.mxu0 0.0
    %526 = vmatprep.subr.mxu0 0.0
    %527 = vmatpush1.msra.mxu0 0.0
    %528 = vmatprep.subr.mxu0 0.0
    %529 = vmatpush1.msra.mxu0 0.0
    %530 = vmatprep.subr.mxu0 0.0
    %531 = vmatpush1.msra.mxu0 0.0
    %532 = vmatprep.subr.mxu0 0.0
    %533 = vmatpush1.msra.mxu0 0.0
    %534 = vmatprep.subr.mxu0 0.0
    %535 = vmatpush1.msra.mxu0 0.0
    %536 = vmatprep.subr.mxu0 0.0
    %537 = vmatpush1.msra.mxu0 0.0
    %538 = vmatprep.subr.mxu0 0.0
    %539 = vmatpush1.msra.mxu0 0.0
    %540 = vmatprep.subr.mxu0 0.0
    %541 = vmatpush1.msra.mxu0 0.0
    %542 = vmatprep.subr.mxu0 0.0
    %543 = vmatpush1.msra.mxu0 0.0
    %544 = vmatprep.subr.mxu0 0.0
    %545 = vmatpush1.msra.mxu0 0.0
    %546 = vmatprep.subr.mxu0 0.0
    %547 = vmatpush1.msra.mxu0 0.0
    %548 = vmatprep.subr.mxu0 0.0
    %549 = vmatpush1.msra.mxu0 0.0
    %550 = vmatprep.subr.mxu0 0.0
    %551 = vmatpush1.msra.mxu0 0.0
    %552 = vmatprep.subr.mxu0 0.0
    %553 = vmatpush1.msra.mxu0 0.0
    %554 = vmatprep.subr.mxu0 0.0
    %555 = vmatpush1.msra.mxu0 0.0
    %556 = vmatprep.subr.mxu0 0.0
    %557 = vmatpush1.msra.mxu0 0.0
    %558 = vmatprep.subr.mxu0 0.0
    %559 = vmatpush1.msra.mxu0 0.0
    %560 = vmatprep.subr.mxu0 0.0
    %561 = vmatpush1.msra.mxu0 0.0
    %562 = vmatprep.subr.mxu0 0.0
    %563 = vmatpush1.msra.mxu0 0.0
    %564 = vmatprep.subr.mxu0 0.0
    %565 = vmatpush1.msra.mxu0 0.0
    %566 = vmatprep.subr.mxu0 0.0
    %567 = vmatpush1.msra.mxu0 0.0
    %568 = vmatprep.subr.mxu0 0.0
    %569 = vmatpush1.msra.mxu0 0.0
    %570 = vmatprep.subr.mxu0 0.0
    %571 = vmatpush1.msra.mxu0 0.0
    %572 = vmatprep.subr.mxu0 0.0
    %573 = vmatpush1.msra.mxu0 0.0
    %574 = vmatprep.mubr.f32.mxu0 0.0
    %575 = vmatmul.mubr.f32.gmra.mrb[0].mxu0 %v499
    %v576 = vpop.f32.mrb[0].mxu0
    %v577 = vadd.f32 0.0, %v576
    %v578 = vpop.f32.mrb[0].mxu0
    %579 = vmatprep.mubr.f32.mxu0 0.0
    %580 = vmatmul.mubr.f32.gmra.mrb[0].mxu0 %v502
    %v581 = vpop.f32.mrb[0].mxu0
    %v582 = vadd.f32 0.0, %v581
    %v583 = vpop.f32.mrb[0].mxu0
    %584 = vmatprep.mubr.f32.mxu0 0.0
    %585 = vmatmul.mubr.f32.gmra.mrb[0].mxu0 %v505
    %v586 = vpop.f32.mrb[0].mxu0
    %v587 = vadd.f32 0.0, %v586
    %v588 = vpop.f32.mrb[0].mxu0
    %589 = vmatprep.mubr.f32.mxu0 0.0
    %590 = vmatmul.mubr.f32.gmra.mrb[0].mxu0 %v508
    %v591 = vpop.f32.mrb[0].mxu0
    %v592 = vadd.f32 0.0, %v591
    %v593 = vpop.f32.mrb[0].mxu0
    %594 = vdwg.mxu0
    %v596 = vsel %vm497, %v386, 0
    %v599 = vsel %vm497, %v391, 0
    %v602 = vsel %vm497, %v396, 0
    %v605 = vsel %vm497, %v401, 0
    %607 = vmatprep.subr.mxu0 0.0
    %608 = vmatpush1.msra.mxu0 %v404
    %609 = vmatprep.subr.mxu0 0.0
    %610 = vmatpush1.msra.mxu0 0.0
    %611 = vmatprep.subr.mxu0 0.0
    %612 = vmatpush1.msra.mxu0 0.0
    %613 = vmatprep.subr.mxu0 0.0
    %614 = vmatpush1.msra.mxu0 0.0
    %615 = vmatprep.subr.mxu0 0.0
    %616 = vmatpush1.msra.mxu0 0.0
    %617 = vmatprep.subr.mxu0 0.0
    %618 = vmatpush1.msra.mxu0 0.0
    %619 = vmatprep.subr.mxu0 0.0
    %620 = vmatpush1.msra.mxu0 0.0
    %621 = vmatprep.subr.mxu0 0.0
    %622 = vmatpush1.msra.mxu0 0.0
    %623 = vmatprep.subr.mxu0 0.0
    %624 = vmatpush1.msra.mxu0 0.0
    %625 = vmatprep.subr.mxu0 0.0
    %626 = vmatpush1.msra.mxu0 0.0
    %627 = vmatprep.subr.mxu0 0.0
    %628 = vmatpush1.msra.mxu0 0.0
    %629 = vmatprep.subr.mxu0 0.0
    %630 = vmatpush1.msra.mxu0 0.0
    %631 = vmatprep.subr.mxu0 0.0
    %632 = vmatpush1.msra.mxu0 0.0
    %633 = vmatprep.subr.mxu0 0.0
    %634 = vmatpush1.msra.mxu0 0.0
    %635 = vmatprep.subr.mxu0 0.0
    %636 = vmatpush1.msra.mxu0 0.0
    %637 = vmatprep.subr.mxu0 0.0
    %638 = vmatpush1.msra.mxu0 0.0
    %639 = vmatprep.subr.mxu0 0.0
    %640 = vmatpush1.msra.mxu0 0.0
    %641 = vmatprep.subr.mxu0 0.0
    %642 = vmatpush1.msra.mxu0 0.0
    %643 = vmatprep.subr.mxu0 0.0
    %644 = vmatpush1.msra.mxu0 0.0
    %645 = vmatprep.subr.mxu0 0.0
    %646 = vmatpush1.msra.mxu0 0.0
    %647 = vmatprep.subr.mxu0 0.0
    %648 = vmatpush1.msra.mxu0 0.0
    %649 = vmatprep.subr.mxu0 0.0
    %650 = vmatpush1.msra.mxu0 0.0
    %651 = vmatprep.subr.mxu0 0.0
    %652 = vmatpush1.msra.mxu0 0.0
    %653 = vmatprep.subr.mxu0 0.0
    %654 = vmatpush1.msra.mxu0 0.0
    %655 = vmatprep.subr.mxu0 0.0
    %656 = vmatpush1.msra.mxu0 0.0
    %657 = vmatprep.subr.mxu0 0.0
    %658 = vmatpush1.msra.mxu0 0.0
    %659 = vmatprep.subr.mxu0 0.0
    %660 = vmatpush1.msra.mxu0 0.0
    %661 = vmatprep.subr.mxu0 0.0
    %662 = vmatpush1.msra.mxu0 0.0
    %663 = vmatprep.subr.mxu0 0.0
    %664 = vmatpush1.msra.mxu0 0.0
    %665 = vmatprep.subr.mxu0 0.0
    %666 = vmatpush1.msra.mxu0 0.0
    %667 = vmatprep.subr.mxu0 0.0
    %668 = vmatpush1.msra.mxu0 0.0
    %669 = vmatprep.subr.mxu0 0.0
    %670 = vmatpush1.msra.mxu0 0.0
    %671 = vmatprep.mubr.f32.mxu0 0.0
    %672 = vmatmul.mubr.f32.gmra.mrb[0].mxu0 %v596
    %v673 = vpop.f32.mrb[0].mxu0
    %v674 = vadd.f32 %v577, %v673
    %v675 = vpop.f32.mrb[0].mxu0
    %676 = vmatprep.mubr.f32.mxu0 0.0
    %677 = vmatmul.mubr.f32.gmra.mrb[0].mxu0 %v599
    %v678 = vpop.f32.mrb[0].mxu0
    %v679 = vadd.f32 %v582, %v678
    %v680 = vpop.f32.mrb[0].mxu0
    %681 = vmatprep.mubr.f32.mxu0 0.0
    %682 = vmatmul.mubr.f32.gmra.mrb[0].mxu0 %v602
    %v683 = vpop.f32.mrb[0].mxu0
    %v684 = vadd.f32 %v587, %v683
    %v685 = vpop.f32.mrb[0].mxu0
    %686 = vmatprep.mubr.f32.mxu0 0.0
    %687 = vmatmul.mubr.f32.gmra.mrb[0].mxu0 %v605
    %v688 = vpop.f32.mrb[0].mxu0
    %v689 = vadd.f32 %v592, %v688
    %v690 = vpop.f32.mrb[0].mxu0
    %691 = vdwg.mxu0
    %s692 = scalar_lea.vmem %s2, 64
    %v693 = vld [vmem:[%s692] sm:$0xff]
    %v694 = vld [vmem:[%s692 + $0x8] sm:$0xff]
    %v695 = vld [vmem:[%s692 + $0x10] sm:$0xff]
    %v696 = vld [vmem:[%s692 + $0x18] sm:$0xff]
    %697 = vmatprep.subr.mxu0 0.0
    %698 = vmatpush1.msra.mxu0 %v299
    %699 = vmatprep.subr.mxu0 0.0
    %700 = vmatpush1.msra.mxu0 %v300
    %701 = vmatprep.subr.mxu0 0.0
    %702 = vmatpush1.msra.mxu0 %v301
    %703 = vmatprep.subr.mxu0 0.0
    %704 = vmatpush1.msra.mxu0 %v302
    %705 = vmatprep.subr.mxu0 0.0
    %706 = vmatpush1.msra.mxu0 %v303
    %707 = vmatprep.subr.mxu0 0.0
    %708 = vmatpush1.msra.mxu0 %v304
    %709 = vmatprep.subr.mxu0 0.0
    %710 = vmatpush1.msra.mxu0 %v305
    %711 = vmatprep.subr.mxu0 0.0
    %712 = vmatpush1.msra.mxu0 %v306
    %713 = vmatprep.subr.mxu0 0.0
    %714 = vmatpush1.msra.mxu0 %v307
    %715 = vmatprep.subr.mxu0 0.0
    %716 = vmatpush1.msra.mxu0 %v308
    %717 = vmatprep.subr.mxu0 0.0
    %718 = vmatpush1.msra.mxu0 %v309
    %719 = vmatprep.subr.mxu0 0.0
    %720 = vmatpush1.msra.mxu0 %v310
    %721 = vmatprep.subr.mxu0 0.0
    %722 = vmatpush1.msra.mxu0 %v311
    %723 = vmatprep.subr.mxu0 0.0
    %724 = vmatpush1.msra.mxu0 %v312
    %725 = vmatprep.subr.mxu0 0.0
    %726 = vmatpush1.msra.mxu0 %v313
    %727 = vmatprep.subr.mxu0 0.0
    %728 = vmatpush1.msra.mxu0 %v314
    %729 = vmatprep.subr.mxu0 0.0
    %730 = vmatpush1.msra.mxu0 0.0
    %731 = vmatprep.subr.mxu0 0.0
    %732 = vmatpush1.msra.mxu0 0.0
    %733 = vmatprep.subr.mxu0 0.0
    %734 = vmatpush1.msra.mxu0 0.0
    %735 = vmatprep.subr.mxu0 0.0
    %736 = vmatpush1.msra.mxu0 0.0
    %737 = vmatprep.subr.mxu0 0.0
    %738 = vmatpush1.msra.mxu0 0.0
    %739 = vmatprep.subr.mxu0 0.0
    %740 = vmatpush1.msra.mxu0 0.0
    %741 = vmatprep.subr.mxu0 0.0
    %742 = vmatpush1.msra.mxu0 0.0
    %743 = vmatprep.subr.mxu0 0.0
    %744 = vmatpush1.msra.mxu0 0.0
    %745 = vmatprep.subr.mxu0 0.0
    %746 = vmatpush1.msra.mxu0 0.0
    %747 = vmatprep.subr.mxu0 0.0
    %748 = vmatpush1.msra.mxu0 0.0
    %749 = vmatprep.subr.mxu0 0.0
    %750 = vmatpush1.msra.mxu0 0.0
    %751 = vmatprep.subr.mxu0 0.0
    %752 = vmatpush1.msra.mxu0 0.0
    %753 = vmatprep.subr.mxu0 0.0
    %754 = vmatpush1.msra.mxu0 0.0
    %755 = vmatprep.subr.mxu0 0.0
    %756 = vmatpush1.msra.mxu0 0.0
    %757 = vmatprep.subr.mxu0 0.0
    %758 = vmatpush1.msra.mxu0 0.0
    %759 = vmatprep.subr.mxu0 0.0
    %760 = vmatpush1.msra.mxu0 0.0
    %761 = vmatprep.mubr.f32.mxu0 0.0
    %762 = vmatmul.mubr.f32.gmra.mrb[0].mxu0 %v693
    %v763 = vpop.f32.mrb[0].mxu0
    %v764 = vadd.f32 0.0, %v763
    %v765 = vpop.f32.mrb[0].mxu0
    %766 = vmatprep.mubr.f32.mxu0 0.0
    %767 = vmatmul.mubr.f32.gmra.mrb[0].mxu0 %v694
    %v768 = vpop.f32.mrb[0].mxu0
    %v769 = vadd.f32 0.0, %v768
    %v770 = vpop.f32.mrb[0].mxu0
    %771 = vmatprep.mubr.f32.mxu0 0.0
    %772 = vmatmul.mubr.f32.gmra.mrb[0].mxu0 %v695
    %v773 = vpop.f32.mrb[0].mxu0
    %v774 = vadd.f32 0.0, %v773
    %v775 = vpop.f32.mrb[0].mxu0
    %776 = vmatprep.mubr.f32.mxu0 0.0
    %777 = vmatmul.mubr.f32.gmra.mrb[0].mxu0 %v696
    %v778 = vpop.f32.mrb[0].mxu0
    %v779 = vadd.f32 0.0, %v778
    %v780 = vpop.f32.mrb[0].mxu0
    %781 = vdwg.mxu0
    %s782 = scalar_lea.vmem %s3, 16
    %v783 = vld [vmem:[%s782] sm:$0xff]
    %v785 = vsel %vm497, %v764, 0
    %v788 = vsel %vm497, %v769, 0
    %v791 = vsel %vm497, %v774, 0
    %v794 = vsel %vm497, %v779, 0
    %796 = vmatprep.subr.mxu0 0.0
    %797 = vmatpush1.msra.mxu0 %v783
    %798 = vmatprep.subr.mxu0 0.0
    %799 = vmatpush1.msra.mxu0 0.0
    %800 = vmatprep.subr.mxu0 0.0
    %801 = vmatpush1.msra.mxu0 0.0
    %802 = vmatprep.subr.mxu0 0.0
    %803 = vmatpush1.msra.mxu0 0.0
    %804 = vmatprep.subr.mxu0 0.0
    %805 = vmatpush1.msra.mxu0 0.0
    %806 = vmatprep.subr.mxu0 0.0
    %807 = vmatpush1.msra.mxu0 0.0
    %808 = vmatprep.subr.mxu0 0.0
    %809 = vmatpush1.msra.mxu0 0.0
    %810 = vmatprep.subr.mxu0 0.0
    %811 = vmatpush1.msra.mxu0 0.0
    %812 = vmatprep.subr.mxu0 0.0
    %813 = vmatpush1.msra.mxu0 0.0
    %814 = vmatprep.subr.mxu0 0.0
    %815 = vmatpush1.msra.mxu0 0.0
    %816 = vmatprep.subr.mxu0 0.0
    %817 = vmatpush1.msra.mxu0 0.0
    %818 = vmatprep.subr.mxu0 0.0
    %819 = vmatpush1.msra.mxu0 0.0
    %820 = vmatprep.subr.mxu0 0.0
    %821 = vmatpush1.msra.mxu0 0.0
    %822 = vmatprep.subr.mxu0 0.0
    %823 = vmatpush1.msra.mxu0 0.0
    %824 = vmatprep.subr.mxu0 0.0
    %825 = vmatpush1.msra.mxu0 0.0
    %826 = vmatprep.subr.mxu0 0.0
    %827 = vmatpush1.msra.mxu0 0.0
    %828 = vmatprep.subr.mxu0 0.0
    %829 = vmatpush1.msra.mxu0 0.0
    %830 = vmatprep.subr.mxu0 0.0
    %831 = vmatpush1.msra.mxu0 0.0
    %832 = vmatprep.subr.mxu0 0.0
    %833 = vmatpush1.msra.mxu0 0.0
    %834 = vmatprep.subr.mxu0 0.0
    %835 = vmatpush1.msra.mxu0 0.0
    %836 = vmatprep.subr.mxu0 0.0
    %837 = vmatpush1.msra.mxu0 0.0
    %838 = vmatprep.subr.mxu0 0.0
    %839 = vmatpush1.msra.mxu0 0.0
    %840 = vmatprep.subr.mxu0 0.0
    %841 = vmatpush1.msra.mxu0 0.0
    %842 = vmatprep.subr.mxu0 0.0
    %843 = vmatpush1.msra.mxu0 0.0
    %844 = vmatprep.subr.mxu0 0.0
    %845 = vmatpush1.msra.mxu0 0.0
    %846 = vmatprep.subr.mxu0 0.0
    %847 = vmatpush1.msra.mxu0 0.0
    %848 = vmatprep.subr.mxu0 0.0
    %849 = vmatpush1.msra.mxu0 0.0
    %850 = vmatprep.subr.mxu0 0.0
    %851 = vmatpush1.msra.mxu0 0.0
    %852 = vmatprep.subr.mxu0 0.0
    %853 = vmatpush1.msra.mxu0 0.0
    %854 = vmatprep.subr.mxu0 0.0
    %855 = vmatpush1.msra.mxu0 0.0
    %856 = vmatprep.subr.mxu0 0.0
    %857 = vmatpush1.msra.mxu0 0.0
    %858 = vmatprep.subr.mxu0 0.0
    %859 = vmatpush1.msra.mxu0 0.0
    %860 = vmatprep.mubr.f32.mxu0 0.0
    %861 = vmatmul.mubr.f32.gmra.mrb[0].mxu0 %v785
    %v862 = vpop.f32.mrb[0].mxu0
    %v863 = vadd.f32 0.0, %v862
    %v864 = vpop.f32.mrb[0].mxu0
    %865 = vmatprep.mubr.f32.mxu0 0.0
    %866 = vmatmul.mubr.f32.gmra.mrb[0].mxu0 %v788
    %v867 = vpop.f32.mrb[0].mxu0
    %v868 = vadd.f32 0.0, %v867
    %v869 = vpop.f32.mrb[0].mxu0
    %870 = vmatprep.mubr.f32.mxu0 0.0
    %871 = vmatmul.mubr.f32.gmra.mrb[0].mxu0 %v791
    %v872 = vpop.f32.mrb[0].mxu0
    %v873 = vadd.f32 0.0, %v872
    %v874 = vpop.f32.mrb[0].mxu0
    %875 = vmatprep.mubr.f32.mxu0 0.0
    %876 = vmatmul.mubr.f32.gmra.mrb[0].mxu0 %v794
    %v877 = vpop.f32.mrb[0].mxu0
    %v878 = vadd.f32 0.0, %v877
    %v879 = vpop.f32.mrb[0].mxu0
    %880 = vdwg.mxu0
    %v881 = vadd.f32 %v674, %v863
    %v882 = vadd.f32 %v679, %v868
    %v883 = vadd.f32 %v684, %v873
    %v884 = vadd.f32 %v689, %v878
    %s885 = scalar_lea.vmem %s2, 96
    %v886 = vld [vmem:[%s885] sm:$0xff]
    %v887 = vld [vmem:[%s885 + $0x8] sm:$0xff]
    %v888 = vld [vmem:[%s885 + $0x10] sm:$0xff]
    %v889 = vld [vmem:[%s885 + $0x18] sm:$0xff]
    %890 = vmatprep.subr.mxu0 0.0
    %891 = vmatpush1.msra.mxu0 %v299
    %892 = vmatprep.subr.mxu0 0.0
    %893 = vmatpush1.msra.mxu0 %v300
    %894 = vmatprep.subr.mxu0 0.0
    %895 = vmatpush1.msra.mxu0 %v301
    %896 = vmatprep.subr.mxu0 0.0
    %897 = vmatpush1.msra.mxu0 %v302
    %898 = vmatprep.subr.mxu0 0.0
    %899 = vmatpush1.msra.mxu0 %v303
    %900 = vmatprep.subr.mxu0 0.0
    %901 = vmatpush1.msra.mxu0 %v304
    %902 = vmatprep.subr.mxu0 0.0
    %903 = vmatpush1.msra.mxu0 %v305
    %904 = vmatprep.subr.mxu0 0.0
    %905 = vmatpush1.msra.mxu0 %v306
    %906 = vmatprep.subr.mxu0 0.0
    %907 = vmatpush1.msra.mxu0 %v307
    %908 = vmatprep.subr.mxu0 0.0
    %909 = vmatpush1.msra.mxu0 %v308
    %910 = vmatprep.subr.mxu0 0.0
    %911 = vmatpush1.msra.mxu0 %v309
    %912 = vmatprep.subr.mxu0 0.0
    %913 = vmatpush1.msra.mxu0 %v310
    %914 = vmatprep.subr.mxu0 0.0
    %915 = vmatpush1.msra.mxu0 %v311
    %916 = vmatprep.subr.mxu0 0.0
    %917 = vmatpush1.msra.mxu0 %v312
    %918 = vmatprep.subr.mxu0 0.0
    %919 = vmatpush1.msra.mxu0 %v313
    %920 = vmatprep.subr.mxu0 0.0
    %921 = vmatpush1.msra.mxu0 %v314
    %922 = vmatprep.subr.mxu0 0.0
    %923 = vmatpush1.msra.mxu0 0.0
    %924 = vmatprep.subr.mxu0 0.0
    %925 = vmatpush1.msra.mxu0 0.0
    %926 = vmatprep.subr.mxu0 0.0
    %927 = vmatpush1.msra.mxu0 0.0
    %928 = vmatprep.subr.mxu0 0.0
    %929 = vmatpush1.msra.mxu0 0.0
    %930 = vmatprep.subr.mxu0 0.0
    %931 = vmatpush1.msra.mxu0 0.0
    %932 = vmatprep.subr.mxu0 0.0
    %933 = vmatpush1.msra.mxu0 0.0
    %934 = vmatprep.subr.mxu0 0.0
    %935 = vmatpush1.msra.mxu0 0.0
    %936 = vmatprep.subr.mxu0 0.0
    %937 = vmatpush1.msra.mxu0 0.0
    %938 = vmatprep.subr.mxu0 0.0
    %939 = vmatpush1.msra.mxu0 0.0
    %940 = vmatprep.subr.mxu0 0.0
    %941 = vmatpush1.msra.mxu0 0.0
    %942 = vmatprep.subr.mxu0 0.0
    %943 = vmatpush1.msra.mxu0 0.0
    %944 = vmatprep.subr.mxu0 0.0
    %945 = vmatpush1.msra.mxu0 0.0
    %946 = vmatprep.subr.mxu0 0.0
    %947 = vmatpush1.msra.mxu0 0.0
    %948 = vmatprep.subr.mxu0 0.0
    %949 = vmatpush1.msra.mxu0 0.0
    %950 = vmatprep.subr.mxu0 0.0
    %951 = vmatpush1.msra.mxu0 0.0
    %952 = vmatprep.subr.mxu0 0.0
    %953 = vmatpush1.msra.mxu0 0.0
    %954 = vmatprep.mubr.f32.mxu0 0.0
    %955 = vmatmul.mubr.f32.gmra.mrb[0].mxu0 %v886
    %v956 = vpop.f32.mrb[0].mxu0
    %v957 = vadd.f32 0.0, %v956
    %v958 = vpop.f32.mrb[0].mxu0
    %959 = vmatprep.mubr.f32.mxu0 0.0
    %960 = vmatmul.mubr.f32.gmra.mrb[0].mxu0 %v887
    %v961 = vpop.f32.mrb[0].mxu0
    %v962 = vadd.f32 0.0, %v961
    %v963 = vpop.f32.mrb[0].mxu0
    %964 = vmatprep.mubr.f32.mxu0 0.0
    %965 = vmatmul.mubr.f32.gmra.mrb[0].mxu0 %v888
    %v966 = vpop.f32.mrb[0].mxu0
    %v967 = vadd.f32 0.0, %v966
    %v968 = vpop.f32.mrb[0].mxu0
    %969 = vmatprep.mubr.f32.mxu0 0.0
    %970 = vmatmul.mubr.f32.gmra.mrb[0].mxu0 %v889
    %v971 = vpop.f32.mrb[0].mxu0
    %v972 = vadd.f32 0.0, %v971
    %v973 = vpop.f32.mrb[0].mxu0
    %974 = vdwg.mxu0
    %s975 = scalar_lea.vmem %s3, 24
    %v976 = vld [vmem:[%s975] sm:$0xff]
    %v978 = vsel %vm497, %v957, 0
    %v981 = vsel %vm497, %v962, 0
    %v984 = vsel %vm497, %v967, 0
    %v987 = vsel %vm497, %v972, 0
    %989 = vmatprep.subr.mxu0 0.0
    %990 = vmatpush1.msra.mxu0 %v976
    %991 = vmatprep.subr.mxu0 0.0
    %992 = vmatpush1.msra.mxu0 0.0
    %993 = vmatprep.subr.mxu0 0.0
    %994 = vmatpush1.msra.mxu0 0.0
    %995 = vmatprep.subr.mxu0 0.0
    %996 = vmatpush1.msra.mxu0 0.0
    %997 = vmatprep.subr.mxu0 0.0
    %998 = vmatpush1.msra.mxu0 0.0
    %999 = vmatprep.subr.mxu0 0.0
    %1000 = vmatpush1.msra.mxu0 0.0
    %1001 = vmatprep.subr.mxu0 0.0
    %1002 = vmatpush1.msra.mxu0 0.0
    %1003 = vmatprep.subr.mxu0 0.0
    %1004 = vmatpush1.msra.mxu0 0.0
    %1005 = vmatprep.subr.mxu0 0.0
    %1006 = vmatpush1.msra.mxu0 0.0
    %1007 = vmatprep.subr.mxu0 0.0
    %1008 = vmatpush1.msra.mxu0 0.0
    %1009 = vmatprep.subr.mxu0 0.0
    %1010 = vmatpush1.msra.mxu0 0.0
    %1011 = vmatprep.subr.mxu0 0.0
    %1012 = vmatpush1.msra.mxu0 0.0
    %1013 = vmatprep.subr.mxu0 0.0
    %1014 = vmatpush1.msra.mxu0 0.0
    %1015 = vmatprep.subr.mxu0 0.0
    %1016 = vmatpush1.msra.mxu0 0.0
    %1017 = vmatprep.subr.mxu0 0.0
    %1018 = vmatpush1.msra.mxu0 0.0
    %1019 = vmatprep.subr.mxu0 0.0
    %1020 = vmatpush1.msra.mxu0 0.0
    %1021 = vmatprep.subr.mxu0 0.0
    %1022 = vmatpush1.msra.mxu0 0.0
    %1023 = vmatprep.subr.mxu0 0.0
    %1024 = vmatpush1.msra.mxu0 0.0
    %1025 = vmatprep.subr.mxu0 0.0
    %1026 = vmatpush1.msra.mxu0 0.0
    %1027 = vmatprep.subr.mxu0 0.0
    %1028 = vmatpush1.msra.mxu0 0.0
    %1029 = vmatprep.subr.mxu0 0.0
    %1030 = vmatpush1.msra.mxu0 0.0
    %1031 = vmatprep.subr.mxu0 0.0
    %1032 = vmatpush1.msra.mxu0 0.0
    %1033 = vmatprep.subr.mxu0 0.0
    %1034 = vmatpush1.msra.mxu0 0.0
    %1035 = vmatprep.subr.mxu0 0.0
    %1036 = vmatpush1.msra.mxu0 0.0
    %1037 = vmatprep.subr.mxu0 0.0
    %1038 = vmatpush1.msra.mxu0 0.0
    %1039 = vmatprep.subr.mxu0 0.0
    %1040 = vmatpush1.msra.mxu0 0.0
    %1041 = vmatprep.subr.mxu0 0.0
    %1042 = vmatpush1.msra.mxu0 0.0
    %1043 = vmatprep.subr.mxu0 0.0
    %1044 = vmatpush1.msra.mxu0 0.0
    %1045 = vmatprep.subr.mxu0 0.0
    %1046 = vmatpush1.msra.mxu0 0.0
    %1047 = vmatprep.subr.mxu0 0.0
    %1048 = vmatpush1.msra.mxu0 0.0
    %1049 = vmatprep.subr.mxu0 0.0
    %1050 = vmatpush1.msra.mxu0 0.0
    %1051 = vmatprep.subr.mxu0 0.0
    %1052 = vmatpush1.msra.mxu0 0.0
    %1053 = vmatprep.mubr.f32.mxu0 0.0
    %1054 = vmatmul.mubr.f32.gmra.mrb[0].mxu0 %v978
    %v1055 = vpop.f32.mrb[0].mxu0
    %v1056 = vadd.f32 0.0, %v1055
    %v1057 = vpop.f32.mrb[0].mxu0
    %1058 = vmatprep.mubr.f32.mxu0 0.0
    %1059 = vmatmul.mubr.f32.gmra.mrb[0].mxu0 %v981
    %v1060 = vpop.f32.mrb[0].mxu0
    %v1061 = vadd.f32 0.0, %v1060
    %v1062 = vpop.f32.mrb[0].mxu0
    %1063 = vmatprep.mubr.f32.mxu0 0.0
    %1064 = vmatmul.mubr.f32.gmra.mrb[0].mxu0 %v984
    %v1065 = vpop.f32.mrb[0].mxu0
    %v1066 = vadd.f32 0.0, %v1065
    %v1067 = vpop.f32.mrb[0].mxu0
    %1068 = vmatprep.mubr.f32.mxu0 0.0
    %1069 = vmatmul.mubr.f32.gmra.mrb[0].mxu0 %v987
    %v1070 = vpop.f32.mrb[0].mxu0
    %v1071 = vadd.f32 0.0, %v1070
    %v1072 = vpop.f32.mrb[0].mxu0
    %1073 = vdwg.mxu0
    %v1074 = vadd.f32 %v881, %v1056
    %v1075 = vadd.f32 %v882, %v1061
    %v1076 = vadd.f32 %v883, %v1066
    %v1077 = vadd.f32 %v884, %v1071
    %s1078 = scalar_lea.vmem %s2, 128
    %v1079 = vld [vmem:[%s1078] sm:$0xff]
    %v1080 = vld [vmem:[%s1078 + $0x8] sm:$0xff]
    %v1081 = vld [vmem:[%s1078 + $0x10] sm:$0xff]
    %v1082 = vld [vmem:[%s1078 + $0x18] sm:$0xff]
    %1083 = vmatprep.subr.mxu0 0.0
    %1084 = vmatpush1.msra.mxu0 %v299
    %1085 = vmatprep.subr.mxu0 0.0
    %1086 = vmatpush1.msra.mxu0 %v300
    %1087 = vmatprep.subr.mxu0 0.0
    %1088 = vmatpush1.msra.mxu0 %v301
    %1089 = vmatprep.subr.mxu0 0.0
    %1090 = vmatpush1.msra.mxu0 %v302
    %1091 = vmatprep.subr.mxu0 0.0
    %1092 = vmatpush1.msra.mxu0 %v303
    %1093 = vmatprep.subr.mxu0 0.0
    %1094 = vmatpush1.msra.mxu0 %v304
    %1095 = vmatprep.subr.mxu0 0.0
    %1096 = vmatpush1.msra.mxu0 %v305
    %1097 = vmatprep.subr.mxu0 0.0
    %1098 = vmatpush1.msra.mxu0 %v306
    %1099 = vmatprep.subr.mxu0 0.0
    %1100 = vmatpush1.msra.mxu0 %v307
    %1101 = vmatprep.subr.mxu0 0.0
    %1102 = vmatpush1.msra.mxu0 %v308
    %1103 = vmatprep.subr.mxu0 0.0
    %1104 = vmatpush1.msra.mxu0 %v309
    %1105 = vmatprep.subr.mxu0 0.0
    %1106 = vmatpush1.msra.mxu0 %v310
    %1107 = vmatprep.subr.mxu0 0.0
    %1108 = vmatpush1.msra.mxu0 %v311
    %1109 = vmatprep.subr.mxu0 0.0
    %1110 = vmatpush1.msra.mxu0 %v312
    %1111 = vmatprep.subr.mxu0 0.0
    %1112 = vmatpush1.msra.mxu0 %v313
    %1113 = vmatprep.subr.mxu0 0.0
    %1114 = vmatpush1.msra.mxu0 %v314
    %1115 = vmatprep.subr.mxu0 0.0
    %1116 = vmatpush1.msra.mxu0 0.0
    %1117 = vmatprep.subr.mxu0 0.0
    %1118 = vmatpush1.msra.mxu0 0.0
    %1119 = vmatprep.subr.mxu0 0.0
    %1120 = vmatpush1.msra.mxu0 0.0
    %1121 = vmatprep.subr.mxu0 0.0
    %1122 = vmatpush1.msra.mxu0 0.0
    %1123 = vmatprep.subr.mxu0 0.0
    %1124 = vmatpush1.msra.mxu0 0.0
    %1125 = vmatprep.subr.mxu0 0.0
    %1126 = vmatpush1.msra.mxu0 0.0
    %1127 = vmatprep.subr.mxu0 0.0
    %1128 = vmatpush1.msra.mxu0 0.0
    %1129 = vmatprep.subr.mxu0 0.0
    %1130 = vmatpush1.msra.mxu0 0.0
    %1131 = vmatprep.subr.mxu0 0.0
    %1132 = vmatpush1.msra.mxu0 0.0
    %1133 = vmatprep.subr.mxu0 0.0
    %1134 = vmatpush1.msra.mxu0 0.0
    %1135 = vmatprep.subr.mxu0 0.0
    %1136 = vmatpush1.msra.mxu0 0.0
    %1137 = vmatprep.subr.mxu0 0.0
    %1138 = vmatpush1.msra.mxu0 0.0
    %1139 = vmatprep.subr.mxu0 0.0
    %1140 = vmatpush1.msra.mxu0 0.0
    %1141 = vmatprep.subr.mxu0 0.0
    %1142 = vmatpush1.msra.mxu0 0.0
    %1143 = vmatprep.subr.mxu0 0.0
    %1144 = vmatpush1.msra.mxu0 0.0
    %1145 = vmatprep.subr.mxu0 0.0
    %1146 = vmatpush1.msra.mxu0 0.0
    %1147 = vmatprep.mubr.f32.mxu0 0.0
    %1148 = vmatmul.mubr.f32.gmra.mrb[0].mxu0 %v1079
    %v1149 = vpop.f32.mrb[0].mxu0
    %v1150 = vadd.f32 0.0, %v1149
    %v1151 = vpop.f32.mrb[0].mxu0
    %1152 = vmatprep.mubr.f32.mxu0 0.0
    %1153 = vmatmul.mubr.f32.gmra.mrb[0].mxu0 %v1080
    %v1154 = vpop.f32.mrb[0].mxu0
    %v1155 = vadd.f32 0.0, %v1154
    %v1156 = vpop.f32.mrb[0].mxu0
    %1157 = vmatprep.mubr.f32.mxu0 0.0
    %1158 = vmatmul.mubr.f32.gmra.mrb[0].mxu0 %v1081
    %v1159 = vpop.f32.mrb[0].mxu0
    %v1160 = vadd.f32 0.0, %v1159
    %v1161 = vpop.f32.mrb[0].mxu0
    %1162 = vmatprep.mubr.f32.mxu0 0.0
    %1163 = vmatmul.mubr.f32.gmra.mrb[0].mxu0 %v1082
    %v1164 = vpop.f32.mrb[0].mxu0
    %v1165 = vadd.f32 0.0, %v1164
    %v1166 = vpop.f32.mrb[0].mxu0
    %1167 = vdwg.mxu0
    %s1168 = scalar_lea.vmem %s3, 32
    %v1169 = vld [vmem:[%s1168] sm:$0xff]
    %v1171 = vsel %vm497, %v1150, 0
    %v1174 = vsel %vm497, %v1155, 0
    %v1177 = vsel %vm497, %v1160, 0
    %v1180 = vsel %vm497, %v1165, 0
    %1182 = vmatprep.subr.mxu0 0.0
    %1183 = vmatpush1.msra.mxu0 %v1169
    %1184 = vmatprep.subr.mxu0 0.0
    %1185 = vmatpush1.msra.mxu0 0.0
    %1186 = vmatprep.subr.mxu0 0.0
    %1187 = vmatpush1.msra.mxu0 0.0
    %1188 = vmatprep.subr.mxu0 0.0
    %1189 = vmatpush1.msra.mxu0 0.0
    %1190 = vmatprep.subr.mxu0 0.0
    %1191 = vmatpush1.msra.mxu0 0.0
    %1192 = vmatprep.subr.mxu0 0.0
    %1193 = vmatpush1.msra.mxu0 0.0
    %1194 = vmatprep.subr.mxu0 0.0
    %1195 = vmatpush1.msra.mxu0 0.0
    %1196 = vmatprep.subr.mxu0 0.0
    %1197 = vmatpush1.msra.mxu0 0.0
    %1198 = vmatprep.subr.mxu0 0.0
    %1199 = vmatpush1.msra.mxu0 0.0
    %1200 = vmatprep.subr.mxu0 0.0
    %1201 = vmatpush1.msra.mxu0 0.0
    %1202 = vmatprep.subr.mxu0 0.0
    %1203 = vmatpush1.msra.mxu0 0.0
    %1204 = vmatprep.subr.mxu0 0.0
    %1205 = vmatpush1.msra.mxu0 0.0
    %1206 = vmatprep.subr.mxu0 0.0
    %1207 = vmatpush1.msra.mxu0 0.0
    %1208 = vmatprep.subr.mxu0 0.0
    %1209 = vmatpush1.msra.mxu0 0.0
    %1210 = vmatprep.subr.mxu0 0.0
    %1211 = vmatpush1.msra.mxu0 0.0
    %1212 = vmatprep.subr.mxu0 0.0
    %1213 = vmatpush1.msra.mxu0 0.0
    %1214 = vmatprep.subr.mxu0 0.0
    %1215 = vmatpush1.msra.mxu0 0.0
    %1216 = vmatprep.subr.mxu0 0.0
    %1217 = vmatpush1.msra.mxu0 0.0
    %1218 = vmatprep.subr.mxu0 0.0
    %1219 = vmatpush1.msra.mxu0 0.0
    %1220 = vmatprep.subr.mxu0 0.0
    %1221 = vmatpush1.msra.mxu0 0.0
    %1222 = vmatprep.subr.mxu0 0.0
    %1223 = vmatpush1.msra.mxu0 0.0
    %1224 = vmatprep.subr.mxu0 0.0
    %1225 = vmatpush1.msra.mxu0 0.0
    %1226 = vmatprep.subr.mxu0 0.0
    %1227 = vmatpush1.msra.mxu0 0.0
    %1228 = vmatprep.subr.mxu0 0.0
    %1229 = vmatpush1.msra.mxu0 0.0
    %1230 = vmatprep.subr.mxu0 0.0
    %1231 = vmatpush1.msra.mxu0 0.0
    %1232 = vmatprep.subr.mxu0 0.0
    %1233 = vmatpush1.msra.mxu0 0.0
    %1234 = vmatprep.subr.mxu0 0.0
    %1235 = vmatpush1.msra.mxu0 0.0
    %1236 = vmatprep.subr.mxu0 0.0
    %1237 = vmatpush1.msra.mxu0 0.0
    %1238 = vmatprep.subr.mxu0 0.0
    %1239 = vmatpush1.msra.mxu0 0.0
    %1240 = vmatprep.subr.mxu0 0.0
    %1241 = vmatpush1.msra.mxu0 0.0
    %1242 = vmatprep.subr.mxu0 0.0
    %1243 = vmatpush1.msra.mxu0 0.0
    %1244 = vmatprep.subr.mxu0 0.0
    %1245 = vmatpush1.msra.mxu0 0.0
    %1246 = vmatprep.mubr.f32.mxu0 0.0
    %1247 = vmatmul.mubr.f32.gmra.mrb[0].mxu0 %v1171
    %v1248 = vpop.f32.mrb[0].mxu0
    %v1249 = vadd.f32 0.0, %v1248
    %v1250 = vpop.f32.mrb[0].mxu0
    %1251 = vmatprep.mubr.f32.mxu0 0.0
    %1252 = vmatmul.mubr.f32.gmra.mrb[0].mxu0 %v1174
    %v1253 = vpop.f32.mrb[0].mxu0
    %v1254 = vadd.f32 0.0, %v1253
    %v1255 = vpop.f32.mrb[0].mxu0
    %1256 = vmatprep.mubr.f32.mxu0 0.0
    %1257 = vmatmul.mubr.f32.gmra.mrb[0].mxu0 %v1177
    %v1258 = vpop.f32.mrb[0].mxu0
    %v1259 = vadd.f32 0.0, %v1258
    %v1260 = vpop.f32.mrb[0].mxu0
    %1261 = vmatprep.mubr.f32.mxu0 0.0
    %1262 = vmatmul.mubr.f32.gmra.mrb[0].mxu0 %v1180
    %v1263 = vpop.f32.mrb[0].mxu0
    %v1264 = vadd.f32 0.0, %v1263
    %v1265 = vpop.f32.mrb[0].mxu0
    %1266 = vdwg.mxu0
    %v1267 = vadd.f32 %v1074, %v1249
    %v1268 = vadd.f32 %v1075, %v1254
    %v1269 = vadd.f32 %v1076, %v1259
    %v1270 = vadd.f32 %v1077, %v1264
    %s1271 = scalar_lea.vmem %s2, 160
    %v1272 = vld [vmem:[%s1271] sm:$0xff]
    %v1273 = vld [vmem:[%s1271 + $0x8] sm:$0xff]
    %v1274 = vld [vmem:[%s1271 + $0x10] sm:$0xff]
    %v1275 = vld [vmem:[%s1271 + $0x18] sm:$0xff]
    %1276 = vmatprep.subr.mxu0 0.0
    %1277 = vmatpush1.msra.mxu0 %v299
    %1278 = vmatprep.subr.mxu0 0.0
    %1279 = vmatpush1.msra.mxu0 %v300
    %1280 = vmatprep.subr.mxu0 0.0
    %1281 = vmatpush1.msra.mxu0 %v301
    %1282 = vmatprep.subr.mxu0 0.0
    %1283 = vmatpush1.msra.mxu0 %v302
    %1284 = vmatprep.subr.mxu0 0.0
    %1285 = vmatpush1.msra.mxu0 %v303
    %1286 = vmatprep.subr.mxu0 0.0
    %1287 = vmatpush1.msra.mxu0 %v304
    %1288 = vmatprep.subr.mxu0 0.0
    %1289 = vmatpush1.msra.mxu0 %v305
    %1290 = vmatprep.subr.mxu0 0.0
    %1291 = vmatpush1.msra.mxu0 %v306
    %1292 = vmatprep.subr.mxu0 0.0
    %1293 = vmatpush1.msra.mxu0 %v307
    %1294 = vmatprep.subr.mxu0 0.0
    %1295 = vmatpush1.msra.mxu0 %v308
    %1296 = vmatprep.subr.mxu0 0.0
    %1297 = vmatpush1.msra.mxu0 %v309
    %1298 = vmatprep.subr.mxu0 0.0
    %1299 = vmatpush1.msra.mxu0 %v310
    %1300 = vmatprep.subr.mxu0 0.0
    %1301 = vmatpush1.msra.mxu0 %v311
    %1302 = vmatprep.subr.mxu0 0.0
    %1303 = vmatpush1.msra.mxu0 %v312
    %1304 = vmatprep.subr.mxu0 0.0
    %1305 = vmatpush1.msra.mxu0 %v313
    %1306 = vmatprep.subr.mxu0 0.0
    %1307 = vmatpush1.msra.mxu0 %v314
    %1308 = vmatprep.subr.mxu0 0.0
    %1309 = vmatpush1.msra.mxu0 0.0
    %1310 = vmatprep.subr.mxu0 0.0
    %1311 = vmatpush1.msra.mxu0 0.0
    %1312 = vmatprep.subr.mxu0 0.0
    %1313 = vmatpush1.msra.mxu0 0.0
    %1314 = vmatprep.subr.mxu0 0.0
    %1315 = vmatpush1.msra.mxu0 0.0
    %1316 = vmatprep.subr.mxu0 0.0
    %1317 = vmatpush1.msra.mxu0 0.0
    %1318 = vmatprep.subr.mxu0 0.0
    %1319 = vmatpush1.msra.mxu0 0.0
    %1320 = vmatprep.subr.mxu0 0.0
    %1321 = vmatpush1.msra.mxu0 0.0
    %1322 = vmatprep.subr.mxu0 0.0
    %1323 = vmatpush1.msra.mxu0 0.0
    %1324 = vmatprep.subr.mxu0 0.0
    %1325 = vmatpush1.msra.mxu0 0.0
    %1326 = vmatprep.subr.mxu0 0.0
    %1327 = vmatpush1.msra.mxu0 0.0
    %1328 = vmatprep.subr.mxu0 0.0
    %1329 = vmatpush1.msra.mxu0 0.0
    %1330 = vmatprep.subr.mxu0 0.0
    %1331 = vmatpush1.msra.mxu0 0.0
    %1332 = vmatprep.subr.mxu0 0.0
    %1333 = vmatpush1.msra.mxu0 0.0
    %1334 = vmatprep.subr.mxu0 0.0
    %1335 = vmatpush1.msra.mxu0 0.0
    %1336 = vmatprep.subr.mxu0 0.0
    %1337 = vmatpush1.msra.mxu0 0.0
    %1338 = vmatprep.subr.mxu0 0.0
    %1339 = vmatpush1.msra.mxu0 0.0
    %1340 = vmatprep.mubr.f32.mxu0 0.0
    %1341 = vmatmul.mubr.f32.gmra.mrb[0].mxu0 %v1272
    %v1342 = vpop.f32.mrb[0].mxu0
    %v1343 = vadd.f32 0.0, %v1342
    %v1344 = vpop.f32.mrb[0].mxu0
    %1345 = vmatprep.mubr.f32.mxu0 0.0
    %1346 = vmatmul.mubr.f32.gmra.mrb[0].mxu0 %v1273
    %v1347 = vpop.f32.mrb[0].mxu0
    %v1348 = vadd.f32 0.0, %v1347
    %v1349 = vpop.f32.mrb[0].mxu0
    %1350 = vmatprep.mubr.f32.mxu0 0.0
    %1351 = vmatmul.mubr.f32.gmra.mrb[0].mxu0 %v1274
    %v1352 = vpop.f32.mrb[0].mxu0
    %v1353 = vadd.f32 0.0, %v1352
    %v1354 = vpop.f32.mrb[0].mxu0
    %1355 = vmatprep.mubr.f32.mxu0 0.0
    %1356 = vmatmul.mubr.f32.gmra.mrb[0].mxu0 %v1275
    %v1357 = vpop.f32.mrb[0].mxu0
    %v1358 = vadd.f32 0.0, %v1357
    %v1359 = vpop.f32.mrb[0].mxu0
    %1360 = vdwg.mxu0
    %s1361 = scalar_lea.vmem %s3, 40
    %v1362 = vld [vmem:[%s1361] sm:$0xff]
    %v1364 = vsel %vm497, %v1343, 0
    %v1367 = vsel %vm497, %v1348, 0
    %v1370 = vsel %vm497, %v1353, 0
    %v1373 = vsel %vm497, %v1358, 0
    %1375 = vmatprep.subr.mxu0 0.0
    %1376 = vmatpush1.msra.mxu0 %v1362
    %1377 = vmatprep.subr.mxu0 0.0
    %1378 = vmatpush1.msra.mxu0 0.0
    %1379 = vmatprep.subr.mxu0 0.0
    %1380 = vmatpush1.msra.mxu0 0.0
    %1381 = vmatprep.subr.mxu0 0.0
    %1382 = vmatpush1.msra.mxu0 0.0
    %1383 = vmatprep.subr.mxu0 0.0
    %1384 = vmatpush1.msra.mxu0 0.0
    %1385 = vmatprep.subr.mxu0 0.0
    %1386 = vmatpush1.msra.mxu0 0.0
    %1387 = vmatprep.subr.mxu0 0.0
    %1388 = vmatpush1.msra.mxu0 0.0
    %1389 = vmatprep.subr.mxu0 0.0
    %1390 = vmatpush1.msra.mxu0 0.0
    %1391 = vmatprep.subr.mxu0 0.0
    %1392 = vmatpush1.msra.mxu0 0.0
    %1393 = vmatprep.subr.mxu0 0.0
    %1394 = vmatpush1.msra.mxu0 0.0
    %1395 = vmatprep.subr.mxu0 0.0
    %1396 = vmatpush1.msra.mxu0 0.0
    %1397 = vmatprep.subr.mxu0 0.0
    %1398 = vmatpush1.msra.mxu0 0.0
    %1399 = vmatprep.subr.mxu0 0.0
    %1400 = vmatpush1.msra.mxu0 0.0
    %1401 = vmatprep.subr.mxu0 0.0
    %1402 = vmatpush1.msra.mxu0 0.0
    %1403 = vmatprep.subr.mxu0 0.0
    %1404 = vmatpush1.msra.mxu0 0.0
    %1405 = vmatprep.subr.mxu0 0.0
    %1406 = vmatpush1.msra.mxu0 0.0
    %1407 = vmatprep.subr.mxu0 0.0
    %1408 = vmatpush1.msra.mxu0 0.0
    %1409 = vmatprep.subr.mxu0 0.0
    %1410 = vmatpush1.msra.mxu0 0.0
    %1411 = vmatprep.subr.mxu0 0.0
    %1412 = vmatpush1.msra.mxu0 0.0
    %1413 = vmatprep.subr.mxu0 0.0
    %1414 = vmatpush1.msra.mxu0 0.0
    %1415 = vmatprep.subr.mxu0 0.0
    %1416 = vmatpush1.msra.mxu0 0.0
    %1417 = vmatprep.subr.mxu0 0.0
    %1418 = vmatpush1.msra.mxu0 0.0
    %1419 = vmatprep.subr.mxu0 0.0
    %1420 = vmatpush1.msra.mxu0 0.0
    %1421 = vmatprep.subr.mxu0 0.0
    %1422 = vmatpush1.msra.mxu0 0.0
    %1423 = vmatprep.subr.mxu0 0.0
    %1424 = vmatpush1.msra.mxu0 0.0
    %1425 = vmatprep.subr.mxu0 0.0
    %1426 = vmatpush1.msra.mxu0 0.0
    %1427 = vmatprep.subr.mxu0 0.0
    %1428 = vmatpush1.msra.mxu0 0.0
    %1429 = vmatprep.subr.mxu0 0.0
    %1430 = vmatpush1.msra.mxu0 0.0
    %1431 = vmatprep.subr.mxu0 0.0
    %1432 = vmatpush1.msra.mxu0 0.0
    %1433 = vmatprep.subr.mxu0 0.0
    %1434 = vmatpush1.msra.mxu0 0.0
    %1435 = vmatprep.subr.mxu0 0.0
    %1436 = vmatpush1.msra.mxu0 0.0
    %1437 = vmatprep.subr.mxu0 0.0
    %1438 = vmatpush1.msra.mxu0 0.0
    %1439 = vmatprep.mubr.f32.mxu0 0.0
    %1440 = vmatmul.mubr.f32.gmra.mrb[0].mxu0 %v1364
    %v1441 = vpop.f32.mrb[0].mxu0
    %v1442 = vadd.f32 0.0, %v1441
    %v1443 = vpop.f32.mrb[0].mxu0
    %1444 = vmatprep.mubr.f32.mxu0 0.0
    %1445 = vmatmul.mubr.f32.gmra.mrb[0].mxu0 %v1367
    %v1446 = vpop.f32.mrb[0].mxu0
    %v1447 = vadd.f32 0.0, %v1446
    %v1448 = vpop.f32.mrb[0].mxu0
    %1449 = vmatprep.mubr.f32.mxu0 0.0
    %1450 = vmatmul.mubr.f32.gmra.mrb[0].mxu0 %v1370
    %v1451 = vpop.f32.mrb[0].mxu0
    %v1452 = vadd.f32 0.0, %v1451
    %v1453 = vpop.f32.mrb[0].mxu0
    %1454 = vmatprep.mubr.f32.mxu0 0.0
    %1455 = vmatmul.mubr.f32.gmra.mrb[0].mxu0 %v1373
    %v1456 = vpop.f32.mrb[0].mxu0
    %v1457 = vadd.f32 0.0, %v1456
    %v1458 = vpop.f32.mrb[0].mxu0
    %1459 = vdwg.mxu0
    %v1460 = vadd.f32 %v1267, %v1442
    %v1461 = vadd.f32 %v1268, %v1447
    %v1462 = vadd.f32 %v1269, %v1452
    %v1463 = vadd.f32 %v1270, %v1457
    %s1464 = scalar_lea.vmem %s2, 192
    %v1465 = vld [vmem:[%s1464] sm:$0xff]
    %v1466 = vld [vmem:[%s1464 + $0x8] sm:$0xff]
    %v1467 = vld [vmem:[%s1464 + $0x10] sm:$0xff]
    %v1468 = vld [vmem:[%s1464 + $0x18] sm:$0xff]
    %1469 = vmatprep.subr.mxu0 0.0
    %1470 = vmatpush1.msra.mxu0 %v299
    %1471 = vmatprep.subr.mxu0 0.0
    %1472 = vmatpush1.msra.mxu0 %v300
    %1473 = vmatprep.subr.mxu0 0.0
    %1474 = vmatpush1.msra.mxu0 %v301
    %1475 = vmatprep.subr.mxu0 0.0
    %1476 = vmatpush1.msra.mxu0 %v302
    %1477 = vmatprep.subr.mxu0 0.0
    %1478 = vmatpush1.msra.mxu0 %v303
    %1479 = vmatprep.subr.mxu0 0.0
    %1480 = vmatpush1.msra.mxu0 %v304
    %1481 = vmatprep.subr.mxu0 0.0
    %1482 = vmatpush1.msra.mxu0 %v305
    %1483 = vmatprep.subr.mxu0 0.0
    %1484 = vmatpush1.msra.mxu0 %v306
    %1485 = vmatprep.subr.mxu0 0.0
    %1486 = vmatpush1.msra.mxu0 %v307
    %1487 = vmatprep.subr.mxu0 0.0
    %1488 = vmatpush1.msra.mxu0 %v308
    %1489 = vmatprep.subr.mxu0 0.0
    %1490 = vmatpush1.msra.mxu0 %v309
    %1491 = vmatprep.subr.mxu0 0.0
    %1492 = vmatpush1.msra.mxu0 %v310
    %1493 = vmatprep.subr.mxu0 0.0
    %1494 = vmatpush1.msra.mxu0 %v311
    %1495 = vmatprep.subr.mxu0 0.0
    %1496 = vmatpush1.msra.mxu0 %v312
    %1497 = vmatprep.subr.mxu0 0.0
    %1498 = vmatpush1.msra.mxu0 %v313
    %1499 = vmatprep.subr.mxu0 0.0
    %1500 = vmatpush1.msra.mxu0 %v314
    %1501 = vmatprep.subr.mxu0 0.0
    %1502 = vmatpush1.msra.mxu0 0.0
    %1503 = vmatprep.subr.mxu0 0.0
    %1504 = vmatpush1.msra.mxu0 0.0
    %1505 = vmatprep.subr.mxu0 0.0
    %1506 = vmatpush1.msra.mxu0 0.0
    %1507 = vmatprep.subr.mxu0 0.0
    %1508 = vmatpush1.msra.mxu0 0.0
    %1509 = vmatprep.subr.mxu0 0.0
    %1510 = vmatpush1.msra.mxu0 0.0
    %1511 = vmatprep.subr.mxu0 0.0
    %1512 = vmatpush1.msra.mxu0 0.0
    %1513 = vmatprep.subr.mxu0 0.0
    %1514 = vmatpush1.msra.mxu0 0.0
    %1515 = vmatprep.subr.mxu0 0.0
    %1516 = vmatpush1.msra.mxu0 0.0
    %1517 = vmatprep.subr.mxu0 0.0
    %1518 = vmatpush1.msra.mxu0 0.0
    %1519 = vmatprep.subr.mxu0 0.0
    %1520 = vmatpush1.msra.mxu0 0.0
    %1521 = vmatprep.subr.mxu0 0.0
    %1522 = vmatpush1.msra.mxu0 0.0
    %1523 = vmatprep.subr.mxu0 0.0
    %1524 = vmatpush1.msra.mxu0 0.0
    %1525 = vmatprep.subr.mxu0 0.0
    %1526 = vmatpush1.msra.mxu0 0.0
    %1527 = vmatprep.subr.mxu0 0.0
    %1528 = vmatpush1.msra.mxu0 0.0
    %1529 = vmatprep.subr.mxu0 0.0
    %1530 = vmatpush1.msra.mxu0 0.0
    %1531 = vmatprep.subr.mxu0 0.0
    %1532 = vmatpush1.msra.mxu0 0.0
    %1533 = vmatprep.mubr.f32.mxu0 0.0
    %1534 = vmatmul.mubr.f32.gmra.mrb[0].mxu0 %v1465
    %v1535 = vpop.f32.mrb[0].mxu0
    %v1536 = vadd.f32 0.0, %v1535
    %v1537 = vpop.f32.mrb[0].mxu0
    %1538 = vmatprep.mubr.f32.mxu0 0.0
    %1539 = vmatmul.mubr.f32.gmra.mrb[0].mxu0 %v1466
    %v1540 = vpop.f32.mrb[0].mxu0
    %v1541 = vadd.f32 0.0, %v1540
    %v1542 = vpop.f32.mrb[0].mxu0
    %1543 = vmatprep.mubr.f32.mxu0 0.0
    %1544 = vmatmul.mubr.f32.gmra.mrb[0].mxu0 %v1467
    %v1545 = vpop.f32.mrb[0].mxu0
    %v1546 = vadd.f32 0.0, %v1545
    %v1547 = vpop.f32.mrb[0].mxu0
    %1548 = vmatprep.mubr.f32.mxu0 0.0
    %1549 = vmatmul.mubr.f32.gmra.mrb[0].mxu0 %v1468
    %v1550 = vpop.f32.mrb[0].mxu0
    %v1551 = vadd.f32 0.0, %v1550
    %v1552 = vpop.f32.mrb[0].mxu0
    %1553 = vdwg.mxu0
    %s1554 = scalar_lea.vmem %s3, 48
    %v1555 = vld [vmem:[%s1554] sm:$0xff]
    %v1557 = vsel %vm497, %v1536, 0
    %v1560 = vsel %vm497, %v1541, 0
    %v1563 = vsel %vm497, %v1546, 0
    %v1566 = vsel %vm497, %v1551, 0
    %1568 = vmatprep.subr.mxu0 0.0
    %1569 = vmatpush1.msra.mxu0 %v1555
    %1570 = vmatprep.subr.mxu0 0.0
    %1571 = vmatpush1.msra.mxu0 0.0
    %1572 = vmatprep.subr.mxu0 0.0
    %1573 = vmatpush1.msra.mxu0 0.0
    %1574 = vmatprep.subr.mxu0 0.0
    %1575 = vmatpush1.msra.mxu0 0.0
    %1576 = vmatprep.subr.mxu0 0.0
    %1577 = vmatpush1.msra.mxu0 0.0
    %1578 = vmatprep.subr.mxu0 0.0
    %1579 = vmatpush1.msra.mxu0 0.0
    %1580 = vmatprep.subr.mxu0 0.0
    %1581 = vmatpush1.msra.mxu0 0.0
    %1582 = vmatprep.subr.mxu0 0.0
    %1583 = vmatpush1.msra.mxu0 0.0
    %1584 = vmatprep.subr.mxu0 0.0
    %1585 = vmatpush1.msra.mxu0 0.0
    %1586 = vmatprep.subr.mxu0 0.0
    %1587 = vmatpush1.msra.mxu0 0.0
    %1588 = vmatprep.subr.mxu0 0.0
    %1589 = vmatpush1.msra.mxu0 0.0
    %1590 = vmatprep.subr.mxu0 0.0
    %1591 = vmatpush1.msra.mxu0 0.0
    %1592 = vmatprep.subr.mxu0 0.0
    %1593 = vmatpush1.msra.mxu0 0.0
    %1594 = vmatprep.subr.mxu0 0.0
    %1595 = vmatpush1.msra.mxu0 0.0
    %1596 = vmatprep.subr.mxu0 0.0
    %1597 = vmatpush1.msra.mxu0 0.0
    %1598 = vmatprep.subr.mxu0 0.0
    %1599 = vmatpush1.msra.mxu0 0.0
    %1600 = vmatprep.subr.mxu0 0.0
    %1601 = vmatpush1.msra.mxu0 0.0
    %1602 = vmatprep.subr.mxu0 0.0
    %1603 = vmatpush1.msra.mxu0 0.0
    %1604 = vmatprep.subr.mxu0 0.0
    %1605 = vmatpush1.msra.mxu0 0.0
    %1606 = vmatprep.subr.mxu0 0.0
    %1607 = vmatpush1.msra.mxu0 0.0
    %1608 = vmatprep.subr.mxu0 0.0
    %1609 = vmatpush1.msra.mxu0 0.0
    %1610 = vmatprep.subr.mxu0 0.0
    %1611 = vmatpush1.msra.mxu0 0.0
    %1612 = vmatprep.subr.mxu0 0.0
    %1613 = vmatpush1.msra.mxu0 0.0
    %1614 = vmatprep.subr.mxu0 0.0
    %1615 = vmatpush1.msra.mxu0 0.0
    %1616 = vmatprep.subr.mxu0 0.0
    %1617 = vmatpush1.msra.mxu0 0.0
    %1618 = vmatprep.subr.mxu0 0.0
    %1619 = vmatpush1.msra.mxu0 0.0
    %1620 = vmatprep.subr.mxu0 0.0
    %1621 = vmatpush1.msra.mxu0 0.0
    %1622 = vmatprep.subr.mxu0 0.0
    %1623 = vmatpush1.msra.mxu0 0.0
    %1624 = vmatprep.subr.mxu0 0.0
    %1625 = vmatpush1.msra.mxu0 0.0
    %1626 = vmatprep.subr.mxu0 0.0
    %1627 = vmatpush1.msra.mxu0 0.0
    %1628 = vmatprep.subr.mxu0 0.0
    %1629 = vmatpush1.msra.mxu0 0.0
    %1630 = vmatprep.subr.mxu0 0.0
    %1631 = vmatpush1.msra.mxu0 0.0
    %1632 = vmatprep.mubr.f32.mxu0 0.0
    %1633 = vmatmul.mubr.f32.gmra.mrb[0].mxu0 %v1557
    %v1634 = vpop.f32.mrb[0].mxu0
    %v1635 = vadd.f32 0.0, %v1634
    %v1636 = vpop.f32.mrb[0].mxu0
    %1637 = vmatprep.mubr.f32.mxu0 0.0
    %1638 = vmatmul.mubr.f32.gmra.mrb[0].mxu0 %v1560
    %v1639 = vpop.f32.mrb[0].mxu0
    %v1640 = vadd.f32 0.0, %v1639
    %v1641 = vpop.f32.mrb[0].mxu0
    %1642 = vmatprep.mubr.f32.mxu0 0.0
    %1643 = vmatmul.mubr.f32.gmra.mrb[0].mxu0 %v1563
    %v1644 = vpop.f32.mrb[0].mxu0
    %v1645 = vadd.f32 0.0, %v1644
    %v1646 = vpop.f32.mrb[0].mxu0
    %1647 = vmatprep.mubr.f32.mxu0 0.0
    %1648 = vmatmul.mubr.f32.gmra.mrb[0].mxu0 %v1566
    %v1649 = vpop.f32.mrb[0].mxu0
    %v1650 = vadd.f32 0.0, %v1649
    %v1651 = vpop.f32.mrb[0].mxu0
    %1652 = vdwg.mxu0
    %v1653 = vadd.f32 %v1460, %v1635
    %v1654 = vadd.f32 %v1461, %v1640
    %v1655 = vadd.f32 %v1462, %v1645
    %v1656 = vadd.f32 %v1463, %v1650
    %s1657 = scalar_lea.vmem %s2, 224
    %v1658 = vld [vmem:[%s1657] sm:$0xff]
    %v1659 = vld [vmem:[%s1657 + $0x8] sm:$0xff]
    %v1660 = vld [vmem:[%s1657 + $0x10] sm:$0xff]
    %v1661 = vld [vmem:[%s1657 + $0x18] sm:$0xff]
    %1662 = vmatprep.subr.mxu0 0.0
    %1663 = vmatpush1.msra.mxu0 %v299
    %1664 = vmatprep.subr.mxu0 0.0
    %1665 = vmatpush1.msra.mxu0 %v300
    %1666 = vmatprep.subr.mxu0 0.0
    %1667 = vmatpush1.msra.mxu0 %v301
    %1668 = vmatprep.subr.mxu0 0.0
    %1669 = vmatpush1.msra.mxu0 %v302
    %1670 = vmatprep.subr.mxu0 0.0
    %1671 = vmatpush1.msra.mxu0 %v303
    %1672 = vmatprep.subr.mxu0 0.0
    %1673 = vmatpush1.msra.mxu0 %v304
    %1674 = vmatprep.subr.mxu0 0.0
    %1675 = vmatpush1.msra.mxu0 %v305
    %1676 = vmatprep.subr.mxu0 0.0
    %1677 = vmatpush1.msra.mxu0 %v306
    %1678 = vmatprep.subr.mxu0 0.0
    %1679 = vmatpush1.msra.mxu0 %v307
    %1680 = vmatprep.subr.mxu0 0.0
    %1681 = vmatpush1.msra.mxu0 %v308
    %1682 = vmatprep.subr.mxu0 0.0
    %1683 = vmatpush1.msra.mxu0 %v309
    %1684 = vmatprep.subr.mxu0 0.0
    %1685 = vmatpush1.msra.mxu0 %v310
    %1686 = vmatprep.subr.mxu0 0.0
    %1687 = vmatpush1.msra.mxu0 %v311
    %1688 = vmatprep.subr.mxu0 0.0
    %1689 = vmatpush1.msra.mxu0 %v312
    %1690 = vmatprep.subr.mxu0 0.0
    %1691 = vmatpush1.msra.mxu0 %v313
    %1692 = vmatprep.subr.mxu0 0.0
    %1693 = vmatpush1.msra.mxu0 %v314
    %1694 = vmatprep.subr.mxu0 0.0
    %1695 = vmatpush1.msra.mxu0 0.0
    %1696 = vmatprep.subr.mxu0 0.0
    %1697 = vmatpush1.msra.mxu0 0.0
    %1698 = vmatprep.subr.mxu0 0.0
    %1699 = vmatpush1.msra.mxu0 0.0
    %1700 = vmatprep.subr.mxu0 0.0
    %1701 = vmatpush1.msra.mxu0 0.0
    %1702 = vmatprep.subr.mxu0 0.0
    %1703 = vmatpush1.msra.mxu0 0.0
    %1704 = vmatprep.subr.mxu0 0.0
    %1705 = vmatpush1.msra.mxu0 0.0
    %1706 = vmatprep.subr.mxu0 0.0
    %1707 = vmatpush1.msra.mxu0 0.0
    %1708 = vmatprep.subr.mxu0 0.0
    %1709 = vmatpush1.msra.mxu0 0.0
    %1710 = vmatprep.subr.mxu0 0.0
    %1711 = vmatpush1.msra.mxu0 0.0
    %1712 = vmatprep.subr.mxu0 0.0
    %1713 = vmatpush1.msra.mxu0 0.0
    %1714 = vmatprep.subr.mxu0 0.0
    %1715 = vmatpush1.msra.mxu0 0.0
    %1716 = vmatprep.subr.mxu0 0.0
    %1717 = vmatpush1.msra.mxu0 0.0
    %1718 = vmatprep.subr.mxu0 0.0
    %1719 = vmatpush1.msra.mxu0 0.0
    %1720 = vmatprep.subr.mxu0 0.0
    %1721 = vmatpush1.msra.mxu0 0.0
    %1722 = vmatprep.subr.mxu0 0.0
    %1723 = vmatpush1.msra.mxu0 0.0
    %1724 = vmatprep.subr.mxu0 0.0
    %1725 = vmatpush1.msra.mxu0 0.0
    %1726 = vmatprep.mubr.f32.mxu0 0.0
    %1727 = vmatmul.mubr.f32.gmra.mrb[0].mxu0 %v1658
    %v1728 = vpop.f32.mrb[0].mxu0
    %v1729 = vadd.f32 0.0, %v1728
    %v1730 = vpop.f32.mrb[0].mxu0
    %1731 = vmatprep.mubr.f32.mxu0 0.0
    %1732 = vmatmul.mubr.f32.gmra.mrb[0].mxu0 %v1659
    %v1733 = vpop.f32.mrb[0].mxu0
    %v1734 = vadd.f32 0.0, %v1733
    %v1735 = vpop.f32.mrb[0].mxu0
    %1736 = vmatprep.mubr.f32.mxu0 0.0
    %1737 = vmatmul.mubr.f32.gmra.mrb[0].mxu0 %v1660
    %v1738 = vpop.f32.mrb[0].mxu0
    %v1739 = vadd.f32 0.0, %v1738
    %v1740 = vpop.f32.mrb[0].mxu0
    %1741 = vmatprep.mubr.f32.mxu0 0.0
    %1742 = vmatmul.mubr.f32.gmra.mrb[0].mxu0 %v1661
    %v1743 = vpop.f32.mrb[0].mxu0
    %v1744 = vadd.f32 0.0, %v1743
    %v1745 = vpop.f32.mrb[0].mxu0
    %1746 = vdwg.mxu0
    %s1747 = scalar_lea.vmem %s3, 56
    %v1748 = vld [vmem:[%s1747] sm:$0xff]
    %v1750 = vsel %vm497, %v1729, 0
    %v1753 = vsel %vm497, %v1734, 0
    %v1756 = vsel %vm497, %v1739, 0
    %v1759 = vsel %vm497, %v1744, 0
    %1761 = vmatprep.subr.mxu0 0.0
    %1762 = vmatpush1.msra.mxu0 %v1748
    %1763 = vmatprep.subr.mxu0 0.0
    %1764 = vmatpush1.msra.mxu0 0.0
    %1765 = vmatprep.subr.mxu0 0.0
    %1766 = vmatpush1.msra.mxu0 0.0
    %1767 = vmatprep.subr.mxu0 0.0
    %1768 = vmatpush1.msra.mxu0 0.0
    %1769 = vmatprep.subr.mxu0 0.0
    %1770 = vmatpush1.msra.mxu0 0.0
    %1771 = vmatprep.subr.mxu0 0.0
    %1772 = vmatpush1.msra.mxu0 0.0
    %1773 = vmatprep.subr.mxu0 0.0
    %1774 = vmatpush1.msra.mxu0 0.0
    %1775 = vmatprep.subr.mxu0 0.0
    %1776 = vmatpush1.msra.mxu0 0.0
    %1777 = vmatprep.subr.mxu0 0.0
    %1778 = vmatpush1.msra.mxu0 0.0
    %1779 = vmatprep.subr.mxu0 0.0
    %1780 = vmatpush1.msra.mxu0 0.0
    %1781 = vmatprep.subr.mxu0 0.0
    %1782 = vmatpush1.msra.mxu0 0.0
    %1783 = vmatprep.subr.mxu0 0.0
    %1784 = vmatpush1.msra.mxu0 0.0
    %1785 = vmatprep.subr.mxu0 0.0
    %1786 = vmatpush1.msra.mxu0 0.0
    %1787 = vmatprep.subr.mxu0 0.0
    %1788 = vmatpush1.msra.mxu0 0.0
    %1789 = vmatprep.subr.mxu0 0.0
    %1790 = vmatpush1.msra.mxu0 0.0
    %1791 = vmatprep.subr.mxu0 0.0
    %1792 = vmatpush1.msra.mxu0 0.0
    %1793 = vmatprep.subr.mxu0 0.0
    %1794 = vmatpush1.msra.mxu0 0.0
    %1795 = vmatprep.subr.mxu0 0.0
    %1796 = vmatpush1.msra.mxu0 0.0
    %1797 = vmatprep.subr.mxu0 0.0
    %1798 = vmatpush1.msra.mxu0 0.0
    %1799 = vmatprep.subr.mxu0 0.0
    %1800 = vmatpush1.msra.mxu0 0.0
    %1801 = vmatprep.subr.mxu0 0.0
    %1802 = vmatpush1.msra.mxu0 0.0
    %1803 = vmatprep.subr.mxu0 0.0
    %1804 = vmatpush1.msra.mxu0 0.0
    %1805 = vmatprep.subr.mxu0 0.0
    %1806 = vmatpush1.msra.mxu0 0.0
    %1807 = vmatprep.subr.mxu0 0.0
    %1808 = vmatpush1.msra.mxu0 0.0
    %1809 = vmatprep.subr.mxu0 0.0
    %1810 = vmatpush1.msra.mxu0 0.0
    %1811 = vmatprep.subr.mxu0 0.0
    %1812 = vmatpush1.msra.mxu0 0.0
    %1813 = vmatprep.subr.mxu0 0.0
    %1814 = vmatpush1.msra.mxu0 0.0
    %1815 = vmatprep.subr.mxu0 0.0
    %1816 = vmatpush1.msra.mxu0 0.0
    %1817 = vmatprep.subr.mxu0 0.0
    %1818 = vmatpush1.msra.mxu0 0.0
    %1819 = vmatprep.subr.mxu0 0.0
    %1820 = vmatpush1.msra.mxu0 0.0
    %1821 = vmatprep.subr.mxu0 0.0
    %1822 = vmatpush1.msra.mxu0 0.0
    %1823 = vmatprep.subr.mxu0 0.0
    %1824 = vmatpush1.msra.mxu0 0.0
    %1825 = vmatprep.mubr.f32.mxu0 0.0
    %1826 = vmatmul.mubr.f32.gmra.mrb[0].mxu0 %v1750
    %v1827 = vpop.f32.mrb[0].mxu0
    %v1828 = vadd.f32 0.0, %v1827
    %v1829 = vpop.f32.mrb[0].mxu0
    %1830 = vmatprep.mubr.f32.mxu0 0.0
    %1831 = vmatmul.mubr.f32.gmra.mrb[0].mxu0 %v1753
    %v1832 = vpop.f32.mrb[0].mxu0
    %v1833 = vadd.f32 0.0, %v1832
    %v1834 = vpop.f32.mrb[0].mxu0
    %1835 = vmatprep.mubr.f32.mxu0 0.0
    %1836 = vmatmul.mubr.f32.gmra.mrb[0].mxu0 %v1756
    %v1837 = vpop.f32.mrb[0].mxu0
    %v1838 = vadd.f32 0.0, %v1837
    %v1839 = vpop.f32.mrb[0].mxu0
    %1840 = vmatprep.mubr.f32.mxu0 0.0
    %1841 = vmatmul.mubr.f32.gmra.mrb[0].mxu0 %v1759
    %v1842 = vpop.f32.mrb[0].mxu0
    %v1843 = vadd.f32 0.0, %v1842
    %v1844 = vpop.f32.mrb[0].mxu0
    %1845 = vdwg.mxu0
    %v1846 = vadd.f32 %v1653, %v1828
    %v1847 = vadd.f32 %v1654, %v1833
    %v1848 = vadd.f32 %v1655, %v1838
    %v1849 = vadd.f32 %v1656, %v1843
    %s1850 = scalar_lea.vmem %s2, 256
    %v1851 = vld [vmem:[%s1850] sm:$0xff]
    %v1852 = vld [vmem:[%s1850 + $0x8] sm:$0xff]
    %v1853 = vld [vmem:[%s1850 + $0x10] sm:$0xff]
    %v1854 = vld [vmem:[%s1850 + $0x18] sm:$0xff]
    %1855 = vmatprep.subr.mxu0 0.0
    %1856 = vmatpush1.msra.mxu0 %v299
    %1857 = vmatprep.subr.mxu0 0.0
    %1858 = vmatpush1.msra.mxu0 %v300
    %1859 = vmatprep.subr.mxu0 0.0
    %1860 = vmatpush1.msra.mxu0 %v301
    %1861 = vmatprep.subr.mxu0 0.0
    %1862 = vmatpush1.msra.mxu0 %v302
    %1863 = vmatprep.subr.mxu0 0.0
    %1864 = vmatpush1.msra.mxu0 %v303
    %1865 = vmatprep.subr.mxu0 0.0
    %1866 = vmatpush1.msra.mxu0 %v304
    %1867 = vmatprep.subr.mxu0 0.0
    %1868 = vmatpush1.msra.mxu0 %v305
    %1869 = vmatprep.subr.mxu0 0.0
    %1870 = vmatpush1.msra.mxu0 %v306
    %1871 = vmatprep.subr.mxu0 0.0
    %1872 = vmatpush1.msra.mxu0 %v307
    %1873 = vmatprep.subr.mxu0 0.0
    %1874 = vmatpush1.msra.mxu0 %v308
    %1875 = vmatprep.subr.mxu0 0.0
    %1876 = vmatpush1.msra.mxu0 %v309
    %1877 = vmatprep.subr.mxu0 0.0
    %1878 = vmatpush1.msra.mxu0 %v310
    %1879 = vmatprep.subr.mxu0 0.0
    %1880 = vmatpush1.msra.mxu0 %v311
    %1881 = vmatprep.subr.mxu0 0.0
    %1882 = vmatpush1.msra.mxu0 %v312
    %1883 = vmatprep.subr.mxu0 0.0
    %1884 = vmatpush1.msra.mxu0 %v313
    %1885 = vmatprep.subr.mxu0 0.0
    %1886 = vmatpush1.msra.mxu0 %v314
    %1887 = vmatprep.subr.mxu0 0.0
    %1888 = vmatpush1.msra.mxu0 0.0
    %1889 = vmatprep.subr.mxu0 0.0
    %1890 = vmatpush1.msra.mxu0 0.0
    %1891 = vmatprep.subr.mxu0 0.0
    %1892 = vmatpush1.msra.mxu0 0.0
    %1893 = vmatprep.subr.mxu0 0.0
    %1894 = vmatpush1.msra.mxu0 0.0
    %1895 = vmatprep.subr.mxu0 0.0
    %1896 = vmatpush1.msra.mxu0 0.0
    %1897 = vmatprep.subr.mxu0 0.0
    %1898 = vmatpush1.msra.mxu0 0.0
    %1899 = vmatprep.subr.mxu0 0.0
    %1900 = vmatpush1.msra.mxu0 0.0
    %1901 = vmatprep.subr.mxu0 0.0
    %1902 = vmatpush1.msra.mxu0 0.0
    %1903 = vmatprep.subr.mxu0 0.0
    %1904 = vmatpush1.msra.mxu0 0.0
    %1905 = vmatprep.subr.mxu0 0.0
    %1906 = vmatpush1.msra.mxu0 0.0
    %1907 = vmatprep.subr.mxu0 0.0
    %1908 = vmatpush1.msra.mxu0 0.0
    %1909 = vmatprep.subr.mxu0 0.0
    %1910 = vmatpush1.msra.mxu0 0.0
    %1911 = vmatprep.subr.mxu0 0.0
    %1912 = vmatpush1.msra.mxu0 0.0
    %1913 = vmatprep.subr.mxu0 0.0
    %1914 = vmatpush1.msra.mxu0 0.0
    %1915 = vmatprep.subr.mxu0 0.0
    %1916 = vmatpush1.msra.mxu0 0.0
    %1917 = vmatprep.subr.mxu0 0.0
    %1918 = vmatpush1.msra.mxu0 0.0
    %1919 = vmatprep.mubr.f32.mxu0 0.0
    %1920 = vmatmul.mubr.f32.gmra.mrb[0].mxu0 %v1851
    %v1921 = vpop.f32.mrb[0].mxu0
    %v1922 = vadd.f32 0.0, %v1921
    %v1923 = vpop.f32.mrb[0].mxu0
    %1924 = vmatprep.mubr.f32.mxu0 0.0
    %1925 = vmatmul.mubr.f32.gmra.mrb[0].mxu0 %v1852
    %v1926 = vpop.f32.mrb[0].mxu0
    %v1927 = vadd.f32 0.0, %v1926
    %v1928 = vpop.f32.mrb[0].mxu0
    %1929 = vmatprep.mubr.f32.mxu0 0.0
    %1930 = vmatmul.mubr.f32.gmra.mrb[0].mxu0 %v1853
    %v1931 = vpop.f32.mrb[0].mxu0
    %v1932 = vadd.f32 0.0, %v1931
    %v1933 = vpop.f32.mrb[0].mxu0
    %1934 = vmatprep.mubr.f32.mxu0 0.0
    %1935 = vmatmul.mubr.f32.gmra.mrb[0].mxu0 %v1854
    %v1936 = vpop.f32.mrb[0].mxu0
    %v1937 = vadd.f32 0.0, %v1936
    %v1938 = vpop.f32.mrb[0].mxu0
    %1939 = vdwg.mxu0
    %s1940 = scalar_lea.vmem %s3, 64
    %v1941 = vld [vmem:[%s1940] sm:$0xff]
    %v1943 = vsel %vm497, %v1922, 0
    %v1946 = vsel %vm497, %v1927, 0
    %v1949 = vsel %vm497, %v1932, 0
    %v1952 = vsel %vm497, %v1937, 0
    %1954 = vmatprep.subr.mxu0 0.0
    %1955 = vmatpush1.msra.mxu0 %v1941
    %1956 = vmatprep.subr.mxu0 0.0
    %1957 = vmatpush1.msra.mxu0 0.0
    %1958 = vmatprep.subr.mxu0 0.0
    %1959 = vmatpush1.msra.mxu0 0.0
    %1960 = vmatprep.subr.mxu0 0.0
    %1961 = vmatpush1.msra.mxu0 0.0
    %1962 = vmatprep.subr.mxu0 0.0
    %1963 = vmatpush1.msra.mxu0 0.0
    %1964 = vmatprep.subr.mxu0 0.0
    %1965 = vmatpush1.msra.mxu0 0.0
    %1966 = vmatprep.subr.mxu0 0.0
    %1967 = vmatpush1.msra.mxu0 0.0
    %1968 = vmatprep.subr.mxu0 0.0
    %1969 = vmatpush1.msra.mxu0 0.0
    %1970 = vmatprep.subr.mxu0 0.0
    %1971 = vmatpush1.msra.mxu0 0.0
    %1972 = vmatprep.subr.mxu0 0.0
    %1973 = vmatpush1.msra.mxu0 0.0
    %1974 = vmatprep.subr.mxu0 0.0
    %1975 = vmatpush1.msra.mxu0 0.0
    %1976 = vmatprep.subr.mxu0 0.0
    %1977 = vmatpush1.msra.mxu0 0.0
    %1978 = vmatprep.subr.mxu0 0.0
    %1979 = vmatpush1.msra.mxu0 0.0
    %1980 = vmatprep.subr.mxu0 0.0
    %1981 = vmatpush1.msra.mxu0 0.0
    %1982 = vmatprep.subr.mxu0 0.0
    %1983 = vmatpush1.msra.mxu0 0.0
    %1984 = vmatprep.subr.mxu0 0.0
    %1985 = vmatpush1.msra.mxu0 0.0
    %1986 = vmatprep.subr.mxu0 0.0
    %1987 = vmatpush1.msra.mxu0 0.0
    %1988 = vmatprep.subr.mxu0 0.0
    %1989 = vmatpush1.msra.mxu0 0.0
    %1990 = vmatprep.subr.mxu0 0.0
    %1991 = vmatpush1.msra.mxu0 0.0
    %1992 = vmatprep.subr.mxu0 0.0
    %1993 = vmatpush1.msra.mxu0 0.0
    %1994 = vmatprep.subr.mxu0 0.0
    %1995 = vmatpush1.msra.mxu0 0.0
    %1996 = vmatprep.subr.mxu0 0.0
    %1997 = vmatpush1.msra.mxu0 0.0
    %1998 = vmatprep.subr.mxu0 0.0
    %1999 = vmatpush1.msra.mxu0 0.0
    %2000 = vmatprep.subr.mxu0 0.0
    %2001 = vmatpush1.msra.mxu0 0.0
    %2002 = vmatprep.subr.mxu0 0.0
    %2003 = vmatpush1.msra.mxu0 0.0
    %2004 = vmatprep.subr.mxu0 0.0
    %2005 = vmatpush1.msra.mxu0 0.0
    %2006 = vmatprep.subr.mxu0 0.0
    %2007 = vmatpush1.msra.mxu0 0.0
    %2008 = vmatprep.subr.mxu0 0.0
    %2009 = vmatpush1.msra.mxu0 0.0
    %2010 = vmatprep.subr.mxu0 0.0
    %2011 = vmatpush1.msra.mxu0 0.0
    %2012 = vmatprep.subr.mxu0 0.0
    %2013 = vmatpush1.msra.mxu0 0.0
    %2014 = vmatprep.subr.mxu0 0.0
    %2015 = vmatpush1.msra.mxu0 0.0
    %2016 = vmatprep.subr.mxu0 0.0
    %2017 = vmatpush1.msra.mxu0 0.0
    %2018 = vmatprep.mubr.f32.mxu0 0.0
    %2019 = vmatmul.mubr.f32.gmra.mrb[0].mxu0 %v1943
    %v2020 = vpop.f32.mrb[0].mxu0
    %v2021 = vadd.f32 0.0, %v2020
    %v2022 = vpop.f32.mrb[0].mxu0
    %2023 = vmatprep.mubr.f32.mxu0 0.0
    %2024 = vmatmul.mubr.f32.gmra.mrb[0].mxu0 %v1946
    %v2025 = vpop.f32.mrb[0].mxu0
    %v2026 = vadd.f32 0.0, %v2025
    %v2027 = vpop.f32.mrb[0].mxu0
    %2028 = vmatprep.mubr.f32.mxu0 0.0
    %2029 = vmatmul.mubr.f32.gmra.mrb[0].mxu0 %v1949
    %v2030 = vpop.f32.mrb[0].mxu0
    %v2031 = vadd.f32 0.0, %v2030
    %v2032 = vpop.f32.mrb[0].mxu0
    %2033 = vmatprep.mubr.f32.mxu0 0.0
    %2034 = vmatmul.mubr.f32.gmra.mrb[0].mxu0 %v1952
    %v2035 = vpop.f32.mrb[0].mxu0
    %v2036 = vadd.f32 0.0, %v2035
    %v2037 = vpop.f32.mrb[0].mxu0
    %2038 = vdwg.mxu0
    %v2039 = vadd.f32 %v1846, %v2021
    %v2040 = vadd.f32 %v1847, %v2026
    %v2041 = vadd.f32 %v1848, %v2031
    %v2042 = vadd.f32 %v1849, %v2036
    %s2043 = scalar_lea.vmem %s2, 288
    %v2044 = vld [vmem:[%s2043] sm:$0xff]
    %v2045 = vld [vmem:[%s2043 + $0x8] sm:$0xff]
    %v2046 = vld [vmem:[%s2043 + $0x10] sm:$0xff]
    %v2047 = vld [vmem:[%s2043 + $0x18] sm:$0xff]
    %2048 = vmatprep.subr.mxu0 0.0
    %2049 = vmatpush1.msra.mxu0 %v299
    %2050 = vmatprep.subr.mxu0 0.0
    %2051 = vmatpush1.msra.mxu0 %v300
    %2052 = vmatprep.subr.mxu0 0.0
    %2053 = vmatpush1.msra.mxu0 %v301
    %2054 = vmatprep.subr.mxu0 0.0
    %2055 = vmatpush1.msra.mxu0 %v302
    %2056 = vmatprep.subr.mxu0 0.0
    %2057 = vmatpush1.msra.mxu0 %v303
    %2058 = vmatprep.subr.mxu0 0.0
    %2059 = vmatpush1.msra.mxu0 %v304
    %2060 = vmatprep.subr.mxu0 0.0
    %2061 = vmatpush1.msra.mxu0 %v305
    %2062 = vmatprep.subr.mxu0 0.0
    %2063 = vmatpush1.msra.mxu0 %v306
    %2064 = vmatprep.subr.mxu0 0.0
    %2065 = vmatpush1.msra.mxu0 %v307
    %2066 = vmatprep.subr.mxu0 0.0
    %2067 = vmatpush1.msra.mxu0 %v308
    %2068 = vmatprep.subr.mxu0 0.0
    %2069 = vmatpush1.msra.mxu0 %v309
    %2070 = vmatprep.subr.mxu0 0.0
    %2071 = vmatpush1.msra.mxu0 %v310
    %2072 = vmatprep.subr.mxu0 0.0
    %2073 = vmatpush1.msra.mxu0 %v311
    %2074 = vmatprep.subr.mxu0 0.0
    %2075 = vmatpush1.msra.mxu0 %v312
    %2076 = vmatprep.subr.mxu0 0.0
    %2077 = vmatpush1.msra.mxu0 %v313
    %2078 = vmatprep.subr.mxu0 0.0
    %2079 = vmatpush1.msra.mxu0 %v314
    %2080 = vmatprep.subr.mxu0 0.0
    %2081 = vmatpush1.msra.mxu0 0.0
    %2082 = vmatprep.subr.mxu0 0.0
    %2083 = vmatpush1.msra.mxu0 0.0
    %2084 = vmatprep.subr.mxu0 0.0
    %2085 = vmatpush1.msra.mxu0 0.0
    %2086 = vmatprep.subr.mxu0 0.0
    %2087 = vmatpush1.msra.mxu0 0.0
    %2088 = vmatprep.subr.mxu0 0.0
    %2089 = vmatpush1.msra.mxu0 0.0
    %2090 = vmatprep.subr.mxu0 0.0
    %2091 = vmatpush1.msra.mxu0 0.0
    %2092 = vmatprep.subr.mxu0 0.0
    %2093 = vmatpush1.msra.mxu0 0.0
    %2094 = vmatprep.subr.mxu0 0.0
    %2095 = vmatpush1.msra.mxu0 0.0
    %2096 = vmatprep.subr.mxu0 0.0
    %2097 = vmatpush1.msra.mxu0 0.0
    %2098 = vmatprep.subr.mxu0 0.0
    %2099 = vmatpush1.msra.mxu0 0.0
    %2100 = vmatprep.subr.mxu0 0.0
    %2101 = vmatpush1.msra.mxu0 0.0
    %2102 = vmatprep.subr.mxu0 0.0
    %2103 = vmatpush1.msra.mxu0 0.0
    %2104 = vmatprep.subr.mxu0 0.0
    %2105 = vmatpush1.msra.mxu0 0.0
    %2106 = vmatprep.subr.mxu0 0.0
    %2107 = vmatpush1.msra.mxu0 0.0
    %2108 = vmatprep.subr.mxu0 0.0
    %2109 = vmatpush1.msra.mxu0 0.0
    %2110 = vmatprep.subr.mxu0 0.0
    %2111 = vmatpush1.msra.mxu0 0.0
    %2112 = vmatprep.mubr.f32.mxu0 0.0
    %2113 = vmatmul.mubr.f32.gmra.mrb[0].mxu0 %v2044
    %v2114 = vpop.f32.mrb[0].mxu0
    %v2115 = vadd.f32 0.0, %v2114
    %v2116 = vpop.f32.mrb[0].mxu0
    %2117 = vmatprep.mubr.f32.mxu0 0.0
    %2118 = vmatmul.mubr.f32.gmra.mrb[0].mxu0 %v2045
    %v2119 = vpop.f32.mrb[0].mxu0
    %v2120 = vadd.f32 0.0, %v2119
    %v2121 = vpop.f32.mrb[0].mxu0
    %2122 = vmatprep.mubr.f32.mxu0 0.0
    %2123 = vmatmul.mubr.f32.gmra.mrb[0].mxu0 %v2046
    %v2124 = vpop.f32.mrb[0].mxu0
    %v2125 = vadd.f32 0.0, %v2124
    %v2126 = vpop.f32.mrb[0].mxu0
    %2127 = vmatprep.mubr.f32.mxu0 0.0
    %2128 = vmatmul.mubr.f32.gmra.mrb[0].mxu0 %v2047
    %v2129 = vpop.f32.mrb[0].mxu0
    %v2130 = vadd.f32 0.0, %v2129
    %v2131 = vpop.f32.mrb[0].mxu0
    %2132 = vdwg.mxu0
    %s2133 = scalar_lea.vmem %s3, 72
    %v2134 = vld [vmem:[%s2133] sm:$0xff]
    %v2136 = vsel %vm497, %v2115, 0
    %v2139 = vsel %vm497, %v2120, 0
    %v2142 = vsel %vm497, %v2125, 0
    %v2145 = vsel %vm497, %v2130, 0
    %2147 = vmatprep.subr.mxu0 0.0
    %2148 = vmatpush1.msra.mxu0 %v2134
    %2149 = vmatprep.subr.mxu0 0.0
    %2150 = vmatpush1.msra.mxu0 0.0
    %2151 = vmatprep.subr.mxu0 0.0
    %2152 = vmatpush1.msra.mxu0 0.0
    %2153 = vmatprep.subr.mxu0 0.0
    %2154 = vmatpush1.msra.mxu0 0.0
    %2155 = vmatprep.subr.mxu0 0.0
    %2156 = vmatpush1.msra.mxu0 0.0
    %2157 = vmatprep.subr.mxu0 0.0
    %2158 = vmatpush1.msra.mxu0 0.0
    %2159 = vmatprep.subr.mxu0 0.0
    %2160 = vmatpush1.msra.mxu0 0.0
    %2161 = vmatprep.subr.mxu0 0.0
    %2162 = vmatpush1.msra.mxu0 0.0
    %2163 = vmatprep.subr.mxu0 0.0
    %2164 = vmatpush1.msra.mxu0 0.0
    %2165 = vmatprep.subr.mxu0 0.0
    %2166 = vmatpush1.msra.mxu0 0.0
    %2167 = vmatprep.subr.mxu0 0.0
    %2168 = vmatpush1.msra.mxu0 0.0
    %2169 = vmatprep.subr.mxu0 0.0
    %2170 = vmatpush1.msra.mxu0 0.0
    %2171 = vmatprep.subr.mxu0 0.0
    %2172 = vmatpush1.msra.mxu0 0.0
    %2173 = vmatprep.subr.mxu0 0.0
    %2174 = vmatpush1.msra.mxu0 0.0
    %2175 = vmatprep.subr.mxu0 0.0
    %2176 = vmatpush1.msra.mxu0 0.0
    %2177 = vmatprep.subr.mxu0 0.0
    %2178 = vmatpush1.msra.mxu0 0.0
    %2179 = vmatprep.subr.mxu0 0.0
    %2180 = vmatpush1.msra.mxu0 0.0
    %2181 = vmatprep.subr.mxu0 0.0
    %2182 = vmatpush1.msra.mxu0 0.0
    %2183 = vmatprep.subr.mxu0 0.0
    %2184 = vmatpush1.msra.mxu0 0.0
    %2185 = vmatprep.subr.mxu0 0.0
    %2186 = vmatpush1.msra.mxu0 0.0
    %2187 = vmatprep.subr.mxu0 0.0
    %2188 = vmatpush1.msra.mxu0 0.0
    %2189 = vmatprep.subr.mxu0 0.0
    %2190 = vmatpush1.msra.mxu0 0.0
    %2191 = vmatprep.subr.mxu0 0.0
    %2192 = vmatpush1.msra.mxu0 0.0
    %2193 = vmatprep.subr.mxu0 0.0
    %2194 = vmatpush1.msra.mxu0 0.0
    %2195 = vmatprep.subr.mxu0 0.0
    %2196 = vmatpush1.msra.mxu0 0.0
    %2197 = vmatprep.subr.mxu0 0.0
    %2198 = vmatpush1.msra.mxu0 0.0
    %2199 = vmatprep.subr.mxu0 0.0
    %2200 = vmatpush1.msra.mxu0 0.0
    %2201 = vmatprep.subr.mxu0 0.0
    %2202 = vmatpush1.msra.mxu0 0.0
    %2203 = vmatprep.subr.mxu0 0.0
    %2204 = vmatpush1.msra.mxu0 0.0
    %2205 = vmatprep.subr.mxu0 0.0
    %2206 = vmatpush1.msra.mxu0 0.0
    %2207 = vmatprep.subr.mxu0 0.0
    %2208 = vmatpush1.msra.mxu0 0.0
    %2209 = vmatprep.subr.mxu0 0.0
    %2210 = vmatpush1.msra.mxu0 0.0
    %2211 = vmatprep.mubr.f32.mxu0 0.0
    %2212 = vmatmul.mubr.f32.gmra.mrb[0].mxu0 %v2136
    %v2213 = vpop.f32.mrb[0].mxu0
    %v2214 = vadd.f32 0.0, %v2213
    %v2215 = vpop.f32.mrb[0].mxu0
    %2216 = vmatprep.mubr.f32.mxu0 0.0
    %2217 = vmatmul.mubr.f32.gmra.mrb[0].mxu0 %v2139
    %v2218 = vpop.f32.mrb[0].mxu0
    %v2219 = vadd.f32 0.0, %v2218
    %v2220 = vpop.f32.mrb[0].mxu0
    %2221 = vmatprep.mubr.f32.mxu0 0.0
    %2222 = vmatmul.mubr.f32.gmra.mrb[0].mxu0 %v2142
    %v2223 = vpop.f32.mrb[0].mxu0
    %v2224 = vadd.f32 0.0, %v2223
    %v2225 = vpop.f32.mrb[0].mxu0
    %2226 = vmatprep.mubr.f32.mxu0 0.0
    %2227 = vmatmul.mubr.f32.gmra.mrb[0].mxu0 %v2145
    %v2228 = vpop.f32.mrb[0].mxu0
    %v2229 = vadd.f32 0.0, %v2228
    %v2230 = vpop.f32.mrb[0].mxu0
    %2231 = vdwg.mxu0
    %v2232 = vadd.f32 %v2039, %v2214
    %v2233 = vadd.f32 %v2040, %v2219
    %v2234 = vadd.f32 %v2041, %v2224
    %v2235 = vadd.f32 %v2042, %v2229
    %s2236 = scalar_lea.vmem %s2, 320
    %v2237 = vld [vmem:[%s2236] sm:$0xff]
    %v2238 = vld [vmem:[%s2236 + $0x8] sm:$0xff]
    %v2239 = vld [vmem:[%s2236 + $0x10] sm:$0xff]
    %v2240 = vld [vmem:[%s2236 + $0x18] sm:$0xff]
    %2241 = vmatprep.subr.mxu0 0.0
    %2242 = vmatpush1.msra.mxu0 %v299
    %2243 = vmatprep.subr.mxu0 0.0
    %2244 = vmatpush1.msra.mxu0 %v300
    %2245 = vmatprep.subr.mxu0 0.0
    %2246 = vmatpush1.msra.mxu0 %v301
    %2247 = vmatprep.subr.mxu0 0.0
    %2248 = vmatpush1.msra.mxu0 %v302
    %2249 = vmatprep.subr.mxu0 0.0
    %2250 = vmatpush1.msra.mxu0 %v303
    %2251 = vmatprep.subr.mxu0 0.0
    %2252 = vmatpush1.msra.mxu0 %v304
    %2253 = vmatprep.subr.mxu0 0.0
    %2254 = vmatpush1.msra.mxu0 %v305
    %2255 = vmatprep.subr.mxu0 0.0
    %2256 = vmatpush1.msra.mxu0 %v306
    %2257 = vmatprep.subr.mxu0 0.0
    %2258 = vmatpush1.msra.mxu0 %v307
    %2259 = vmatprep.subr.mxu0 0.0
    %2260 = vmatpush1.msra.mxu0 %v308
    %2261 = vmatprep.subr.mxu0 0.0
    %2262 = vmatpush1.msra.mxu0 %v309
    %2263 = vmatprep.subr.mxu0 0.0
    %2264 = vmatpush1.msra.mxu0 %v310
    %2265 = vmatprep.subr.mxu0 0.0
    %2266 = vmatpush1.msra.mxu0 %v311
    %2267 = vmatprep.subr.mxu0 0.0
    %2268 = vmatpush1.msra.mxu0 %v312
    %2269 = vmatprep.subr.mxu0 0.0
    %2270 = vmatpush1.msra.mxu0 %v313
    %2271 = vmatprep.subr.mxu0 0.0
    %2272 = vmatpush1.msra.mxu0 %v314
    %2273 = vmatprep.subr.mxu0 0.0
    %2274 = vmatpush1.msra.mxu0 0.0
    %2275 = vmatprep.subr.mxu0 0.0
    %2276 = vmatpush1.msra.mxu0 0.0
    %2277 = vmatprep.subr.mxu0 0.0
    %2278 = vmatpush1.msra.mxu0 0.0
    %2279 = vmatprep.subr.mxu0 0.0
    %2280 = vmatpush1.msra.mxu0 0.0
    %2281 = vmatprep.subr.mxu0 0.0
    %2282 = vmatpush1.msra.mxu0 0.0
    %2283 = vmatprep.subr.mxu0 0.0
    %2284 = vmatpush1.msra.mxu0 0.0
    %2285 = vmatprep.subr.mxu0 0.0
    %2286 = vmatpush1.msra.mxu0 0.0
    %2287 = vmatprep.subr.mxu0 0.0
    %2288 = vmatpush1.msra.mxu0 0.0
    %2289 = vmatprep.subr.mxu0 0.0
    %2290 = vmatpush1.msra.mxu0 0.0
    %2291 = vmatprep.subr.mxu0 0.0
    %2292 = vmatpush1.msra.mxu0 0.0
    %2293 = vmatprep.subr.mxu0 0.0
    %2294 = vmatpush1.msra.mxu0 0.0
    %2295 = vmatprep.subr.mxu0 0.0
    %2296 = vmatpush1.msra.mxu0 0.0
    %2297 = vmatprep.subr.mxu0 0.0
    %2298 = vmatpush1.msra.mxu0 0.0
    %2299 = vmatprep.subr.mxu0 0.0
    %2300 = vmatpush1.msra.mxu0 0.0
    %2301 = vmatprep.subr.mxu0 0.0
    %2302 = vmatpush1.msra.mxu0 0.0
    %2303 = vmatprep.subr.mxu0 0.0
    %2304 = vmatpush1.msra.mxu0 0.0
    %2305 = vmatprep.mubr.f32.mxu0 0.0
    %2306 = vmatmul.mubr.f32.gmra.mrb[0].mxu0 %v2237
    %v2307 = vpop.f32.mrb[0].mxu0
    %v2308 = vadd.f32 0.0, %v2307
    %v2309 = vpop.f32.mrb[0].mxu0
    %2310 = vmatprep.mubr.f32.mxu0 0.0
    %2311 = vmatmul.mubr.f32.gmra.mrb[0].mxu0 %v2238
    %v2312 = vpop.f32.mrb[0].mxu0
    %v2313 = vadd.f32 0.0, %v2312
    %v2314 = vpop.f32.mrb[0].mxu0
    %2315 = vmatprep.mubr.f32.mxu0 0.0
    %2316 = vmatmul.mubr.f32.gmra.mrb[0].mxu0 %v2239
    %v2317 = vpop.f32.mrb[0].mxu0
    %v2318 = vadd.f32 0.0, %v2317
    %v2319 = vpop.f32.mrb[0].mxu0
    %2320 = vmatprep.mubr.f32.mxu0 0.0
    %2321 = vmatmul.mubr.f32.gmra.mrb[0].mxu0 %v2240
    %v2322 = vpop.f32.mrb[0].mxu0
    %v2323 = vadd.f32 0.0, %v2322
    %v2324 = vpop.f32.mrb[0].mxu0
    %2325 = vdwg.mxu0
    %s2326 = scalar_lea.vmem %s3, 80
    %v2327 = vld [vmem:[%s2326] sm:$0xff]
    %v2329 = vsel %vm497, %v2308, 0
    %v2332 = vsel %vm497, %v2313, 0
    %v2335 = vsel %vm497, %v2318, 0
    %v2338 = vsel %vm497, %v2323, 0
    %2340 = vmatprep.subr.mxu0 0.0
    %2341 = vmatpush1.msra.mxu0 %v2327
    %2342 = vmatprep.subr.mxu0 0.0
    %2343 = vmatpush1.msra.mxu0 0.0
    %2344 = vmatprep.subr.mxu0 0.0
    %2345 = vmatpush1.msra.mxu0 0.0
    %2346 = vmatprep.subr.mxu0 0.0
    %2347 = vmatpush1.msra.mxu0 0.0
    %2348 = vmatprep.subr.mxu0 0.0
    %2349 = vmatpush1.msra.mxu0 0.0
    %2350 = vmatprep.subr.mxu0 0.0
    %2351 = vmatpush1.msra.mxu0 0.0
    %2352 = vmatprep.subr.mxu0 0.0
    %2353 = vmatpush1.msra.mxu0 0.0
    %2354 = vmatprep.subr.mxu0 0.0
    %2355 = vmatpush1.msra.mxu0 0.0
    %2356 = vmatprep.subr.mxu0 0.0
    %2357 = vmatpush1.msra.mxu0 0.0
    %2358 = vmatprep.subr.mxu0 0.0
    %2359 = vmatpush1.msra.mxu0 0.0
    %2360 = vmatprep.subr.mxu0 0.0
    %2361 = vmatpush1.msra.mxu0 0.0
    %2362 = vmatprep.subr.mxu0 0.0
    %2363 = vmatpush1.msra.mxu0 0.0
    %2364 = vmatprep.subr.mxu0 0.0
    %2365 = vmatpush1.msra.mxu0 0.0
    %2366 = vmatprep.subr.mxu0 0.0
    %2367 = vmatpush1.msra.mxu0 0.0
    %2368 = vmatprep.subr.mxu0 0.0
    %2369 = vmatpush1.msra.mxu0 0.0
    %2370 = vmatprep.subr.mxu0 0.0
    %2371 = vmatpush1.msra.mxu0 0.0
    %2372 = vmatprep.subr.mxu0 0.0
    %2373 = vmatpush1.msra.mxu0 0.0
    %2374 = vmatprep.subr.mxu0 0.0
    %2375 = vmatpush1.msra.mxu0 0.0
    %2376 = vmatprep.subr.mxu0 0.0
    %2377 = vmatpush1.msra.mxu0 0.0
    %2378 = vmatprep.subr.mxu0 0.0
    %2379 = vmatpush1.msra.mxu0 0.0
    %2380 = vmatprep.subr.mxu0 0.0
    %2381 = vmatpush1.msra.mxu0 0.0
    %2382 = vmatprep.subr.mxu0 0.0
    %2383 = vmatpush1.msra.mxu0 0.0
    %2384 = vmatprep.subr.mxu0 0.0
    %2385 = vmatpush1.msra.mxu0 0.0
    %2386 = vmatprep.subr.mxu0 0.0
    %2387 = vmatpush1.msra.mxu0 0.0
    %2388 = vmatprep.subr.mxu0 0.0
    %2389 = vmatpush1.msra.mxu0 0.0
    %2390 = vmatprep.subr.mxu0 0.0
    %2391 = vmatpush1.msra.mxu0 0.0
    %2392 = vmatprep.subr.mxu0 0.0
    %2393 = vmatpush1.msra.mxu0 0.0
    %2394 = vmatprep.subr.mxu0 0.0
    %2395 = vmatpush1.msra.mxu0 0.0
    %2396 = vmatprep.subr.mxu0 0.0
    %2397 = vmatpush1.msra.mxu0 0.0
    %2398 = vmatprep.subr.mxu0 0.0
    %2399 = vmatpush1.msra.mxu0 0.0
    %2400 = vmatprep.subr.mxu0 0.0
    %2401 = vmatpush1.msra.mxu0 0.0
    %2402 = vmatprep.subr.mxu0 0.0
    %2403 = vmatpush1.msra.mxu0 0.0
    %2404 = vmatprep.mubr.f32.mxu0 0.0
    %2405 = vmatmul.mubr.f32.gmra.mrb[0].mxu0 %v2329
    %v2406 = vpop.f32.mrb[0].mxu0
    %v2407 = vadd.f32 0.0, %v2406
    %v2408 = vpop.f32.mrb[0].mxu0
    %2409 = vmatprep.mubr.f32.mxu0 0.0
    %2410 = vmatmul.mubr.f32.gmra.mrb[0].mxu0 %v2332
    %v2411 = vpop.f32.mrb[0].mxu0
    %v2412 = vadd.f32 0.0, %v2411
    %v2413 = vpop.f32.mrb[0].mxu0
    %2414 = vmatprep.mubr.f32.mxu0 0.0
    %2415 = vmatmul.mubr.f32.gmra.mrb[0].mxu0 %v2335
    %v2416 = vpop.f32.mrb[0].mxu0
    %v2417 = vadd.f32 0.0, %v2416
    %v2418 = vpop.f32.mrb[0].mxu0
    %2419 = vmatprep.mubr.f32.mxu0 0.0
    %2420 = vmatmul.mubr.f32.gmra.mrb[0].mxu0 %v2338
    %v2421 = vpop.f32.mrb[0].mxu0
    %v2422 = vadd.f32 0.0, %v2421
    %v2423 = vpop.f32.mrb[0].mxu0
    %2424 = vdwg.mxu0
    %v2425 = vadd.f32 %v2232, %v2407
    %v2426 = vadd.f32 %v2233, %v2412
    %v2427 = vadd.f32 %v2234, %v2417
    %v2428 = vadd.f32 %v2235, %v2422
    %s2429 = scalar_lea.vmem %s2, 352
    %v2430 = vld [vmem:[%s2429] sm:$0xff]
    %v2431 = vld [vmem:[%s2429 + $0x8] sm:$0xff]
    %v2432 = vld [vmem:[%s2429 + $0x10] sm:$0xff]
    %v2433 = vld [vmem:[%s2429 + $0x18] sm:$0xff]
    %2434 = vmatprep.subr.mxu0 0.0
    %2435 = vmatpush1.msra.mxu0 %v299
    %2436 = vmatprep.subr.mxu0 0.0
    %2437 = vmatpush1.msra.mxu0 %v300
    %2438 = vmatprep.subr.mxu0 0.0
    %2439 = vmatpush1.msra.mxu0 %v301
    %2440 = vmatprep.subr.mxu0 0.0
    %2441 = vmatpush1.msra.mxu0 %v302
    %2442 = vmatprep.subr.mxu0 0.0
    %2443 = vmatpush1.msra.mxu0 %v303
    %2444 = vmatprep.subr.mxu0 0.0
    %2445 = vmatpush1.msra.mxu0 %v304
    %2446 = vmatprep.subr.mxu0 0.0
    %2447 = vmatpush1.msra.mxu0 %v305
    %2448 = vmatprep.subr.mxu0 0.0
    %2449 = vmatpush1.msra.mxu0 %v306
    %2450 = vmatprep.subr.mxu0 0.0
    %2451 = vmatpush1.msra.mxu0 %v307
    %2452 = vmatprep.subr.mxu0 0.0
    %2453 = vmatpush1.msra.mxu0 %v308
    %2454 = vmatprep.subr.mxu0 0.0
    %2455 = vmatpush1.msra.mxu0 %v309
    %2456 = vmatprep.subr.mxu0 0.0
    %2457 = vmatpush1.msra.mxu0 %v310
    %2458 = vmatprep.subr.mxu0 0.0
    %2459 = vmatpush1.msra.mxu0 %v311
    %2460 = vmatprep.subr.mxu0 0.0
    %2461 = vmatpush1.msra.mxu0 %v312
    %2462 = vmatprep.subr.mxu0 0.0
    %2463 = vmatpush1.msra.mxu0 %v313
    %2464 = vmatprep.subr.mxu0 0.0
    %2465 = vmatpush1.msra.mxu0 %v314
    %2466 = vmatprep.subr.mxu0 0.0
    %2467 = vmatpush1.msra.mxu0 0.0
    %2468 = vmatprep.subr.mxu0 0.0
    %2469 = vmatpush1.msra.mxu0 0.0
    %2470 = vmatprep.subr.mxu0 0.0
    %2471 = vmatpush1.msra.mxu0 0.0
    %2472 = vmatprep.subr.mxu0 0.0
    %2473 = vmatpush1.msra.mxu0 0.0
    %2474 = vmatprep.subr.mxu0 0.0
    %2475 = vmatpush1.msra.mxu0 0.0
    %2476 = vmatprep.subr.mxu0 0.0
    %2477 = vmatpush1.msra.mxu0 0.0
    %2478 = vmatprep.subr.mxu0 0.0
    %2479 = vmatpush1.msra.mxu0 0.0
    %2480 = vmatprep.subr.mxu0 0.0
    %2481 = vmatpush1.msra.mxu0 0.0
    %2482 = vmatprep.subr.mxu0 0.0
    %2483 = vmatpush1.msra.mxu0 0.0
    %2484 = vmatprep.subr.mxu0 0.0
    %2485 = vmatpush1.msra.mxu0 0.0
    %2486 = vmatprep.subr.mxu0 0.0
    %2487 = vmatpush1.msra.mxu0 0.0
    %2488 = vmatprep.subr.mxu0 0.0
    %2489 = vmatpush1.msra.mxu0 0.0
    %2490 = vmatprep.subr.mxu0 0.0
    %2491 = vmatpush1.msra.mxu0 0.0
    %2492 = vmatprep.subr.mxu0 0.0
    %2493 = vmatpush1.msra.mxu0 0.0
    %2494 = vmatprep.subr.mxu0 0.0
    %2495 = vmatpush1.msra.mxu0 0.0
    %2496 = vmatprep.subr.mxu0 0.0
    %2497 = vmatpush1.msra.mxu0 0.0
    %2498 = vmatprep.mubr.f32.mxu0 0.0
    %2499 = vmatmul.mubr.f32.gmra.mrb[0].mxu0 %v2430
    %v2500 = vpop.f32.mrb[0].mxu0
    %v2501 = vadd.f32 0.0, %v2500
    %v2502 = vpop.f32.mrb[0].mxu0
    %2503 = vmatprep.mubr.f32.mxu0 0.0
    %2504 = vmatmul.mubr.f32.gmra.mrb[0].mxu0 %v2431
    %v2505 = vpop.f32.mrb[0].mxu0
    %v2506 = vadd.f32 0.0, %v2505
    %v2507 = vpop.f32.mrb[0].mxu0
    %2508 = vmatprep.mubr.f32.mxu0 0.0
    %2509 = vmatmul.mubr.f32.gmra.mrb[0].mxu0 %v2432
    %v2510 = vpop.f32.mrb[0].mxu0
    %v2511 = vadd.f32 0.0, %v2510
    %v2512 = vpop.f32.mrb[0].mxu0
    %2513 = vmatprep.mubr.f32.mxu0 0.0
    %2514 = vmatmul.mubr.f32.gmra.mrb[0].mxu0 %v2433
    %v2515 = vpop.f32.mrb[0].mxu0
    %v2516 = vadd.f32 0.0, %v2515
    %v2517 = vpop.f32.mrb[0].mxu0
    %2518 = vdwg.mxu0
    %s2519 = scalar_lea.vmem %s3, 88
    %v2520 = vld [vmem:[%s2519] sm:$0xff]
    %v2522 = vsel %vm497, %v2501, 0
    %v2525 = vsel %vm497, %v2506, 0
    %v2528 = vsel %vm497, %v2511, 0
    %v2531 = vsel %vm497, %v2516, 0
    %2533 = vmatprep.subr.mxu0 0.0
    %2534 = vmatpush1.msra.mxu0 %v2520
    %2535 = vmatprep.subr.mxu0 0.0
    %2536 = vmatpush1.msra.mxu0 0.0
    %2537 = vmatprep.subr.mxu0 0.0
    %2538 = vmatpush1.msra.mxu0 0.0
    %2539 = vmatprep.subr.mxu0 0.0
    %2540 = vmatpush1.msra.mxu0 0.0
    %2541 = vmatprep.subr.mxu0 0.0
    %2542 = vmatpush1.msra.mxu0 0.0
    %2543 = vmatprep.subr.mxu0 0.0
    %2544 = vmatpush1.msra.mxu0 0.0
    %2545 = vmatprep.subr.mxu0 0.0
    %2546 = vmatpush1.msra.mxu0 0.0
    %2547 = vmatprep.subr.mxu0 0.0
    %2548 = vmatpush1.msra.mxu0 0.0
    %2549 = vmatprep.subr.mxu0 0.0
    %2550 = vmatpush1.msra.mxu0 0.0
    %2551 = vmatprep.subr.mxu0 0.0
    %2552 = vmatpush1.msra.mxu0 0.0
    %2553 = vmatprep.subr.mxu0 0.0
    %2554 = vmatpush1.msra.mxu0 0.0
    %2555 = vmatprep.subr.mxu0 0.0
    %2556 = vmatpush1.msra.mxu0 0.0
    %2557 = vmatprep.subr.mxu0 0.0
    %2558 = vmatpush1.msra.mxu0 0.0
    %2559 = vmatprep.subr.mxu0 0.0
    %2560 = vmatpush1.msra.mxu0 0.0
    %2561 = vmatprep.subr.mxu0 0.0
    %2562 = vmatpush1.msra.mxu0 0.0
    %2563 = vmatprep.subr.mxu0 0.0
    %2564 = vmatpush1.msra.mxu0 0.0
    %2565 = vmatprep.subr.mxu0 0.0
    %2566 = vmatpush1.msra.mxu0 0.0
    %2567 = vmatprep.subr.mxu0 0.0
    %2568 = vmatpush1.msra.mxu0 0.0
    %2569 = vmatprep.subr.mxu0 0.0
    %2570 = vmatpush1.msra.mxu0 0.0
    %2571 = vmatprep.subr.mxu0 0.0
    %2572 = vmatpush1.msra.mxu0 0.0
    %2573 = vmatprep.subr.mxu0 0.0
    %2574 = vmatpush1.msra.mxu0 0.0
    %2575 = vmatprep.subr.mxu0 0.0
    %2576 = vmatpush1.msra.mxu0 0.0
    %2577 = vmatprep.subr.mxu0 0.0
    %2578 = vmatpush1.msra.mxu0 0.0
    %2579 = vmatprep.subr.mxu0 0.0
    %2580 = vmatpush1.msra.mxu0 0.0
    %2581 = vmatprep.subr.mxu0 0.0
    %2582 = vmatpush1.msra.mxu0 0.0
    %2583 = vmatprep.subr.mxu0 0.0
    %2584 = vmatpush1.msra.mxu0 0.0
    %2585 = vmatprep.subr.mxu0 0.0
    %2586 = vmatpush1.msra.mxu0 0.0
    %2587 = vmatprep.subr.mxu0 0.0
    %2588 = vmatpush1.msra.mxu0 0.0
    %2589 = vmatprep.subr.mxu0 0.0
    %2590 = vmatpush1.msra.mxu0 0.0
    %2591 = vmatprep.subr.mxu0 0.0
    %2592 = vmatpush1.msra.mxu0 0.0
    %2593 = vmatprep.subr.mxu0 0.0
    %2594 = vmatpush1.msra.mxu0 0.0
    %2595 = vmatprep.subr.mxu0 0.0
    %2596 = vmatpush1.msra.mxu0 0.0
    %2597 = vmatprep.mubr.f32.mxu0 0.0
    %2598 = vmatmul.mubr.f32.gmra.mrb[0].mxu0 %v2522
    %v2599 = vpop.f32.mrb[0].mxu0
    %v2600 = vadd.f32 0.0, %v2599
    %v2601 = vpop.f32.mrb[0].mxu0
    %2602 = vmatprep.mubr.f32.mxu0 0.0
    %2603 = vmatmul.mubr.f32.gmra.mrb[0].mxu0 %v2525
    %v2604 = vpop.f32.mrb[0].mxu0
    %v2605 = vadd.f32 0.0, %v2604
    %v2606 = vpop.f32.mrb[0].mxu0
    %2607 = vmatprep.mubr.f32.mxu0 0.0
    %2608 = vmatmul.mubr.f32.gmra.mrb[0].mxu0 %v2528
    %v2609 = vpop.f32.mrb[0].mxu0
    %v2610 = vadd.f32 0.0, %v2609
    %v2611 = vpop.f32.mrb[0].mxu0
    %2612 = vmatprep.mubr.f32.mxu0 0.0
    %2613 = vmatmul.mubr.f32.gmra.mrb[0].mxu0 %v2531
    %v2614 = vpop.f32.mrb[0].mxu0
    %v2615 = vadd.f32 0.0, %v2614
    %v2616 = vpop.f32.mrb[0].mxu0
    %2617 = vdwg.mxu0
    %v2618 = vadd.f32 %v2425, %v2600
    %v2619 = vadd.f32 %v2426, %v2605
    %v2620 = vadd.f32 %v2427, %v2610
    %v2621 = vadd.f32 %v2428, %v2615
    %s2622 = scalar_lea.vmem %s2, 384
    %v2623 = vld [vmem:[%s2622] sm:$0xff]
    %v2624 = vld [vmem:[%s2622 + $0x8] sm:$0xff]
    %v2625 = vld [vmem:[%s2622 + $0x10] sm:$0xff]
    %v2626 = vld [vmem:[%s2622 + $0x18] sm:$0xff]
    %2627 = vmatprep.subr.mxu0 0.0
    %2628 = vmatpush1.msra.mxu0 %v299
    %2629 = vmatprep.subr.mxu0 0.0
    %2630 = vmatpush1.msra.mxu0 %v300
    %2631 = vmatprep.subr.mxu0 0.0
    %2632 = vmatpush1.msra.mxu0 %v301
    %2633 = vmatprep.subr.mxu0 0.0
    %2634 = vmatpush1.msra.mxu0 %v302
    %2635 = vmatprep.subr.mxu0 0.0
    %2636 = vmatpush1.msra.mxu0 %v303
    %2637 = vmatprep.subr.mxu0 0.0
    %2638 = vmatpush1.msra.mxu0 %v304
    %2639 = vmatprep.subr.mxu0 0.0
    %2640 = vmatpush1.msra.mxu0 %v305
    %2641 = vmatprep.subr.mxu0 0.0
    %2642 = vmatpush1.msra.mxu0 %v306
    %2643 = vmatprep.subr.mxu0 0.0
    %2644 = vmatpush1.msra.mxu0 %v307
    %2645 = vmatprep.subr.mxu0 0.0
    %2646 = vmatpush1.msra.mxu0 %v308
    %2647 = vmatprep.subr.mxu0 0.0
    %2648 = vmatpush1.msra.mxu0 %v309
    %2649 = vmatprep.subr.mxu0 0.0
    %2650 = vmatpush1.msra.mxu0 %v310
    %2651 = vmatprep.subr.mxu0 0.0
    %2652 = vmatpush1.msra.mxu0 %v311
    %2653 = vmatprep.subr.mxu0 0.0
    %2654 = vmatpush1.msra.mxu0 %v312
    %2655 = vmatprep.subr.mxu0 0.0
    %2656 = vmatpush1.msra.mxu0 %v313
    %2657 = vmatprep.subr.mxu0 0.0
    %2658 = vmatpush1.msra.mxu0 %v314
    %2659 = vmatprep.subr.mxu0 0.0
    %2660 = vmatpush1.msra.mxu0 0.0
    %2661 = vmatprep.subr.mxu0 0.0
    %2662 = vmatpush1.msra.mxu0 0.0
    %2663 = vmatprep.subr.mxu0 0.0
    %2664 = vmatpush1.msra.mxu0 0.0
    %2665 = vmatprep.subr.mxu0 0.0
    %2666 = vmatpush1.msra.mxu0 0.0
    %2667 = vmatprep.subr.mxu0 0.0
    %2668 = vmatpush1.msra.mxu0 0.0
    %2669 = vmatprep.subr.mxu0 0.0
    %2670 = vmatpush1.msra.mxu0 0.0
    %2671 = vmatprep.subr.mxu0 0.0
    %2672 = vmatpush1.msra.mxu0 0.0
    %2673 = vmatprep.subr.mxu0 0.0
    %2674 = vmatpush1.msra.mxu0 0.0
    %2675 = vmatprep.subr.mxu0 0.0
    %2676 = vmatpush1.msra.mxu0 0.0
    %2677 = vmatprep.subr.mxu0 0.0
    %2678 = vmatpush1.msra.mxu0 0.0
    %2679 = vmatprep.subr.mxu0 0.0
    %2680 = vmatpush1.msra.mxu0 0.0
    %2681 = vmatprep.subr.mxu0 0.0
    %2682 = vmatpush1.msra.mxu0 0.0
    %2683 = vmatprep.subr.mxu0 0.0
    %2684 = vmatpush1.msra.mxu0 0.0
    %2685 = vmatprep.subr.mxu0 0.0
    %2686 = vmatpush1.msra.mxu0 0.0
    %2687 = vmatprep.subr.mxu0 0.0
    %2688 = vmatpush1.msra.mxu0 0.0
    %2689 = vmatprep.subr.mxu0 0.0
    %2690 = vmatpush1.msra.mxu0 0.0
    %2691 = vmatprep.mubr.f32.mxu0 0.0
    %2692 = vmatmul.mubr.f32.gmra.mrb[0].mxu0 %v2623
    %v2693 = vpop.f32.mrb[0].mxu0
    %v2694 = vadd.f32 0.0, %v2693
    %v2695 = vpop.f32.mrb[0].mxu0
    %2696 = vmatprep.mubr.f32.mxu0 0.0
    %2697 = vmatmul.mubr.f32.gmra.mrb[0].mxu0 %v2624
    %v2698 = vpop.f32.mrb[0].mxu0
    %v2699 = vadd.f32 0.0, %v2698
    %v2700 = vpop.f32.mrb[0].mxu0
    %2701 = vmatprep.mubr.f32.mxu0 0.0
    %2702 = vmatmul.mubr.f32.gmra.mrb[0].mxu0 %v2625
    %v2703 = vpop.f32.mrb[0].mxu0
    %v2704 = vadd.f32 0.0, %v2703
    %v2705 = vpop.f32.mrb[0].mxu0
    %2706 = vmatprep.mubr.f32.mxu0 0.0
    %2707 = vmatmul.mubr.f32.gmra.mrb[0].mxu0 %v2626
    %v2708 = vpop.f32.mrb[0].mxu0
    %v2709 = vadd.f32 0.0, %v2708
    %v2710 = vpop.f32.mrb[0].mxu0
    %2711 = vdwg.mxu0
    %s2712 = scalar_lea.vmem %s3, 96
    %v2713 = vld [vmem:[%s2712] sm:$0xff]
    %v2715 = vsel %vm497, %v2694, 0
    %v2718 = vsel %vm497, %v2699, 0
    %v2721 = vsel %vm497, %v2704, 0
    %v2724 = vsel %vm497, %v2709, 0
    %2726 = vmatprep.subr.mxu0 0.0
    %2727 = vmatpush1.msra.mxu0 %v2713
    %2728 = vmatprep.subr.mxu0 0.0
    %2729 = vmatpush1.msra.mxu0 0.0
    %2730 = vmatprep.subr.mxu0 0.0
    %2731 = vmatpush1.msra.mxu0 0.0
    %2732 = vmatprep.subr.mxu0 0.0
    %2733 = vmatpush1.msra.mxu0 0.0
    %2734 = vmatprep.subr.mxu0 0.0
    %2735 = vmatpush1.msra.mxu0 0.0
    %2736 = vmatprep.subr.mxu0 0.0
    %2737 = vmatpush1.msra.mxu0 0.0
    %2738 = vmatprep.subr.mxu0 0.0
    %2739 = vmatpush1.msra.mxu0 0.0
    %2740 = vmatprep.subr.mxu0 0.0
    %2741 = vmatpush1.msra.mxu0 0.0
    %2742 = vmatprep.subr.mxu0 0.0
    %2743 = vmatpush1.msra.mxu0 0.0
    %2744 = vmatprep.subr.mxu0 0.0
    %2745 = vmatpush1.msra.mxu0 0.0
    %2746 = vmatprep.subr.mxu0 0.0
    %2747 = vmatpush1.msra.mxu0 0.0
    %2748 = vmatprep.subr.mxu0 0.0
    %2749 = vmatpush1.msra.mxu0 0.0
    %2750 = vmatprep.subr.mxu0 0.0
    %2751 = vmatpush1.msra.mxu0 0.0
    %2752 = vmatprep.subr.mxu0 0.0
    %2753 = vmatpush1.msra.mxu0 0.0
    %2754 = vmatprep.subr.mxu0 0.0
    %2755 = vmatpush1.msra.mxu0 0.0
    %2756 = vmatprep.subr.mxu0 0.0
    %2757 = vmatpush1.msra.mxu0 0.0
    %2758 = vmatprep.subr.mxu0 0.0
    %2759 = vmatpush1.msra.mxu0 0.0
    %2760 = vmatprep.subr.mxu0 0.0
    %2761 = vmatpush1.msra.mxu0 0.0
    %2762 = vmatprep.subr.mxu0 0.0
    %2763 = vmatpush1.msra.mxu0 0.0
    %2764 = vmatprep.subr.mxu0 0.0
    %2765 = vmatpush1.msra.mxu0 0.0
    %2766 = vmatprep.subr.mxu0 0.0
    %2767 = vmatpush1.msra.mxu0 0.0
    %2768 = vmatprep.subr.mxu0 0.0
    %2769 = vmatpush1.msra.mxu0 0.0
    %2770 = vmatprep.subr.mxu0 0.0
    %2771 = vmatpush1.msra.mxu0 0.0
    %2772 = vmatprep.subr.mxu0 0.0
    %2773 = vmatpush1.msra.mxu0 0.0
    %2774 = vmatprep.subr.mxu0 0.0
    %2775 = vmatpush1.msra.mxu0 0.0
    %2776 = vmatprep.subr.mxu0 0.0
    %2777 = vmatpush1.msra.mxu0 0.0
    %2778 = vmatprep.subr.mxu0 0.0
    %2779 = vmatpush1.msra.mxu0 0.0
    %2780 = vmatprep.subr.mxu0 0.0
    %2781 = vmatpush1.msra.mxu0 0.0
    %2782 = vmatprep.subr.mxu0 0.0
    %2783 = vmatpush1.msra.mxu0 0.0
    %2784 = vmatprep.subr.mxu0 0.0
    %2785 = vmatpush1.msra.mxu0 0.0
    %2786 = vmatprep.subr.mxu0 0.0
    %2787 = vmatpush1.msra.mxu0 0.0
    %2788 = vmatprep.subr.mxu0 0.0
    %2789 = vmatpush1.msra.mxu0 0.0
    %2790 = vmatprep.mubr.f32.mxu0 0.0
    %2791 = vmatmul.mubr.f32.gmra.mrb[0].mxu0 %v2715
    %v2792 = vpop.f32.mrb[0].mxu0
    %v2793 = vadd.f32 0.0, %v2792
    %v2794 = vpop.f32.mrb[0].mxu0
    %2795 = vmatprep.mubr.f32.mxu0 0.0
    %2796 = vmatmul.mubr.f32.gmra.mrb[0].mxu0 %v2718
    %v2797 = vpop.f32.mrb[0].mxu0
    %v2798 = vadd.f32 0.0, %v2797
    %v2799 = vpop.f32.mrb[0].mxu0
    %2800 = vmatprep.mubr.f32.mxu0 0.0
    %2801 = vmatmul.mubr.f32.gmra.mrb[0].mxu0 %v2721
    %v2802 = vpop.f32.mrb[0].mxu0
    %v2803 = vadd.f32 0.0, %v2802
    %v2804 = vpop.f32.mrb[0].mxu0
    %2805 = vmatprep.mubr.f32.mxu0 0.0
    %2806 = vmatmul.mubr.f32.gmra.mrb[0].mxu0 %v2724
    %v2807 = vpop.f32.mrb[0].mxu0
    %v2808 = vadd.f32 0.0, %v2807
    %v2809 = vpop.f32.mrb[0].mxu0
    %2810 = vdwg.mxu0
    %v2811 = vadd.f32 %v2618, %v2793
    %v2812 = vadd.f32 %v2619, %v2798
    %v2813 = vadd.f32 %v2620, %v2803
    %v2814 = vadd.f32 %v2621, %v2808
    %s2815 = scalar_lea.vmem %s2, 416
    %v2816 = vld [vmem:[%s2815] sm:$0xff]
    %v2817 = vld [vmem:[%s2815 + $0x8] sm:$0xff]
    %v2818 = vld [vmem:[%s2815 + $0x10] sm:$0xff]
    %v2819 = vld [vmem:[%s2815 + $0x18] sm:$0xff]
    %2820 = vmatprep.subr.mxu0 0.0
    %2821 = vmatpush1.msra.mxu0 %v299
    %2822 = vmatprep.subr.mxu0 0.0
    %2823 = vmatpush1.msra.mxu0 %v300
    %2824 = vmatprep.subr.mxu0 0.0
    %2825 = vmatpush1.msra.mxu0 %v301
    %2826 = vmatprep.subr.mxu0 0.0
    %2827 = vmatpush1.msra.mxu0 %v302
    %2828 = vmatprep.subr.mxu0 0.0
    %2829 = vmatpush1.msra.mxu0 %v303
    %2830 = vmatprep.subr.mxu0 0.0
    %2831 = vmatpush1.msra.mxu0 %v304
    %2832 = vmatprep.subr.mxu0 0.0
    %2833 = vmatpush1.msra.mxu0 %v305
    %2834 = vmatprep.subr.mxu0 0.0
    %2835 = vmatpush1.msra.mxu0 %v306
    %2836 = vmatprep.subr.mxu0 0.0
    %2837 = vmatpush1.msra.mxu0 %v307
    %2838 = vmatprep.subr.mxu0 0.0
    %2839 = vmatpush1.msra.mxu0 %v308
    %2840 = vmatprep.subr.mxu0 0.0
    %2841 = vmatpush1.msra.mxu0 %v309
    %2842 = vmatprep.subr.mxu0 0.0
    %2843 = vmatpush1.msra.mxu0 %v310
    %2844 = vmatprep.subr.mxu0 0.0
    %2845 = vmatpush1.msra.mxu0 %v311
    %2846 = vmatprep.subr.mxu0 0.0
    %2847 = vmatpush1.msra.mxu0 %v312
    %2848 = vmatprep.subr.mxu0 0.0
    %2849 = vmatpush1.msra.mxu0 %v313
    %2850 = vmatprep.subr.mxu0 0.0
    %2851 = vmatpush1.msra.mxu0 %v314
    %2852 = vmatprep.subr.mxu0 0.0
    %2853 = vmatpush1.msra.mxu0 0.0
    %2854 = vmatprep.subr.mxu0 0.0
    %2855 = vmatpush1.msra.mxu0 0.0
    %2856 = vmatprep.subr.mxu0 0.0
    %2857 = vmatpush1.msra.mxu0 0.0
    %2858 = vmatprep.subr.mxu0 0.0
    %2859 = vmatpush1.msra.mxu0 0.0
    %2860 = vmatprep.subr.mxu0 0.0
    %2861 = vmatpush1.msra.mxu0 0.0
    %2862 = vmatprep.subr.mxu0 0.0
    %2863 = vmatpush1.msra.mxu0 0.0
    %2864 = vmatprep.subr.mxu0 0.0
    %2865 = vmatpush1.msra.mxu0 0.0
    %2866 = vmatprep.subr.mxu0 0.0
    %2867 = vmatpush1.msra.mxu0 0.0
    %2868 = vmatprep.subr.mxu0 0.0
    %2869 = vmatpush1.msra.mxu0 0.0
    %2870 = vmatprep.subr.mxu0 0.0
    %2871 = vmatpush1.msra.mxu0 0.0
    %2872 = vmatprep.subr.mxu0 0.0
    %2873 = vmatpush1.msra.mxu0 0.0
    %2874 = vmatprep.subr.mxu0 0.0
    %2875 = vmatpush1.msra.mxu0 0.0
    %2876 = vmatprep.subr.mxu0 0.0
    %2877 = vmatpush1.msra.mxu0 0.0
    %2878 = vmatprep.subr.mxu0 0.0
    %2879 = vmatpush1.msra.mxu0 0.0
    %2880 = vmatprep.subr.mxu0 0.0
    %2881 = vmatpush1.msra.mxu0 0.0
    %2882 = vmatprep.subr.mxu0 0.0
    %2883 = vmatpush1.msra.mxu0 0.0
    %2884 = vmatprep.mubr.f32.mxu0 0.0
    %2885 = vmatmul.mubr.f32.gmra.mrb[0].mxu0 %v2816
    %v2886 = vpop.f32.mrb[0].mxu0
    %v2887 = vadd.f32 0.0, %v2886
    %v2888 = vpop.f32.mrb[0].mxu0
    %2889 = vmatprep.mubr.f32.mxu0 0.0
    %2890 = vmatmul.mubr.f32.gmra.mrb[0].mxu0 %v2817
    %v2891 = vpop.f32.mrb[0].mxu0
    %v2892 = vadd.f32 0.0, %v2891
    %v2893 = vpop.f32.mrb[0].mxu0
    %2894 = vmatprep.mubr.f32.mxu0 0.0
    %2895 = vmatmul.mubr.f32.gmra.mrb[0].mxu0 %v2818
    %v2896 = vpop.f32.mrb[0].mxu0
    %v2897 = vadd.f32 0.0, %v2896
    %v2898 = vpop.f32.mrb[0].mxu0
    %2899 = vmatprep.mubr.f32.mxu0 0.0
    %2900 = vmatmul.mubr.f32.gmra.mrb[0].mxu0 %v2819
    %v2901 = vpop.f32.mrb[0].mxu0
    %v2902 = vadd.f32 0.0, %v2901
    %v2903 = vpop.f32.mrb[0].mxu0
    %2904 = vdwg.mxu0
    %s2905 = scalar_lea.vmem %s3, 104
    %v2906 = vld [vmem:[%s2905] sm:$0xff]
    %v2908 = vsel %vm497, %v2887, 0
    %v2911 = vsel %vm497, %v2892, 0
    %v2914 = vsel %vm497, %v2897, 0
    %v2917 = vsel %vm497, %v2902, 0
    %2919 = vmatprep.subr.mxu0 0.0
    %2920 = vmatpush1.msra.mxu0 %v2906
    %2921 = vmatprep.subr.mxu0 0.0
    %2922 = vmatpush1.msra.mxu0 0.0
    %2923 = vmatprep.subr.mxu0 0.0
    %2924 = vmatpush1.msra.mxu0 0.0
    %2925 = vmatprep.subr.mxu0 0.0
    %2926 = vmatpush1.msra.mxu0 0.0
    %2927 = vmatprep.subr.mxu0 0.0
    %2928 = vmatpush1.msra.mxu0 0.0
    %2929 = vmatprep.subr.mxu0 0.0
    %2930 = vmatpush1.msra.mxu0 0.0
    %2931 = vmatprep.subr.mxu0 0.0
    %2932 = vmatpush1.msra.mxu0 0.0
    %2933 = vmatprep.subr.mxu0 0.0
    %2934 = vmatpush1.msra.mxu0 0.0
    %2935 = vmatprep.subr.mxu0 0.0
    %2936 = vmatpush1.msra.mxu0 0.0
    %2937 = vmatprep.subr.mxu0 0.0
    %2938 = vmatpush1.msra.mxu0 0.0
    %2939 = vmatprep.subr.mxu0 0.0
    %2940 = vmatpush1.msra.mxu0 0.0
    %2941 = vmatprep.subr.mxu0 0.0
    %2942 = vmatpush1.msra.mxu0 0.0
    %2943 = vmatprep.subr.mxu0 0.0
    %2944 = vmatpush1.msra.mxu0 0.0
    %2945 = vmatprep.subr.mxu0 0.0
    %2946 = vmatpush1.msra.mxu0 0.0
    %2947 = vmatprep.subr.mxu0 0.0
    %2948 = vmatpush1.msra.mxu0 0.0
    %2949 = vmatprep.subr.mxu0 0.0
    %2950 = vmatpush1.msra.mxu0 0.0
    %2951 = vmatprep.subr.mxu0 0.0
    %2952 = vmatpush1.msra.mxu0 0.0
    %2953 = vmatprep.subr.mxu0 0.0
    %2954 = vmatpush1.msra.mxu0 0.0
    %2955 = vmatprep.subr.mxu0 0.0
    %2956 = vmatpush1.msra.mxu0 0.0
    %2957 = vmatprep.subr.mxu0 0.0
    %2958 = vmatpush1.msra.mxu0 0.0
    %2959 = vmatprep.subr.mxu0 0.0
    %2960 = vmatpush1.msra.mxu0 0.0
    %2961 = vmatprep.subr.mxu0 0.0
    %2962 = vmatpush1.msra.mxu0 0.0
    %2963 = vmatprep.subr.mxu0 0.0
    %2964 = vmatpush1.msra.mxu0 0.0
    %2965 = vmatprep.subr.mxu0 0.0
    %2966 = vmatpush1.msra.mxu0 0.0
    %2967 = vmatprep.subr.mxu0 0.0
    %2968 = vmatpush1.msra.mxu0 0.0
    %2969 = vmatprep.subr.mxu0 0.0
    %2970 = vmatpush1.msra.mxu0 0.0
    %2971 = vmatprep.subr.mxu0 0.0
    %2972 = vmatpush1.msra.mxu0 0.0
    %2973 = vmatprep.subr.mxu0 0.0
    %2974 = vmatpush1.msra.mxu0 0.0
    %2975 = vmatprep.subr.mxu0 0.0
    %2976 = vmatpush1.msra.mxu0 0.0
    %2977 = vmatprep.subr.mxu0 0.0
    %2978 = vmatpush1.msra.mxu0 0.0
    %2979 = vmatprep.subr.mxu0 0.0
    %2980 = vmatpush1.msra.mxu0 0.0
    %2981 = vmatprep.subr.mxu0 0.0
    %2982 = vmatpush1.msra.mxu0 0.0
    %2983 = vmatprep.mubr.f32.mxu0 0.0
    %2984 = vmatmul.mubr.f32.gmra.mrb[0].mxu0 %v2908
    %v2985 = vpop.f32.mrb[0].mxu0
    %v2986 = vadd.f32 0.0, %v2985
    %v2987 = vpop.f32.mrb[0].mxu0
    %2988 = vmatprep.mubr.f32.mxu0 0.0
    %2989 = vmatmul.mubr.f32.gmra.mrb[0].mxu0 %v2911
    %v2990 = vpop.f32.mrb[0].mxu0
    %v2991 = vadd.f32 0.0, %v2990
    %v2992 = vpop.f32.mrb[0].mxu0
    %2993 = vmatprep.mubr.f32.mxu0 0.0
    %2994 = vmatmul.mubr.f32.gmra.mrb[0].mxu0 %v2914
    %v2995 = vpop.f32.mrb[0].mxu0
    %v2996 = vadd.f32 0.0, %v2995
    %v2997 = vpop.f32.mrb[0].mxu0
    %2998 = vmatprep.mubr.f32.mxu0 0.0
    %2999 = vmatmul.mubr.f32.gmra.mrb[0].mxu0 %v2917
    %v3000 = vpop.f32.mrb[0].mxu0
    %v3001 = vadd.f32 0.0, %v3000
    %v3002 = vpop.f32.mrb[0].mxu0
    %3003 = vdwg.mxu0
    %v3004 = vadd.f32 %v2811, %v2986
    %v3005 = vadd.f32 %v2812, %v2991
    %v3006 = vadd.f32 %v2813, %v2996
    %v3007 = vadd.f32 %v2814, %v3001
    %s3008 = scalar_lea.vmem %s2, 448
    %v3009 = vld [vmem:[%s3008] sm:$0xff]
    %v3010 = vld [vmem:[%s3008 + $0x8] sm:$0xff]
    %v3011 = vld [vmem:[%s3008 + $0x10] sm:$0xff]
    %v3012 = vld [vmem:[%s3008 + $0x18] sm:$0xff]
    %3013 = vmatprep.subr.mxu0 0.0
    %3014 = vmatpush1.msra.mxu0 %v299
    %3015 = vmatprep.subr.mxu0 0.0
    %3016 = vmatpush1.msra.mxu0 %v300
    %3017 = vmatprep.subr.mxu0 0.0
    %3018 = vmatpush1.msra.mxu0 %v301
    %3019 = vmatprep.subr.mxu0 0.0
    %3020 = vmatpush1.msra.mxu0 %v302
    %3021 = vmatprep.subr.mxu0 0.0
    %3022 = vmatpush1.msra.mxu0 %v303
    %3023 = vmatprep.subr.mxu0 0.0
    %3024 = vmatpush1.msra.mxu0 %v304
    %3025 = vmatprep.subr.mxu0 0.0
    %3026 = vmatpush1.msra.mxu0 %v305
    %3027 = vmatprep.subr.mxu0 0.0
    %3028 = vmatpush1.msra.mxu0 %v306
    %3029 = vmatprep.subr.mxu0 0.0
    %3030 = vmatpush1.msra.mxu0 %v307
    %3031 = vmatprep.subr.mxu0 0.0
    %3032 = vmatpush1.msra.mxu0 %v308
    %3033 = vmatprep.subr.mxu0 0.0
    %3034 = vmatpush1.msra.mxu0 %v309
    %3035 = vmatprep.subr.mxu0 0.0
    %3036 = vmatpush1.msra.mxu0 %v310
    %3037 = vmatprep.subr.mxu0 0.0
    %3038 = vmatpush1.msra.mxu0 %v311
    %3039 = vmatprep.subr.mxu0 0.0
    %3040 = vmatpush1.msra.mxu0 %v312
    %3041 = vmatprep.subr.mxu0 0.0
    %3042 = vmatpush1.msra.mxu0 %v313
    %3043 = vmatprep.subr.mxu0 0.0
    %3044 = vmatpush1.msra.mxu0 %v314
    %3045 = vmatprep.subr.mxu0 0.0
    %3046 = vmatpush1.msra.mxu0 0.0
    %3047 = vmatprep.subr.mxu0 0.0
    %3048 = vmatpush1.msra.mxu0 0.0
    %3049 = vmatprep.subr.mxu0 0.0
    %3050 = vmatpush1.msra.mxu0 0.0
    %3051 = vmatprep.subr.mxu0 0.0
    %3052 = vmatpush1.msra.mxu0 0.0
    %3053 = vmatprep.subr.mxu0 0.0
    %3054 = vmatpush1.msra.mxu0 0.0
    %3055 = vmatprep.subr.mxu0 0.0
    %3056 = vmatpush1.msra.mxu0 0.0
    %3057 = vmatprep.subr.mxu0 0.0
    %3058 = vmatpush1.msra.mxu0 0.0
    %3059 = vmatprep.subr.mxu0 0.0
    %3060 = vmatpush1.msra.mxu0 0.0
    %3061 = vmatprep.subr.mxu0 0.0
    %3062 = vmatpush1.msra.mxu0 0.0
    %3063 = vmatprep.subr.mxu0 0.0
    %3064 = vmatpush1.msra.mxu0 0.0
    %3065 = vmatprep.subr.mxu0 0.0
    %3066 = vmatpush1.msra.mxu0 0.0
    %3067 = vmatprep.subr.mxu0 0.0
    %3068 = vmatpush1.msra.mxu0 0.0
    %3069 = vmatprep.subr.mxu0 0.0
    %3070 = vmatpush1.msra.mxu0 0.0
    %3071 = vmatprep.subr.mxu0 0.0
    %3072 = vmatpush1.msra.mxu0 0.0
    %3073 = vmatprep.subr.mxu0 0.0
    %3074 = vmatpush1.msra.mxu0 0.0
    %3075 = vmatprep.subr.mxu0 0.0
    %3076 = vmatpush1.msra.mxu0 0.0
    %3077 = vmatprep.mubr.f32.mxu0 0.0
    %3078 = vmatmul.mubr.f32.gmra.mrb[0].mxu0 %v3009
    %v3079 = vpop.f32.mrb[0].mxu0
    %v3080 = vadd.f32 0.0, %v3079
    %v3081 = vpop.f32.mrb[0].mxu0
    %3082 = vmatprep.mubr.f32.mxu0 0.0
    %3083 = vmatmul.mubr.f32.gmra.mrb[0].mxu0 %v3010
    %v3084 = vpop.f32.mrb[0].mxu0
    %v3085 = vadd.f32 0.0, %v3084
    %v3086 = vpop.f32.mrb[0].mxu0
    %3087 = vmatprep.mubr.f32.mxu0 0.0
    %3088 = vmatmul.mubr.f32.gmra.mrb[0].mxu0 %v3011
    %v3089 = vpop.f32.mrb[0].mxu0
    %v3090 = vadd.f32 0.0, %v3089
    %v3091 = vpop.f32.mrb[0].mxu0
    %3092 = vmatprep.mubr.f32.mxu0 0.0
    %3093 = vmatmul.mubr.f32.gmra.mrb[0].mxu0 %v3012
    %v3094 = vpop.f32.mrb[0].mxu0
    %v3095 = vadd.f32 0.0, %v3094
    %v3096 = vpop.f32.mrb[0].mxu0
    %3097 = vdwg.mxu0
    %s3098 = scalar_lea.vmem %s3, 112
    %v3099 = vld [vmem:[%s3098] sm:$0xff]
    %v3101 = vsel %vm497, %v3080, 0
    %v3104 = vsel %vm497, %v3085, 0
    %v3107 = vsel %vm497, %v3090, 0
    %v3110 = vsel %vm497, %v3095, 0
    %3112 = vmatprep.subr.mxu0 0.0
    %3113 = vmatpush1.msra.mxu0 %v3099
    %3114 = vmatprep.subr.mxu0 0.0
    %3115 = vmatpush1.msra.mxu0 0.0
    %3116 = vmatprep.subr.mxu0 0.0
    %3117 = vmatpush1.msra.mxu0 0.0
    %3118 = vmatprep.subr.mxu0 0.0
    %3119 = vmatpush1.msra.mxu0 0.0
    %3120 = vmatprep.subr.mxu0 0.0
    %3121 = vmatpush1.msra.mxu0 0.0
    %3122 = vmatprep.subr.mxu0 0.0
    %3123 = vmatpush1.msra.mxu0 0.0
    %3124 = vmatprep.subr.mxu0 0.0
    %3125 = vmatpush1.msra.mxu0 0.0
    %3126 = vmatprep.subr.mxu0 0.0
    %3127 = vmatpush1.msra.mxu0 0.0
    %3128 = vmatprep.subr.mxu0 0.0
    %3129 = vmatpush1.msra.mxu0 0.0
    %3130 = vmatprep.subr.mxu0 0.0
    %3131 = vmatpush1.msra.mxu0 0.0
    %3132 = vmatprep.subr.mxu0 0.0
    %3133 = vmatpush1.msra.mxu0 0.0
    %3134 = vmatprep.subr.mxu0 0.0
    %3135 = vmatpush1.msra.mxu0 0.0
    %3136 = vmatprep.subr.mxu0 0.0
    %3137 = vmatpush1.msra.mxu0 0.0
    %3138 = vmatprep.subr.mxu0 0.0
    %3139 = vmatpush1.msra.mxu0 0.0
    %3140 = vmatprep.subr.mxu0 0.0
    %3141 = vmatpush1.msra.mxu0 0.0
    %3142 = vmatprep.subr.mxu0 0.0
    %3143 = vmatpush1.msra.mxu0 0.0
    %3144 = vmatprep.subr.mxu0 0.0
    %3145 = vmatpush1.msra.mxu0 0.0
    %3146 = vmatprep.subr.mxu0 0.0
    %3147 = vmatpush1.msra.mxu0 0.0
    %3148 = vmatprep.subr.mxu0 0.0
    %3149 = vmatpush1.msra.mxu0 0.0
    %3150 = vmatprep.subr.mxu0 0.0
    %3151 = vmatpush1.msra.mxu0 0.0
    %3152 = vmatprep.subr.mxu0 0.0
    %3153 = vmatpush1.msra.mxu0 0.0
    %3154 = vmatprep.subr.mxu0 0.0
    %3155 = vmatpush1.msra.mxu0 0.0
    %3156 = vmatprep.subr.mxu0 0.0
    %3157 = vmatpush1.msra.mxu0 0.0
    %3158 = vmatprep.subr.mxu0 0.0
    %3159 = vmatpush1.msra.mxu0 0.0
    %3160 = vmatprep.subr.mxu0 0.0
    %3161 = vmatpush1.msra.mxu0 0.0
    %3162 = vmatprep.subr.mxu0 0.0
    %3163 = vmatpush1.msra.mxu0 0.0
    %3164 = vmatprep.subr.mxu0 0.0
    %3165 = vmatpush1.msra.mxu0 0.0
    %3166 = vmatprep.subr.mxu0 0.0
    %3167 = vmatpush1.msra.mxu0 0.0
    %3168 = vmatprep.subr.mxu0 0.0
    %3169 = vmatpush1.msra.mxu0 0.0
    %3170 = vmatprep.subr.mxu0 0.0
    %3171 = vmatpush1.msra.mxu0 0.0
    %3172 = vmatprep.subr.mxu0 0.0
    %3173 = vmatpush1.msra.mxu0 0.0
    %3174 = vmatprep.subr.mxu0 0.0
    %3175 = vmatpush1.msra.mxu0 0.0
    %3176 = vmatprep.mubr.f32.mxu0 0.0
    %3177 = vmatmul.mubr.f32.gmra.mrb[0].mxu0 %v3101
    %v3178 = vpop.f32.mrb[0].mxu0
    %v3179 = vadd.f32 0.0, %v3178
    %v3180 = vpop.f32.mrb[0].mxu0
    %3181 = vmatprep.mubr.f32.mxu0 0.0
    %3182 = vmatmul.mubr.f32.gmra.mrb[0].mxu0 %v3104
    %v3183 = vpop.f32.mrb[0].mxu0
    %v3184 = vadd.f32 0.0, %v3183
    %v3185 = vpop.f32.mrb[0].mxu0
    %3186 = vmatprep.mubr.f32.mxu0 0.0
    %3187 = vmatmul.mubr.f32.gmra.mrb[0].mxu0 %v3107
    %v3188 = vpop.f32.mrb[0].mxu0
    %v3189 = vadd.f32 0.0, %v3188
    %v3190 = vpop.f32.mrb[0].mxu0
    %3191 = vmatprep.mubr.f32.mxu0 0.0
    %3192 = vmatmul.mubr.f32.gmra.mrb[0].mxu0 %v3110
    %v3193 = vpop.f32.mrb[0].mxu0
    %v3194 = vadd.f32 0.0, %v3193
    %v3195 = vpop.f32.mrb[0].mxu0
    %3196 = vdwg.mxu0
    %v3197 = vadd.f32 %v3004, %v3179
    %v3198 = vadd.f32 %v3005, %v3184
    %v3199 = vadd.f32 %v3006, %v3189
    %v3200 = vadd.f32 %v3007, %v3194
    %s3201 = scalar_lea.vmem %s2, 480
    %v3202 = vld [vmem:[%s3201] sm:$0xff]
    %v3203 = vld [vmem:[%s3201 + $0x8] sm:$0xff]
    %v3204 = vld [vmem:[%s3201 + $0x10] sm:$0xff]
    %v3205 = vld [vmem:[%s3201 + $0x18] sm:$0xff]
    %3206 = vmatprep.subr.mxu0 0.0
    %3207 = vmatpush1.msra.mxu0 %v299
    %3208 = vmatprep.subr.mxu0 0.0
    %3209 = vmatpush1.msra.mxu0 %v300
    %3210 = vmatprep.subr.mxu0 0.0
    %3211 = vmatpush1.msra.mxu0 %v301
    %3212 = vmatprep.subr.mxu0 0.0
    %3213 = vmatpush1.msra.mxu0 %v302
    %3214 = vmatprep.subr.mxu0 0.0
    %3215 = vmatpush1.msra.mxu0 %v303
    %3216 = vmatprep.subr.mxu0 0.0
    %3217 = vmatpush1.msra.mxu0 %v304
    %3218 = vmatprep.subr.mxu0 0.0
    %3219 = vmatpush1.msra.mxu0 %v305
    %3220 = vmatprep.subr.mxu0 0.0
    %3221 = vmatpush1.msra.mxu0 %v306
    %3222 = vmatprep.subr.mxu0 0.0
    %3223 = vmatpush1.msra.mxu0 %v307
    %3224 = vmatprep.subr.mxu0 0.0
    %3225 = vmatpush1.msra.mxu0 %v308
    %3226 = vmatprep.subr.mxu0 0.0
    %3227 = vmatpush1.msra.mxu0 %v309
    %3228 = vmatprep.subr.mxu0 0.0
    %3229 = vmatpush1.msra.mxu0 %v310
    %3230 = vmatprep.subr.mxu0 0.0
    %3231 = vmatpush1.msra.mxu0 %v311
    %3232 = vmatprep.subr.mxu0 0.0
    %3233 = vmatpush1.msra.mxu0 %v312
    %3234 = vmatprep.subr.mxu0 0.0
    %3235 = vmatpush1.msra.mxu0 %v313
    %3236 = vmatprep.subr.mxu0 0.0
    %3237 = vmatpush1.msra.mxu0 %v314
    %3238 = vmatprep.subr.mxu0 0.0
    %3239 = vmatpush1.msra.mxu0 0.0
    %3240 = vmatprep.subr.mxu0 0.0
    %3241 = vmatpush1.msra.mxu0 0.0
    %3242 = vmatprep.subr.mxu0 0.0
    %3243 = vmatpush1.msra.mxu0 0.0
    %3244 = vmatprep.subr.mxu0 0.0
    %3245 = vmatpush1.msra.mxu0 0.0
    %3246 = vmatprep.subr.mxu0 0.0
    %3247 = vmatpush1.msra.mxu0 0.0
    %3248 = vmatprep.subr.mxu0 0.0
    %3249 = vmatpush1.msra.mxu0 0.0
    %3250 = vmatprep.subr.mxu0 0.0
    %3251 = vmatpush1.msra.mxu0 0.0
    %3252 = vmatprep.subr.mxu0 0.0
    %3253 = vmatpush1.msra.mxu0 0.0
    %3254 = vmatprep.subr.mxu0 0.0
    %3255 = vmatpush1.msra.mxu0 0.0
    %3256 = vmatprep.subr.mxu0 0.0
    %3257 = vmatpush1.msra.mxu0 0.0
    %3258 = vmatprep.subr.mxu0 0.0
    %3259 = vmatpush1.msra.mxu0 0.0
    %3260 = vmatprep.subr.mxu0 0.0
    %3261 = vmatpush1.msra.mxu0 0.0
    %3262 = vmatprep.subr.mxu0 0.0
    %3263 = vmatpush1.msra.mxu0 0.0
    %3264 = vmatprep.subr.mxu0 0.0
    %3265 = vmatpush1.msra.mxu0 0.0
    %3266 = vmatprep.subr.mxu0 0.0
    %3267 = vmatpush1.msra.mxu0 0.0
    %3268 = vmatprep.subr.mxu0 0.0
    %3269 = vmatpush1.msra.mxu0 0.0
    %3270 = vmatprep.mubr.f32.mxu0 0.0
    %3271 = vmatmul.mubr.f32.gmra.mrb[0].mxu0 %v3202
    %v3272 = vpop.f32.mrb[0].mxu0
    %v3273 = vadd.f32 0.0, %v3272
    %v3274 = vpop.f32.mrb[0].mxu0
    %3275 = vmatprep.mubr.f32.mxu0 0.0
    %3276 = vmatmul.mubr.f32.gmra.mrb[0].mxu0 %v3203
    %v3277 = vpop.f32.mrb[0].mxu0
    %v3278 = vadd.f32 0.0, %v3277
    %v3279 = vpop.f32.mrb[0].mxu0
    %3280 = vmatprep.mubr.f32.mxu0 0.0
    %3281 = vmatmul.mubr.f32.gmra.mrb[0].mxu0 %v3204
    %v3282 = vpop.f32.mrb[0].mxu0
    %v3283 = vadd.f32 0.0, %v3282
    %v3284 = vpop.f32.mrb[0].mxu0
    %3285 = vmatprep.mubr.f32.mxu0 0.0
    %3286 = vmatmul.mubr.f32.gmra.mrb[0].mxu0 %v3205
    %v3287 = vpop.f32.mrb[0].mxu0
    %v3288 = vadd.f32 0.0, %v3287
    %v3289 = vpop.f32.mrb[0].mxu0
    %3290 = vdwg.mxu0
    %s3291 = scalar_lea.vmem %s3, 120
    %v3292 = vld [vmem:[%s3291] sm:$0xff]
    %v3294 = vsel %vm497, %v3273, 0
    %v3297 = vsel %vm497, %v3278, 0
    %v3300 = vsel %vm497, %v3283, 0
    %v3303 = vsel %vm497, %v3288, 0
    %3305 = vmatprep.subr.mxu0 0.0
    %3306 = vmatpush1.msra.mxu0 %v3292
    %3307 = vmatprep.subr.mxu0 0.0
    %3308 = vmatpush1.msra.mxu0 0.0
    %3309 = vmatprep.subr.mxu0 0.0
    %3310 = vmatpush1.msra.mxu0 0.0
    %3311 = vmatprep.subr.mxu0 0.0
    %3312 = vmatpush1.msra.mxu0 0.0
    %3313 = vmatprep.subr.mxu0 0.0
    %3314 = vmatpush1.msra.mxu0 0.0
    %3315 = vmatprep.subr.mxu0 0.0
    %3316 = vmatpush1.msra.mxu0 0.0
    %3317 = vmatprep.subr.mxu0 0.0
    %3318 = vmatpush1.msra.mxu0 0.0
    %3319 = vmatprep.subr.mxu0 0.0
    %3320 = vmatpush1.msra.mxu0 0.0
    %3321 = vmatprep.subr.mxu0 0.0
    %3322 = vmatpush1.msra.mxu0 0.0
    %3323 = vmatprep.subr.mxu0 0.0
    %3324 = vmatpush1.msra.mxu0 0.0
    %3325 = vmatprep.subr.mxu0 0.0
    %3326 = vmatpush1.msra.mxu0 0.0
    %3327 = vmatprep.subr.mxu0 0.0
    %3328 = vmatpush1.msra.mxu0 0.0
    %3329 = vmatprep.subr.mxu0 0.0
    %3330 = vmatpush1.msra.mxu0 0.0
    %3331 = vmatprep.subr.mxu0 0.0
    %3332 = vmatpush1.msra.mxu0 0.0
    %3333 = vmatprep.subr.mxu0 0.0
    %3334 = vmatpush1.msra.mxu0 0.0
    %3335 = vmatprep.subr.mxu0 0.0
    %3336 = vmatpush1.msra.mxu0 0.0
    %3337 = vmatprep.subr.mxu0 0.0
    %3338 = vmatpush1.msra.mxu0 0.0
    %3339 = vmatprep.subr.mxu0 0.0
    %3340 = vmatpush1.msra.mxu0 0.0
    %3341 = vmatprep.subr.mxu0 0.0
    %3342 = vmatpush1.msra.mxu0 0.0
    %3343 = vmatprep.subr.mxu0 0.0
    %3344 = vmatpush1.msra.mxu0 0.0
    %3345 = vmatprep.subr.mxu0 0.0
    %3346 = vmatpush1.msra.mxu0 0.0
    %3347 = vmatprep.subr.mxu0 0.0
    %3348 = vmatpush1.msra.mxu0 0.0
    %3349 = vmatprep.subr.mxu0 0.0
    %3350 = vmatpush1.msra.mxu0 0.0
    %3351 = vmatprep.subr.mxu0 0.0
    %3352 = vmatpush1.msra.mxu0 0.0
    %3353 = vmatprep.subr.mxu0 0.0
    %3354 = vmatpush1.msra.mxu0 0.0
    %3355 = vmatprep.subr.mxu0 0.0
    %3356 = vmatpush1.msra.mxu0 0.0
    %3357 = vmatprep.subr.mxu0 0.0
    %3358 = vmatpush1.msra.mxu0 0.0
    %3359 = vmatprep.subr.mxu0 0.0
    %3360 = vmatpush1.msra.mxu0 0.0
    %3361 = vmatprep.subr.mxu0 0.0
    %3362 = vmatpush1.msra.mxu0 0.0
    %3363 = vmatprep.subr.mxu0 0.0
    %3364 = vmatpush1.msra.mxu0 0.0
    %3365 = vmatprep.subr.mxu0 0.0
    %3366 = vmatpush1.msra.mxu0 0.0
    %3367 = vmatprep.subr.mxu0 0.0
    %3368 = vmatpush1.msra.mxu0 0.0
    %3369 = vmatprep.mubr.f32.mxu0 0.0
    %3370 = vmatmul.mubr.f32.gmra.mrb[0].mxu0 %v3294
    %v3371 = vpop.f32.mrb[0].mxu0
    %v3372 = vadd.f32 0.0, %v3371
    %v3373 = vpop.f32.mrb[0].mxu0
    %3374 = vmatprep.mubr.f32.mxu0 0.0
    %3375 = vmatmul.mubr.f32.gmra.mrb[0].mxu0 %v3297
    %v3376 = vpop.f32.mrb[0].mxu0
    %v3377 = vadd.f32 0.0, %v3376
    %v3378 = vpop.f32.mrb[0].mxu0
    %3379 = vmatprep.mubr.f32.mxu0 0.0
    %3380 = vmatmul.mubr.f32.gmra.mrb[0].mxu0 %v3300
    %v3381 = vpop.f32.mrb[0].mxu0
    %v3382 = vadd.f32 0.0, %v3381
    %v3383 = vpop.f32.mrb[0].mxu0
    %3384 = vmatprep.mubr.f32.mxu0 0.0
    %3385 = vmatmul.mubr.f32.gmra.mrb[0].mxu0 %v3303
    %v3386 = vpop.f32.mrb[0].mxu0
    %v3387 = vadd.f32 0.0, %v3386
    %v3388 = vpop.f32.mrb[0].mxu0
    %3389 = vdwg.mxu0
    %v3390 = vadd.f32 %v3197, %v3372
    %v3391 = vadd.f32 %v3198, %v3377
    %v3392 = vadd.f32 %v3199, %v3382
    %v3393 = vadd.f32 %v3200, %v3387
    %vm3394 = vcmask 130048
    %v3395 = vsel %vm3394, %v3390, 0.0
    %v3396 = vsel %vm3394, %v3391, 0.0
    %v3397 = vadd.f32 %v3395, %v3396
    %v3398 = vsel %vm3394, %v3392, 0.0
    %v3399 = vadd.f32 %v3397, %v3398
    %v3400 = vsel %vm3394, %v3393, 0.0
    %v3401 = vadd.f32 %v3399, %v3400
    %v3402 = vrot.slane %v3401, 4
    %v3403 = vadd.f32 %v3401, %v3402
    %v3404 = vrot.slane %v3403, 2
    %v3405 = vadd.f32 %v3403, %v3404
    %v3406 = vrot.slane %v3405, 1
    %v3407 = vadd.f32 %v3405, %v3406
    %v3408 = vrcp.pop 32.0
    %v3409 = vmul.f32 %v3407, %v3408
    %v3410 = vsub.f32 %v3390, %v3409
    %v3411 = vsub.f32 %v3391, %v3409
    %v3412 = vsub.f32 %v3392, %v3409
    %v3413 = vsub.f32 %v3393, %v3409
    %v3414 = vmul.f32 %v3410, %v3410
    %v3415 = vmul.f32 %v3411, %v3411
    %v3416 = vmul.f32 %v3412, %v3412
    %v3417 = vmul.f32 %v3413, %v3413
    %v3418 = vsel %vm3394, %v3414, 0.0
    %v3419 = vsel %vm3394, %v3415, 0.0
    %v3420 = vadd.f32 %v3418, %v3419
    %v3421 = vsel %vm3394, %v3416, 0.0
    %v3422 = vadd.f32 %v3420, %v3421
    %v3423 = vsel %vm3394, %v3417, 0.0
    %v3424 = vadd.f32 %v3422, %v3423
    %v3425 = vrot.slane %v3424, 4
    %v3426 = vadd.f32 %v3424, %v3425
    %v3427 = vrot.slane %v3426, 2
    %v3428 = vadd.f32 %v3426, %v3427
    %v3429 = vrot.slane %v3428, 1
    %v3430 = vadd.f32 %v3428, %v3429
    %v3431 = vmul.f32 %v3430, %v3408
    %v3432 = vld [vmem:[%s4] sm:$0x1]
    %v3433 = vadd.f32 %v3431, 1e-05
    %v3434 = vrsqrt.pop %v3433
    %v3435 = vmul.f32 %v3432, %v3434
    %v3437 = vlaneseq
    %v3438 = vshrl.u32 %v3437, 7
    %v3439 = vsub.s32 0, %v3438
    %v3440 = vrot.slane %v3435, %v3439
    %v3442 = vmul.f32 %v3410, %v3440
    %v3443 = vmul.f32 %v3411, %v3440
    %v3444 = vmul.f32 %v3412, %v3440
    %v3445 = vmul.f32 %v3413, %v3440
    %v3446 = vld [vmem:[%s5] sm:$0x1]
    %v3448 = vlaneseq
    %v3449 = vshrl.u32 %v3448, 7
    %v3450 = vsub.s32 0, %v3449
    %v3451 = vrot.slane %v3446, %v3450
    %v3453 = vadd.f32 %v3442, %v3451
    %v3454 = vadd.f32 %v3443, %v3451
    %v3455 = vadd.f32 %v3444, %v3451
    %v3456 = vadd.f32 %v3445, %v3451
    %vm3457 = vcmp.ge.f32.partialorder %v3453, 0.0
    %vm3458 = vcmp.ge.f32.partialorder %v3454, 0.0
    %vm3459 = vcmp.ge.f32.partialorder %v3455, 0.0
    %vm3460 = vcmp.ge.f32.partialorder %v3456, 0.0
    %v3461 = vmul.f32 %v3453, 0.2
    %v3462 = vmul.f32 %v3454, 0.2
    %v3463 = vmul.f32 %v3455, 0.2
    %v3464 = vmul.f32 %v3456, 0.2
    %v3465 = vsel %vm3457, %v3453, %v3461
    %v3466 = vsel %vm3458, %v3454, %v3462
    %v3467 = vsel %vm3459, %v3455, %v3463
    %v3468 = vsel %vm3460, %v3456, %v3464
    %v3469 = vld [vmem:[%s6] sm:$0x3]
    %vm3470 = vcmask 261120
    %v3472 = vsel %vm3470, %v3469, 0
    %3474 = vmatprep.subr.mxu0 0.0
    %3475 = vmatpush1.msra.mxu0 %v3465
    %3476 = vmatprep.subr.mxu0 0.0
    %3477 = vmatpush1.msra.mxu0 %v3466
    %3478 = vmatprep.subr.mxu0 0.0
    %3479 = vmatpush1.msra.mxu0 %v3467
    %3480 = vmatprep.subr.mxu0 0.0
    %3481 = vmatpush1.msra.mxu0 %v3468
    %3482 = vmatprep.subr.mxu0 0.0
    %3483 = vmatpush1.msra.mxu0 0.0
    %3484 = vmatprep.subr.mxu0 0.0
    %3485 = vmatpush1.msra.mxu0 0.0
    %3486 = vmatprep.subr.mxu0 0.0
    %3487 = vmatpush1.msra.mxu0 0.0
    %3488 = vmatprep.subr.mxu0 0.0
    %3489 = vmatpush1.msra.mxu0 0.0
    %3490 = vmatprep.subr.mxu0 0.0
    %3491 = vmatpush1.msra.mxu0 0.0
    %3492 = vmatprep.subr.mxu0 0.0
    %3493 = vmatpush1.msra.mxu0 0.0
    %3494 = vmatprep.subr.mxu0 0.0
    %3495 = vmatpush1.msra.mxu0 0.0
    %3496 = vmatprep.subr.mxu0 0.0
    %3497 = vmatpush1.msra.mxu0 0.0
    %3498 = vmatprep.subr.mxu0 0.0
    %3499 = vmatpush1.msra.mxu0 0.0
    %3500 = vmatprep.subr.mxu0 0.0
    %3501 = vmatpush1.msra.mxu0 0.0
    %3502 = vmatprep.subr.mxu0 0.0
    %3503 = vmatpush1.msra.mxu0 0.0
    %3504 = vmatprep.subr.mxu0 0.0
    %3505 = vmatpush1.msra.mxu0 0.0
    %3506 = vmatprep.subr.mxu0 0.0
    %3507 = vmatpush1.msra.mxu0 0.0
    %3508 = vmatprep.subr.mxu0 0.0
    %3509 = vmatpush1.msra.mxu0 0.0
    %3510 = vmatprep.subr.mxu0 0.0
    %3511 = vmatpush1.msra.mxu0 0.0
    %3512 = vmatprep.subr.mxu0 0.0
    %3513 = vmatpush1.msra.mxu0 0.0
    %3514 = vmatprep.subr.mxu0 0.0
    %3515 = vmatpush1.msra.mxu0 0.0
    %3516 = vmatprep.subr.mxu0 0.0
    %3517 = vmatpush1.msra.mxu0 0.0
    %3518 = vmatprep.subr.mxu0 0.0
    %3519 = vmatpush1.msra.mxu0 0.0
    %3520 = vmatprep.subr.mxu0 0.0
    %3521 = vmatpush1.msra.mxu0 0.0
    %3522 = vmatprep.subr.mxu0 0.0
    %3523 = vmatpush1.msra.mxu0 0.0
    %3524 = vmatprep.subr.mxu0 0.0
    %3525 = vmatpush1.msra.mxu0 0.0
    %3526 = vmatprep.subr.mxu0 0.0
    %3527 = vmatpush1.msra.mxu0 0.0
    %3528 = vmatprep.subr.mxu0 0.0
    %3529 = vmatpush1.msra.mxu0 0.0
    %3530 = vmatprep.subr.mxu0 0.0
    %3531 = vmatpush1.msra.mxu0 0.0
    %3532 = vmatprep.subr.mxu0 0.0
    %3533 = vmatpush1.msra.mxu0 0.0
    %3534 = vmatprep.subr.mxu0 0.0
    %3535 = vmatpush1.msra.mxu0 0.0
    %3536 = vmatprep.subr.mxu0 0.0
    %3537 = vmatpush1.msra.mxu0 0.0
    %3538 = vmatprep.mubr.f32.mxu0 0.0
    %3539 = vmatmul.mubr.f32.gmra.mrb[0].mxu0 %v3472
    %v3540 = vpop.f32.mrb[0].mxu0
    %v3541 = vadd.f32 0.0, %v3540
    %v3542 = vpop.f32.mrb[0].mxu0
    %3543 = vdwg.mxu0
    %v3544 = vld [vmem:[%s7] sm:$0xff]
    %v3545 = vld [vmem:[%s7 + $0x8] sm:$0xff]
    %v3546 = vld [vmem:[%s7 + $0x10] sm:$0xff]
    %v3547 = vld [vmem:[%s7 + $0x18] sm:$0xff]
    %v3548 = vld [vmem:[%s7 + $0x20] sm:$0xff]
    %v3549 = vld [vmem:[%s7 + $0x28] sm:$0xff]
    %v3550 = vld [vmem:[%s7 + $0x30] sm:$0xff]
    %v3551 = vld [vmem:[%s7 + $0x38] sm:$0xff]
    %s3552 = scalar_lea.vmem %s6, 2
    %v3553 = vld [vmem:[%s3552] sm:$0x3]
    %v3555 = vsel %vm3470, %v3553, 0
    %3557 = vmatprep.subr.mxu0 0.0
    %3558 = vmatpush1.msra.mxu0 %v3465
    %3559 = vmatprep.subr.mxu0 0.0
    %3560 = vmatpush1.msra.mxu0 %v3466
    %3561 = vmatprep.subr.mxu0 0.0
    %3562 = vmatpush1.msra.mxu0 %v3467
    %3563 = vmatprep.subr.mxu0 0.0
    %3564 = vmatpush1.msra.mxu0 %v3468
    %3565 = vmatprep.subr.mxu0 0.0
    %3566 = vmatpush1.msra.mxu0 0.0
    %3567 = vmatprep.subr.mxu0 0.0
    %3568 = vmatpush1.msra.mxu0 0.0
    %3569 = vmatprep.subr.mxu0 0.0
    %3570 = vmatpush1.msra.mxu0 0.0
    %3571 = vmatprep.subr.mxu0 0.0
    %3572 = vmatpush1.msra.mxu0 0.0
    %3573 = vmatprep.subr.mxu0 0.0
    %3574 = vmatpush1.msra.mxu0 0.0
    %3575 = vmatprep.subr.mxu0 0.0
    %3576 = vmatpush1.msra.mxu0 0.0
    %3577 = vmatprep.subr.mxu0 0.0
    %3578 = vmatpush1.msra.mxu0 0.0
    %3579 = vmatprep.subr.mxu0 0.0
    %3580 = vmatpush1.msra.mxu0 0.0
    %3581 = vmatprep.subr.mxu0 0.0
    %3582 = vmatpush1.msra.mxu0 0.0
    %3583 = vmatprep.subr.mxu0 0.0
    %3584 = vmatpush1.msra.mxu0 0.0
    %3585 = vmatprep.subr.mxu0 0.0
    %3586 = vmatpush1.msra.mxu0 0.0
    %3587 = vmatprep.subr.mxu0 0.0
    %3588 = vmatpush1.msra.mxu0 0.0
    %3589 = vmatprep.subr.mxu0 0.0
    %3590 = vmatpush1.msra.mxu0 0.0
    %3591 = vmatprep.subr.mxu0 0.0
    %3592 = vmatpush1.msra.mxu0 0.0
    %3593 = vmatprep.subr.mxu0 0.0
    %3594 = vmatpush1.msra.mxu0 0.0
    %3595 = vmatprep.subr.mxu0 0.0
    %3596 = vmatpush1.msra.mxu0 0.0
    %3597 = vmatprep.subr.mxu0 0.0
    %3598 = vmatpush1.msra.mxu0 0.0
    %3599 = vmatprep.subr.mxu0 0.0
    %3600 = vmatpush1.msra.mxu0 0.0
    %3601 = vmatprep.subr.mxu0 0.0
    %3602 = vmatpush1.msra.mxu0 0.0
    %3603 = vmatprep.subr.mxu0 0.0
    %3604 = vmatpush1.msra.mxu0 0.0
    %3605 = vmatprep.subr.mxu0 0.0
    %3606 = vmatpush1.msra.mxu0 0.0
    %3607 = vmatprep.subr.mxu0 0.0
    %3608 = vmatpush1.msra.mxu0 0.0
    %3609 = vmatprep.subr.mxu0 0.0
    %3610 = vmatpush1.msra.mxu0 0.0
    %3611 = vmatprep.subr.mxu0 0.0
    %3612 = vmatpush1.msra.mxu0 0.0
    %3613 = vmatprep.subr.mxu0 0.0
    %3614 = vmatpush1.msra.mxu0 0.0
    %3615 = vmatprep.subr.mxu0 0.0
    %3616 = vmatpush1.msra.mxu0 0.0
    %3617 = vmatprep.subr.mxu0 0.0
    %3618 = vmatpush1.msra.mxu0 0.0
    %3619 = vmatprep.subr.mxu0 0.0
    %3620 = vmatpush1.msra.mxu0 0.0
    %3621 = vmatprep.mubr.f32.mxu0 0.0
    %3622 = vmatmul.mubr.f32.gmra.mrb[0].mxu0 %v3555
    %v3623 = vpop.f32.mrb[0].mxu0
    %v3624 = vadd.f32 0.0, %v3623
    %v3625 = vpop.f32.mrb[0].mxu0
    %3626 = vdwg.mxu0
    %s3627 = scalar_lea.vmem %s7, 64
    %v3628 = vld [vmem:[%s3627] sm:$0xff]
    %v3629 = vld [vmem:[%s3627 + $0x8] sm:$0xff]
    %v3630 = vld [vmem:[%s3627 + $0x10] sm:$0xff]
    %v3631 = vld [vmem:[%s3627 + $0x18] sm:$0xff]
    %v3632 = vld [vmem:[%s3627 + $0x20] sm:$0xff]
    %v3633 = vld [vmem:[%s3627 + $0x28] sm:$0xff]
    %v3634 = vld [vmem:[%s3627 + $0x30] sm:$0xff]
    %v3635 = vld [vmem:[%s3627 + $0x38] sm:$0xff]
    %v3637 = vsel %vm3394, %v3624, 0
    %3639 = vmatprep.subr.mxu0 %v3629
    %3640 = vmatpush1.msra.mxu0 %v3628
    %3641 = vmatprep.subr.mxu0 %v3633
    %3642 = vmatpush1.msra.mxu0 %v3632
    %3643 = vmatprep.subr.mxu0 0.0
    %3644 = vmatpush1.msra.mxu0 0.0
    %3645 = vmatprep.subr.mxu0 0.0
    %3646 = vmatpush1.msra.mxu0 0.0
    %3647 = vmatprep.subr.mxu0 0.0
    %3648 = vmatpush1.msra.mxu0 0.0
    %3649 = vmatprep.subr.mxu0 0.0
    %3650 = vmatpush1.msra.mxu0 0.0
    %3651 = vmatprep.subr.mxu0 0.0
    %3652 = vmatpush1.msra.mxu0 0.0
    %3653 = vmatprep.subr.mxu0 0.0
    %3654 = vmatpush1.msra.mxu0 0.0
    %3655 = vmatprep.subr.mxu0 0.0
    %3656 = vmatpush1.msra.mxu0 0.0
    %3657 = vmatprep.subr.mxu0 0.0
    %3658 = vmatpush1.msra.mxu0 0.0
    %3659 = vmatprep.subr.mxu0 0.0
    %3660 = vmatpush1.msra.mxu0 0.0
    %3661 = vmatprep.subr.mxu0 0.0
    %3662 = vmatpush1.msra.mxu0 0.0
    %3663 = vmatprep.subr.mxu0 0.0
    %3664 = vmatpush1.msra.mxu0 0.0
    %3665 = vmatprep.subr.mxu0 0.0
    %3666 = vmatpush1.msra.mxu0 0.0
    %3667 = vmatprep.subr.mxu0 0.0
    %3668 = vmatpush1.msra.mxu0 0.0
    %3669 = vmatprep.subr.mxu0 0.0
    %3670 = vmatpush1.msra.mxu0 0.0
    %3671 = vmatprep.subr.mxu0 0.0
    %3672 = vmatpush1.msra.mxu0 0.0
    %3673 = vmatprep.subr.mxu0 0.0
    %3674 = vmatpush1.msra.mxu0 0.0
    %3675 = vmatprep.subr.mxu0 0.0
    %3676 = vmatpush1.msra.mxu0 0.0
    %3677 = vmatprep.subr.mxu0 0.0
    %3678 = vmatpush1.msra.mxu0 0.0
    %3679 = vmatprep.subr.mxu0 0.0
    %3680 = vmatpush1.msra.mxu0 0.0
    %3681 = vmatprep.subr.mxu0 0.0
    %3682 = vmatpush1.msra.mxu0 0.0
    %3683 = vmatprep.subr.mxu0 0.0
    %3684 = vmatpush1.msra.mxu0 0.0
    %3685 = vmatprep.subr.mxu0 0.0
    %3686 = vmatpush1.msra.mxu0 0.0
    %3687 = vmatprep.subr.mxu0 0.0
    %3688 = vmatpush1.msra.mxu0 0.0
    %3689 = vmatprep.subr.mxu0 0.0
    %3690 = vmatpush1.msra.mxu0 0.0
    %3691 = vmatprep.subr.mxu0 0.0
    %3692 = vmatpush1.msra.mxu0 0.0
    %3693 = vmatprep.subr.mxu0 0.0
    %3694 = vmatpush1.msra.mxu0 0.0
    %3695 = vmatprep.subr.mxu0 0.0
    %3696 = vmatpush1.msra.mxu0 0.0
    %3697 = vmatprep.subr.mxu0 0.0
    %3698 = vmatpush1.msra.mxu0 0.0
    %3699 = vmatprep.subr.mxu0 0.0
    %3700 = vmatpush1.msra.mxu0 0.0
    %3701 = vmatprep.subr.mxu0 0.0
    %3702 = vmatpush1.msra.mxu0 0.0
    %3703 = vmatprep.mubr.f32.mxu0 0.0
    %3704 = vmatmul.mubr.f32.gmra.mrb[0].mxu0 %v3637
    %v3705 = vpop.f32.mrb[0].mxu0
    %v3706 = vadd.f32 0.0, %v3705
    %v3707 = vpop.f32.mrb[0].mxu0
    %v3708 = vadd.f32 0.0, %v3707
    %3709 = vdwg.mxu0
    %3710 = vmatprep.subr.mxu0 %v3631
    %3711 = vmatpush1.msra.mxu0 %v3630
    %3712 = vmatprep.subr.mxu0 %v3635
    %3713 = vmatpush1.msra.mxu0 %v3634
    %3714 = vmatprep.subr.mxu0 0.0
    %3715 = vmatpush1.msra.mxu0 0.0
    %3716 = vmatprep.subr.mxu0 0.0
    %3717 = vmatpush1.msra.mxu0 0.0
    %3718 = vmatprep.subr.mxu0 0.0
    %3719 = vmatpush1.msra.mxu0 0.0
    %3720 = vmatprep.subr.mxu0 0.0
    %3721 = vmatpush1.msra.mxu0 0.0
    %3722 = vmatprep.subr.mxu0 0.0
    %3723 = vmatpush1.msra.mxu0 0.0
    %3724 = vmatprep.subr.mxu0 0.0
    %3725 = vmatpush1.msra.mxu0 0.0
    %3726 = vmatprep.subr.mxu0 0.0
    %3727 = vmatpush1.msra.mxu0 0.0
    %3728 = vmatprep.subr.mxu0 0.0
    %3729 = vmatpush1.msra.mxu0 0.0
    %3730 = vmatprep.subr.mxu0 0.0
    %3731 = vmatpush1.msra.mxu0 0.0
    %3732 = vmatprep.subr.mxu0 0.0
    %3733 = vmatpush1.msra.mxu0 0.0
    %3734 = vmatprep.subr.mxu0 0.0
    %3735 = vmatpush1.msra.mxu0 0.0
    %3736 = vmatprep.subr.mxu0 0.0
    %3737 = vmatpush1.msra.mxu0 0.0
    %3738 = vmatprep.subr.mxu0 0.0
    %3739 = vmatpush1.msra.mxu0 0.0
    %3740 = vmatprep.subr.mxu0 0.0
    %3741 = vmatpush1.msra.mxu0 0.0
    %3742 = vmatprep.subr.mxu0 0.0
    %3743 = vmatpush1.msra.mxu0 0.0
    %3744 = vmatprep.subr.mxu0 0.0
    %3745 = vmatpush1.msra.mxu0 0.0
    %3746 = vmatprep.subr.mxu0 0.0
    %3747 = vmatpush1.msra.mxu0 0.0
    %3748 = vmatprep.subr.mxu0 0.0
    %3749 = vmatpush1.msra.mxu0 0.0
    %3750 = vmatprep.subr.mxu0 0.0
    %3751 = vmatpush1.msra.mxu0 0.0
    %3752 = vmatprep.subr.mxu0 0.0
    %3753 = vmatpush1.msra.mxu0 0.0
    %3754 = vmatprep.subr.mxu0 0.0
    %3755 = vmatpush1.msra.mxu0 0.0
    %3756 = vmatprep.subr.mxu0 0.0
    %3757 = vmatpush1.msra.mxu0 0.0
    %3758 = vmatprep.subr.mxu0 0.0
    %3759 = vmatpush1.msra.mxu0 0.0
    %3760 = vmatprep.subr.mxu0 0.0
    %3761 = vmatpush1.msra.mxu0 0.0
    %3762 = vmatprep.subr.mxu0 0.0
    %3763 = vmatpush1.msra.mxu0 0.0
    %3764 = vmatprep.subr.mxu0 0.0
    %3765 = vmatpush1.msra.mxu0 0.0
    %3766 = vmatprep.subr.mxu0 0.0
    %3767 = vmatpush1.msra.mxu0 0.0
    %3768 = vmatprep.subr.mxu0 0.0
    %3769 = vmatpush1.msra.mxu0 0.0
    %3770 = vmatprep.subr.mxu0 0.0
    %3771 = vmatpush1.msra.mxu0 0.0
    %3772 = vmatprep.subr.mxu0 0.0
    %3773 = vmatpush1.msra.mxu0 0.0
    %3774 = vmatprep.mubr.f32.mxu0 0.0
    %3775 = vmatmul.mubr.f32.gmra.mrb[0].mxu0 %v3637
    %v3776 = vpop.f32.mrb[0].mxu0
    %v3777 = vadd.f32 0.0, %v3776
    %v3778 = vpop.f32.mrb[0].mxu0
    %v3779 = vadd.f32 0.0, %v3778
    %3780 = vdwg.mxu0
    %v3782 = vsel %vm3394, %v3541, 0
    %3784 = vmatprep.subr.mxu0 %v3545
    %3785 = vmatpush1.msra.mxu0 %v3544
    %3786 = vmatprep.subr.mxu0 %v3549
    %3787 = vmatpush1.msra.mxu0 %v3548
    %3788 = vmatprep.subr.mxu0 0.0
    %3789 = vmatpush1.msra.mxu0 0.0
    %3790 = vmatprep.subr.mxu0 0.0
    %3791 = vmatpush1.msra.mxu0 0.0
    %3792 = vmatprep.subr.mxu0 0.0
    %3793 = vmatpush1.msra.mxu0 0.0
    %3794 = vmatprep.subr.mxu0 0.0
    %3795 = vmatpush1.msra.mxu0 0.0
    %3796 = vmatprep.subr.mxu0 0.0
    %3797 = vmatpush1.msra.mxu0 0.0
    %3798 = vmatprep.subr.mxu0 0.0
    %3799 = vmatpush1.msra.mxu0 0.0
    %3800 = vmatprep.subr.mxu0 0.0
    %3801 = vmatpush1.msra.mxu0 0.0
    %3802 = vmatprep.subr.mxu0 0.0
    %3803 = vmatpush1.msra.mxu0 0.0
    %3804 = vmatprep.subr.mxu0 0.0
    %3805 = vmatpush1.msra.mxu0 0.0
    %3806 = vmatprep.subr.mxu0 0.0
    %3807 = vmatpush1.msra.mxu0 0.0
    %3808 = vmatprep.subr.mxu0 0.0
    %3809 = vmatpush1.msra.mxu0 0.0
    %3810 = vmatprep.subr.mxu0 0.0
    %3811 = vmatpush1.msra.mxu0 0.0
    %3812 = vmatprep.subr.mxu0 0.0
    %3813 = vmatpush1.msra.mxu0 0.0
    %3814 = vmatprep.subr.mxu0 0.0
    %3815 = vmatpush1.msra.mxu0 0.0
    %3816 = vmatprep.subr.mxu0 0.0
    %3817 = vmatpush1.msra.mxu0 0.0
    %3818 = vmatprep.subr.mxu0 0.0
    %3819 = vmatpush1.msra.mxu0 0.0
    %3820 = vmatprep.subr.mxu0 0.0
    %3821 = vmatpush1.msra.mxu0 0.0
    %3822 = vmatprep.subr.mxu0 0.0
    %3823 = vmatpush1.msra.mxu0 0.0
    %3824 = vmatprep.subr.mxu0 0.0
    %3825 = vmatpush1.msra.mxu0 0.0
    %3826 = vmatprep.subr.mxu0 0.0
    %3827 = vmatpush1.msra.mxu0 0.0
    %3828 = vmatprep.subr.mxu0 0.0
    %3829 = vmatpush1.msra.mxu0 0.0
    %3830 = vmatprep.subr.mxu0 0.0
    %3831 = vmatpush1.msra.mxu0 0.0
    %3832 = vmatprep.subr.mxu0 0.0
    %3833 = vmatpush1.msra.mxu0 0.0
    %3834 = vmatprep.subr.mxu0 0.0
    %3835 = vmatpush1.msra.mxu0 0.0
    %3836 = vmatprep.subr.mxu0 0.0
    %3837 = vmatpush1.msra.mxu0 0.0
    %3838 = vmatprep.subr.mxu0 0.0
    %3839 = vmatpush1.msra.mxu0 0.0
    %3840 = vmatprep.subr.mxu0 0.0
    %3841 = vmatpush1.msra.mxu0 0.0
    %3842 = vmatprep.subr.mxu0 0.0
    %3843 = vmatpush1.msra.mxu0 0.0
    %3844 = vmatprep.subr.mxu0 0.0
    %3845 = vmatpush1.msra.mxu0 0.0
    %3846 = vmatprep.subr.mxu0 0.0
    %3847 = vmatpush1.msra.mxu0 0.0
    %3848 = vmatprep.mubr.f32.mxu0 0.0
    %3849 = vmatmul.mubr.f32.gmra.mrb[0].mxu0 %v3782
    %v3850 = vpop.f32.mrb[0].mxu0
    %v3851 = vadd.f32 %v3706, %v3850
    %v3852 = vpop.f32.mrb[0].mxu0
    %v3853 = vadd.f32 %v3708, %v3852
    %3854 = vdwg.mxu0
    %3855 = vmatprep.subr.mxu0 %v3547
    %3856 = vmatpush1.msra.mxu0 %v3546
    %3857 = vmatprep.subr.mxu0 %v3551
    %3858 = vmatpush1.msra.mxu0 %v3550
    %3859 = vmatprep.subr.mxu0 0.0
    %3860 = vmatpush1.msra.mxu0 0.0
    %3861 = vmatprep.subr.mxu0 0.0
    %3862 = vmatpush1.msra.mxu0 0.0
    %3863 = vmatprep.subr.mxu0 0.0
    %3864 = vmatpush1.msra.mxu0 0.0
    %3865 = vmatprep.subr.mxu0 0.0
    %3866 = vmatpush1.msra.mxu0 0.0
    %3867 = vmatprep.subr.mxu0 0.0
    %3868 = vmatpush1.msra.mxu0 0.0
    %3869 = vmatprep.subr.mxu0 0.0
    %3870 = vmatpush1.msra.mxu0 0.0
    %3871 = vmatprep.subr.mxu0 0.0
    %3872 = vmatpush1.msra.mxu0 0.0
    %3873 = vmatprep.subr.mxu0 0.0
    %3874 = vmatpush1.msra.mxu0 0.0
    %3875 = vmatprep.subr.mxu0 0.0
    %3876 = vmatpush1.msra.mxu0 0.0
    %3877 = vmatprep.subr.mxu0 0.0
    %3878 = vmatpush1.msra.mxu0 0.0
    %3879 = vmatprep.subr.mxu0 0.0
    %3880 = vmatpush1.msra.mxu0 0.0
    %3881 = vmatprep.subr.mxu0 0.0
    %3882 = vmatpush1.msra.mxu0 0.0
    %3883 = vmatprep.subr.mxu0 0.0
    %3884 = vmatpush1.msra.mxu0 0.0
    %3885 = vmatprep.subr.mxu0 0.0
    %3886 = vmatpush1.msra.mxu0 0.0
    %3887 = vmatprep.subr.mxu0 0.0
    %3888 = vmatpush1.msra.mxu0 0.0
    %3889 = vmatprep.subr.mxu0 0.0
    %3890 = vmatpush1.msra.mxu0 0.0
    %3891 = vmatprep.subr.mxu0 0.0
    %3892 = vmatpush1.msra.mxu0 0.0
    %3893 = vmatprep.subr.mxu0 0.0
    %3894 = vmatpush1.msra.mxu0 0.0
    %3895 = vmatprep.subr.mxu0 0.0
    %3896 = vmatpush1.msra.mxu0 0.0
    %3897 = vmatprep.subr.mxu0 0.0
    %3898 = vmatpush1.msra.mxu0 0.0
    %3899 = vmatprep.subr.mxu0 0.0
    %3900 = vmatpush1.msra.mxu0 0.0
    %3901 = vmatprep.subr.mxu0 0.0
    %3902 = vmatpush1.msra.mxu0 0.0
    %3903 = vmatprep.subr.mxu0 0.0
    %3904 = vmatpush1.msra.mxu0 0.0
    %3905 = vmatprep.subr.mxu0 0.0
    %3906 = vmatpush1.msra.mxu0 0.0
    %3907 = vmatprep.subr.mxu0 0.0
    %3908 = vmatpush1.msra.mxu0 0.0
    %3909 = vmatprep.subr.mxu0 0.0
    %3910 = vmatpush1.msra.mxu0 0.0
    %3911 = vmatprep.subr.mxu0 0.0
    %3912 = vmatpush1.msra.mxu0 0.0
    %3913 = vmatprep.subr.mxu0 0.0
    %3914 = vmatpush1.msra.mxu0 0.0
    %3915 = vmatprep.subr.mxu0 0.0
    %3916 = vmatpush1.msra.mxu0 0.0
    %3917 = vmatprep.subr.mxu0 0.0
    %3918 = vmatpush1.msra.mxu0 0.0
    %3919 = vmatprep.mubr.f32.mxu0 0.0
    %3920 = vmatmul.mubr.f32.gmra.mrb[0].mxu0 %v3782
    %v3921 = vpop.f32.mrb[0].mxu0
    %v3922 = vadd.f32 %v3777, %v3921
    %v3923 = vpop.f32.mrb[0].mxu0
    %v3924 = vadd.f32 %v3779, %v3923
    %3925 = vdwg.mxu0
    %s3926 = scalar_lea.vmem %s6, 4
    %v3927 = vld [vmem:[%s3926] sm:$0x3]
    %v3929 = vsel %vm3470, %v3927, 0
    %3931 = vmatprep.subr.mxu0 0.0
    %3932 = vmatpush1.msra.mxu0 %v3465
    %3933 = vmatprep.subr.mxu0 0.0
    %3934 = vmatpush1.msra.mxu0 %v3466
    %3935 = vmatprep.subr.mxu0 0.0
    %3936 = vmatpush1.msra.mxu0 %v3467
    %3937 = vmatprep.subr.mxu0 0.0
    %3938 = vmatpush1.msra.mxu0 %v3468
    %3939 = vmatprep.subr.mxu0 0.0
    %3940 = vmatpush1.msra.mxu0 0.0
    %3941 = vmatprep.subr.mxu0 0.0
    %3942 = vmatpush1.msra.mxu0 0.0
    %3943 = vmatprep.subr.mxu0 0.0
    %3944 = vmatpush1.msra.mxu0 0.0
    %3945 = vmatprep.subr.mxu0 0.0
    %3946 = vmatpush1.msra.mxu0 0.0
    %3947 = vmatprep.subr.mxu0 0.0
    %3948 = vmatpush1.msra.mxu0 0.0
    %3949 = vmatprep.subr.mxu0 0.0
    %3950 = vmatpush1.msra.mxu0 0.0
    %3951 = vmatprep.subr.mxu0 0.0
    %3952 = vmatpush1.msra.mxu0 0.0
    %3953 = vmatprep.subr.mxu0 0.0
    %3954 = vmatpush1.msra.mxu0 0.0
    %3955 = vmatprep.subr.mxu0 0.0
    %3956 = vmatpush1.msra.mxu0 0.0
    %3957 = vmatprep.subr.mxu0 0.0
    %3958 = vmatpush1.msra.mxu0 0.0
    %3959 = vmatprep.subr.mxu0 0.0
    %3960 = vmatpush1.msra.mxu0 0.0
    %3961 = vmatprep.subr.mxu0 0.0
    %3962 = vmatpush1.msra.mxu0 0.0
    %3963 = vmatprep.subr.mxu0 0.0
    %3964 = vmatpush1.msra.mxu0 0.0
    %3965 = vmatprep.subr.mxu0 0.0
    %3966 = vmatpush1.msra.mxu0 0.0
    %3967 = vmatprep.subr.mxu0 0.0
    %3968 = vmatpush1.msra.mxu0 0.0
    %3969 = vmatprep.subr.mxu0 0.0
    %3970 = vmatpush1.msra.mxu0 0.0
    %3971 = vmatprep.subr.mxu0 0.0
    %3972 = vmatpush1.msra.mxu0 0.0
    %3973 = vmatprep.subr.mxu0 0.0
    %3974 = vmatpush1.msra.mxu0 0.0
    %3975 = vmatprep.subr.mxu0 0.0
    %3976 = vmatpush1.msra.mxu0 0.0
    %3977 = vmatprep.subr.mxu0 0.0
    %3978 = vmatpush1.msra.mxu0 0.0
    %3979 = vmatprep.subr.mxu0 0.0
    %3980 = vmatpush1.msra.mxu0 0.0
    %3981 = vmatprep.subr.mxu0 0.0
    %3982 = vmatpush1.msra.mxu0 0.0
    %3983 = vmatprep.subr.mxu0 0.0
    %3984 = vmatpush1.msra.mxu0 0.0
    %3985 = vmatprep.subr.mxu0 0.0
    %3986 = vmatpush1.msra.mxu0 0.0
    %3987 = vmatprep.subr.mxu0 0.0
    %3988 = vmatpush1.msra.mxu0 0.0
    %3989 = vmatprep.subr.mxu0 0.0
    %3990 = vmatpush1.msra.mxu0 0.0
    %3991 = vmatprep.subr.mxu0 0.0
    %3992 = vmatpush1.msra.mxu0 0.0
    %3993 = vmatprep.subr.mxu0 0.0
    %3994 = vmatpush1.msra.mxu0 0.0
    %3995 = vmatprep.mubr.f32.mxu0 0.0
    %3996 = vmatmul.mubr.f32.gmra.mrb[0].mxu0 %v3929
    %v3997 = vpop.f32.mrb[0].mxu0
    %v3998 = vadd.f32 0.0, %v3997
    %v3999 = vpop.f32.mrb[0].mxu0
    %4000 = vdwg.mxu0
    %s4001 = scalar_lea.vmem %s7, 128
    %v4002 = vld [vmem:[%s4001] sm:$0xff]
    %v4003 = vld [vmem:[%s4001 + $0x8] sm:$0xff]
    %v4004 = vld [vmem:[%s4001 + $0x10] sm:$0xff]
    %v4005 = vld [vmem:[%s4001 + $0x18] sm:$0xff]
    %v4006 = vld [vmem:[%s4001 + $0x20] sm:$0xff]
    %v4007 = vld [vmem:[%s4001 + $0x28] sm:$0xff]
    %v4008 = vld [vmem:[%s4001 + $0x30] sm:$0xff]
    %v4009 = vld [vmem:[%s4001 + $0x38] sm:$0xff]
    %v4011 = vsel %vm3394, %v3998, 0
    %4013 = vmatprep.subr.mxu0 %v4003
    %4014 = vmatpush1.msra.mxu0 %v4002
    %4015 = vmatprep.subr.mxu0 %v4007
    %4016 = vmatpush1.msra.mxu0 %v4006
    %4017 = vmatprep.subr.mxu0 0.0
    %4018 = vmatpush1.msra.mxu0 0.0
    %4019 = vmatprep.subr.mxu0 0.0
    %4020 = vmatpush1.msra.mxu0 0.0
    %4021 = vmatprep.subr.mxu0 0.0
    %4022 = vmatpush1.msra.mxu0 0.0
    %4023 = vmatprep.subr.mxu0 0.0
    %4024 = vmatpush1.msra.mxu0 0.0
    %4025 = vmatprep.subr.mxu0 0.0
    %4026 = vmatpush1.msra.mxu0 0.0
    %4027 = vmatprep.subr.mxu0 0.0
    %4028 = vmatpush1.msra.mxu0 0.0
    %4029 = vmatprep.subr.mxu0 0.0
    %4030 = vmatpush1.msra.mxu0 0.0
    %4031 = vmatprep.subr.mxu0 0.0
    %4032 = vmatpush1.msra.mxu0 0.0
    %4033 = vmatprep.subr.mxu0 0.0
    %4034 = vmatpush1.msra.mxu0 0.0
    %4035 = vmatprep.subr.mxu0 0.0
    %4036 = vmatpush1.msra.mxu0 0.0
    %4037 = vmatprep.subr.mxu0 0.0
    %4038 = vmatpush1.msra.mxu0 0.0
    %4039 = vmatprep.subr.mxu0 0.0
    %4040 = vmatpush1.msra.mxu0 0.0
    %4041 = vmatprep.subr.mxu0 0.0
    %4042 = vmatpush1.msra.mxu0 0.0
    %4043 = vmatprep.subr.mxu0 0.0
    %4044 = vmatpush1.msra.mxu0 0.0
    %4045 = vmatprep.subr.mxu0 0.0
    %4046 = vmatpush1.msra.mxu0 0.0
    %4047 = vmatprep.subr.mxu0 0.0
    %4048 = vmatpush1.msra.mxu0 0.0
    %4049 = vmatprep.subr.mxu0 0.0
    %4050 = vmatpush1.msra.mxu0 0.0
    %4051 = vmatprep.subr.mxu0 0.0
    %4052 = vmatpush1.msra.mxu0 0.0
    %4053 = vmatprep.subr.mxu0 0.0
    %4054 = vmatpush1.msra.mxu0 0.0
    %4055 = vmatprep.subr.mxu0 0.0
    %4056 = vmatpush1.msra.mxu0 0.0
    %4057 = vmatprep.subr.mxu0 0.0
    %4058 = vmatpush1.msra.mxu0 0.0
    %4059 = vmatprep.subr.mxu0 0.0
    %4060 = vmatpush1.msra.mxu0 0.0
    %4061 = vmatprep.subr.mxu0 0.0
    %4062 = vmatpush1.msra.mxu0 0.0
    %4063 = vmatprep.subr.mxu0 0.0
    %4064 = vmatpush1.msra.mxu0 0.0
    %4065 = vmatprep.subr.mxu0 0.0
    %4066 = vmatpush1.msra.mxu0 0.0
    %4067 = vmatprep.subr.mxu0 0.0
    %4068 = vmatpush1.msra.mxu0 0.0
    %4069 = vmatprep.subr.mxu0 0.0
    %4070 = vmatpush1.msra.mxu0 0.0
    %4071 = vmatprep.subr.mxu0 0.0
    %4072 = vmatpush1.msra.mxu0 0.0
    %4073 = vmatprep.subr.mxu0 0.0
    %4074 = vmatpush1.msra.mxu0 0.0
    %4075 = vmatprep.subr.mxu0 0.0
    %4076 = vmatpush1.msra.mxu0 0.0
    %4077 = vmatprep.mubr.f32.mxu0 0.0
    %4078 = vmatmul.mubr.f32.gmra.mrb[0].mxu0 %v4011
    %v4079 = vpop.f32.mrb[0].mxu0
    %v4080 = vadd.f32 0.0, %v4079
    %v4081 = vpop.f32.mrb[0].mxu0
    %v4082 = vadd.f32 0.0, %v4081
    %4083 = vdwg.mxu0
    %4084 = vmatprep.subr.mxu0 %v4005
    %4085 = vmatpush1.msra.mxu0 %v4004
    %4086 = vmatprep.subr.mxu0 %v4009
    %4087 = vmatpush1.msra.mxu0 %v4008
    %4088 = vmatprep.subr.mxu0 0.0
    %4089 = vmatpush1.msra.mxu0 0.0
    %4090 = vmatprep.subr.mxu0 0.0
    %4091 = vmatpush1.msra.mxu0 0.0
    %4092 = vmatprep.subr.mxu0 0.0
    %4093 = vmatpush1.msra.mxu0 0.0
    %4094 = vmatprep.subr.mxu0 0.0
    %4095 = vmatpush1.msra.mxu0 0.0
    %4096 = vmatprep.subr.mxu0 0.0
    %4097 = vmatpush1.msra.mxu0 0.0
    %4098 = vmatprep.subr.mxu0 0.0
    %4099 = vmatpush1.msra.mxu0 0.0
    %4100 = vmatprep.subr.mxu0 0.0
    %4101 = vmatpush1.msra.mxu0 0.0
    %4102 = vmatprep.subr.mxu0 0.0
    %4103 = vmatpush1.msra.mxu0 0.0
    %4104 = vmatprep.subr.mxu0 0.0
    %4105 = vmatpush1.msra.mxu0 0.0
    %4106 = vmatprep.subr.mxu0 0.0
    %4107 = vmatpush1.msra.mxu0 0.0
    %4108 = vmatprep.subr.mxu0 0.0
    %4109 = vmatpush1.msra.mxu0 0.0
    %4110 = vmatprep.subr.mxu0 0.0
    %4111 = vmatpush1.msra.mxu0 0.0
    %4112 = vmatprep.subr.mxu0 0.0
    %4113 = vmatpush1.msra.mxu0 0.0
    %4114 = vmatprep.subr.mxu0 0.0
    %4115 = vmatpush1.msra.mxu0 0.0
    %4116 = vmatprep.subr.mxu0 0.0
    %4117 = vmatpush1.msra.mxu0 0.0
    %4118 = vmatprep.subr.mxu0 0.0
    %4119 = vmatpush1.msra.mxu0 0.0
    %4120 = vmatprep.subr.mxu0 0.0
    %4121 = vmatpush1.msra.mxu0 0.0
    %4122 = vmatprep.subr.mxu0 0.0
    %4123 = vmatpush1.msra.mxu0 0.0
    %4124 = vmatprep.subr.mxu0 0.0
    %4125 = vmatpush1.msra.mxu0 0.0
    %4126 = vmatprep.subr.mxu0 0.0
    %4127 = vmatpush1.msra.mxu0 0.0
    %4128 = vmatprep.subr.mxu0 0.0
    %4129 = vmatpush1.msra.mxu0 0.0
    %4130 = vmatprep.subr.mxu0 0.0
    %4131 = vmatpush1.msra.mxu0 0.0
    %4132 = vmatprep.subr.mxu0 0.0
    %4133 = vmatpush1.msra.mxu0 0.0
    %4134 = vmatprep.subr.mxu0 0.0
    %4135 = vmatpush1.msra.mxu0 0.0
    %4136 = vmatprep.subr.mxu0 0.0
    %4137 = vmatpush1.msra.mxu0 0.0
    %4138 = vmatprep.subr.mxu0 0.0
    %4139 = vmatpush1.msra.mxu0 0.0
    %4140 = vmatprep.subr.mxu0 0.0
    %4141 = vmatpush1.msra.mxu0 0.0
    %4142 = vmatprep.subr.mxu0 0.0
    %4143 = vmatpush1.msra.mxu0 0.0
    %4144 = vmatprep.subr.mxu0 0.0
    %4145 = vmatpush1.msra.mxu0 0.0
    %4146 = vmatprep.subr.mxu0 0.0
    %4147 = vmatpush1.msra.mxu0 0.0
    %4148 = vmatprep.mubr.f32.mxu0 0.0
    %4149 = vmatmul.mubr.f32.gmra.mrb[0].mxu0 %v4011
    %v4150 = vpop.f32.mrb[0].mxu0
    %v4151 = vadd.f32 0.0, %v4150
    %v4152 = vpop.f32.mrb[0].mxu0
    %v4153 = vadd.f32 0.0, %v4152
    %4154 = vdwg.mxu0
    %v4155 = vadd.f32 %v3851, %v4080
    %v4156 = vadd.f32 %v3853, %v4082
    %v4157 = vadd.f32 %v3922, %v4151
    %v4158 = vadd.f32 %v3924, %v4153
    %s4159 = scalar_lea.vmem %s6, 6
    %v4160 = vld [vmem:[%s4159] sm:$0x3]
    %v4162 = vsel %vm3470, %v4160, 0
    %4164 = vmatprep.subr.mxu0 0.0
    %4165 = vmatpush1.msra.mxu0 %v3465
    %4166 = vmatprep.subr.mxu0 0.0
    %4167 = vmatpush1.msra.mxu0 %v3466
    %4168 = vmatprep.subr.mxu0 0.0
    %4169 = vmatpush1.msra.mxu0 %v3467
    %4170 = vmatprep.subr.mxu0 0.0
    %4171 = vmatpush1.msra.mxu0 %v3468
    %4172 = vmatprep.subr.mxu0 0.0
    %4173 = vmatpush1.msra.mxu0 0.0
    %4174 = vmatprep.subr.mxu0 0.0
    %4175 = vmatpush1.msra.mxu0 0.0
    %4176 = vmatprep.subr.mxu0 0.0
    %4177 = vmatpush1.msra.mxu0 0.0
    %4178 = vmatprep.subr.mxu0 0.0
    %4179 = vmatpush1.msra.mxu0 0.0
    %4180 = vmatprep.subr.mxu0 0.0
    %4181 = vmatpush1.msra.mxu0 0.0
    %4182 = vmatprep.subr.mxu0 0.0
    %4183 = vmatpush1.msra.mxu0 0.0
    %4184 = vmatprep.subr.mxu0 0.0
    %4185 = vmatpush1.msra.mxu0 0.0
    %4186 = vmatprep.subr.mxu0 0.0
    %4187 = vmatpush1.msra.mxu0 0.0
    %4188 = vmatprep.subr.mxu0 0.0
    %4189 = vmatpush1.msra.mxu0 0.0
    %4190 = vmatprep.subr.mxu0 0.0
    %4191 = vmatpush1.msra.mxu0 0.0
    %4192 = vmatprep.subr.mxu0 0.0
    %4193 = vmatpush1.msra.mxu0 0.0
    %4194 = vmatprep.subr.mxu0 0.0
    %4195 = vmatpush1.msra.mxu0 0.0
    %4196 = vmatprep.subr.mxu0 0.0
    %4197 = vmatpush1.msra.mxu0 0.0
    %4198 = vmatprep.subr.mxu0 0.0
    %4199 = vmatpush1.msra.mxu0 0.0
    %4200 = vmatprep.subr.mxu0 0.0
    %4201 = vmatpush1.msra.mxu0 0.0
    %4202 = vmatprep.subr.mxu0 0.0
    %4203 = vmatpush1.msra.mxu0 0.0
    %4204 = vmatprep.subr.mxu0 0.0
    %4205 = vmatpush1.msra.mxu0 0.0
    %4206 = vmatprep.subr.mxu0 0.0
    %4207 = vmatpush1.msra.mxu0 0.0
    %4208 = vmatprep.subr.mxu0 0.0
    %4209 = vmatpush1.msra.mxu0 0.0
    %4210 = vmatprep.subr.mxu0 0.0
    %4211 = vmatpush1.msra.mxu0 0.0
    %4212 = vmatprep.subr.mxu0 0.0
    %4213 = vmatpush1.msra.mxu0 0.0
    %4214 = vmatprep.subr.mxu0 0.0
    %4215 = vmatpush1.msra.mxu0 0.0
    %4216 = vmatprep.subr.mxu0 0.0
    %4217 = vmatpush1.msra.mxu0 0.0
    %4218 = vmatprep.subr.mxu0 0.0
    %4219 = vmatpush1.msra.mxu0 0.0
    %4220 = vmatprep.subr.mxu0 0.0
    %4221 = vmatpush1.msra.mxu0 0.0
    %4222 = vmatprep.subr.mxu0 0.0
    %4223 = vmatpush1.msra.mxu0 0.0
    %4224 = vmatprep.subr.mxu0 0.0
    %4225 = vmatpush1.msra.mxu0 0.0
    %4226 = vmatprep.subr.mxu0 0.0
    %4227 = vmatpush1.msra.mxu0 0.0
    %4228 = vmatprep.mubr.f32.mxu0 0.0
    %4229 = vmatmul.mubr.f32.gmra.mrb[0].mxu0 %v4162
    %v4230 = vpop.f32.mrb[0].mxu0
    %v4231 = vadd.f32 0.0, %v4230
    %v4232 = vpop.f32.mrb[0].mxu0
    %4233 = vdwg.mxu0
    %s4234 = scalar_lea.vmem %s7, 192
    %v4235 = vld [vmem:[%s4234] sm:$0xff]
    %v4236 = vld [vmem:[%s4234 + $0x8] sm:$0xff]
    %v4237 = vld [vmem:[%s4234 + $0x10] sm:$0xff]
    %v4238 = vld [vmem:[%s4234 + $0x18] sm:$0xff]
    %v4239 = vld [vmem:[%s4234 + $0x20] sm:$0xff]
    %v4240 = vld [vmem:[%s4234 + $0x28] sm:$0xff]
    %v4241 = vld [vmem:[%s4234 + $0x30] sm:$0xff]
    %v4242 = vld [vmem:[%s4234 + $0x38] sm:$0xff]
    %v4244 = vsel %vm3394, %v4231, 0
    %4246 = vmatprep.subr.mxu0 %v4236
    %4247 = vmatpush1.msra.mxu0 %v4235
    %4248 = vmatprep.subr.mxu0 %v4240
    %4249 = vmatpush1.msra.mxu0 %v4239
    %4250 = vmatprep.subr.mxu0 0.0
    %4251 = vmatpush1.msra.mxu0 0.0
    %4252 = vmatprep.subr.mxu0 0.0
    %4253 = vmatpush1.msra.mxu0 0.0
    %4254 = vmatprep.subr.mxu0 0.0
    %4255 = vmatpush1.msra.mxu0 0.0
    %4256 = vmatprep.subr.mxu0 0.0
    %4257 = vmatpush1.msra.mxu0 0.0
    %4258 = vmatprep.subr.mxu0 0.0
    %4259 = vmatpush1.msra.mxu0 0.0
    %4260 = vmatprep.subr.mxu0 0.0
    %4261 = vmatpush1.msra.mxu0 0.0
    %4262 = vmatprep.subr.mxu0 0.0
    %4263 = vmatpush1.msra.mxu0 0.0
    %4264 = vmatprep.subr.mxu0 0.0
    %4265 = vmatpush1.msra.mxu0 0.0
    %4266 = vmatprep.subr.mxu0 0.0
    %4267 = vmatpush1.msra.mxu0 0.0
    %4268 = vmatprep.subr.mxu0 0.0
    %4269 = vmatpush1.msra.mxu0 0.0
    %4270 = vmatprep.subr.mxu0 0.0
    %4271 = vmatpush1.msra.mxu0 0.0
    %4272 = vmatprep.subr.mxu0 0.0
    %4273 = vmatpush1.msra.mxu0 0.0
    %4274 = vmatprep.subr.mxu0 0.0
    %4275 = vmatpush1.msra.mxu0 0.0
    %4276 = vmatprep.subr.mxu0 0.0
    %4277 = vmatpush1.msra.mxu0 0.0
    %4278 = vmatprep.subr.mxu0 0.0
    %4279 = vmatpush1.msra.mxu0 0.0
    %4280 = vmatprep.subr.mxu0 0.0
    %4281 = vmatpush1.msra.mxu0 0.0
    %4282 = vmatprep.subr.mxu0 0.0
    %4283 = vmatpush1.msra.mxu0 0.0
    %4284 = vmatprep.subr.mxu0 0.0
    %4285 = vmatpush1.msra.mxu0 0.0
    %4286 = vmatprep.subr.mxu0 0.0
    %4287 = vmatpush1.msra.mxu0 0.0
    %4288 = vmatprep.subr.mxu0 0.0
    %4289 = vmatpush1.msra.mxu0 0.0
    %4290 = vmatprep.subr.mxu0 0.0
    %4291 = vmatpush1.msra.mxu0 0.0
    %4292 = vmatprep.subr.mxu0 0.0
    %4293 = vmatpush1.msra.mxu0 0.0
    %4294 = vmatprep.subr.mxu0 0.0
    %4295 = vmatpush1.msra.mxu0 0.0
    %4296 = vmatprep.subr.mxu0 0.0
    %4297 = vmatpush1.msra.mxu0 0.0
    %4298 = vmatprep.subr.mxu0 0.0
    %4299 = vmatpush1.msra.mxu0 0.0
    %4300 = vmatprep.subr.mxu0 0.0
    %4301 = vmatpush1.msra.mxu0 0.0
    %4302 = vmatprep.subr.mxu0 0.0
    %4303 = vmatpush1.msra.mxu0 0.0
    %4304 = vmatprep.subr.mxu0 0.0
    %4305 = vmatpush1.msra.mxu0 0.0
    %4306 = vmatprep.subr.mxu0 0.0
    %4307 = vmatpush1.msra.mxu0 0.0
    %4308 = vmatprep.subr.mxu0 0.0
    %4309 = vmatpush1.msra.mxu0 0.0
    %4310 = vmatprep.mubr.f32.mxu0 0.0
    %4311 = vmatmul.mubr.f32.gmra.mrb[0].mxu0 %v4244
    %v4312 = vpop.f32.mrb[0].mxu0
    %v4313 = vadd.f32 0.0, %v4312
    %v4314 = vpop.f32.mrb[0].mxu0
    %v4315 = vadd.f32 0.0, %v4314
    %4316 = vdwg.mxu0
    %4317 = vmatprep.subr.mxu0 %v4238
    %4318 = vmatpush1.msra.mxu0 %v4237
    %4319 = vmatprep.subr.mxu0 %v4242
    %4320 = vmatpush1.msra.mxu0 %v4241
    %4321 = vmatprep.subr.mxu0 0.0
    %4322 = vmatpush1.msra.mxu0 0.0
    %4323 = vmatprep.subr.mxu0 0.0
    %4324 = vmatpush1.msra.mxu0 0.0
    %4325 = vmatprep.subr.mxu0 0.0
    %4326 = vmatpush1.msra.mxu0 0.0
    %4327 = vmatprep.subr.mxu0 0.0
    %4328 = vmatpush1.msra.mxu0 0.0
    %4329 = vmatprep.subr.mxu0 0.0
    %4330 = vmatpush1.msra.mxu0 0.0
    %4331 = vmatprep.subr.mxu0 0.0
    %4332 = vmatpush1.msra.mxu0 0.0
    %4333 = vmatprep.subr.mxu0 0.0
    %4334 = vmatpush1.msra.mxu0 0.0
    %4335 = vmatprep.subr.mxu0 0.0
    %4336 = vmatpush1.msra.mxu0 0.0
    %4337 = vmatprep.subr.mxu0 0.0
    %4338 = vmatpush1.msra.mxu0 0.0
    %4339 = vmatprep.subr.mxu0 0.0
    %4340 = vmatpush1.msra.mxu0 0.0
    %4341 = vmatprep.subr.mxu0 0.0
    %4342 = vmatpush1.msra.mxu0 0.0
    %4343 = vmatprep.subr.mxu0 0.0
    %4344 = vmatpush1.msra.mxu0 0.0
    %4345 = vmatprep.subr.mxu0 0.0
    %4346 = vmatpush1.msra.mxu0 0.0
    %4347 = vmatprep.subr.mxu0 0.0
    %4348 = vmatpush1.msra.mxu0 0.0
    %4349 = vmatprep.subr.mxu0 0.0
    %4350 = vmatpush1.msra.mxu0 0.0
    %4351 = vmatprep.subr.mxu0 0.0
    %4352 = vmatpush1.msra.mxu0 0.0
    %4353 = vmatprep.subr.mxu0 0.0
    %4354 = vmatpush1.msra.mxu0 0.0
    %4355 = vmatprep.subr.mxu0 0.0
    %4356 = vmatpush1.msra.mxu0 0.0
    %4357 = vmatprep.subr.mxu0 0.0
    %4358 = vmatpush1.msra.mxu0 0.0
    %4359 = vmatprep.subr.mxu0 0.0
    %4360 = vmatpush1.msra.mxu0 0.0
    %4361 = vmatprep.subr.mxu0 0.0
    %4362 = vmatpush1.msra.mxu0 0.0
    %4363 = vmatprep.subr.mxu0 0.0
    %4364 = vmatpush1.msra.mxu0 0.0
    %4365 = vmatprep.subr.mxu0 0.0
    %4366 = vmatpush1.msra.mxu0 0.0
    %4367 = vmatprep.subr.mxu0 0.0
    %4368 = vmatpush1.msra.mxu0 0.0
    %4369 = vmatprep.subr.mxu0 0.0
    %4370 = vmatpush1.msra.mxu0 0.0
    %4371 = vmatprep.subr.mxu0 0.0
    %4372 = vmatpush1.msra.mxu0 0.0
    %4373 = vmatprep.subr.mxu0 0.0
    %4374 = vmatpush1.msra.mxu0 0.0
    %4375 = vmatprep.subr.mxu0 0.0
    %4376 = vmatpush1.msra.mxu0 0.0
    %4377 = vmatprep.subr.mxu0 0.0
    %4378 = vmatpush1.msra.mxu0 0.0
    %4379 = vmatprep.subr.mxu0 0.0
    %4380 = vmatpush1.msra.mxu0 0.0
    %4381 = vmatprep.mubr.f32.mxu0 0.0
    %4382 = vmatmul.mubr.f32.gmra.mrb[0].mxu0 %v4244
    %v4383 = vpop.f32.mrb[0].mxu0
    %v4384 = vadd.f32 0.0, %v4383
    %v4385 = vpop.f32.mrb[0].mxu0
    %v4386 = vadd.f32 0.0, %v4385
    %4387 = vdwg.mxu0
    %v4388 = vadd.f32 %v4155, %v4313
    %v4389 = vadd.f32 %v4156, %v4315
    %v4390 = vadd.f32 %v4157, %v4384
    %v4391 = vadd.f32 %v4158, %v4386
    %s4392 = scalar_lea.vmem %s6, 8
    %v4393 = vld [vmem:[%s4392] sm:$0x3]
    %v4395 = vsel %vm3470, %v4393, 0
    %4397 = vmatprep.subr.mxu0 0.0
    %4398 = vmatpush1.msra.mxu0 %v3465
    %4399 = vmatprep.subr.mxu0 0.0
    %4400 = vmatpush1.msra.mxu0 %v3466
    %4401 = vmatprep.subr.mxu0 0.0
    %4402 = vmatpush1.msra.mxu0 %v3467
    %4403 = vmatprep.subr.mxu0 0.0
    %4404 = vmatpush1.msra.mxu0 %v3468
    %4405 = vmatprep.subr.mxu0 0.0
    %4406 = vmatpush1.msra.mxu0 0.0
    %4407 = vmatprep.subr.mxu0 0.0
    %4408 = vmatpush1.msra.mxu0 0.0
    %4409 = vmatprep.subr.mxu0 0.0
    %4410 = vmatpush1.msra.mxu0 0.0
    %4411 = vmatprep.subr.mxu0 0.0
    %4412 = vmatpush1.msra.mxu0 0.0
    %4413 = vmatprep.subr.mxu0 0.0
    %4414 = vmatpush1.msra.mxu0 0.0
    %4415 = vmatprep.subr.mxu0 0.0
    %4416 = vmatpush1.msra.mxu0 0.0
    %4417 = vmatprep.subr.mxu0 0.0
    %4418 = vmatpush1.msra.mxu0 0.0
    %4419 = vmatprep.subr.mxu0 0.0
    %4420 = vmatpush1.msra.mxu0 0.0
    %4421 = vmatprep.subr.mxu0 0.0
    %4422 = vmatpush1.msra.mxu0 0.0
    %4423 = vmatprep.subr.mxu0 0.0
    %4424 = vmatpush1.msra.mxu0 0.0
    %4425 = vmatprep.subr.mxu0 0.0
    %4426 = vmatpush1.msra.mxu0 0.0
    %4427 = vmatprep.subr.mxu0 0.0
    %4428 = vmatpush1.msra.mxu0 0.0
    %4429 = vmatprep.subr.mxu0 0.0
    %4430 = vmatpush1.msra.mxu0 0.0
    %4431 = vmatprep.subr.mxu0 0.0
    %4432 = vmatpush1.msra.mxu0 0.0
    %4433 = vmatprep.subr.mxu0 0.0
    %4434 = vmatpush1.msra.mxu0 0.0
    %4435 = vmatprep.subr.mxu0 0.0
    %4436 = vmatpush1.msra.mxu0 0.0
    %4437 = vmatprep.subr.mxu0 0.0
    %4438 = vmatpush1.msra.mxu0 0.0
    %4439 = vmatprep.subr.mxu0 0.0
    %4440 = vmatpush1.msra.mxu0 0.0
    %4441 = vmatprep.subr.mxu0 0.0
    %4442 = vmatpush1.msra.mxu0 0.0
    %4443 = vmatprep.subr.mxu0 0.0
    %4444 = vmatpush1.msra.mxu0 0.0
    %4445 = vmatprep.subr.mxu0 0.0
    %4446 = vmatpush1.msra.mxu0 0.0
    %4447 = vmatprep.subr.mxu0 0.0
    %4448 = vmatpush1.msra.mxu0 0.0
    %4449 = vmatprep.subr.mxu0 0.0
    %4450 = vmatpush1.msra.mxu0 0.0
    %4451 = vmatprep.subr.mxu0 0.0
    %4452 = vmatpush1.msra.mxu0 0.0
    %4453 = vmatprep.subr.mxu0 0.0
    %4454 = vmatpush1.msra.mxu0 0.0
    %4455 = vmatprep.subr.mxu0 0.0
    %4456 = vmatpush1.msra.mxu0 0.0
    %4457 = vmatprep.subr.mxu0 0.0
    %4458 = vmatpush1.msra.mxu0 0.0
    %4459 = vmatprep.subr.mxu0 0.0
    %4460 = vmatpush1.msra.mxu0 0.0
    %4461 = vmatprep.mubr.f32.mxu0 0.0
    %4462 = vmatmul.mubr.f32.gmra.mrb[0].mxu0 %v4395
    %v4463 = vpop.f32.mrb[0].mxu0
    %v4464 = vadd.f32 0.0, %v4463
    %v4465 = vpop.f32.mrb[0].mxu0
    %4466 = vdwg.mxu0
    %s4467 = scalar_lea.vmem %s7, 256
    %v4468 = vld [vmem:[%s4467] sm:$0xff]
    %v4469 = vld [vmem:[%s4467 + $0x8] sm:$0xff]
    %v4470 = vld [vmem:[%s4467 + $0x10] sm:$0xff]
    %v4471 = vld [vmem:[%s4467 + $0x18] sm:$0xff]
    %v4472 = vld [vmem:[%s4467 + $0x20] sm:$0xff]
    %v4473 = vld [vmem:[%s4467 + $0x28] sm:$0xff]
    %v4474 = vld [vmem:[%s4467 + $0x30] sm:$0xff]
    %v4475 = vld [vmem:[%s4467 + $0x38] sm:$0xff]
    %v4477 = vsel %vm3394, %v4464, 0
    %4479 = vmatprep.subr.mxu0 %v4469
    %4480 = vmatpush1.msra.mxu0 %v4468
    %4481 = vmatprep.subr.mxu0 %v4473
    %4482 = vmatpush1.msra.mxu0 %v4472
    %4483 = vmatprep.subr.mxu0 0.0
    %4484 = vmatpush1.msra.mxu0 0.0
    %4485 = vmatprep.subr.mxu0 0.0
    %4486 = vmatpush1.msra.mxu0 0.0
    %4487 = vmatprep.subr.mxu0 0.0
    %4488 = vmatpush1.msra.mxu0 0.0
    %4489 = vmatprep.subr.mxu0 0.0
    %4490 = vmatpush1.msra.mxu0 0.0
    %4491 = vmatprep.subr.mxu0 0.0
    %4492 = vmatpush1.msra.mxu0 0.0
    %4493 = vmatprep.subr.mxu0 0.0
    %4494 = vmatpush1.msra.mxu0 0.0
    %4495 = vmatprep.subr.mxu0 0.0
    %4496 = vmatpush1.msra.mxu0 0.0
    %4497 = vmatprep.subr.mxu0 0.0
    %4498 = vmatpush1.msra.mxu0 0.0
    %4499 = vmatprep.subr.mxu0 0.0
    %4500 = vmatpush1.msra.mxu0 0.0
    %4501 = vmatprep.subr.mxu0 0.0
    %4502 = vmatpush1.msra.mxu0 0.0
    %4503 = vmatprep.subr.mxu0 0.0
    %4504 = vmatpush1.msra.mxu0 0.0
    %4505 = vmatprep.subr.mxu0 0.0
    %4506 = vmatpush1.msra.mxu0 0.0
    %4507 = vmatprep.subr.mxu0 0.0
    %4508 = vmatpush1.msra.mxu0 0.0
    %4509 = vmatprep.subr.mxu0 0.0
    %4510 = vmatpush1.msra.mxu0 0.0
    %4511 = vmatprep.subr.mxu0 0.0
    %4512 = vmatpush1.msra.mxu0 0.0
    %4513 = vmatprep.subr.mxu0 0.0
    %4514 = vmatpush1.msra.mxu0 0.0
    %4515 = vmatprep.subr.mxu0 0.0
    %4516 = vmatpush1.msra.mxu0 0.0
    %4517 = vmatprep.subr.mxu0 0.0
    %4518 = vmatpush1.msra.mxu0 0.0
    %4519 = vmatprep.subr.mxu0 0.0
    %4520 = vmatpush1.msra.mxu0 0.0
    %4521 = vmatprep.subr.mxu0 0.0
    %4522 = vmatpush1.msra.mxu0 0.0
    %4523 = vmatprep.subr.mxu0 0.0
    %4524 = vmatpush1.msra.mxu0 0.0
    %4525 = vmatprep.subr.mxu0 0.0
    %4526 = vmatpush1.msra.mxu0 0.0
    %4527 = vmatprep.subr.mxu0 0.0
    %4528 = vmatpush1.msra.mxu0 0.0
    %4529 = vmatprep.subr.mxu0 0.0
    %4530 = vmatpush1.msra.mxu0 0.0
    %4531 = vmatprep.subr.mxu0 0.0
    %4532 = vmatpush1.msra.mxu0 0.0
    %4533 = vmatprep.subr.mxu0 0.0
    %4534 = vmatpush1.msra.mxu0 0.0
    %4535 = vmatprep.subr.mxu0 0.0
    %4536 = vmatpush1.msra.mxu0 0.0
    %4537 = vmatprep.subr.mxu0 0.0
    %4538 = vmatpush1.msra.mxu0 0.0
    %4539 = vmatprep.subr.mxu0 0.0
    %4540 = vmatpush1.msra.mxu0 0.0
    %4541 = vmatprep.subr.mxu0 0.0
    %4542 = vmatpush1.msra.mxu0 0.0
    %4543 = vmatprep.mubr.f32.mxu0 0.0
    %4544 = vmatmul.mubr.f32.gmra.mrb[0].mxu0 %v4477
    %v4545 = vpop.f32.mrb[0].mxu0
    %v4546 = vadd.f32 0.0, %v4545
    %v4547 = vpop.f32.mrb[0].mxu0
    %v4548 = vadd.f32 0.0, %v4547
    %4549 = vdwg.mxu0
    %4550 = vmatprep.subr.mxu0 %v4471
    %4551 = vmatpush1.msra.mxu0 %v4470
    %4552 = vmatprep.subr.mxu0 %v4475
    %4553 = vmatpush1.msra.mxu0 %v4474
    %4554 = vmatprep.subr.mxu0 0.0
    %4555 = vmatpush1.msra.mxu0 0.0
    %4556 = vmatprep.subr.mxu0 0.0
    %4557 = vmatpush1.msra.mxu0 0.0
    %4558 = vmatprep.subr.mxu0 0.0
    %4559 = vmatpush1.msra.mxu0 0.0
    %4560 = vmatprep.subr.mxu0 0.0
    %4561 = vmatpush1.msra.mxu0 0.0
    %4562 = vmatprep.subr.mxu0 0.0
    %4563 = vmatpush1.msra.mxu0 0.0
    %4564 = vmatprep.subr.mxu0 0.0
    %4565 = vmatpush1.msra.mxu0 0.0
    %4566 = vmatprep.subr.mxu0 0.0
    %4567 = vmatpush1.msra.mxu0 0.0
    %4568 = vmatprep.subr.mxu0 0.0
    %4569 = vmatpush1.msra.mxu0 0.0
    %4570 = vmatprep.subr.mxu0 0.0
    %4571 = vmatpush1.msra.mxu0 0.0
    %4572 = vmatprep.subr.mxu0 0.0
    %4573 = vmatpush1.msra.mxu0 0.0
    %4574 = vmatprep.subr.mxu0 0.0
    %4575 = vmatpush1.msra.mxu0 0.0
    %4576 = vmatprep.subr.mxu0 0.0
    %4577 = vmatpush1.msra.mxu0 0.0
    %4578 = vmatprep.subr.mxu0 0.0
    %4579 = vmatpush1.msra.mxu0 0.0
    %4580 = vmatprep.subr.mxu0 0.0
    %4581 = vmatpush1.msra.mxu0 0.0
    %4582 = vmatprep.subr.mxu0 0.0
    %4583 = vmatpush1.msra.mxu0 0.0
    %4584 = vmatprep.subr.mxu0 0.0
    %4585 = vmatpush1.msra.mxu0 0.0
    %4586 = vmatprep.subr.mxu0 0.0
    %4587 = vmatpush1.msra.mxu0 0.0
    %4588 = vmatprep.subr.mxu0 0.0
    %4589 = vmatpush1.msra.mxu0 0.0
    %4590 = vmatprep.subr.mxu0 0.0
    %4591 = vmatpush1.msra.mxu0 0.0
    %4592 = vmatprep.subr.mxu0 0.0
    %4593 = vmatpush1.msra.mxu0 0.0
    %4594 = vmatprep.subr.mxu0 0.0
    %4595 = vmatpush1.msra.mxu0 0.0
    %4596 = vmatprep.subr.mxu0 0.0
    %4597 = vmatpush1.msra.mxu0 0.0
    %4598 = vmatprep.subr.mxu0 0.0
    %4599 = vmatpush1.msra.mxu0 0.0
    %4600 = vmatprep.subr.mxu0 0.0
    %4601 = vmatpush1.msra.mxu0 0.0
    %4602 = vmatprep.subr.mxu0 0.0
    %4603 = vmatpush1.msra.mxu0 0.0
    %4604 = vmatprep.subr.mxu0 0.0
    %4605 = vmatpush1.msra.mxu0 0.0
    %4606 = vmatprep.subr.mxu0 0.0
    %4607 = vmatpush1.msra.mxu0 0.0
    %4608 = vmatprep.subr.mxu0 0.0
    %4609 = vmatpush1.msra.mxu0 0.0
    %4610 = vmatprep.subr.mxu0 0.0
    %4611 = vmatpush1.msra.mxu0 0.0
    %4612 = vmatprep.subr.mxu0 0.0
    %4613 = vmatpush1.msra.mxu0 0.0
    %4614 = vmatprep.mubr.f32.mxu0 0.0
    %4615 = vmatmul.mubr.f32.gmra.mrb[0].mxu0 %v4477
    %v4616 = vpop.f32.mrb[0].mxu0
    %v4617 = vadd.f32 0.0, %v4616
    %v4618 = vpop.f32.mrb[0].mxu0
    %v4619 = vadd.f32 0.0, %v4618
    %4620 = vdwg.mxu0
    %v4621 = vadd.f32 %v4388, %v4546
    %v4622 = vadd.f32 %v4389, %v4548
    %v4623 = vadd.f32 %v4390, %v4617
    %v4624 = vadd.f32 %v4391, %v4619
    %s4625 = scalar_lea.vmem %s6, 10
    %v4626 = vld [vmem:[%s4625] sm:$0x3]
    %v4628 = vsel %vm3470, %v4626, 0
    %4630 = vmatprep.subr.mxu0 0.0
    %4631 = vmatpush1.msra.mxu0 %v3465
    %4632 = vmatprep.subr.mxu0 0.0
    %4633 = vmatpush1.msra.mxu0 %v3466
    %4634 = vmatprep.subr.mxu0 0.0
    %4635 = vmatpush1.msra.mxu0 %v3467
    %4636 = vmatprep.subr.mxu0 0.0
    %4637 = vmatpush1.msra.mxu0 %v3468
    %4638 = vmatprep.subr.mxu0 0.0
    %4639 = vmatpush1.msra.mxu0 0.0
    %4640 = vmatprep.subr.mxu0 0.0
    %4641 = vmatpush1.msra.mxu0 0.0
    %4642 = vmatprep.subr.mxu0 0.0
    %4643 = vmatpush1.msra.mxu0 0.0
    %4644 = vmatprep.subr.mxu0 0.0
    %4645 = vmatpush1.msra.mxu0 0.0
    %4646 = vmatprep.subr.mxu0 0.0
    %4647 = vmatpush1.msra.mxu0 0.0
    %4648 = vmatprep.subr.mxu0 0.0
    %4649 = vmatpush1.msra.mxu0 0.0
    %4650 = vmatprep.subr.mxu0 0.0
    %4651 = vmatpush1.msra.mxu0 0.0
    %4652 = vmatprep.subr.mxu0 0.0
    %4653 = vmatpush1.msra.mxu0 0.0
    %4654 = vmatprep.subr.mxu0 0.0
    %4655 = vmatpush1.msra.mxu0 0.0
    %4656 = vmatprep.subr.mxu0 0.0
    %4657 = vmatpush1.msra.mxu0 0.0
    %4658 = vmatprep.subr.mxu0 0.0
    %4659 = vmatpush1.msra.mxu0 0.0
    %4660 = vmatprep.subr.mxu0 0.0
    %4661 = vmatpush1.msra.mxu0 0.0
    %4662 = vmatprep.subr.mxu0 0.0
    %4663 = vmatpush1.msra.mxu0 0.0
    %4664 = vmatprep.subr.mxu0 0.0
    %4665 = vmatpush1.msra.mxu0 0.0
    %4666 = vmatprep.subr.mxu0 0.0
    %4667 = vmatpush1.msra.mxu0 0.0
    %4668 = vmatprep.subr.mxu0 0.0
    %4669 = vmatpush1.msra.mxu0 0.0
    %4670 = vmatprep.subr.mxu0 0.0
    %4671 = vmatpush1.msra.mxu0 0.0
    %4672 = vmatprep.subr.mxu0 0.0
    %4673 = vmatpush1.msra.mxu0 0.0
    %4674 = vmatprep.subr.mxu0 0.0
    %4675 = vmatpush1.msra.mxu0 0.0
    %4676 = vmatprep.subr.mxu0 0.0
    %4677 = vmatpush1.msra.mxu0 0.0
    %4678 = vmatprep.subr.mxu0 0.0
    %4679 = vmatpush1.msra.mxu0 0.0
    %4680 = vmatprep.subr.mxu0 0.0
    %4681 = vmatpush1.msra.mxu0 0.0
    %4682 = vmatprep.subr.mxu0 0.0
    %4683 = vmatpush1.msra.mxu0 0.0
    %4684 = vmatprep.subr.mxu0 0.0
    %4685 = vmatpush1.msra.mxu0 0.0
    %4686 = vmatprep.subr.mxu0 0.0
    %4687 = vmatpush1.msra.mxu0 0.0
    %4688 = vmatprep.subr.mxu0 0.0
    %4689 = vmatpush1.msra.mxu0 0.0
    %4690 = vmatprep.subr.mxu0 0.0
    %4691 = vmatpush1.msra.mxu0 0.0
    %4692 = vmatprep.subr.mxu0 0.0
    %4693 = vmatpush1.msra.mxu0 0.0
    %4694 = vmatprep.mubr.f32.mxu0 0.0
    %4695 = vmatmul.mubr.f32.gmra.mrb[0].mxu0 %v4628
    %v4696 = vpop.f32.mrb[0].mxu0
    %v4697 = vadd.f32 0.0, %v4696
    %v4698 = vpop.f32.mrb[0].mxu0
    %4699 = vdwg.mxu0
    %s4700 = scalar_lea.vmem %s7, 320
    %v4701 = vld [vmem:[%s4700] sm:$0xff]
    %v4702 = vld [vmem:[%s4700 + $0x8] sm:$0xff]
    %v4703 = vld [vmem:[%s4700 + $0x10] sm:$0xff]
    %v4704 = vld [vmem:[%s4700 + $0x18] sm:$0xff]
    %v4705 = vld [vmem:[%s4700 + $0x20] sm:$0xff]
    %v4706 = vld [vmem:[%s4700 + $0x28] sm:$0xff]
    %v4707 = vld [vmem:[%s4700 + $0x30] sm:$0xff]
    %v4708 = vld [vmem:[%s4700 + $0x38] sm:$0xff]
    %v4710 = vsel %vm3394, %v4697, 0
    %4712 = vmatprep.subr.mxu0 %v4702
    %4713 = vmatpush1.msra.mxu0 %v4701
    %4714 = vmatprep.subr.mxu0 %v4706
    %4715 = vmatpush1.msra.mxu0 %v4705
    %4716 = vmatprep.subr.mxu0 0.0
    %4717 = vmatpush1.msra.mxu0 0.0
    %4718 = vmatprep.subr.mxu0 0.0
    %4719 = vmatpush1.msra.mxu0 0.0
    %4720 = vmatprep.subr.mxu0 0.0
    %4721 = vmatpush1.msra.mxu0 0.0
    %4722 = vmatprep.subr.mxu0 0.0
    %4723 = vmatpush1.msra.mxu0 0.0
    %4724 = vmatprep.subr.mxu0 0.0
    %4725 = vmatpush1.msra.mxu0 0.0
    %4726 = vmatprep.subr.mxu0 0.0
    %4727 = vmatpush1.msra.mxu0 0.0
    %4728 = vmatprep.subr.mxu0 0.0
    %4729 = vmatpush1.msra.mxu0 0.0
    %4730 = vmatprep.subr.mxu0 0.0
    %4731 = vmatpush1.msra.mxu0 0.0
    %4732 = vmatprep.subr.mxu0 0.0
    %4733 = vmatpush1.msra.mxu0 0.0
    %4734 = vmatprep.subr.mxu0 0.0
    %4735 = vmatpush1.msra.mxu0 0.0
    %4736 = vmatprep.subr.mxu0 0.0
    %4737 = vmatpush1.msra.mxu0 0.0
    %4738 = vmatprep.subr.mxu0 0.0
    %4739 = vmatpush1.msra.mxu0 0.0
    %4740 = vmatprep.subr.mxu0 0.0
    %4741 = vmatpush1.msra.mxu0 0.0
    %4742 = vmatprep.subr.mxu0 0.0
    %4743 = vmatpush1.msra.mxu0 0.0
    %4744 = vmatprep.subr.mxu0 0.0
    %4745 = vmatpush1.msra.mxu0 0.0
    %4746 = vmatprep.subr.mxu0 0.0
    %4747 = vmatpush1.msra.mxu0 0.0
    %4748 = vmatprep.subr.mxu0 0.0
    %4749 = vmatpush1.msra.mxu0 0.0
    %4750 = vmatprep.subr.mxu0 0.0
    %4751 = vmatpush1.msra.mxu0 0.0
    %4752 = vmatprep.subr.mxu0 0.0
    %4753 = vmatpush1.msra.mxu0 0.0
    %4754 = vmatprep.subr.mxu0 0.0
    %4755 = vmatpush1.msra.mxu0 0.0
    %4756 = vmatprep.subr.mxu0 0.0
    %4757 = vmatpush1.msra.mxu0 0.0
    %4758 = vmatprep.subr.mxu0 0.0
    %4759 = vmatpush1.msra.mxu0 0.0
    %4760 = vmatprep.subr.mxu0 0.0
    %4761 = vmatpush1.msra.mxu0 0.0
    %4762 = vmatprep.subr.mxu0 0.0
    %4763 = vmatpush1.msra.mxu0 0.0
    %4764 = vmatprep.subr.mxu0 0.0
    %4765 = vmatpush1.msra.mxu0 0.0
    %4766 = vmatprep.subr.mxu0 0.0
    %4767 = vmatpush1.msra.mxu0 0.0
    %4768 = vmatprep.subr.mxu0 0.0
    %4769 = vmatpush1.msra.mxu0 0.0
    %4770 = vmatprep.subr.mxu0 0.0
    %4771 = vmatpush1.msra.mxu0 0.0
    %4772 = vmatprep.subr.mxu0 0.0
    %4773 = vmatpush1.msra.mxu0 0.0
    %4774 = vmatprep.subr.mxu0 0.0
    %4775 = vmatpush1.msra.mxu0 0.0
    %4776 = vmatprep.mubr.f32.mxu0 0.0
    %4777 = vmatmul.mubr.f32.gmra.mrb[0].mxu0 %v4710
    %v4778 = vpop.f32.mrb[0].mxu0
    %v4779 = vadd.f32 0.0, %v4778
    %v4780 = vpop.f32.mrb[0].mxu0
    %v4781 = vadd.f32 0.0, %v4780
    %4782 = vdwg.mxu0
    %4783 = vmatprep.subr.mxu0 %v4704
    %4784 = vmatpush1.msra.mxu0 %v4703
    %4785 = vmatprep.subr.mxu0 %v4708
    %4786 = vmatpush1.msra.mxu0 %v4707
    %4787 = vmatprep.subr.mxu0 0.0
    %4788 = vmatpush1.msra.mxu0 0.0
    %4789 = vmatprep.subr.mxu0 0.0
    %4790 = vmatpush1.msra.mxu0 0.0
    %4791 = vmatprep.subr.mxu0 0.0
    %4792 = vmatpush1.msra.mxu0 0.0
    %4793 = vmatprep.subr.mxu0 0.0
    %4794 = vmatpush1.msra.mxu0 0.0
    %4795 = vmatprep.subr.mxu0 0.0
    %4796 = vmatpush1.msra.mxu0 0.0
    %4797 = vmatprep.subr.mxu0 0.0
    %4798 = vmatpush1.msra.mxu0 0.0
    %4799 = vmatprep.subr.mxu0 0.0
    %4800 = vmatpush1.msra.mxu0 0.0
    %4801 = vmatprep.subr.mxu0 0.0
    %4802 = vmatpush1.msra.mxu0 0.0
    %4803 = vmatprep.subr.mxu0 0.0
    %4804 = vmatpush1.msra.mxu0 0.0
    %4805 = vmatprep.subr.mxu0 0.0
    %4806 = vmatpush1.msra.mxu0 0.0
    %4807 = vmatprep.subr.mxu0 0.0
    %4808 = vmatpush1.msra.mxu0 0.0
    %4809 = vmatprep.subr.mxu0 0.0
    %4810 = vmatpush1.msra.mxu0 0.0
    %4811 = vmatprep.subr.mxu0 0.0
    %4812 = vmatpush1.msra.mxu0 0.0
    %4813 = vmatprep.subr.mxu0 0.0
    %4814 = vmatpush1.msra.mxu0 0.0
    %4815 = vmatprep.subr.mxu0 0.0
    %4816 = vmatpush1.msra.mxu0 0.0
    %4817 = vmatprep.subr.mxu0 0.0
    %4818 = vmatpush1.msra.mxu0 0.0
    %4819 = vmatprep.subr.mxu0 0.0
    %4820 = vmatpush1.msra.mxu0 0.0
    %4821 = vmatprep.subr.mxu0 0.0
    %4822 = vmatpush1.msra.mxu0 0.0
    %4823 = vmatprep.subr.mxu0 0.0
    %4824 = vmatpush1.msra.mxu0 0.0
    %4825 = vmatprep.subr.mxu0 0.0
    %4826 = vmatpush1.msra.mxu0 0.0
    %4827 = vmatprep.subr.mxu0 0.0
    %4828 = vmatpush1.msra.mxu0 0.0
    %4829 = vmatprep.subr.mxu0 0.0
    %4830 = vmatpush1.msra.mxu0 0.0
    %4831 = vmatprep.subr.mxu0 0.0
    %4832 = vmatpush1.msra.mxu0 0.0
    %4833 = vmatprep.subr.mxu0 0.0
    %4834 = vmatpush1.msra.mxu0 0.0
    %4835 = vmatprep.subr.mxu0 0.0
    %4836 = vmatpush1.msra.mxu0 0.0
    %4837 = vmatprep.subr.mxu0 0.0
    %4838 = vmatpush1.msra.mxu0 0.0
    %4839 = vmatprep.subr.mxu0 0.0
    %4840 = vmatpush1.msra.mxu0 0.0
    %4841 = vmatprep.subr.mxu0 0.0
    %4842 = vmatpush1.msra.mxu0 0.0
    %4843 = vmatprep.subr.mxu0 0.0
    %4844 = vmatpush1.msra.mxu0 0.0
    %4845 = vmatprep.subr.mxu0 0.0
    %4846 = vmatpush1.msra.mxu0 0.0
    %4847 = vmatprep.mubr.f32.mxu0 0.0
    %4848 = vmatmul.mubr.f32.gmra.mrb[0].mxu0 %v4710
    %v4849 = vpop.f32.mrb[0].mxu0
    %v4850 = vadd.f32 0.0, %v4849
    %v4851 = vpop.f32.mrb[0].mxu0
    %v4852 = vadd.f32 0.0, %v4851
    %4853 = vdwg.mxu0
    %v4854 = vadd.f32 %v4621, %v4779
    %v4855 = vadd.f32 %v4622, %v4781
    %v4856 = vadd.f32 %v4623, %v4850
    %v4857 = vadd.f32 %v4624, %v4852
    %s4858 = scalar_lea.vmem %s6, 12
    %v4859 = vld [vmem:[%s4858] sm:$0x3]
    %v4861 = vsel %vm3470, %v4859, 0
    %4863 = vmatprep.subr.mxu0 0.0
    %4864 = vmatpush1.msra.mxu0 %v3465
    %4865 = vmatprep.subr.mxu0 0.0
    %4866 = vmatpush1.msra.mxu0 %v3466
    %4867 = vmatprep.subr.mxu0 0.0
    %4868 = vmatpush1.msra.mxu0 %v3467
    %4869 = vmatprep.subr.mxu0 0.0
    %4870 = vmatpush1.msra.mxu0 %v3468
    %4871 = vmatprep.subr.mxu0 0.0
    %4872 = vmatpush1.msra.mxu0 0.0
    %4873 = vmatprep.subr.mxu0 0.0
    %4874 = vmatpush1.msra.mxu0 0.0
    %4875 = vmatprep.subr.mxu0 0.0
    %4876 = vmatpush1.msra.mxu0 0.0
    %4877 = vmatprep.subr.mxu0 0.0
    %4878 = vmatpush1.msra.mxu0 0.0
    %4879 = vmatprep.subr.mxu0 0.0
    %4880 = vmatpush1.msra.mxu0 0.0
    %4881 = vmatprep.subr.mxu0 0.0
    %4882 = vmatpush1.msra.mxu0 0.0
    %4883 = vmatprep.subr.mxu0 0.0
    %4884 = vmatpush1.msra.mxu0 0.0
    %4885 = vmatprep.subr.mxu0 0.0
    %4886 = vmatpush1.msra.mxu0 0.0
    %4887 = vmatprep.subr.mxu0 0.0
    %4888 = vmatpush1.msra.mxu0 0.0
    %4889 = vmatprep.subr.mxu0 0.0
    %4890 = vmatpush1.msra.mxu0 0.0
    %4891 = vmatprep.subr.mxu0 0.0
    %4892 = vmatpush1.msra.mxu0 0.0
    %4893 = vmatprep.subr.mxu0 0.0
    %4894 = vmatpush1.msra.mxu0 0.0
    %4895 = vmatprep.subr.mxu0 0.0
    %4896 = vmatpush1.msra.mxu0 0.0
    %4897 = vmatprep.subr.mxu0 0.0
    %4898 = vmatpush1.msra.mxu0 0.0
    %4899 = vmatprep.subr.mxu0 0.0
    %4900 = vmatpush1.msra.mxu0 0.0
    %4901 = vmatprep.subr.mxu0 0.0
    %4902 = vmatpush1.msra.mxu0 0.0
    %4903 = vmatprep.subr.mxu0 0.0
    %4904 = vmatpush1.msra.mxu0 0.0
    %4905 = vmatprep.subr.mxu0 0.0
    %4906 = vmatpush1.msra.mxu0 0.0
    %4907 = vmatprep.subr.mxu0 0.0
    %4908 = vmatpush1.msra.mxu0 0.0
    %4909 = vmatprep.subr.mxu0 0.0
    %4910 = vmatpush1.msra.mxu0 0.0
    %4911 = vmatprep.subr.mxu0 0.0
    %4912 = vmatpush1.msra.mxu0 0.0
    %4913 = vmatprep.subr.mxu0 0.0
    %4914 = vmatpush1.msra.mxu0 0.0
    %4915 = vmatprep.subr.mxu0 0.0
    %4916 = vmatpush1.msra.mxu0 0.0
    %4917 = vmatprep.subr.mxu0 0.0
    %4918 = vmatpush1.msra.mxu0 0.0
    %4919 = vmatprep.subr.mxu0 0.0
    %4920 = vmatpush1.msra.mxu0 0.0
    %4921 = vmatprep.subr.mxu0 0.0
    %4922 = vmatpush1.msra.mxu0 0.0
    %4923 = vmatprep.subr.mxu0 0.0
    %4924 = vmatpush1.msra.mxu0 0.0
    %4925 = vmatprep.subr.mxu0 0.0
    %4926 = vmatpush1.msra.mxu0 0.0
    %4927 = vmatprep.mubr.f32.mxu0 0.0
    %4928 = vmatmul.mubr.f32.gmra.mrb[0].mxu0 %v4861
    %v4929 = vpop.f32.mrb[0].mxu0
    %v4930 = vadd.f32 0.0, %v4929
    %v4931 = vpop.f32.mrb[0].mxu0
    %4932 = vdwg.mxu0
    %s4933 = scalar_lea.vmem %s7, 384
    %v4934 = vld [vmem:[%s4933] sm:$0xff]
    %v4935 = vld [vmem:[%s4933 + $0x8] sm:$0xff]
    %v4936 = vld [vmem:[%s4933 + $0x10] sm:$0xff]
    %v4937 = vld [vmem:[%s4933 + $0x18] sm:$0xff]
    %v4938 = vld [vmem:[%s4933 + $0x20] sm:$0xff]
    %v4939 = vld [vmem:[%s4933 + $0x28] sm:$0xff]
    %v4940 = vld [vmem:[%s4933 + $0x30] sm:$0xff]
    %v4941 = vld [vmem:[%s4933 + $0x38] sm:$0xff]
    %v4943 = vsel %vm3394, %v4930, 0
    %4945 = vmatprep.subr.mxu0 %v4935
    %4946 = vmatpush1.msra.mxu0 %v4934
    %4947 = vmatprep.subr.mxu0 %v4939
    %4948 = vmatpush1.msra.mxu0 %v4938
    %4949 = vmatprep.subr.mxu0 0.0
    %4950 = vmatpush1.msra.mxu0 0.0
    %4951 = vmatprep.subr.mxu0 0.0
    %4952 = vmatpush1.msra.mxu0 0.0
    %4953 = vmatprep.subr.mxu0 0.0
    %4954 = vmatpush1.msra.mxu0 0.0
    %4955 = vmatprep.subr.mxu0 0.0
    %4956 = vmatpush1.msra.mxu0 0.0
    %4957 = vmatprep.subr.mxu0 0.0
    %4958 = vmatpush1.msra.mxu0 0.0
    %4959 = vmatprep.subr.mxu0 0.0
    %4960 = vmatpush1.msra.mxu0 0.0
    %4961 = vmatprep.subr.mxu0 0.0
    %4962 = vmatpush1.msra.mxu0 0.0
    %4963 = vmatprep.subr.mxu0 0.0
    %4964 = vmatpush1.msra.mxu0 0.0
    %4965 = vmatprep.subr.mxu0 0.0
    %4966 = vmatpush1.msra.mxu0 0.0
    %4967 = vmatprep.subr.mxu0 0.0
    %4968 = vmatpush1.msra.mxu0 0.0
    %4969 = vmatprep.subr.mxu0 0.0
    %4970 = vmatpush1.msra.mxu0 0.0
    %4971 = vmatprep.subr.mxu0 0.0
    %4972 = vmatpush1.msra.mxu0 0.0
    %4973 = vmatprep.subr.mxu0 0.0
    %4974 = vmatpush1.msra.mxu0 0.0
    %4975 = vmatprep.subr.mxu0 0.0
    %4976 = vmatpush1.msra.mxu0 0.0
    %4977 = vmatprep.subr.mxu0 0.0
    %4978 = vmatpush1.msra.mxu0 0.0
    %4979 = vmatprep.subr.mxu0 0.0
    %4980 = vmatpush1.msra.mxu0 0.0
    %4981 = vmatprep.subr.mxu0 0.0
    %4982 = vmatpush1.msra.mxu0 0.0
    %4983 = vmatprep.subr.mxu0 0.0
    %4984 = vmatpush1.msra.mxu0 0.0
    %4985 = vmatprep.subr.mxu0 0.0
    %4986 = vmatpush1.msra.mxu0 0.0
    %4987 = vmatprep.subr.mxu0 0.0
    %4988 = vmatpush1.msra.mxu0 0.0
    %4989 = vmatprep.subr.mxu0 0.0
    %4990 = vmatpush1.msra.mxu0 0.0
    %4991 = vmatprep.subr.mxu0 0.0
    %4992 = vmatpush1.msra.mxu0 0.0
    %4993 = vmatprep.subr.mxu0 0.0
    %4994 = vmatpush1.msra.mxu0 0.0
    %4995 = vmatprep.subr.mxu0 0.0
    %4996 = vmatpush1.msra.mxu0 0.0
    %4997 = vmatprep.subr.mxu0 0.0
    %4998 = vmatpush1.msra.mxu0 0.0
    %4999 = vmatprep.subr.mxu0 0.0
    %5000 = vmatpush1.msra.mxu0 0.0
    %5001 = vmatprep.subr.mxu0 0.0
    %5002 = vmatpush1.msra.mxu0 0.0
    %5003 = vmatprep.subr.mxu0 0.0
    %5004 = vmatpush1.msra.mxu0 0.0
    %5005 = vmatprep.subr.mxu0 0.0
    %5006 = vmatpush1.msra.mxu0 0.0
    %5007 = vmatprep.subr.mxu0 0.0
    %5008 = vmatpush1.msra.mxu0 0.0
    %5009 = vmatprep.mubr.f32.mxu0 0.0
    %5010 = vmatmul.mubr.f32.gmra.mrb[0].mxu0 %v4943
    %v5011 = vpop.f32.mrb[0].mxu0
    %v5012 = vadd.f32 0.0, %v5011
    %v5013 = vpop.f32.mrb[0].mxu0
    %v5014 = vadd.f32 0.0, %v5013
    %5015 = vdwg.mxu0
    %5016 = vmatprep.subr.mxu0 %v4937
    %5017 = vmatpush1.msra.mxu0 %v4936
    %5018 = vmatprep.subr.mxu0 %v4941
    %5019 = vmatpush1.msra.mxu0 %v4940
    %5020 = vmatprep.subr.mxu0 0.0
    %5021 = vmatpush1.msra.mxu0 0.0
    %5022 = vmatprep.subr.mxu0 0.0
    %5023 = vmatpush1.msra.mxu0 0.0
    %5024 = vmatprep.subr.mxu0 0.0
    %5025 = vmatpush1.msra.mxu0 0.0
    %5026 = vmatprep.subr.mxu0 0.0
    %5027 = vmatpush1.msra.mxu0 0.0
    %5028 = vmatprep.subr.mxu0 0.0
    %5029 = vmatpush1.msra.mxu0 0.0
    %5030 = vmatprep.subr.mxu0 0.0
    %5031 = vmatpush1.msra.mxu0 0.0
    %5032 = vmatprep.subr.mxu0 0.0
    %5033 = vmatpush1.msra.mxu0 0.0
    %5034 = vmatprep.subr.mxu0 0.0
    %5035 = vmatpush1.msra.mxu0 0.0
    %5036 = vmatprep.subr.mxu0 0.0
    %5037 = vmatpush1.msra.mxu0 0.0
    %5038 = vmatprep.subr.mxu0 0.0
    %5039 = vmatpush1.msra.mxu0 0.0
    %5040 = vmatprep.subr.mxu0 0.0
    %5041 = vmatpush1.msra.mxu0 0.0
    %5042 = vmatprep.subr.mxu0 0.0
    %5043 = vmatpush1.msra.mxu0 0.0
    %5044 = vmatprep.subr.mxu0 0.0
    %5045 = vmatpush1.msra.mxu0 0.0
    %5046 = vmatprep.subr.mxu0 0.0
    %5047 = vmatpush1.msra.mxu0 0.0
    %5048 = vmatprep.subr.mxu0 0.0
    %5049 = vmatpush1.msra.mxu0 0.0
    %5050 = vmatprep.subr.mxu0 0.0
    %5051 = vmatpush1.msra.mxu0 0.0
    %5052 = vmatprep.subr.mxu0 0.0
    %5053 = vmatpush1.msra.mxu0 0.0
    %5054 = vmatprep.subr.mxu0 0.0
    %5055 = vmatpush1.msra.mxu0 0.0
    %5056 = vmatprep.subr.mxu0 0.0
    %5057 = vmatpush1.msra.mxu0 0.0
    %5058 = vmatprep.subr.mxu0 0.0
    %5059 = vmatpush1.msra.mxu0 0.0
    %5060 = vmatprep.subr.mxu0 0.0
    %5061 = vmatpush1.msra.mxu0 0.0
    %5062 = vmatprep.subr.mxu0 0.0
    %5063 = vmatpush1.msra.mxu0 0.0
    %5064 = vmatprep.subr.mxu0 0.0
    %5065 = vmatpush1.msra.mxu0 0.0
    %5066 = vmatprep.subr.mxu0 0.0
    %5067 = vmatpush1.msra.mxu0 0.0
    %5068 = vmatprep.subr.mxu0 0.0
    %5069 = vmatpush1.msra.mxu0 0.0
    %5070 = vmatprep.subr.mxu0 0.0
    %5071 = vmatpush1.msra.mxu0 0.0
    %5072 = vmatprep.subr.mxu0 0.0
    %5073 = vmatpush1.msra.mxu0 0.0
    %5074 = vmatprep.subr.mxu0 0.0
    %5075 = vmatpush1.msra.mxu0 0.0
    %5076 = vmatprep.subr.mxu0 0.0
    %5077 = vmatpush1.msra.mxu0 0.0
    %5078 = vmatprep.subr.mxu0 0.0
    %5079 = vmatpush1.msra.mxu0 0.0
    %5080 = vmatprep.mubr.f32.mxu0 0.0
    %5081 = vmatmul.mubr.f32.gmra.mrb[0].mxu0 %v4943
    %v5082 = vpop.f32.mrb[0].mxu0
    %v5083 = vadd.f32 0.0, %v5082
    %v5084 = vpop.f32.mrb[0].mxu0
    %v5085 = vadd.f32 0.0, %v5084
    %5086 = vdwg.mxu0
    %v5087 = vadd.f32 %v4854, %v5012
    %v5088 = vadd.f32 %v4855, %v5014
    %v5089 = vadd.f32 %v4856, %v5083
    %v5090 = vadd.f32 %v4857, %v5085
    %s5091 = scalar_lea.vmem %s6, 14
    %v5092 = vld [vmem:[%s5091] sm:$0x3]
    %v5094 = vsel %vm3470, %v5092, 0
    %5096 = vmatprep.subr.mxu0 0.0
    %5097 = vmatpush1.msra.mxu0 %v3465
    %5098 = vmatprep.subr.mxu0 0.0
    %5099 = vmatpush1.msra.mxu0 %v3466
    %5100 = vmatprep.subr.mxu0 0.0
    %5101 = vmatpush1.msra.mxu0 %v3467
    %5102 = vmatprep.subr.mxu0 0.0
    %5103 = vmatpush1.msra.mxu0 %v3468
    %5104 = vmatprep.subr.mxu0 0.0
    %5105 = vmatpush1.msra.mxu0 0.0
    %5106 = vmatprep.subr.mxu0 0.0
    %5107 = vmatpush1.msra.mxu0 0.0
    %5108 = vmatprep.subr.mxu0 0.0
    %5109 = vmatpush1.msra.mxu0 0.0
    %5110 = vmatprep.subr.mxu0 0.0
    %5111 = vmatpush1.msra.mxu0 0.0
    %5112 = vmatprep.subr.mxu0 0.0
    %5113 = vmatpush1.msra.mxu0 0.0
    %5114 = vmatprep.subr.mxu0 0.0
    %5115 = vmatpush1.msra.mxu0 0.0
    %5116 = vmatprep.subr.mxu0 0.0
    %5117 = vmatpush1.msra.mxu0 0.0
    %5118 = vmatprep.subr.mxu0 0.0
    %5119 = vmatpush1.msra.mxu0 0.0
    %5120 = vmatprep.subr.mxu0 0.0
    %5121 = vmatpush1.msra.mxu0 0.0
    %5122 = vmatprep.subr.mxu0 0.0
    %5123 = vmatpush1.msra.mxu0 0.0
    %5124 = vmatprep.subr.mxu0 0.0
    %5125 = vmatpush1.msra.mxu0 0.0
    %5126 = vmatprep.subr.mxu0 0.0
    %5127 = vmatpush1.msra.mxu0 0.0
    %5128 = vmatprep.subr.mxu0 0.0
    %5129 = vmatpush1.msra.mxu0 0.0
    %5130 = vmatprep.subr.mxu0 0.0
    %5131 = vmatpush1.msra.mxu0 0.0
    %5132 = vmatprep.subr.mxu0 0.0
    %5133 = vmatpush1.msra.mxu0 0.0
    %5134 = vmatprep.subr.mxu0 0.0
    %5135 = vmatpush1.msra.mxu0 0.0
    %5136 = vmatprep.subr.mxu0 0.0
    %5137 = vmatpush1.msra.mxu0 0.0
    %5138 = vmatprep.subr.mxu0 0.0
    %5139 = vmatpush1.msra.mxu0 0.0
    %5140 = vmatprep.subr.mxu0 0.0
    %5141 = vmatpush1.msra.mxu0 0.0
    %5142 = vmatprep.subr.mxu0 0.0
    %5143 = vmatpush1.msra.mxu0 0.0
    %5144 = vmatprep.subr.mxu0 0.0
    %5145 = vmatpush1.msra.mxu0 0.0
    %5146 = vmatprep.subr.mxu0 0.0
    %5147 = vmatpush1.msra.mxu0 0.0
    %5148 = vmatprep.subr.mxu0 0.0
    %5149 = vmatpush1.msra.mxu0 0.0
    %5150 = vmatprep.subr.mxu0 0.0
    %5151 = vmatpush1.msra.mxu0 0.0
    %5152 = vmatprep.subr.mxu0 0.0
    %5153 = vmatpush1.msra.mxu0 0.0
    %5154 = vmatprep.subr.mxu0 0.0
    %5155 = vmatpush1.msra.mxu0 0.0
    %5156 = vmatprep.subr.mxu0 0.0
    %5157 = vmatpush1.msra.mxu0 0.0
    %5158 = vmatprep.subr.mxu0 0.0
    %5159 = vmatpush1.msra.mxu0 0.0
    %5160 = vmatprep.mubr.f32.mxu0 0.0
    %5161 = vmatmul.mubr.f32.gmra.mrb[0].mxu0 %v5094
    %v5162 = vpop.f32.mrb[0].mxu0
    %v5163 = vadd.f32 0.0, %v5162
    %v5164 = vpop.f32.mrb[0].mxu0
    %5165 = vdwg.mxu0
    %s5166 = scalar_lea.vmem %s7, 448
    %v5167 = vld [vmem:[%s5166] sm:$0xff]
    %v5168 = vld [vmem:[%s5166 + $0x8] sm:$0xff]
    %v5169 = vld [vmem:[%s5166 + $0x10] sm:$0xff]
    %v5170 = vld [vmem:[%s5166 + $0x18] sm:$0xff]
    %v5171 = vld [vmem:[%s5166 + $0x20] sm:$0xff]
    %v5172 = vld [vmem:[%s5166 + $0x28] sm:$0xff]
    %v5173 = vld [vmem:[%s5166 + $0x30] sm:$0xff]
    %v5174 = vld [vmem:[%s5166 + $0x38] sm:$0xff]
    %v5176 = vsel %vm3394, %v5163, 0
    %5178 = vmatprep.subr.mxu0 %v5168
    %5179 = vmatpush1.msra.mxu0 %v5167
    %5180 = vmatprep.subr.mxu0 %v5172
    %5181 = vmatpush1.msra.mxu0 %v5171
    %5182 = vmatprep.subr.mxu0 0.0
    %5183 = vmatpush1.msra.mxu0 0.0
    %5184 = vmatprep.subr.mxu0 0.0
    %5185 = vmatpush1.msra.mxu0 0.0
    %5186 = vmatprep.subr.mxu0 0.0
    %5187 = vmatpush1.msra.mxu0 0.0
    %5188 = vmatprep.subr.mxu0 0.0
    %5189 = vmatpush1.msra.mxu0 0.0
    %5190 = vmatprep.subr.mxu0 0.0
    %5191 = vmatpush1.msra.mxu0 0.0
    %5192 = vmatprep.subr.mxu0 0.0
    %5193 = vmatpush1.msra.mxu0 0.0
    %5194 = vmatprep.subr.mxu0 0.0
    %5195 = vmatpush1.msra.mxu0 0.0
    %5196 = vmatprep.subr.mxu0 0.0
    %5197 = vmatpush1.msra.mxu0 0.0
    %5198 = vmatprep.subr.mxu0 0.0
    %5199 = vmatpush1.msra.mxu0 0.0
    %5200 = vmatprep.subr.mxu0 0.0
    %5201 = vmatpush1.msra.mxu0 0.0
    %5202 = vmatprep.subr.mxu0 0.0
    %5203 = vmatpush1.msra.mxu0 0.0
    %5204 = vmatprep.subr.mxu0 0.0
    %5205 = vmatpush1.msra.mxu0 0.0
    %5206 = vmatprep.subr.mxu0 0.0
    %5207 = vmatpush1.msra.mxu0 0.0
    %5208 = vmatprep.subr.mxu0 0.0
    %5209 = vmatpush1.msra.mxu0 0.0
    %5210 = vmatprep.subr.mxu0 0.0
    %5211 = vmatpush1.msra.mxu0 0.0
    %5212 = vmatprep.subr.mxu0 0.0
    %5213 = vmatpush1.msra.mxu0 0.0
    %5214 = vmatprep.subr.mxu0 0.0
    %5215 = vmatpush1.msra.mxu0 0.0
    %5216 = vmatprep.subr.mxu0 0.0
    %5217 = vmatpush1.msra.mxu0 0.0
    %5218 = vmatprep.subr.mxu0 0.0
    %5219 = vmatpush1.msra.mxu0 0.0
    %5220 = vmatprep.subr.mxu0 0.0
    %5221 = vmatpush1.msra.mxu0 0.0
    %5222 = vmatprep.subr.mxu0 0.0
    %5223 = vmatpush1.msra.mxu0 0.0
    %5224 = vmatprep.subr.mxu0 0.0
    %5225 = vmatpush1.msra.mxu0 0.0
    %5226 = vmatprep.subr.mxu0 0.0
    %5227 = vmatpush1.msra.mxu0 0.0
    %5228 = vmatprep.subr.mxu0 0.0
    %5229 = vmatpush1.msra.mxu0 0.0
    %5230 = vmatprep.subr.mxu0 0.0
    %5231 = vmatpush1.msra.mxu0 0.0
    %5232 = vmatprep.subr.mxu0 0.0
    %5233 = vmatpush1.msra.mxu0 0.0
    %5234 = vmatprep.subr.mxu0 0.0
    %5235 = vmatpush1.msra.mxu0 0.0
    %5236 = vmatprep.subr.mxu0 0.0
    %5237 = vmatpush1.msra.mxu0 0.0
    %5238 = vmatprep.subr.mxu0 0.0
    %5239 = vmatpush1.msra.mxu0 0.0
    %5240 = vmatprep.subr.mxu0 0.0
    %5241 = vmatpush1.msra.mxu0 0.0
    %5242 = vmatprep.mubr.f32.mxu0 0.0
    %5243 = vmatmul.mubr.f32.gmra.mrb[0].mxu0 %v5176
    %v5244 = vpop.f32.mrb[0].mxu0
    %v5245 = vadd.f32 0.0, %v5244
    %v5246 = vpop.f32.mrb[0].mxu0
    %v5247 = vadd.f32 0.0, %v5246
    %5248 = vdwg.mxu0
    %5249 = vmatprep.subr.mxu0 %v5170
    %5250 = vmatpush1.msra.mxu0 %v5169
    %5251 = vmatprep.subr.mxu0 %v5174
    %5252 = vmatpush1.msra.mxu0 %v5173
    %5253 = vmatprep.subr.mxu0 0.0
    %5254 = vmatpush1.msra.mxu0 0.0
    %5255 = vmatprep.subr.mxu0 0.0
    %5256 = vmatpush1.msra.mxu0 0.0
    %5257 = vmatprep.subr.mxu0 0.0
    %5258 = vmatpush1.msra.mxu0 0.0
    %5259 = vmatprep.subr.mxu0 0.0
    %5260 = vmatpush1.msra.mxu0 0.0
    %5261 = vmatprep.subr.mxu0 0.0
    %5262 = vmatpush1.msra.mxu0 0.0
    %5263 = vmatprep.subr.mxu0 0.0
    %5264 = vmatpush1.msra.mxu0 0.0
    %5265 = vmatprep.subr.mxu0 0.0
    %5266 = vmatpush1.msra.mxu0 0.0
    %5267 = vmatprep.subr.mxu0 0.0
    %5268 = vmatpush1.msra.mxu0 0.0
    %5269 = vmatprep.subr.mxu0 0.0
    %5270 = vmatpush1.msra.mxu0 0.0
    %5271 = vmatprep.subr.mxu0 0.0
    %5272 = vmatpush1.msra.mxu0 0.0
    %5273 = vmatprep.subr.mxu0 0.0
    %5274 = vmatpush1.msra.mxu0 0.0
    %5275 = vmatprep.subr.mxu0 0.0
    %5276 = vmatpush1.msra.mxu0 0.0
    %5277 = vmatprep.subr.mxu0 0.0
    %5278 = vmatpush1.msra.mxu0 0.0
    %5279 = vmatprep.subr.mxu0 0.0
    %5280 = vmatpush1.msra.mxu0 0.0
    %5281 = vmatprep.subr.mxu0 0.0
    %5282 = vmatpush1.msra.mxu0 0.0
    %5283 = vmatprep.subr.mxu0 0.0
    %5284 = vmatpush1.msra.mxu0 0.0
    %5285 = vmatprep.subr.mxu0 0.0
    %5286 = vmatpush1.msra.mxu0 0.0
    %5287 = vmatprep.subr.mxu0 0.0
    %5288 = vmatpush1.msra.mxu0 0.0
    %5289 = vmatprep.subr.mxu0 0.0
    %5290 = vmatpush1.msra.mxu0 0.0
    %5291 = vmatprep.subr.mxu0 0.0
    %5292 = vmatpush1.msra.mxu0 0.0
    %5293 = vmatprep.subr.mxu0 0.0
    %5294 = vmatpush1.msra.mxu0 0.0
    %5295 = vmatprep.subr.mxu0 0.0
    %5296 = vmatpush1.msra.mxu0 0.0
    %5297 = vmatprep.subr.mxu0 0.0
    %5298 = vmatpush1.msra.mxu0 0.0
    %5299 = vmatprep.subr.mxu0 0.0
    %5300 = vmatpush1.msra.mxu0 0.0
    %5301 = vmatprep.subr.mxu0 0.0
    %5302 = vmatpush1.msra.mxu0 0.0
    %5303 = vmatprep.subr.mxu0 0.0
    %5304 = vmatpush1.msra.mxu0 0.0
    %5305 = vmatprep.subr.mxu0 0.0
    %5306 = vmatpush1.msra.mxu0 0.0
    %5307 = vmatprep.subr.mxu0 0.0
    %5308 = vmatpush1.msra.mxu0 0.0
    %5309 = vmatprep.subr.mxu0 0.0
    %5310 = vmatpush1.msra.mxu0 0.0
    %5311 = vmatprep.subr.mxu0 0.0
    %5312 = vmatpush1.msra.mxu0 0.0
    %5313 = vmatprep.mubr.f32.mxu0 0.0
    %5314 = vmatmul.mubr.f32.gmra.mrb[0].mxu0 %v5176
    %v5315 = vpop.f32.mrb[0].mxu0
    %v5316 = vadd.f32 0.0, %v5315
    %v5317 = vpop.f32.mrb[0].mxu0
    %v5318 = vadd.f32 0.0, %v5317
    %5319 = vdwg.mxu0
    %v5320 = vadd.f32 %v5087, %v5245
    %v5321 = vadd.f32 %v5088, %v5247
    %v5322 = vadd.f32 %v5089, %v5316
    %v5323 = vadd.f32 %v5090, %v5318
    %s5324 = scalar_lea.vmem %s6, 16
    %v5325 = vld [vmem:[%s5324] sm:$0x3]
    %v5327 = vsel %vm3470, %v5325, 0
    %5329 = vmatprep.subr.mxu0 0.0
    %5330 = vmatpush1.msra.mxu0 %v3465
    %5331 = vmatprep.subr.mxu0 0.0
    %5332 = vmatpush1.msra.mxu0 %v3466
    %5333 = vmatprep.subr.mxu0 0.0
    %5334 = vmatpush1.msra.mxu0 %v3467
    %5335 = vmatprep.subr.mxu0 0.0
    %5336 = vmatpush1.msra.mxu0 %v3468
    %5337 = vmatprep.subr.mxu0 0.0
    %5338 = vmatpush1.msra.mxu0 0.0
    %5339 = vmatprep.subr.mxu0 0.0
    %5340 = vmatpush1.msra.mxu0 0.0
    %5341 = vmatprep.subr.mxu0 0.0
    %5342 = vmatpush1.msra.mxu0 0.0
    %5343 = vmatprep.subr.mxu0 0.0
    %5344 = vmatpush1.msra.mxu0 0.0
    %5345 = vmatprep.subr.mxu0 0.0
    %5346 = vmatpush1.msra.mxu0 0.0
    %5347 = vmatprep.subr.mxu0 0.0
    %5348 = vmatpush1.msra.mxu0 0.0
    %5349 = vmatprep.subr.mxu0 0.0
    %5350 = vmatpush1.msra.mxu0 0.0
    %5351 = vmatprep.subr.mxu0 0.0
    %5352 = vmatpush1.msra.mxu0 0.0
    %5353 = vmatprep.subr.mxu0 0.0
    %5354 = vmatpush1.msra.mxu0 0.0
    %5355 = vmatprep.subr.mxu0 0.0
    %5356 = vmatpush1.msra.mxu0 0.0
    %5357 = vmatprep.subr.mxu0 0.0
    %5358 = vmatpush1.msra.mxu0 0.0
    %5359 = vmatprep.subr.mxu0 0.0
    %5360 = vmatpush1.msra.mxu0 0.0
    %5361 = vmatprep.subr.mxu0 0.0
    %5362 = vmatpush1.msra.mxu0 0.0
    %5363 = vmatprep.subr.mxu0 0.0
    %5364 = vmatpush1.msra.mxu0 0.0
    %5365 = vmatprep.subr.mxu0 0.0
    %5366 = vmatpush1.msra.mxu0 0.0
    %5367 = vmatprep.subr.mxu0 0.0
    %5368 = vmatpush1.msra.mxu0 0.0
    %5369 = vmatprep.subr.mxu0 0.0
    %5370 = vmatpush1.msra.mxu0 0.0
    %5371 = vmatprep.subr.mxu0 0.0
    %5372 = vmatpush1.msra.mxu0 0.0
    %5373 = vmatprep.subr.mxu0 0.0
    %5374 = vmatpush1.msra.mxu0 0.0
    %5375 = vmatprep.subr.mxu0 0.0
    %5376 = vmatpush1.msra.mxu0 0.0
    %5377 = vmatprep.subr.mxu0 0.0
    %5378 = vmatpush1.msra.mxu0 0.0
    %5379 = vmatprep.subr.mxu0 0.0
    %5380 = vmatpush1.msra.mxu0 0.0
    %5381 = vmatprep.subr.mxu0 0.0
    %5382 = vmatpush1.msra.mxu0 0.0
    %5383 = vmatprep.subr.mxu0 0.0
    %5384 = vmatpush1.msra.mxu0 0.0
    %5385 = vmatprep.subr.mxu0 0.0
    %5386 = vmatpush1.msra.mxu0 0.0
    %5387 = vmatprep.subr.mxu0 0.0
    %5388 = vmatpush1.msra.mxu0 0.0
    %5389 = vmatprep.subr.mxu0 0.0
    %5390 = vmatpush1.msra.mxu0 0.0
    %5391 = vmatprep.subr.mxu0 0.0
    %5392 = vmatpush1.msra.mxu0 0.0
    %5393 = vmatprep.mubr.f32.mxu0 0.0
    %5394 = vmatmul.mubr.f32.gmra.mrb[0].mxu0 %v5327
    %v5395 = vpop.f32.mrb[0].mxu0
    %v5396 = vadd.f32 0.0, %v5395
    %v5397 = vpop.f32.mrb[0].mxu0
    %5398 = vdwg.mxu0
    %s5399 = scalar_lea.vmem %s7, 512
    %v5400 = vld [vmem:[%s5399] sm:$0xff]
    %v5401 = vld [vmem:[%s5399 + $0x8] sm:$0xff]
    %v5402 = vld [vmem:[%s5399 + $0x10] sm:$0xff]
    %v5403 = vld [vmem:[%s5399 + $0x18] sm:$0xff]
    %v5404 = vld [vmem:[%s5399 + $0x20] sm:$0xff]
    %v5405 = vld [vmem:[%s5399 + $0x28] sm:$0xff]
    %v5406 = vld [vmem:[%s5399 + $0x30] sm:$0xff]
    %v5407 = vld [vmem:[%s5399 + $0x38] sm:$0xff]
    %v5409 = vsel %vm3394, %v5396, 0
    %5411 = vmatprep.subr.mxu0 %v5401
    %5412 = vmatpush1.msra.mxu0 %v5400
    %5413 = vmatprep.subr.mxu0 %v5405
    %5414 = vmatpush1.msra.mxu0 %v5404
    %5415 = vmatprep.subr.mxu0 0.0
    %5416 = vmatpush1.msra.mxu0 0.0
    %5417 = vmatprep.subr.mxu0 0.0
    %5418 = vmatpush1.msra.mxu0 0.0
    %5419 = vmatprep.subr.mxu0 0.0
    %5420 = vmatpush1.msra.mxu0 0.0
    %5421 = vmatprep.subr.mxu0 0.0
    %5422 = vmatpush1.msra.mxu0 0.0
    %5423 = vmatprep.subr.mxu0 0.0
    %5424 = vmatpush1.msra.mxu0 0.0
    %5425 = vmatprep.subr.mxu0 0.0
    %5426 = vmatpush1.msra.mxu0 0.0
    %5427 = vmatprep.subr.mxu0 0.0
    %5428 = vmatpush1.msra.mxu0 0.0
    %5429 = vmatprep.subr.mxu0 0.0
    %5430 = vmatpush1.msra.mxu0 0.0
    %5431 = vmatprep.subr.mxu0 0.0
    %5432 = vmatpush1.msra.mxu0 0.0
    %5433 = vmatprep.subr.mxu0 0.0
    %5434 = vmatpush1.msra.mxu0 0.0
    %5435 = vmatprep.subr.mxu0 0.0
    %5436 = vmatpush1.msra.mxu0 0.0
    %5437 = vmatprep.subr.mxu0 0.0
    %5438 = vmatpush1.msra.mxu0 0.0
    %5439 = vmatprep.subr.mxu0 0.0
    %5440 = vmatpush1.msra.mxu0 0.0
    %5441 = vmatprep.subr.mxu0 0.0
    %5442 = vmatpush1.msra.mxu0 0.0
    %5443 = vmatprep.subr.mxu0 0.0
    %5444 = vmatpush1.msra.mxu0 0.0
    %5445 = vmatprep.subr.mxu0 0.0
    %5446 = vmatpush1.msra.mxu0 0.0
    %5447 = vmatprep.subr.mxu0 0.0
    %5448 = vmatpush1.msra.mxu0 0.0
    %5449 = vmatprep.subr.mxu0 0.0
    %5450 = vmatpush1.msra.mxu0 0.0
    %5451 = vmatprep.subr.mxu0 0.0
    %5452 = vmatpush1.msra.mxu0 0.0
    %5453 = vmatprep.subr.mxu0 0.0
    %5454 = vmatpush1.msra.mxu0 0.0
    %5455 = vmatprep.subr.mxu0 0.0
    %5456 = vmatpush1.msra.mxu0 0.0
    %5457 = vmatprep.subr.mxu0 0.0
    %5458 = vmatpush1.msra.mxu0 0.0
    %5459 = vmatprep.subr.mxu0 0.0
    %5460 = vmatpush1.msra.mxu0 0.0
    %5461 = vmatprep.subr.mxu0 0.0
    %5462 = vmatpush1.msra.mxu0 0.0
    %5463 = vmatprep.subr.mxu0 0.0
    %5464 = vmatpush1.msra.mxu0 0.0
    %5465 = vmatprep.subr.mxu0 0.0
    %5466 = vmatpush1.msra.mxu0 0.0
    %5467 = vmatprep.subr.mxu0 0.0
    %5468 = vmatpush1.msra.mxu0 0.0
    %5469 = vmatprep.subr.mxu0 0.0
    %5470 = vmatpush1.msra.mxu0 0.0
    %5471 = vmatprep.subr.mxu0 0.0
    %5472 = vmatpush1.msra.mxu0 0.0
    %5473 = vmatprep.subr.mxu0 0.0
    %5474 = vmatpush1.msra.mxu0 0.0
    %5475 = vmatprep.mubr.f32.mxu0 0.0
    %5476 = vmatmul.mubr.f32.gmra.mrb[0].mxu0 %v5409
    %v5477 = vpop.f32.mrb[0].mxu0
    %v5478 = vadd.f32 0.0, %v5477
    %v5479 = vpop.f32.mrb[0].mxu0
    %v5480 = vadd.f32 0.0, %v5479
    %5481 = vdwg.mxu0
    %5482 = vmatprep.subr.mxu0 %v5403
    %5483 = vmatpush1.msra.mxu0 %v5402
    %5484 = vmatprep.subr.mxu0 %v5407
    %5485 = vmatpush1.msra.mxu0 %v5406
    %5486 = vmatprep.subr.mxu0 0.0
    %5487 = vmatpush1.msra.mxu0 0.0
    %5488 = vmatprep.subr.mxu0 0.0
    %5489 = vmatpush1.msra.mxu0 0.0
    %5490 = vmatprep.subr.mxu0 0.0
    %5491 = vmatpush1.msra.mxu0 0.0
    %5492 = vmatprep.subr.mxu0 0.0
    %5493 = vmatpush1.msra.mxu0 0.0
    %5494 = vmatprep.subr.mxu0 0.0
    %5495 = vmatpush1.msra.mxu0 0.0
    %5496 = vmatprep.subr.mxu0 0.0
    %5497 = vmatpush1.msra.mxu0 0.0
    %5498 = vmatprep.subr.mxu0 0.0
    %5499 = vmatpush1.msra.mxu0 0.0
    %5500 = vmatprep.subr.mxu0 0.0
    %5501 = vmatpush1.msra.mxu0 0.0
    %5502 = vmatprep.subr.mxu0 0.0
    %5503 = vmatpush1.msra.mxu0 0.0
    %5504 = vmatprep.subr.mxu0 0.0
    %5505 = vmatpush1.msra.mxu0 0.0
    %5506 = vmatprep.subr.mxu0 0.0
    %5507 = vmatpush1.msra.mxu0 0.0
    %5508 = vmatprep.subr.mxu0 0.0
    %5509 = vmatpush1.msra.mxu0 0.0
    %5510 = vmatprep.subr.mxu0 0.0
    %5511 = vmatpush1.msra.mxu0 0.0
    %5512 = vmatprep.subr.mxu0 0.0
    %5513 = vmatpush1.msra.mxu0 0.0
    %5514 = vmatprep.subr.mxu0 0.0
    %5515 = vmatpush1.msra.mxu0 0.0
    %5516 = vmatprep.subr.mxu0 0.0
    %5517 = vmatpush1.msra.mxu0 0.0
    %5518 = vmatprep.subr.mxu0 0.0
    %5519 = vmatpush1.msra.mxu0 0.0
    %5520 = vmatprep.subr.mxu0 0.0
    %5521 = vmatpush1.msra.mxu0 0.0
    %5522 = vmatprep.subr.mxu0 0.0
    %5523 = vmatpush1.msra.mxu0 0.0
    %5524 = vmatprep.subr.mxu0 0.0
    %5525 = vmatpush1.msra.mxu0 0.0
    %5526 = vmatprep.subr.mxu0 0.0
    %5527 = vmatpush1.msra.mxu0 0.0
    %5528 = vmatprep.subr.mxu0 0.0
    %5529 = vmatpush1.msra.mxu0 0.0
    %5530 = vmatprep.subr.mxu0 0.0
    %5531 = vmatpush1.msra.mxu0 0.0
    %5532 = vmatprep.subr.mxu0 0.0
    %5533 = vmatpush1.msra.mxu0 0.0
    %5534 = vmatprep.subr.mxu0 0.0
    %5535 = vmatpush1.msra.mxu0 0.0
    %5536 = vmatprep.subr.mxu0 0.0
    %5537 = vmatpush1.msra.mxu0 0.0
    %5538 = vmatprep.subr.mxu0 0.0
    %5539 = vmatpush1.msra.mxu0 0.0
    %5540 = vmatprep.subr.mxu0 0.0
    %5541 = vmatpush1.msra.mxu0 0.0
    %5542 = vmatprep.subr.mxu0 0.0
    %5543 = vmatpush1.msra.mxu0 0.0
    %5544 = vmatprep.subr.mxu0 0.0
    %5545 = vmatpush1.msra.mxu0 0.0
    %5546 = vmatprep.mubr.f32.mxu0 0.0
    %5547 = vmatmul.mubr.f32.gmra.mrb[0].mxu0 %v5409
    %v5548 = vpop.f32.mrb[0].mxu0
    %v5549 = vadd.f32 0.0, %v5548
    %v5550 = vpop.f32.mrb[0].mxu0
    %v5551 = vadd.f32 0.0, %v5550
    %5552 = vdwg.mxu0
    %v5553 = vadd.f32 %v5320, %v5478
    %v5554 = vadd.f32 %v5321, %v5480
    %v5555 = vadd.f32 %v5322, %v5549
    %v5556 = vadd.f32 %v5323, %v5551
    %s5557 = scalar_lea.vmem %s6, 18
    %v5558 = vld [vmem:[%s5557] sm:$0x3]
    %v5560 = vsel %vm3470, %v5558, 0
    %5562 = vmatprep.subr.mxu0 0.0
    %5563 = vmatpush1.msra.mxu0 %v3465
    %5564 = vmatprep.subr.mxu0 0.0
    %5565 = vmatpush1.msra.mxu0 %v3466
    %5566 = vmatprep.subr.mxu0 0.0
    %5567 = vmatpush1.msra.mxu0 %v3467
    %5568 = vmatprep.subr.mxu0 0.0
    %5569 = vmatpush1.msra.mxu0 %v3468
    %5570 = vmatprep.subr.mxu0 0.0
    %5571 = vmatpush1.msra.mxu0 0.0
    %5572 = vmatprep.subr.mxu0 0.0
    %5573 = vmatpush1.msra.mxu0 0.0
    %5574 = vmatprep.subr.mxu0 0.0
    %5575 = vmatpush1.msra.mxu0 0.0
    %5576 = vmatprep.subr.mxu0 0.0
    %5577 = vmatpush1.msra.mxu0 0.0
    %5578 = vmatprep.subr.mxu0 0.0
    %5579 = vmatpush1.msra.mxu0 0.0
    %5580 = vmatprep.subr.mxu0 0.0
    %5581 = vmatpush1.msra.mxu0 0.0
    %5582 = vmatprep.subr.mxu0 0.0
    %5583 = vmatpush1.msra.mxu0 0.0
    %5584 = vmatprep.subr.mxu0 0.0
    %5585 = vmatpush1.msra.mxu0 0.0
    %5586 = vmatprep.subr.mxu0 0.0
    %5587 = vmatpush1.msra.mxu0 0.0
    %5588 = vmatprep.subr.mxu0 0.0
    %5589 = vmatpush1.msra.mxu0 0.0
    %5590 = vmatprep.subr.mxu0 0.0
    %5591 = vmatpush1.msra.mxu0 0.0
    %5592 = vmatprep.subr.mxu0 0.0
    %5593 = vmatpush1.msra.mxu0 0.0
    %5594 = vmatprep.subr.mxu0 0.0
    %5595 = vmatpush1.msra.mxu0 0.0
    %5596 = vmatprep.subr.mxu0 0.0
    %5597 = vmatpush1.msra.mxu0 0.0
    %5598 = vmatprep.subr.mxu0 0.0
    %5599 = vmatpush1.msra.mxu0 0.0
    %5600 = vmatprep.subr.mxu0 0.0
    %5601 = vmatpush1.msra.mxu0 0.0
    %5602 = vmatprep.subr.mxu0 0.0
    %5603 = vmatpush1.msra.mxu0 0.0
    %5604 = vmatprep.subr.mxu0 0.0
    %5605 = vmatpush1.msra.mxu0 0.0
    %5606 = vmatprep.subr.mxu0 0.0
    %5607 = vmatpush1.msra.mxu0 0.0
    %5608 = vmatprep.subr.mxu0 0.0
    %5609 = vmatpush1.msra.mxu0 0.0
    %5610 = vmatprep.subr.mxu0 0.0
    %5611 = vmatpush1.msra.mxu0 0.0
    %5612 = vmatprep.subr.mxu0 0.0
    %5613 = vmatpush1.msra.mxu0 0.0
    %5614 = vmatprep.subr.mxu0 0.0
    %5615 = vmatpush1.msra.mxu0 0.0
    %5616 = vmatprep.subr.mxu0 0.0
    %5617 = vmatpush1.msra.mxu0 0.0
    %5618 = vmatprep.subr.mxu0 0.0
    %5619 = vmatpush1.msra.mxu0 0.0
    %5620 = vmatprep.subr.mxu0 0.0
    %5621 = vmatpush1.msra.mxu0 0.0
    %5622 = vmatprep.subr.mxu0 0.0
    %5623 = vmatpush1.msra.mxu0 0.0
    %5624 = vmatprep.subr.mxu0 0.0
    %5625 = vmatpush1.msra.mxu0 0.0
    %5626 = vmatprep.mubr.f32.mxu0 0.0
    %5627 = vmatmul.mubr.f32.gmra.mrb[0].mxu0 %v5560
    %v5628 = vpop.f32.mrb[0].mxu0
    %v5629 = vadd.f32 0.0, %v5628
    %v5630 = vpop.f32.mrb[0].mxu0
    %5631 = vdwg.mxu0
    %s5632 = scalar_lea.vmem %s7, 576
    %v5633 = vld [vmem:[%s5632] sm:$0xff]
    %v5634 = vld [vmem:[%s5632 + $0x8] sm:$0xff]
    %v5635 = vld [vmem:[%s5632 + $0x10] sm:$0xff]
    %v5636 = vld [vmem:[%s5632 + $0x18] sm:$0xff]
    %v5637 = vld [vmem:[%s5632 + $0x20] sm:$0xff]
    %v5638 = vld [vmem:[%s5632 + $0x28] sm:$0xff]
    %v5639 = vld [vmem:[%s5632 + $0x30] sm:$0xff]
    %v5640 = vld [vmem:[%s5632 + $0x38] sm:$0xff]
    %v5642 = vsel %vm3394, %v5629, 0
    %5644 = vmatprep.subr.mxu0 %v5634
    %5645 = vmatpush1.msra.mxu0 %v5633
    %5646 = vmatprep.subr.mxu0 %v5638
    %5647 = vmatpush1.msra.mxu0 %v5637
    %5648 = vmatprep.subr.mxu0 0.0
    %5649 = vmatpush1.msra.mxu0 0.0
    %5650 = vmatprep.subr.mxu0 0.0
    %5651 = vmatpush1.msra.mxu0 0.0
    %5652 = vmatprep.subr.mxu0 0.0
    %5653 = vmatpush1.msra.mxu0 0.0
    %5654 = vmatprep.subr.mxu0 0.0
    %5655 = vmatpush1.msra.mxu0 0.0
    %5656 = vmatprep.subr.mxu0 0.0
    %5657 = vmatpush1.msra.mxu0 0.0
    %5658 = vmatprep.subr.mxu0 0.0
    %5659 = vmatpush1.msra.mxu0 0.0
    %5660 = vmatprep.subr.mxu0 0.0
    %5661 = vmatpush1.msra.mxu0 0.0
    %5662 = vmatprep.subr.mxu0 0.0
    %5663 = vmatpush1.msra.mxu0 0.0
    %5664 = vmatprep.subr.mxu0 0.0
    %5665 = vmatpush1.msra.mxu0 0.0
    %5666 = vmatprep.subr.mxu0 0.0
    %5667 = vmatpush1.msra.mxu0 0.0
    %5668 = vmatprep.subr.mxu0 0.0
    %5669 = vmatpush1.msra.mxu0 0.0
    %5670 = vmatprep.subr.mxu0 0.0
    %5671 = vmatpush1.msra.mxu0 0.0
    %5672 = vmatprep.subr.mxu0 0.0
    %5673 = vmatpush1.msra.mxu0 0.0
    %5674 = vmatprep.subr.mxu0 0.0
    %5675 = vmatpush1.msra.mxu0 0.0
    %5676 = vmatprep.subr.mxu0 0.0
    %5677 = vmatpush1.msra.mxu0 0.0
    %5678 = vmatprep.subr.mxu0 0.0
    %5679 = vmatpush1.msra.mxu0 0.0
    %5680 = vmatprep.subr.mxu0 0.0
    %5681 = vmatpush1.msra.mxu0 0.0
    %5682 = vmatprep.subr.mxu0 0.0
    %5683 = vmatpush1.msra.mxu0 0.0
    %5684 = vmatprep.subr.mxu0 0.0
    %5685 = vmatpush1.msra.mxu0 0.0
    %5686 = vmatprep.subr.mxu0 0.0
    %5687 = vmatpush1.msra.mxu0 0.0
    %5688 = vmatprep.subr.mxu0 0.0
    %5689 = vmatpush1.msra.mxu0 0.0
    %5690 = vmatprep.subr.mxu0 0.0
    %5691 = vmatpush1.msra.mxu0 0.0
    %5692 = vmatprep.subr.mxu0 0.0
    %5693 = vmatpush1.msra.mxu0 0.0
    %5694 = vmatprep.subr.mxu0 0.0
    %5695 = vmatpush1.msra.mxu0 0.0
    %5696 = vmatprep.subr.mxu0 0.0
    %5697 = vmatpush1.msra.mxu0 0.0
    %5698 = vmatprep.subr.mxu0 0.0
    %5699 = vmatpush1.msra.mxu0 0.0
    %5700 = vmatprep.subr.mxu0 0.0
    %5701 = vmatpush1.msra.mxu0 0.0
    %5702 = vmatprep.subr.mxu0 0.0
    %5703 = vmatpush1.msra.mxu0 0.0
    %5704 = vmatprep.subr.mxu0 0.0
    %5705 = vmatpush1.msra.mxu0 0.0
    %5706 = vmatprep.subr.mxu0 0.0
    %5707 = vmatpush1.msra.mxu0 0.0
    %5708 = vmatprep.mubr.f32.mxu0 0.0
    %5709 = vmatmul.mubr.f32.gmra.mrb[0].mxu0 %v5642
    %v5710 = vpop.f32.mrb[0].mxu0
    %v5711 = vadd.f32 0.0, %v5710
    %v5712 = vpop.f32.mrb[0].mxu0
    %v5713 = vadd.f32 0.0, %v5712
    %5714 = vdwg.mxu0
    %5715 = vmatprep.subr.mxu0 %v5636
    %5716 = vmatpush1.msra.mxu0 %v5635
    %5717 = vmatprep.subr.mxu0 %v5640
    %5718 = vmatpush1.msra.mxu0 %v5639
    %5719 = vmatprep.subr.mxu0 0.0
    %5720 = vmatpush1.msra.mxu0 0.0
    %5721 = vmatprep.subr.mxu0 0.0
    %5722 = vmatpush1.msra.mxu0 0.0
    %5723 = vmatprep.subr.mxu0 0.0
    %5724 = vmatpush1.msra.mxu0 0.0
    %5725 = vmatprep.subr.mxu0 0.0
    %5726 = vmatpush1.msra.mxu0 0.0
    %5727 = vmatprep.subr.mxu0 0.0
    %5728 = vmatpush1.msra.mxu0 0.0
    %5729 = vmatprep.subr.mxu0 0.0
    %5730 = vmatpush1.msra.mxu0 0.0
    %5731 = vmatprep.subr.mxu0 0.0
    %5732 = vmatpush1.msra.mxu0 0.0
    %5733 = vmatprep.subr.mxu0 0.0
    %5734 = vmatpush1.msra.mxu0 0.0
    %5735 = vmatprep.subr.mxu0 0.0
    %5736 = vmatpush1.msra.mxu0 0.0
    %5737 = vmatprep.subr.mxu0 0.0
    %5738 = vmatpush1.msra.mxu0 0.0
    %5739 = vmatprep.subr.mxu0 0.0
    %5740 = vmatpush1.msra.mxu0 0.0
    %5741 = vmatprep.subr.mxu0 0.0
    %5742 = vmatpush1.msra.mxu0 0.0
    %5743 = vmatprep.subr.mxu0 0.0
    %5744 = vmatpush1.msra.mxu0 0.0
    %5745 = vmatprep.subr.mxu0 0.0
    %5746 = vmatpush1.msra.mxu0 0.0
    %5747 = vmatprep.subr.mxu0 0.0
    %5748 = vmatpush1.msra.mxu0 0.0
    %5749 = vmatprep.subr.mxu0 0.0
    %5750 = vmatpush1.msra.mxu0 0.0
    %5751 = vmatprep.subr.mxu0 0.0
    %5752 = vmatpush1.msra.mxu0 0.0
    %5753 = vmatprep.subr.mxu0 0.0
    %5754 = vmatpush1.msra.mxu0 0.0
    %5755 = vmatprep.subr.mxu0 0.0
    %5756 = vmatpush1.msra.mxu0 0.0
    %5757 = vmatprep.subr.mxu0 0.0
    %5758 = vmatpush1.msra.mxu0 0.0
    %5759 = vmatprep.subr.mxu0 0.0
    %5760 = vmatpush1.msra.mxu0 0.0
    %5761 = vmatprep.subr.mxu0 0.0
    %5762 = vmatpush1.msra.mxu0 0.0
    %5763 = vmatprep.subr.mxu0 0.0
    %5764 = vmatpush1.msra.mxu0 0.0
    %5765 = vmatprep.subr.mxu0 0.0
    %5766 = vmatpush1.msra.mxu0 0.0
    %5767 = vmatprep.subr.mxu0 0.0
    %5768 = vmatpush1.msra.mxu0 0.0
    %5769 = vmatprep.subr.mxu0 0.0
    %5770 = vmatpush1.msra.mxu0 0.0
    %5771 = vmatprep.subr.mxu0 0.0
    %5772 = vmatpush1.msra.mxu0 0.0
    %5773 = vmatprep.subr.mxu0 0.0
    %5774 = vmatpush1.msra.mxu0 0.0
    %5775 = vmatprep.subr.mxu0 0.0
    %5776 = vmatpush1.msra.mxu0 0.0
    %5777 = vmatprep.subr.mxu0 0.0
    %5778 = vmatpush1.msra.mxu0 0.0
    %5779 = vmatprep.mubr.f32.mxu0 0.0
    %5780 = vmatmul.mubr.f32.gmra.mrb[0].mxu0 %v5642
    %v5781 = vpop.f32.mrb[0].mxu0
    %v5782 = vadd.f32 0.0, %v5781
    %v5783 = vpop.f32.mrb[0].mxu0
    %v5784 = vadd.f32 0.0, %v5783
    %5785 = vdwg.mxu0
    %v5786 = vadd.f32 %v5553, %v5711
    %v5787 = vadd.f32 %v5554, %v5713
    %v5788 = vadd.f32 %v5555, %v5782
    %v5789 = vadd.f32 %v5556, %v5784
    %s5790 = scalar_lea.vmem %s6, 20
    %v5791 = vld [vmem:[%s5790] sm:$0x3]
    %v5793 = vsel %vm3470, %v5791, 0
    %5795 = vmatprep.subr.mxu0 0.0
    %5796 = vmatpush1.msra.mxu0 %v3465
    %5797 = vmatprep.subr.mxu0 0.0
    %5798 = vmatpush1.msra.mxu0 %v3466
    %5799 = vmatprep.subr.mxu0 0.0
    %5800 = vmatpush1.msra.mxu0 %v3467
    %5801 = vmatprep.subr.mxu0 0.0
    %5802 = vmatpush1.msra.mxu0 %v3468
    %5803 = vmatprep.subr.mxu0 0.0
    %5804 = vmatpush1.msra.mxu0 0.0
    %5805 = vmatprep.subr.mxu0 0.0
    %5806 = vmatpush1.msra.mxu0 0.0
    %5807 = vmatprep.subr.mxu0 0.0
    %5808 = vmatpush1.msra.mxu0 0.0
    %5809 = vmatprep.subr.mxu0 0.0
    %5810 = vmatpush1.msra.mxu0 0.0
    %5811 = vmatprep.subr.mxu0 0.0
    %5812 = vmatpush1.msra.mxu0 0.0
    %5813 = vmatprep.subr.mxu0 0.0
    %5814 = vmatpush1.msra.mxu0 0.0
    %5815 = vmatprep.subr.mxu0 0.0
    %5816 = vmatpush1.msra.mxu0 0.0
    %5817 = vmatprep.subr.mxu0 0.0
    %5818 = vmatpush1.msra.mxu0 0.0
    %5819 = vmatprep.subr.mxu0 0.0
    %5820 = vmatpush1.msra.mxu0 0.0
    %5821 = vmatprep.subr.mxu0 0.0
    %5822 = vmatpush1.msra.mxu0 0.0
    %5823 = vmatprep.subr.mxu0 0.0
    %5824 = vmatpush1.msra.mxu0 0.0
    %5825 = vmatprep.subr.mxu0 0.0
    %5826 = vmatpush1.msra.mxu0 0.0
    %5827 = vmatprep.subr.mxu0 0.0
    %5828 = vmatpush1.msra.mxu0 0.0
    %5829 = vmatprep.subr.mxu0 0.0
    %5830 = vmatpush1.msra.mxu0 0.0
    %5831 = vmatprep.subr.mxu0 0.0
    %5832 = vmatpush1.msra.mxu0 0.0
    %5833 = vmatprep.subr.mxu0 0.0
    %5834 = vmatpush1.msra.mxu0 0.0
    %5835 = vmatprep.subr.mxu0 0.0
    %5836 = vmatpush1.msra.mxu0 0.0
    %5837 = vmatprep.subr.mxu0 0.0
    %5838 = vmatpush1.msra.mxu0 0.0
    %5839 = vmatprep.subr.mxu0 0.0
    %5840 = vmatpush1.msra.mxu0 0.0
    %5841 = vmatprep.subr.mxu0 0.0
    %5842 = vmatpush1.msra.mxu0 0.0
    %5843 = vmatprep.subr.mxu0 0.0
    %5844 = vmatpush1.msra.mxu0 0.0
    %5845 = vmatprep.subr.mxu0 0.0
    %5846 = vmatpush1.msra.mxu0 0.0
    %5847 = vmatprep.subr.mxu0 0.0
    %5848 = vmatpush1.msra.mxu0 0.0
    %5849 = vmatprep.subr.mxu0 0.0
    %5850 = vmatpush1.msra.mxu0 0.0
    %5851 = vmatprep.subr.mxu0 0.0
    %5852 = vmatpush1.msra.mxu0 0.0
    %5853 = vmatprep.subr.mxu0 0.0
    %5854 = vmatpush1.msra.mxu0 0.0
    %5855 = vmatprep.subr.mxu0 0.0
    %5856 = vmatpush1.msra.mxu0 0.0
    %5857 = vmatprep.subr.mxu0 0.0
    %5858 = vmatpush1.msra.mxu0 0.0
    %5859 = vmatprep.mubr.f32.mxu0 0.0
    %5860 = vmatmul.mubr.f32.gmra.mrb[0].mxu0 %v5793
    %v5861 = vpop.f32.mrb[0].mxu0
    %v5862 = vadd.f32 0.0, %v5861
    %v5863 = vpop.f32.mrb[0].mxu0
    %5864 = vdwg.mxu0
    %s5865 = scalar_lea.vmem %s7, 640
    %v5866 = vld [vmem:[%s5865] sm:$0xff]
    %v5867 = vld [vmem:[%s5865 + $0x8] sm:$0xff]
    %v5868 = vld [vmem:[%s5865 + $0x10] sm:$0xff]
    %v5869 = vld [vmem:[%s5865 + $0x18] sm:$0xff]
    %v5870 = vld [vmem:[%s5865 + $0x20] sm:$0xff]
    %v5871 = vld [vmem:[%s5865 + $0x28] sm:$0xff]
    %v5872 = vld [vmem:[%s5865 + $0x30] sm:$0xff]
    %v5873 = vld [vmem:[%s5865 + $0x38] sm:$0xff]
    %v5875 = vsel %vm3394, %v5862, 0
    %5877 = vmatprep.subr.mxu0 %v5867
    %5878 = vmatpush1.msra.mxu0 %v5866
    %5879 = vmatprep.subr.mxu0 %v5871
    %5880 = vmatpush1.msra.mxu0 %v5870
    %5881 = vmatprep.subr.mxu0 0.0
    %5882 = vmatpush1.msra.mxu0 0.0
    %5883 = vmatprep.subr.mxu0 0.0
    %5884 = vmatpush1.msra.mxu0 0.0
    %5885 = vmatprep.subr.mxu0 0.0
    %5886 = vmatpush1.msra.mxu0 0.0
    %5887 = vmatprep.subr.mxu0 0.0
    %5888 = vmatpush1.msra.mxu0 0.0
    %5889 = vmatprep.subr.mxu0 0.0
    %5890 = vmatpush1.msra.mxu0 0.0
    %5891 = vmatprep.subr.mxu0 0.0
    %5892 = vmatpush1.msra.mxu0 0.0
    %5893 = vmatprep.subr.mxu0 0.0
    %5894 = vmatpush1.msra.mxu0 0.0
    %5895 = vmatprep.subr.mxu0 0.0
    %5896 = vmatpush1.msra.mxu0 0.0
    %5897 = vmatprep.subr.mxu0 0.0
    %5898 = vmatpush1.msra.mxu0 0.0
    %5899 = vmatprep.subr.mxu0 0.0
    %5900 = vmatpush1.msra.mxu0 0.0
    %5901 = vmatprep.subr.mxu0 0.0
    %5902 = vmatpush1.msra.mxu0 0.0
    %5903 = vmatprep.subr.mxu0 0.0
    %5904 = vmatpush1.msra.mxu0 0.0
    %5905 = vmatprep.subr.mxu0 0.0
    %5906 = vmatpush1.msra.mxu0 0.0
    %5907 = vmatprep.subr.mxu0 0.0
    %5908 = vmatpush1.msra.mxu0 0.0
    %5909 = vmatprep.subr.mxu0 0.0
    %5910 = vmatpush1.msra.mxu0 0.0
    %5911 = vmatprep.subr.mxu0 0.0
    %5912 = vmatpush1.msra.mxu0 0.0
    %5913 = vmatprep.subr.mxu0 0.0
    %5914 = vmatpush1.msra.mxu0 0.0
    %5915 = vmatprep.subr.mxu0 0.0
    %5916 = vmatpush1.msra.mxu0 0.0
    %5917 = vmatprep.subr.mxu0 0.0
    %5918 = vmatpush1.msra.mxu0 0.0
    %5919 = vmatprep.subr.mxu0 0.0
    %5920 = vmatpush1.msra.mxu0 0.0
    %5921 = vmatprep.subr.mxu0 0.0
    %5922 = vmatpush1.msra.mxu0 0.0
    %5923 = vmatprep.subr.mxu0 0.0
    %5924 = vmatpush1.msra.mxu0 0.0
    %5925 = vmatprep.subr.mxu0 0.0
    %5926 = vmatpush1.msra.mxu0 0.0
    %5927 = vmatprep.subr.mxu0 0.0
    %5928 = vmatpush1.msra.mxu0 0.0
    %5929 = vmatprep.subr.mxu0 0.0
    %5930 = vmatpush1.msra.mxu0 0.0
    %5931 = vmatprep.subr.mxu0 0.0
    %5932 = vmatpush1.msra.mxu0 0.0
    %5933 = vmatprep.subr.mxu0 0.0
    %5934 = vmatpush1.msra.mxu0 0.0
    %5935 = vmatprep.subr.mxu0 0.0
    %5936 = vmatpush1.msra.mxu0 0.0
    %5937 = vmatprep.subr.mxu0 0.0
    %5938 = vmatpush1.msra.mxu0 0.0
    %5939 = vmatprep.subr.mxu0 0.0
    %5940 = vmatpush1.msra.mxu0 0.0
    %5941 = vmatprep.mubr.f32.mxu0 0.0
    %5942 = vmatmul.mubr.f32.gmra.mrb[0].mxu0 %v5875
    %v5943 = vpop.f32.mrb[0].mxu0
    %v5944 = vadd.f32 0.0, %v5943
    %v5945 = vpop.f32.mrb[0].mxu0
    %v5946 = vadd.f32 0.0, %v5945
    %5947 = vdwg.mxu0
    %5948 = vmatprep.subr.mxu0 %v5869
    %5949 = vmatpush1.msra.mxu0 %v5868
    %5950 = vmatprep.subr.mxu0 %v5873
    %5951 = vmatpush1.msra.mxu0 %v5872
    %5952 = vmatprep.subr.mxu0 0.0
    %5953 = vmatpush1.msra.mxu0 0.0
    %5954 = vmatprep.subr.mxu0 0.0
    %5955 = vmatpush1.msra.mxu0 0.0
    %5956 = vmatprep.subr.mxu0 0.0
    %5957 = vmatpush1.msra.mxu0 0.0
    %5958 = vmatprep.subr.mxu0 0.0
    %5959 = vmatpush1.msra.mxu0 0.0
    %5960 = vmatprep.subr.mxu0 0.0
    %5961 = vmatpush1.msra.mxu0 0.0
    %5962 = vmatprep.subr.mxu0 0.0
    %5963 = vmatpush1.msra.mxu0 0.0
    %5964 = vmatprep.subr.mxu0 0.0
    %5965 = vmatpush1.msra.mxu0 0.0
    %5966 = vmatprep.subr.mxu0 0.0
    %5967 = vmatpush1.msra.mxu0 0.0
    %5968 = vmatprep.subr.mxu0 0.0
    %5969 = vmatpush1.msra.mxu0 0.0
    %5970 = vmatprep.subr.mxu0 0.0
    %5971 = vmatpush1.msra.mxu0 0.0
    %5972 = vmatprep.subr.mxu0 0.0
    %5973 = vmatpush1.msra.mxu0 0.0
    %5974 = vmatprep.subr.mxu0 0.0
    %5975 = vmatpush1.msra.mxu0 0.0
    %5976 = vmatprep.subr.mxu0 0.0
    %5977 = vmatpush1.msra.mxu0 0.0
    %5978 = vmatprep.subr.mxu0 0.0
    %5979 = vmatpush1.msra.mxu0 0.0
    %5980 = vmatprep.subr.mxu0 0.0
    %5981 = vmatpush1.msra.mxu0 0.0
    %5982 = vmatprep.subr.mxu0 0.0
    %5983 = vmatpush1.msra.mxu0 0.0
    %5984 = vmatprep.subr.mxu0 0.0
    %5985 = vmatpush1.msra.mxu0 0.0
    %5986 = vmatprep.subr.mxu0 0.0
    %5987 = vmatpush1.msra.mxu0 0.0
    %5988 = vmatprep.subr.mxu0 0.0
    %5989 = vmatpush1.msra.mxu0 0.0
    %5990 = vmatprep.subr.mxu0 0.0
    %5991 = vmatpush1.msra.mxu0 0.0
    %5992 = vmatprep.subr.mxu0 0.0
    %5993 = vmatpush1.msra.mxu0 0.0
    %5994 = vmatprep.subr.mxu0 0.0
    %5995 = vmatpush1.msra.mxu0 0.0
    %5996 = vmatprep.subr.mxu0 0.0
    %5997 = vmatpush1.msra.mxu0 0.0
    %5998 = vmatprep.subr.mxu0 0.0
    %5999 = vmatpush1.msra.mxu0 0.0
    %6000 = vmatprep.subr.mxu0 0.0
    %6001 = vmatpush1.msra.mxu0 0.0
    %6002 = vmatprep.subr.mxu0 0.0
    %6003 = vmatpush1.msra.mxu0 0.0
    %6004 = vmatprep.subr.mxu0 0.0
    %6005 = vmatpush1.msra.mxu0 0.0
    %6006 = vmatprep.subr.mxu0 0.0
    %6007 = vmatpush1.msra.mxu0 0.0
    %6008 = vmatprep.subr.mxu0 0.0
    %6009 = vmatpush1.msra.mxu0 0.0
    %6010 = vmatprep.subr.mxu0 0.0
    %6011 = vmatpush1.msra.mxu0 0.0
    %6012 = vmatprep.mubr.f32.mxu0 0.0
    %6013 = vmatmul.mubr.f32.gmra.mrb[0].mxu0 %v5875
    %v6014 = vpop.f32.mrb[0].mxu0
    %v6015 = vadd.f32 0.0, %v6014
    %v6016 = vpop.f32.mrb[0].mxu0
    %v6017 = vadd.f32 0.0, %v6016
    %6018 = vdwg.mxu0
    %v6019 = vadd.f32 %v5786, %v5944
    %v6020 = vadd.f32 %v5787, %v5946
    %v6021 = vadd.f32 %v5788, %v6015
    %v6022 = vadd.f32 %v5789, %v6017
    %s6023 = scalar_lea.vmem %s6, 22
    %v6024 = vld [vmem:[%s6023] sm:$0x3]
    %v6026 = vsel %vm3470, %v6024, 0
    %6028 = vmatprep.subr.mxu0 0.0
    %6029 = vmatpush1.msra.mxu0 %v3465
    %6030 = vmatprep.subr.mxu0 0.0
    %6031 = vmatpush1.msra.mxu0 %v3466
    %6032 = vmatprep.subr.mxu0 0.0
    %6033 = vmatpush1.msra.mxu0 %v3467
    %6034 = vmatprep.subr.mxu0 0.0
    %6035 = vmatpush1.msra.mxu0 %v3468
    %6036 = vmatprep.subr.mxu0 0.0
    %6037 = vmatpush1.msra.mxu0 0.0
    %6038 = vmatprep.subr.mxu0 0.0
    %6039 = vmatpush1.msra.mxu0 0.0
    %6040 = vmatprep.subr.mxu0 0.0
    %6041 = vmatpush1.msra.mxu0 0.0
    %6042 = vmatprep.subr.mxu0 0.0
    %6043 = vmatpush1.msra.mxu0 0.0
    %6044 = vmatprep.subr.mxu0 0.0
    %6045 = vmatpush1.msra.mxu0 0.0
    %6046 = vmatprep.subr.mxu0 0.0
    %6047 = vmatpush1.msra.mxu0 0.0
    %6048 = vmatprep.subr.mxu0 0.0
    %6049 = vmatpush1.msra.mxu0 0.0
    %6050 = vmatprep.subr.mxu0 0.0
    %6051 = vmatpush1.msra.mxu0 0.0
    %6052 = vmatprep.subr.mxu0 0.0
    %6053 = vmatpush1.msra.mxu0 0.0
    %6054 = vmatprep.subr.mxu0 0.0
    %6055 = vmatpush1.msra.mxu0 0.0
    %6056 = vmatprep.subr.mxu0 0.0
    %6057 = vmatpush1.msra.mxu0 0.0
    %6058 = vmatprep.subr.mxu0 0.0
    %6059 = vmatpush1.msra.mxu0 0.0
    %6060 = vmatprep.subr.mxu0 0.0
    %6061 = vmatpush1.msra.mxu0 0.0
    %6062 = vmatprep.subr.mxu0 0.0
    %6063 = vmatpush1.msra.mxu0 0.0
    %6064 = vmatprep.subr.mxu0 0.0
    %6065 = vmatpush1.msra.mxu0 0.0
    %6066 = vmatprep.subr.mxu0 0.0
    %6067 = vmatpush1.msra.mxu0 0.0
    %6068 = vmatprep.subr.mxu0 0.0
    %6069 = vmatpush1.msra.mxu0 0.0
    %6070 = vmatprep.subr.mxu0 0.0
    %6071 = vmatpush1.msra.mxu0 0.0
    %6072 = vmatprep.subr.mxu0 0.0
    %6073 = vmatpush1.msra.mxu0 0.0
    %6074 = vmatprep.subr.mxu0 0.0
    %6075 = vmatpush1.msra.mxu0 0.0
    %6076 = vmatprep.subr.mxu0 0.0
    %6077 = vmatpush1.msra.mxu0 0.0
    %6078 = vmatprep.subr.mxu0 0.0
    %6079 = vmatpush1.msra.mxu0 0.0
    %6080 = vmatprep.subr.mxu0 0.0
    %6081 = vmatpush1.msra.mxu0 0.0
    %6082 = vmatprep.subr.mxu0 0.0
    %6083 = vmatpush1.msra.mxu0 0.0
    %6084 = vmatprep.subr.mxu0 0.0
    %6085 = vmatpush1.msra.mxu0 0.0
    %6086 = vmatprep.subr.mxu0 0.0
    %6087 = vmatpush1.msra.mxu0 0.0
    %6088 = vmatprep.subr.mxu0 0.0
    %6089 = vmatpush1.msra.mxu0 0.0
    %6090 = vmatprep.subr.mxu0 0.0
    %6091 = vmatpush1.msra.mxu0 0.0
    %6092 = vmatprep.mubr.f32.mxu0 0.0
    %6093 = vmatmul.mubr.f32.gmra.mrb[0].mxu0 %v6026
    %v6094 = vpop.f32.mrb[0].mxu0
    %v6095 = vadd.f32 0.0, %v6094
    %v6096 = vpop.f32.mrb[0].mxu0
    %6097 = vdwg.mxu0
    %s6098 = scalar_lea.vmem %s7, 704
    %v6099 = vld [vmem:[%s6098] sm:$0xff]
    %v6100 = vld [vmem:[%s6098 + $0x8] sm:$0xff]
    %v6101 = vld [vmem:[%s6098 + $0x10] sm:$0xff]
    %v6102 = vld [vmem:[%s6098 + $0x18] sm:$0xff]
    %v6103 = vld [vmem:[%s6098 + $0x20] sm:$0xff]
    %v6104 = vld [vmem:[%s6098 + $0x28] sm:$0xff]
    %v6105 = vld [vmem:[%s6098 + $0x30] sm:$0xff]
    %v6106 = vld [vmem:[%s6098 + $0x38] sm:$0xff]
    %v6108 = vsel %vm3394, %v6095, 0
    %6110 = vmatprep.subr.mxu0 %v6100
    %6111 = vmatpush1.msra.mxu0 %v6099
    %6112 = vmatprep.subr.mxu0 %v6104
    %6113 = vmatpush1.msra.mxu0 %v6103
    %6114 = vmatprep.subr.mxu0 0.0
    %6115 = vmatpush1.msra.mxu0 0.0
    %6116 = vmatprep.subr.mxu0 0.0
    %6117 = vmatpush1.msra.mxu0 0.0
    %6118 = vmatprep.subr.mxu0 0.0
    %6119 = vmatpush1.msra.mxu0 0.0
    %6120 = vmatprep.subr.mxu0 0.0
    %6121 = vmatpush1.msra.mxu0 0.0
    %6122 = vmatprep.subr.mxu0 0.0
    %6123 = vmatpush1.msra.mxu0 0.0
    %6124 = vmatprep.subr.mxu0 0.0
    %6125 = vmatpush1.msra.mxu0 0.0
    %6126 = vmatprep.subr.mxu0 0.0
    %6127 = vmatpush1.msra.mxu0 0.0
    %6128 = vmatprep.subr.mxu0 0.0
    %6129 = vmatpush1.msra.mxu0 0.0
    %6130 = vmatprep.subr.mxu0 0.0
    %6131 = vmatpush1.msra.mxu0 0.0
    %6132 = vmatprep.subr.mxu0 0.0
    %6133 = vmatpush1.msra.mxu0 0.0
    %6134 = vmatprep.subr.mxu0 0.0
    %6135 = vmatpush1.msra.mxu0 0.0
    %6136 = vmatprep.subr.mxu0 0.0
    %6137 = vmatpush1.msra.mxu0 0.0
    %6138 = vmatprep.subr.mxu0 0.0
    %6139 = vmatpush1.msra.mxu0 0.0
    %6140 = vmatprep.subr.mxu0 0.0
    %6141 = vmatpush1.msra.mxu0 0.0
    %6142 = vmatprep.subr.mxu0 0.0
    %6143 = vmatpush1.msra.mxu0 0.0
    %6144 = vmatprep.subr.mxu0 0.0
    %6145 = vmatpush1.msra.mxu0 0.0
    %6146 = vmatprep.subr.mxu0 0.0
    %6147 = vmatpush1.msra.mxu0 0.0
    %6148 = vmatprep.subr.mxu0 0.0
    %6149 = vmatpush1.msra.mxu0 0.0
    %6150 = vmatprep.subr.mxu0 0.0
    %6151 = vmatpush1.msra.mxu0 0.0
    %6152 = vmatprep.subr.mxu0 0.0
    %6153 = vmatpush1.msra.mxu0 0.0
    %6154 = vmatprep.subr.mxu0 0.0
    %6155 = vmatpush1.msra.mxu0 0.0
    %6156 = vmatprep.subr.mxu0 0.0
    %6157 = vmatpush1.msra.mxu0 0.0
    %6158 = vmatprep.subr.mxu0 0.0
    %6159 = vmatpush1.msra.mxu0 0.0
    %6160 = vmatprep.subr.mxu0 0.0
    %6161 = vmatpush1.msra.mxu0 0.0
    %6162 = vmatprep.subr.mxu0 0.0
    %6163 = vmatpush1.msra.mxu0 0.0
    %6164 = vmatprep.subr.mxu0 0.0
    %6165 = vmatpush1.msra.mxu0 0.0
    %6166 = vmatprep.subr.mxu0 0.0
    %6167 = vmatpush1.msra.mxu0 0.0
    %6168 = vmatprep.subr.mxu0 0.0
    %6169 = vmatpush1.msra.mxu0 0.0
    %6170 = vmatprep.subr.mxu0 0.0
    %6171 = vmatpush1.msra.mxu0 0.0
    %6172 = vmatprep.subr.mxu0 0.0
    %6173 = vmatpush1.msra.mxu0 0.0
    %6174 = vmatprep.mubr.f32.mxu0 0.0
    %6175 = vmatmul.mubr.f32.gmra.mrb[0].mxu0 %v6108
    %v6176 = vpop.f32.mrb[0].mxu0
    %v6177 = vadd.f32 0.0, %v6176
    %v6178 = vpop.f32.mrb[0].mxu0
    %v6179 = vadd.f32 0.0, %v6178
    %6180 = vdwg.mxu0
    %6181 = vmatprep.subr.mxu0 %v6102
    %6182 = vmatpush1.msra.mxu0 %v6101
    %6183 = vmatprep.subr.mxu0 %v6106
    %6184 = vmatpush1.msra.mxu0 %v6105
    %6185 = vmatprep.subr.mxu0 0.0
    %6186 = vmatpush1.msra.mxu0 0.0
    %6187 = vmatprep.subr.mxu0 0.0
    %6188 = vmatpush1.msra.mxu0 0.0
    %6189 = vmatprep.subr.mxu0 0.0
    %6190 = vmatpush1.msra.mxu0 0.0
    %6191 = vmatprep.subr.mxu0 0.0
    %6192 = vmatpush1.msra.mxu0 0.0
    %6193 = vmatprep.subr.mxu0 0.0
    %6194 = vmatpush1.msra.mxu0 0.0
    %6195 = vmatprep.subr.mxu0 0.0
    %6196 = vmatpush1.msra.mxu0 0.0
    %6197 = vmatprep.subr.mxu0 0.0
    %6198 = vmatpush1.msra.mxu0 0.0
    %6199 = vmatprep.subr.mxu0 0.0
    %6200 = vmatpush1.msra.mxu0 0.0
    %6201 = vmatprep.subr.mxu0 0.0
    %6202 = vmatpush1.msra.mxu0 0.0
    %6203 = vmatprep.subr.mxu0 0.0
    %6204 = vmatpush1.msra.mxu0 0.0
    %6205 = vmatprep.subr.mxu0 0.0
    %6206 = vmatpush1.msra.mxu0 0.0
    %6207 = vmatprep.subr.mxu0 0.0
    %6208 = vmatpush1.msra.mxu0 0.0
    %6209 = vmatprep.subr.mxu0 0.0
    %6210 = vmatpush1.msra.mxu0 0.0
    %6211 = vmatprep.subr.mxu0 0.0
    %6212 = vmatpush1.msra.mxu0 0.0
    %6213 = vmatprep.subr.mxu0 0.0
    %6214 = vmatpush1.msra.mxu0 0.0
    %6215 = vmatprep.subr.mxu0 0.0
    %6216 = vmatpush1.msra.mxu0 0.0
    %6217 = vmatprep.subr.mxu0 0.0
    %6218 = vmatpush1.msra.mxu0 0.0
    %6219 = vmatprep.subr.mxu0 0.0
    %6220 = vmatpush1.msra.mxu0 0.0
    %6221 = vmatprep.subr.mxu0 0.0
    %6222 = vmatpush1.msra.mxu0 0.0
    %6223 = vmatprep.subr.mxu0 0.0
    %6224 = vmatpush1.msra.mxu0 0.0
    %6225 = vmatprep.subr.mxu0 0.0
    %6226 = vmatpush1.msra.mxu0 0.0
    %6227 = vmatprep.subr.mxu0 0.0
    %6228 = vmatpush1.msra.mxu0 0.0
    %6229 = vmatprep.subr.mxu0 0.0
    %6230 = vmatpush1.msra.mxu0 0.0
    %6231 = vmatprep.subr.mxu0 0.0
    %6232 = vmatpush1.msra.mxu0 0.0
    %6233 = vmatprep.subr.mxu0 0.0
    %6234 = vmatpush1.msra.mxu0 0.0
    %6235 = vmatprep.subr.mxu0 0.0
    %6236 = vmatpush1.msra.mxu0 0.0
    %6237 = vmatprep.subr.mxu0 0.0
    %6238 = vmatpush1.msra.mxu0 0.0
    %6239 = vmatprep.subr.mxu0 0.0
    %6240 = vmatpush1.msra.mxu0 0.0
    %6241 = vmatprep.subr.mxu0 0.0
    %6242 = vmatpush1.msra.mxu0 0.0
    %6243 = vmatprep.subr.mxu0 0.0
    %6244 = vmatpush1.msra.mxu0 0.0
    %6245 = vmatprep.mubr.f32.mxu0 0.0
    %6246 = vmatmul.mubr.f32.gmra.mrb[0].mxu0 %v6108
    %v6247 = vpop.f32.mrb[0].mxu0
    %v6248 = vadd.f32 0.0, %v6247
    %v6249 = vpop.f32.mrb[0].mxu0
    %v6250 = vadd.f32 0.0, %v6249
    %6251 = vdwg.mxu0
    %v6252 = vadd.f32 %v6019, %v6177
    %v6253 = vadd.f32 %v6020, %v6179
    %v6254 = vadd.f32 %v6021, %v6248
    %v6255 = vadd.f32 %v6022, %v6250
    %s6256 = scalar_lea.vmem %s6, 24
    %v6257 = vld [vmem:[%s6256] sm:$0x3]
    %v6259 = vsel %vm3470, %v6257, 0
    %6261 = vmatprep.subr.mxu0 0.0
    %6262 = vmatpush1.msra.mxu0 %v3465
    %6263 = vmatprep.subr.mxu0 0.0
    %6264 = vmatpush1.msra.mxu0 %v3466
    %6265 = vmatprep.subr.mxu0 0.0
    %6266 = vmatpush1.msra.mxu0 %v3467
    %6267 = vmatprep.subr.mxu0 0.0
    %6268 = vmatpush1.msra.mxu0 %v3468
    %6269 = vmatprep.subr.mxu0 0.0
    %6270 = vmatpush1.msra.mxu0 0.0
    %6271 = vmatprep.subr.mxu0 0.0
    %6272 = vmatpush1.msra.mxu0 0.0
    %6273 = vmatprep.subr.mxu0 0.0
    %6274 = vmatpush1.msra.mxu0 0.0
    %6275 = vmatprep.subr.mxu0 0.0
    %6276 = vmatpush1.msra.mxu0 0.0
    %6277 = vmatprep.subr.mxu0 0.0
    %6278 = vmatpush1.msra.mxu0 0.0
    %6279 = vmatprep.subr.mxu0 0.0
    %6280 = vmatpush1.msra.mxu0 0.0
    %6281 = vmatprep.subr.mxu0 0.0
    %6282 = vmatpush1.msra.mxu0 0.0
    %6283 = vmatprep.subr.mxu0 0.0
    %6284 = vmatpush1.msra.mxu0 0.0
    %6285 = vmatprep.subr.mxu0 0.0
    %6286 = vmatpush1.msra.mxu0 0.0
    %6287 = vmatprep.subr.mxu0 0.0
    %6288 = vmatpush1.msra.mxu0 0.0
    %6289 = vmatprep.subr.mxu0 0.0
    %6290 = vmatpush1.msra.mxu0 0.0
    %6291 = vmatprep.subr.mxu0 0.0
    %6292 = vmatpush1.msra.mxu0 0.0
    %6293 = vmatprep.subr.mxu0 0.0
    %6294 = vmatpush1.msra.mxu0 0.0
    %6295 = vmatprep.subr.mxu0 0.0
    %6296 = vmatpush1.msra.mxu0 0.0
    %6297 = vmatprep.subr.mxu0 0.0
    %6298 = vmatpush1.msra.mxu0 0.0
    %6299 = vmatprep.subr.mxu0 0.0
    %6300 = vmatpush1.msra.mxu0 0.0
    %6301 = vmatprep.subr.mxu0 0.0
    %6302 = vmatpush1.msra.mxu0 0.0
    %6303 = vmatprep.subr.mxu0 0.0
    %6304 = vmatpush1.msra.mxu0 0.0
    %6305 = vmatprep.subr.mxu0 0.0
    %6306 = vmatpush1.msra.mxu0 0.0
    %6307 = vmatprep.subr.mxu0 0.0
    %6308 = vmatpush1.msra.mxu0 0.0
    %6309 = vmatprep.subr.mxu0 0.0
    %6310 = vmatpush1.msra.mxu0 0.0
    %6311 = vmatprep.subr.mxu0 0.0
    %6312 = vmatpush1.msra.mxu0 0.0
    %6313 = vmatprep.subr.mxu0 0.0
    %6314 = vmatpush1.msra.mxu0 0.0
    %6315 = vmatprep.subr.mxu0 0.0
    %6316 = vmatpush1.msra.mxu0 0.0
    %6317 = vmatprep.subr.mxu0 0.0
    %6318 = vmatpush1.msra.mxu0 0.0
    %6319 = vmatprep.subr.mxu0 0.0
    %6320 = vmatpush1.msra.mxu0 0.0
    %6321 = vmatprep.subr.mxu0 0.0
    %6322 = vmatpush1.msra.mxu0 0.0
    %6323 = vmatprep.subr.mxu0 0.0
    %6324 = vmatpush1.msra.mxu0 0.0
    %6325 = vmatprep.mubr.f32.mxu0 0.0
    %6326 = vmatmul.mubr.f32.gmra.mrb[0].mxu0 %v6259
    %v6327 = vpop.f32.mrb[0].mxu0
    %v6328 = vadd.f32 0.0, %v6327
    %v6329 = vpop.f32.mrb[0].mxu0
    %6330 = vdwg.mxu0
    %s6331 = scalar_lea.vmem %s7, 768
    %v6332 = vld [vmem:[%s6331] sm:$0xff]
    %v6333 = vld [vmem:[%s6331 + $0x8] sm:$0xff]
    %v6334 = vld [vmem:[%s6331 + $0x10] sm:$0xff]
    %v6335 = vld [vmem:[%s6331 + $0x18] sm:$0xff]
    %v6336 = vld [vmem:[%s6331 + $0x20] sm:$0xff]
    %v6337 = vld [vmem:[%s6331 + $0x28] sm:$0xff]
    %v6338 = vld [vmem:[%s6331 + $0x30] sm:$0xff]
    %v6339 = vld [vmem:[%s6331 + $0x38] sm:$0xff]
    %v6341 = vsel %vm3394, %v6328, 0
    %6343 = vmatprep.subr.mxu0 %v6333
    %6344 = vmatpush1.msra.mxu0 %v6332
    %6345 = vmatprep.subr.mxu0 %v6337
    %6346 = vmatpush1.msra.mxu0 %v6336
    %6347 = vmatprep.subr.mxu0 0.0
    %6348 = vmatpush1.msra.mxu0 0.0
    %6349 = vmatprep.subr.mxu0 0.0
    %6350 = vmatpush1.msra.mxu0 0.0
    %6351 = vmatprep.subr.mxu0 0.0
    %6352 = vmatpush1.msra.mxu0 0.0
    %6353 = vmatprep.subr.mxu0 0.0
    %6354 = vmatpush1.msra.mxu0 0.0
    %6355 = vmatprep.subr.mxu0 0.0
    %6356 = vmatpush1.msra.mxu0 0.0
    %6357 = vmatprep.subr.mxu0 0.0
    %6358 = vmatpush1.msra.mxu0 0.0
    %6359 = vmatprep.subr.mxu0 0.0
    %6360 = vmatpush1.msra.mxu0 0.0
    %6361 = vmatprep.subr.mxu0 0.0
    %6362 = vmatpush1.msra.mxu0 0.0
    %6363 = vmatprep.subr.mxu0 0.0
    %6364 = vmatpush1.msra.mxu0 0.0
    %6365 = vmatprep.subr.mxu0 0.0
    %6366 = vmatpush1.msra.mxu0 0.0
    %6367 = vmatprep.subr.mxu0 0.0
    %6368 = vmatpush1.msra.mxu0 0.0
    %6369 = vmatprep.subr.mxu0 0.0
    %6370 = vmatpush1.msra.mxu0 0.0
    %6371 = vmatprep.subr.mxu0 0.0
    %6372 = vmatpush1.msra.mxu0 0.0
    %6373 = vmatprep.subr.mxu0 0.0
    %6374 = vmatpush1.msra.mxu0 0.0
    %6375 = vmatprep.subr.mxu0 0.0
    %6376 = vmatpush1.msra.mxu0 0.0
    %6377 = vmatprep.subr.mxu0 0.0
    %6378 = vmatpush1.msra.mxu0 0.0
    %6379 = vmatprep.subr.mxu0 0.0
    %6380 = vmatpush1.msra.mxu0 0.0
    %6381 = vmatprep.subr.mxu0 0.0
    %6382 = vmatpush1.msra.mxu0 0.0
    %6383 = vmatprep.subr.mxu0 0.0
    %6384 = vmatpush1.msra.mxu0 0.0
    %6385 = vmatprep.subr.mxu0 0.0
    %6386 = vmatpush1.msra.mxu0 0.0
    %6387 = vmatprep.subr.mxu0 0.0
    %6388 = vmatpush1.msra.mxu0 0.0
    %6389 = vmatprep.subr.mxu0 0.0
    %6390 = vmatpush1.msra.mxu0 0.0
    %6391 = vmatprep.subr.mxu0 0.0
    %6392 = vmatpush1.msra.mxu0 0.0
    %6393 = vmatprep.subr.mxu0 0.0
    %6394 = vmatpush1.msra.mxu0 0.0
    %6395 = vmatprep.subr.mxu0 0.0
    %6396 = vmatpush1.msra.mxu0 0.0
    %6397 = vmatprep.subr.mxu0 0.0
    %6398 = vmatpush1.msra.mxu0 0.0
    %6399 = vmatprep.subr.mxu0 0.0
    %6400 = vmatpush1.msra.mxu0 0.0
    %6401 = vmatprep.subr.mxu0 0.0
    %6402 = vmatpush1.msra.mxu0 0.0
    %6403 = vmatprep.subr.mxu0 0.0
    %6404 = vmatpush1.msra.mxu0 0.0
    %6405 = vmatprep.subr.mxu0 0.0
    %6406 = vmatpush1.msra.mxu0 0.0
    %6407 = vmatprep.mubr.f32.mxu0 0.0
    %6408 = vmatmul.mubr.f32.gmra.mrb[0].mxu0 %v6341
    %v6409 = vpop.f32.mrb[0].mxu0
    %v6410 = vadd.f32 0.0, %v6409
    %v6411 = vpop.f32.mrb[0].mxu0
    %v6412 = vadd.f32 0.0, %v6411
    %6413 = vdwg.mxu0
    %6414 = vmatprep.subr.mxu0 %v6335
    %6415 = vmatpush1.msra.mxu0 %v6334
    %6416 = vmatprep.subr.mxu0 %v6339
    %6417 = vmatpush1.msra.mxu0 %v6338
    %6418 = vmatprep.subr.mxu0 0.0
    %6419 = vmatpush1.msra.mxu0 0.0
    %6420 = vmatprep.subr.mxu0 0.0
    %6421 = vmatpush1.msra.mxu0 0.0
    %6422 = vmatprep.subr.mxu0 0.0
    %6423 = vmatpush1.msra.mxu0 0.0
    %6424 = vmatprep.subr.mxu0 0.0
    %6425 = vmatpush1.msra.mxu0 0.0
    %6426 = vmatprep.subr.mxu0 0.0
    %6427 = vmatpush1.msra.mxu0 0.0
    %6428 = vmatprep.subr.mxu0 0.0
    %6429 = vmatpush1.msra.mxu0 0.0
    %6430 = vmatprep.subr.mxu0 0.0
    %6431 = vmatpush1.msra.mxu0 0.0
    %6432 = vmatprep.subr.mxu0 0.0
    %6433 = vmatpush1.msra.mxu0 0.0
    %6434 = vmatprep.subr.mxu0 0.0
    %6435 = vmatpush1.msra.mxu0 0.0
    %6436 = vmatprep.subr.mxu0 0.0
    %6437 = vmatpush1.msra.mxu0 0.0
    %6438 = vmatprep.subr.mxu0 0.0
    %6439 = vmatpush1.msra.mxu0 0.0
    %6440 = vmatprep.subr.mxu0 0.0
    %6441 = vmatpush1.msra.mxu0 0.0
    %6442 = vmatprep.subr.mxu0 0.0
    %6443 = vmatpush1.msra.mxu0 0.0
    %6444 = vmatprep.subr.mxu0 0.0
    %6445 = vmatpush1.msra.mxu0 0.0
    %6446 = vmatprep.subr.mxu0 0.0
    %6447 = vmatpush1.msra.mxu0 0.0
    %6448 = vmatprep.subr.mxu0 0.0
    %6449 = vmatpush1.msra.mxu0 0.0
    %6450 = vmatprep.subr.mxu0 0.0
    %6451 = vmatpush1.msra.mxu0 0.0
    %6452 = vmatprep.subr.mxu0 0.0
    %6453 = vmatpush1.msra.mxu0 0.0
    %6454 = vmatprep.subr.mxu0 0.0
    %6455 = vmatpush1.msra.mxu0 0.0
    %6456 = vmatprep.subr.mxu0 0.0
    %6457 = vmatpush1.msra.mxu0 0.0
    %6458 = vmatprep.subr.mxu0 0.0
    %6459 = vmatpush1.msra.mxu0 0.0
    %6460 = vmatprep.subr.mxu0 0.0
    %6461 = vmatpush1.msra.mxu0 0.0
    %6462 = vmatprep.subr.mxu0 0.0
    %6463 = vmatpush1.msra.mxu0 0.0
    %6464 = vmatprep.subr.mxu0 0.0
    %6465 = vmatpush1.msra.mxu0 0.0
    %6466 = vmatprep.subr.mxu0 0.0
    %6467 = vmatpush1.msra.mxu0 0.0
    %6468 = vmatprep.subr.mxu0 0.0
    %6469 = vmatpush1.msra.mxu0 0.0
    %6470 = vmatprep.subr.mxu0 0.0
    %6471 = vmatpush1.msra.mxu0 0.0
    %6472 = vmatprep.subr.mxu0 0.0
    %6473 = vmatpush1.msra.mxu0 0.0
    %6474 = vmatprep.subr.mxu0 0.0
    %6475 = vmatpush1.msra.mxu0 0.0
    %6476 = vmatprep.subr.mxu0 0.0
    %6477 = vmatpush1.msra.mxu0 0.0
    %6478 = vmatprep.mubr.f32.mxu0 0.0
    %6479 = vmatmul.mubr.f32.gmra.mrb[0].mxu0 %v6341
    %v6480 = vpop.f32.mrb[0].mxu0
    %v6481 = vadd.f32 0.0, %v6480
    %v6482 = vpop.f32.mrb[0].mxu0
    %v6483 = vadd.f32 0.0, %v6482
    %6484 = vdwg.mxu0
    %v6485 = vadd.f32 %v6252, %v6410
    %v6486 = vadd.f32 %v6253, %v6412
    %v6487 = vadd.f32 %v6254, %v6481
    %v6488 = vadd.f32 %v6255, %v6483
    %s6489 = scalar_lea.vmem %s6, 26
    %v6490 = vld [vmem:[%s6489] sm:$0x3]
    %v6492 = vsel %vm3470, %v6490, 0
    %6494 = vmatprep.subr.mxu0 0.0
    %6495 = vmatpush1.msra.mxu0 %v3465
    %6496 = vmatprep.subr.mxu0 0.0
    %6497 = vmatpush1.msra.mxu0 %v3466
    %6498 = vmatprep.subr.mxu0 0.0
    %6499 = vmatpush1.msra.mxu0 %v3467
    %6500 = vmatprep.subr.mxu0 0.0
    %6501 = vmatpush1.msra.mxu0 %v3468
    %6502 = vmatprep.subr.mxu0 0.0
    %6503 = vmatpush1.msra.mxu0 0.0
    %6504 = vmatprep.subr.mxu0 0.0
    %6505 = vmatpush1.msra.mxu0 0.0
    %6506 = vmatprep.subr.mxu0 0.0
    %6507 = vmatpush1.msra.mxu0 0.0
    %6508 = vmatprep.subr.mxu0 0.0
    %6509 = vmatpush1.msra.mxu0 0.0
    %6510 = vmatprep.subr.mxu0 0.0
    %6511 = vmatpush1.msra.mxu0 0.0
    %6512 = vmatprep.subr.mxu0 0.0
    %6513 = vmatpush1.msra.mxu0 0.0
    %6514 = vmatprep.subr.mxu0 0.0
    %6515 = vmatpush1.msra.mxu0 0.0
    %6516 = vmatprep.subr.mxu0 0.0
    %6517 = vmatpush1.msra.mxu0 0.0
    %6518 = vmatprep.subr.mxu0 0.0
    %6519 = vmatpush1.msra.mxu0 0.0
    %6520 = vmatprep.subr.mxu0 0.0
    %6521 = vmatpush1.msra.mxu0 0.0
    %6522 = vmatprep.subr.mxu0 0.0
    %6523 = vmatpush1.msra.mxu0 0.0
    %6524 = vmatprep.subr.mxu0 0.0
    %6525 = vmatpush1.msra.mxu0 0.0
    %6526 = vmatprep.subr.mxu0 0.0
    %6527 = vmatpush1.msra.mxu0 0.0
    %6528 = vmatprep.subr.mxu0 0.0
    %6529 = vmatpush1.msra.mxu0 0.0
    %6530 = vmatprep.subr.mxu0 0.0
    %6531 = vmatpush1.msra.mxu0 0.0
    %6532 = vmatprep.subr.mxu0 0.0
    %6533 = vmatpush1.msra.mxu0 0.0
    %6534 = vmatprep.subr.mxu0 0.0
    %6535 = vmatpush1.msra.mxu0 0.0
    %6536 = vmatprep.subr.mxu0 0.0
    %6537 = vmatpush1.msra.mxu0 0.0
    %6538 = vmatprep.subr.mxu0 0.0
    %6539 = vmatpush1.msra.mxu0 0.0
    %6540 = vmatprep.subr.mxu0 0.0
    %6541 = vmatpush1.msra.mxu0 0.0
    %6542 = vmatprep.subr.mxu0 0.0
    %6543 = vmatpush1.msra.mxu0 0.0
    %6544 = vmatprep.subr.mxu0 0.0
    %6545 = vmatpush1.msra.mxu0 0.0
    %6546 = vmatprep.subr.mxu0 0.0
    %6547 = vmatpush1.msra.mxu0 0.0
    %6548 = vmatprep.subr.mxu0 0.0
    %6549 = vmatpush1.msra.mxu0 0.0
    %6550 = vmatprep.subr.mxu0 0.0
    %6551 = vmatpush1.msra.mxu0 0.0
    %6552 = vmatprep.subr.mxu0 0.0
    %6553 = vmatpush1.msra.mxu0 0.0
    %6554 = vmatprep.subr.mxu0 0.0
    %6555 = vmatpush1.msra.mxu0 0.0
    %6556 = vmatprep.subr.mxu0 0.0
    %6557 = vmatpush1.msra.mxu0 0.0
    %6558 = vmatprep.mubr.f32.mxu0 0.0
    %6559 = vmatmul.mubr.f32.gmra.mrb[0].mxu0 %v6492
    %v6560 = vpop.f32.mrb[0].mxu0
    %v6561 = vadd.f32 0.0, %v6560
    %v6562 = vpop.f32.mrb[0].mxu0
    %6563 = vdwg.mxu0
    %s6564 = scalar_lea.vmem %s7, 832
    %v6565 = vld [vmem:[%s6564] sm:$0xff]
    %v6566 = vld [vmem:[%s6564 + $0x8] sm:$0xff]
    %v6567 = vld [vmem:[%s6564 + $0x10] sm:$0xff]
    %v6568 = vld [vmem:[%s6564 + $0x18] sm:$0xff]
    %v6569 = vld [vmem:[%s6564 + $0x20] sm:$0xff]
    %v6570 = vld [vmem:[%s6564 + $0x28] sm:$0xff]
    %v6571 = vld [vmem:[%s6564 + $0x30] sm:$0xff]
    %v6572 = vld [vmem:[%s6564 + $0x38] sm:$0xff]
    %v6574 = vsel %vm3394, %v6561, 0
    %6576 = vmatprep.subr.mxu0 %v6566
    %6577 = vmatpush1.msra.mxu0 %v6565
    %6578 = vmatprep.subr.mxu0 %v6570
    %6579 = vmatpush1.msra.mxu0 %v6569
    %6580 = vmatprep.subr.mxu0 0.0
    %6581 = vmatpush1.msra.mxu0 0.0
    %6582 = vmatprep.subr.mxu0 0.0
    %6583 = vmatpush1.msra.mxu0 0.0
    %6584 = vmatprep.subr.mxu0 0.0
    %6585 = vmatpush1.msra.mxu0 0.0
    %6586 = vmatprep.subr.mxu0 0.0
    %6587 = vmatpush1.msra.mxu0 0.0
    %6588 = vmatprep.subr.mxu0 0.0
    %6589 = vmatpush1.msra.mxu0 0.0
    %6590 = vmatprep.subr.mxu0 0.0
    %6591 = vmatpush1.msra.mxu0 0.0
    %6592 = vmatprep.subr.mxu0 0.0
    %6593 = vmatpush1.msra.mxu0 0.0
    %6594 = vmatprep.subr.mxu0 0.0
    %6595 = vmatpush1.msra.mxu0 0.0
    %6596 = vmatprep.subr.mxu0 0.0
    %6597 = vmatpush1.msra.mxu0 0.0
    %6598 = vmatprep.subr.mxu0 0.0
    %6599 = vmatpush1.msra.mxu0 0.0
    %6600 = vmatprep.subr.mxu0 0.0
    %6601 = vmatpush1.msra.mxu0 0.0
    %6602 = vmatprep.subr.mxu0 0.0
    %6603 = vmatpush1.msra.mxu0 0.0
    %6604 = vmatprep.subr.mxu0 0.0
    %6605 = vmatpush1.msra.mxu0 0.0
    %6606 = vmatprep.subr.mxu0 0.0
    %6607 = vmatpush1.msra.mxu0 0.0
    %6608 = vmatprep.subr.mxu0 0.0
    %6609 = vmatpush1.msra.mxu0 0.0
    %6610 = vmatprep.subr.mxu0 0.0
    %6611 = vmatpush1.msra.mxu0 0.0
    %6612 = vmatprep.subr.mxu0 0.0
    %6613 = vmatpush1.msra.mxu0 0.0
    %6614 = vmatprep.subr.mxu0 0.0
    %6615 = vmatpush1.msra.mxu0 0.0
    %6616 = vmatprep.subr.mxu0 0.0
    %6617 = vmatpush1.msra.mxu0 0.0
    %6618 = vmatprep.subr.mxu0 0.0
    %6619 = vmatpush1.msra.mxu0 0.0
    %6620 = vmatprep.subr.mxu0 0.0
    %6621 = vmatpush1.msra.mxu0 0.0
    %6622 = vmatprep.subr.mxu0 0.0
    %6623 = vmatpush1.msra.mxu0 0.0
    %6624 = vmatprep.subr.mxu0 0.0
    %6625 = vmatpush1.msra.mxu0 0.0
    %6626 = vmatprep.subr.mxu0 0.0
    %6627 = vmatpush1.msra.mxu0 0.0
    %6628 = vmatprep.subr.mxu0 0.0
    %6629 = vmatpush1.msra.mxu0 0.0
    %6630 = vmatprep.subr.mxu0 0.0
    %6631 = vmatpush1.msra.mxu0 0.0
    %6632 = vmatprep.subr.mxu0 0.0
    %6633 = vmatpush1.msra.mxu0 0.0
    %6634 = vmatprep.subr.mxu0 0.0
    %6635 = vmatpush1.msra.mxu0 0.0
    %6636 = vmatprep.subr.mxu0 0.0
    %6637 = vmatpush1.msra.mxu0 0.0
    %6638 = vmatprep.subr.mxu0 0.0
    %6639 = vmatpush1.msra.mxu0 0.0
    %6640 = vmatprep.mubr.f32.mxu0 0.0
    %6641 = vmatmul.mubr.f32.gmra.mrb[0].mxu0 %v6574
    %v6642 = vpop.f32.mrb[0].mxu0
    %v6643 = vadd.f32 0.0, %v6642
    %v6644 = vpop.f32.mrb[0].mxu0
    %v6645 = vadd.f32 0.0, %v6644
    %6646 = vdwg.mxu0
    %6647 = vmatprep.subr.mxu0 %v6568
    %6648 = vmatpush1.msra.mxu0 %v6567
    %6649 = vmatprep.subr.mxu0 %v6572
    %6650 = vmatpush1.msra.mxu0 %v6571
    %6651 = vmatprep.subr.mxu0 0.0
    %6652 = vmatpush1.msra.mxu0 0.0
    %6653 = vmatprep.subr.mxu0 0.0
    %6654 = vmatpush1.msra.mxu0 0.0
    %6655 = vmatprep.subr.mxu0 0.0
    %6656 = vmatpush1.msra.mxu0 0.0
    %6657 = vmatprep.subr.mxu0 0.0
    %6658 = vmatpush1.msra.mxu0 0.0
    %6659 = vmatprep.subr.mxu0 0.0
    %6660 = vmatpush1.msra.mxu0 0.0
    %6661 = vmatprep.subr.mxu0 0.0
    %6662 = vmatpush1.msra.mxu0 0.0
    %6663 = vmatprep.subr.mxu0 0.0
    %6664 = vmatpush1.msra.mxu0 0.0
    %6665 = vmatprep.subr.mxu0 0.0
    %6666 = vmatpush1.msra.mxu0 0.0
    %6667 = vmatprep.subr.mxu0 0.0
    %6668 = vmatpush1.msra.mxu0 0.0
    %6669 = vmatprep.subr.mxu0 0.0
    %6670 = vmatpush1.msra.mxu0 0.0
    %6671 = vmatprep.subr.mxu0 0.0
    %6672 = vmatpush1.msra.mxu0 0.0
    %6673 = vmatprep.subr.mxu0 0.0
    %6674 = vmatpush1.msra.mxu0 0.0
    %6675 = vmatprep.subr.mxu0 0.0
    %6676 = vmatpush1.msra.mxu0 0.0
    %6677 = vmatprep.subr.mxu0 0.0
    %6678 = vmatpush1.msra.mxu0 0.0
    %6679 = vmatprep.subr.mxu0 0.0
    %6680 = vmatpush1.msra.mxu0 0.0
    %6681 = vmatprep.subr.mxu0 0.0
    %6682 = vmatpush1.msra.mxu0 0.0
    %6683 = vmatprep.subr.mxu0 0.0
    %6684 = vmatpush1.msra.mxu0 0.0
    %6685 = vmatprep.subr.mxu0 0.0
    %6686 = vmatpush1.msra.mxu0 0.0
    %6687 = vmatprep.subr.mxu0 0.0
    %6688 = vmatpush1.msra.mxu0 0.0
    %6689 = vmatprep.subr.mxu0 0.0
    %6690 = vmatpush1.msra.mxu0 0.0
    %6691 = vmatprep.subr.mxu0 0.0
    %6692 = vmatpush1.msra.mxu0 0.0
    %6693 = vmatprep.subr.mxu0 0.0
    %6694 = vmatpush1.msra.mxu0 0.0
    %6695 = vmatprep.subr.mxu0 0.0
    %6696 = vmatpush1.msra.mxu0 0.0
    %6697 = vmatprep.subr.mxu0 0.0
    %6698 = vmatpush1.msra.mxu0 0.0
    %6699 = vmatprep.subr.mxu0 0.0
    %6700 = vmatpush1.msra.mxu0 0.0
    %6701 = vmatprep.subr.mxu0 0.0
    %6702 = vmatpush1.msra.mxu0 0.0
    %6703 = vmatprep.subr.mxu0 0.0
    %6704 = vmatpush1.msra.mxu0 0.0
    %6705 = vmatprep.subr.mxu0 0.0
    %6706 = vmatpush1.msra.mxu0 0.0
    %6707 = vmatprep.subr.mxu0 0.0
    %6708 = vmatpush1.msra.mxu0 0.0
    %6709 = vmatprep.subr.mxu0 0.0
    %6710 = vmatpush1.msra.mxu0 0.0
    %6711 = vmatprep.mubr.f32.mxu0 0.0
    %6712 = vmatmul.mubr.f32.gmra.mrb[0].mxu0 %v6574
    %v6713 = vpop.f32.mrb[0].mxu0
    %v6714 = vadd.f32 0.0, %v6713
    %v6715 = vpop.f32.mrb[0].mxu0
    %v6716 = vadd.f32 0.0, %v6715
    %6717 = vdwg.mxu0
    %v6718 = vadd.f32 %v6485, %v6643
    %v6719 = vadd.f32 %v6486, %v6645
    %v6720 = vadd.f32 %v6487, %v6714
    %v6721 = vadd.f32 %v6488, %v6716
    %s6722 = scalar_lea.vmem %s6, 28
    %v6723 = vld [vmem:[%s6722] sm:$0x3]
    %v6725 = vsel %vm3470, %v6723, 0
    %6727 = vmatprep.subr.mxu0 0.0
    %6728 = vmatpush1.msra.mxu0 %v3465
    %6729 = vmatprep.subr.mxu0 0.0
    %6730 = vmatpush1.msra.mxu0 %v3466
    %6731 = vmatprep.subr.mxu0 0.0
    %6732 = vmatpush1.msra.mxu0 %v3467
    %6733 = vmatprep.subr.mxu0 0.0
    %6734 = vmatpush1.msra.mxu0 %v3468
    %6735 = vmatprep.subr.mxu0 0.0
    %6736 = vmatpush1.msra.mxu0 0.0
    %6737 = vmatprep.subr.mxu0 0.0
    %6738 = vmatpush1.msra.mxu0 0.0
    %6739 = vmatprep.subr.mxu0 0.0
    %6740 = vmatpush1.msra.mxu0 0.0
    %6741 = vmatprep.subr.mxu0 0.0
    %6742 = vmatpush1.msra.mxu0 0.0
    %6743 = vmatprep.subr.mxu0 0.0
    %6744 = vmatpush1.msra.mxu0 0.0
    %6745 = vmatprep.subr.mxu0 0.0
    %6746 = vmatpush1.msra.mxu0 0.0
    %6747 = vmatprep.subr.mxu0 0.0
    %6748 = vmatpush1.msra.mxu0 0.0
    %6749 = vmatprep.subr.mxu0 0.0
    %6750 = vmatpush1.msra.mxu0 0.0
    %6751 = vmatprep.subr.mxu0 0.0
    %6752 = vmatpush1.msra.mxu0 0.0
    %6753 = vmatprep.subr.mxu0 0.0
    %6754 = vmatpush1.msra.mxu0 0.0
    %6755 = vmatprep.subr.mxu0 0.0
    %6756 = vmatpush1.msra.mxu0 0.0
    %6757 = vmatprep.subr.mxu0 0.0
    %6758 = vmatpush1.msra.mxu0 0.0
    %6759 = vmatprep.subr.mxu0 0.0
    %6760 = vmatpush1.msra.mxu0 0.0
    %6761 = vmatprep.subr.mxu0 0.0
    %6762 = vmatpush1.msra.mxu0 0.0
    %6763 = vmatprep.subr.mxu0 0.0
    %6764 = vmatpush1.msra.mxu0 0.0
    %6765 = vmatprep.subr.mxu0 0.0
    %6766 = vmatpush1.msra.mxu0 0.0
    %6767 = vmatprep.subr.mxu0 0.0
    %6768 = vmatpush1.msra.mxu0 0.0
    %6769 = vmatprep.subr.mxu0 0.0
    %6770 = vmatpush1.msra.mxu0 0.0
    %6771 = vmatprep.subr.mxu0 0.0
    %6772 = vmatpush1.msra.mxu0 0.0
    %6773 = vmatprep.subr.mxu0 0.0
    %6774 = vmatpush1.msra.mxu0 0.0
    %6775 = vmatprep.subr.mxu0 0.0
    %6776 = vmatpush1.msra.mxu0 0.0
    %6777 = vmatprep.subr.mxu0 0.0
    %6778 = vmatpush1.msra.mxu0 0.0
    %6779 = vmatprep.subr.mxu0 0.0
    %6780 = vmatpush1.msra.mxu0 0.0
    %6781 = vmatprep.subr.mxu0 0.0
    %6782 = vmatpush1.msra.mxu0 0.0
    %6783 = vmatprep.subr.mxu0 0.0
    %6784 = vmatpush1.msra.mxu0 0.0
    %6785 = vmatprep.subr.mxu0 0.0
    %6786 = vmatpush1.msra.mxu0 0.0
    %6787 = vmatprep.subr.mxu0 0.0
    %6788 = vmatpush1.msra.mxu0 0.0
    %6789 = vmatprep.subr.mxu0 0.0
    %6790 = vmatpush1.msra.mxu0 0.0
    %6791 = vmatprep.mubr.f32.mxu0 0.0
    %6792 = vmatmul.mubr.f32.gmra.mrb[0].mxu0 %v6725
    %v6793 = vpop.f32.mrb[0].mxu0
    %v6794 = vadd.f32 0.0, %v6793
    %v6795 = vpop.f32.mrb[0].mxu0
    %6796 = vdwg.mxu0
    %s6797 = scalar_lea.vmem %s7, 896
    %v6798 = vld [vmem:[%s6797] sm:$0xff]
    %v6799 = vld [vmem:[%s6797 + $0x8] sm:$0xff]
    %v6800 = vld [vmem:[%s6797 + $0x10] sm:$0xff]
    %v6801 = vld [vmem:[%s6797 + $0x18] sm:$0xff]
    %v6802 = vld [vmem:[%s6797 + $0x20] sm:$0xff]
    %v6803 = vld [vmem:[%s6797 + $0x28] sm:$0xff]
    %v6804 = vld [vmem:[%s6797 + $0x30] sm:$0xff]
    %v6805 = vld [vmem:[%s6797 + $0x38] sm:$0xff]
    %v6807 = vsel %vm3394, %v6794, 0
    %6809 = vmatprep.subr.mxu0 %v6799
    %6810 = vmatpush1.msra.mxu0 %v6798
    %6811 = vmatprep.subr.mxu0 %v6803
    %6812 = vmatpush1.msra.mxu0 %v6802
    %6813 = vmatprep.subr.mxu0 0.0
    %6814 = vmatpush1.msra.mxu0 0.0
    %6815 = vmatprep.subr.mxu0 0.0
    %6816 = vmatpush1.msra.mxu0 0.0
    %6817 = vmatprep.subr.mxu0 0.0
    %6818 = vmatpush1.msra.mxu0 0.0
    %6819 = vmatprep.subr.mxu0 0.0
    %6820 = vmatpush1.msra.mxu0 0.0
    %6821 = vmatprep.subr.mxu0 0.0
    %6822 = vmatpush1.msra.mxu0 0.0
    %6823 = vmatprep.subr.mxu0 0.0
    %6824 = vmatpush1.msra.mxu0 0.0
    %6825 = vmatprep.subr.mxu0 0.0
    %6826 = vmatpush1.msra.mxu0 0.0
    %6827 = vmatprep.subr.mxu0 0.0
    %6828 = vmatpush1.msra.mxu0 0.0
    %6829 = vmatprep.subr.mxu0 0.0
    %6830 = vmatpush1.msra.mxu0 0.0
    %6831 = vmatprep.subr.mxu0 0.0
    %6832 = vmatpush1.msra.mxu0 0.0
    %6833 = vmatprep.subr.mxu0 0.0
    %6834 = vmatpush1.msra.mxu0 0.0
    %6835 = vmatprep.subr.mxu0 0.0
    %6836 = vmatpush1.msra.mxu0 0.0
    %6837 = vmatprep.subr.mxu0 0.0
    %6838 = vmatpush1.msra.mxu0 0.0
    %6839 = vmatprep.subr.mxu0 0.0
    %6840 = vmatpush1.msra.mxu0 0.0
    %6841 = vmatprep.subr.mxu0 0.0
    %6842 = vmatpush1.msra.mxu0 0.0
    %6843 = vmatprep.subr.mxu0 0.0
    %6844 = vmatpush1.msra.mxu0 0.0
    %6845 = vmatprep.subr.mxu0 0.0
    %6846 = vmatpush1.msra.mxu0 0.0
    %6847 = vmatprep.subr.mxu0 0.0
    %6848 = vmatpush1.msra.mxu0 0.0
    %6849 = vmatprep.subr.mxu0 0.0
    %6850 = vmatpush1.msra.mxu0 0.0
    %6851 = vmatprep.subr.mxu0 0.0
    %6852 = vmatpush1.msra.mxu0 0.0
    %6853 = vmatprep.subr.mxu0 0.0
    %6854 = vmatpush1.msra.mxu0 0.0
    %6855 = vmatprep.subr.mxu0 0.0
    %6856 = vmatpush1.msra.mxu0 0.0
    %6857 = vmatprep.subr.mxu0 0.0
    %6858 = vmatpush1.msra.mxu0 0.0
    %6859 = vmatprep.subr.mxu0 0.0
    %6860 = vmatpush1.msra.mxu0 0.0
    %6861 = vmatprep.subr.mxu0 0.0
    %6862 = vmatpush1.msra.mxu0 0.0
    %6863 = vmatprep.subr.mxu0 0.0
    %6864 = vmatpush1.msra.mxu0 0.0
    %6865 = vmatprep.subr.mxu0 0.0
    %6866 = vmatpush1.msra.mxu0 0.0
    %6867 = vmatprep.subr.mxu0 0.0
    %6868 = vmatpush1.msra.mxu0 0.0
    %6869 = vmatprep.subr.mxu0 0.0
    %6870 = vmatpush1.msra.mxu0 0.0
    %6871 = vmatprep.subr.mxu0 0.0
    %6872 = vmatpush1.msra.mxu0 0.0
    %6873 = vmatprep.mubr.f32.mxu0 0.0
    %6874 = vmatmul.mubr.f32.gmra.mrb[0].mxu0 %v6807
    %v6875 = vpop.f32.mrb[0].mxu0
    %v6876 = vadd.f32 0.0, %v6875
    %v6877 = vpop.f32.mrb[0].mxu0
    %v6878 = vadd.f32 0.0, %v6877
    %6879 = vdwg.mxu0
    %6880 = vmatprep.subr.mxu0 %v6801
    %6881 = vmatpush1.msra.mxu0 %v6800
    %6882 = vmatprep.subr.mxu0 %v6805
    %6883 = vmatpush1.msra.mxu0 %v6804
    %6884 = vmatprep.subr.mxu0 0.0
    %6885 = vmatpush1.msra.mxu0 0.0
    %6886 = vmatprep.subr.mxu0 0.0
    %6887 = vmatpush1.msra.mxu0 0.0
    %6888 = vmatprep.subr.mxu0 0.0
    %6889 = vmatpush1.msra.mxu0 0.0
    %6890 = vmatprep.subr.mxu0 0.0
    %6891 = vmatpush1.msra.mxu0 0.0
    %6892 = vmatprep.subr.mxu0 0.0
    %6893 = vmatpush1.msra.mxu0 0.0
    %6894 = vmatprep.subr.mxu0 0.0
    %6895 = vmatpush1.msra.mxu0 0.0
    %6896 = vmatprep.subr.mxu0 0.0
    %6897 = vmatpush1.msra.mxu0 0.0
    %6898 = vmatprep.subr.mxu0 0.0
    %6899 = vmatpush1.msra.mxu0 0.0
    %6900 = vmatprep.subr.mxu0 0.0
    %6901 = vmatpush1.msra.mxu0 0.0
    %6902 = vmatprep.subr.mxu0 0.0
    %6903 = vmatpush1.msra.mxu0 0.0
    %6904 = vmatprep.subr.mxu0 0.0
    %6905 = vmatpush1.msra.mxu0 0.0
    %6906 = vmatprep.subr.mxu0 0.0
    %6907 = vmatpush1.msra.mxu0 0.0
    %6908 = vmatprep.subr.mxu0 0.0
    %6909 = vmatpush1.msra.mxu0 0.0
    %6910 = vmatprep.subr.mxu0 0.0
    %6911 = vmatpush1.msra.mxu0 0.0
    %6912 = vmatprep.subr.mxu0 0.0
    %6913 = vmatpush1.msra.mxu0 0.0
    %6914 = vmatprep.subr.mxu0 0.0
    %6915 = vmatpush1.msra.mxu0 0.0
    %6916 = vmatprep.subr.mxu0 0.0
    %6917 = vmatpush1.msra.mxu0 0.0
    %6918 = vmatprep.subr.mxu0 0.0
    %6919 = vmatpush1.msra.mxu0 0.0
    %6920 = vmatprep.subr.mxu0 0.0
    %6921 = vmatpush1.msra.mxu0 0.0
    %6922 = vmatprep.subr.mxu0 0.0
    %6923 = vmatpush1.msra.mxu0 0.0
    %6924 = vmatprep.subr.mxu0 0.0
    %6925 = vmatpush1.msra.mxu0 0.0
    %6926 = vmatprep.subr.mxu0 0.0
    %6927 = vmatpush1.msra.mxu0 0.0
    %6928 = vmatprep.subr.mxu0 0.0
    %6929 = vmatpush1.msra.mxu0 0.0
    %6930 = vmatprep.subr.mxu0 0.0
    %6931 = vmatpush1.msra.mxu0 0.0
    %6932 = vmatprep.subr.mxu0 0.0
    %6933 = vmatpush1.msra.mxu0 0.0
    %6934 = vmatprep.subr.mxu0 0.0
    %6935 = vmatpush1.msra.mxu0 0.0
    %6936 = vmatprep.subr.mxu0 0.0
    %6937 = vmatpush1.msra.mxu0 0.0
    %6938 = vmatprep.subr.mxu0 0.0
    %6939 = vmatpush1.msra.mxu0 0.0
    %6940 = vmatprep.subr.mxu0 0.0
    %6941 = vmatpush1.msra.mxu0 0.0
    %6942 = vmatprep.subr.mxu0 0.0
    %6943 = vmatpush1.msra.mxu0 0.0
    %6944 = vmatprep.mubr.f32.mxu0 0.0
    %6945 = vmatmul.mubr.f32.gmra.mrb[0].mxu0 %v6807
    %v6946 = vpop.f32.mrb[0].mxu0
    %v6947 = vadd.f32 0.0, %v6946
    %v6948 = vpop.f32.mrb[0].mxu0
    %v6949 = vadd.f32 0.0, %v6948
    %6950 = vdwg.mxu0
    %v6951 = vadd.f32 %v6718, %v6876
    %v6952 = vadd.f32 %v6719, %v6878
    %v6953 = vadd.f32 %v6720, %v6947
    %v6954 = vadd.f32 %v6721, %v6949
    %s6955 = scalar_lea.vmem %s6, 30
    %v6956 = vld [vmem:[%s6955] sm:$0x3]
    %v6958 = vsel %vm3470, %v6956, 0
    %6960 = vmatprep.subr.mxu0 0.0
    %6961 = vmatpush1.msra.mxu0 %v3465
    %6962 = vmatprep.subr.mxu0 0.0
    %6963 = vmatpush1.msra.mxu0 %v3466
    %6964 = vmatprep.subr.mxu0 0.0
    %6965 = vmatpush1.msra.mxu0 %v3467
    %6966 = vmatprep.subr.mxu0 0.0
    %6967 = vmatpush1.msra.mxu0 %v3468
    %6968 = vmatprep.subr.mxu0 0.0
    %6969 = vmatpush1.msra.mxu0 0.0
    %6970 = vmatprep.subr.mxu0 0.0
    %6971 = vmatpush1.msra.mxu0 0.0
    %6972 = vmatprep.subr.mxu0 0.0
    %6973 = vmatpush1.msra.mxu0 0.0
    %6974 = vmatprep.subr.mxu0 0.0
    %6975 = vmatpush1.msra.mxu0 0.0
    %6976 = vmatprep.subr.mxu0 0.0
    %6977 = vmatpush1.msra.mxu0 0.0
    %6978 = vmatprep.subr.mxu0 0.0
    %6979 = vmatpush1.msra.mxu0 0.0
    %6980 = vmatprep.subr.mxu0 0.0
    %6981 = vmatpush1.msra.mxu0 0.0
    %6982 = vmatprep.subr.mxu0 0.0
    %6983 = vmatpush1.msra.mxu0 0.0
    %6984 = vmatprep.subr.mxu0 0.0
    %6985 = vmatpush1.msra.mxu0 0.0
    %6986 = vmatprep.subr.mxu0 0.0
    %6987 = vmatpush1.msra.mxu0 0.0
    %6988 = vmatprep.subr.mxu0 0.0
    %6989 = vmatpush1.msra.mxu0 0.0
    %6990 = vmatprep.subr.mxu0 0.0
    %6991 = vmatpush1.msra.mxu0 0.0
    %6992 = vmatprep.subr.mxu0 0.0
    %6993 = vmatpush1.msra.mxu0 0.0
    %6994 = vmatprep.subr.mxu0 0.0
    %6995 = vmatpush1.msra.mxu0 0.0
    %6996 = vmatprep.subr.mxu0 0.0
    %6997 = vmatpush1.msra.mxu0 0.0
    %6998 = vmatprep.subr.mxu0 0.0
    %6999 = vmatpush1.msra.mxu0 0.0
    %7000 = vmatprep.subr.mxu0 0.0
    %7001 = vmatpush1.msra.mxu0 0.0
    %7002 = vmatprep.subr.mxu0 0.0
    %7003 = vmatpush1.msra.mxu0 0.0
    %7004 = vmatprep.subr.mxu0 0.0
    %7005 = vmatpush1.msra.mxu0 0.0
    %7006 = vmatprep.subr.mxu0 0.0
    %7007 = vmatpush1.msra.mxu0 0.0
    %7008 = vmatprep.subr.mxu0 0.0
    %7009 = vmatpush1.msra.mxu0 0.0
    %7010 = vmatprep.subr.mxu0 0.0
    %7011 = vmatpush1.msra.mxu0 0.0
    %7012 = vmatprep.subr.mxu0 0.0
    %7013 = vmatpush1.msra.mxu0 0.0
    %7014 = vmatprep.subr.mxu0 0.0
    %7015 = vmatpush1.msra.mxu0 0.0
    %7016 = vmatprep.subr.mxu0 0.0
    %7017 = vmatpush1.msra.mxu0 0.0
    %7018 = vmatprep.subr.mxu0 0.0
    %7019 = vmatpush1.msra.mxu0 0.0
    %7020 = vmatprep.subr.mxu0 0.0
    %7021 = vmatpush1.msra.mxu0 0.0
    %7022 = vmatprep.subr.mxu0 0.0
    %7023 = vmatpush1.msra.mxu0 0.0
    %7024 = vmatprep.mubr.f32.mxu0 0.0
    %7025 = vmatmul.mubr.f32.gmra.mrb[0].mxu0 %v6958
    %v7026 = vpop.f32.mrb[0].mxu0
    %v7027 = vadd.f32 0.0, %v7026
    %v7028 = vpop.f32.mrb[0].mxu0
    %7029 = vdwg.mxu0
    %s7030 = scalar_lea.vmem %s7, 960
    %v7031 = vld [vmem:[%s7030] sm:$0xff]
    %v7032 = vld [vmem:[%s7030 + $0x8] sm:$0xff]
    %v7033 = vld [vmem:[%s7030 + $0x10] sm:$0xff]
    %v7034 = vld [vmem:[%s7030 + $0x18] sm:$0xff]
    %v7035 = vld [vmem:[%s7030 + $0x20] sm:$0xff]
    %v7036 = vld [vmem:[%s7030 + $0x28] sm:$0xff]
    %v7037 = vld [vmem:[%s7030 + $0x30] sm:$0xff]
    %v7038 = vld [vmem:[%s7030 + $0x38] sm:$0xff]
    %v7040 = vsel %vm3394, %v7027, 0
    %7042 = vmatprep.subr.mxu0 %v7032
    %7043 = vmatpush1.msra.mxu0 %v7031
    %7044 = vmatprep.subr.mxu0 %v7036
    %7045 = vmatpush1.msra.mxu0 %v7035
    %7046 = vmatprep.subr.mxu0 0.0
    %7047 = vmatpush1.msra.mxu0 0.0
    %7048 = vmatprep.subr.mxu0 0.0
    %7049 = vmatpush1.msra.mxu0 0.0
    %7050 = vmatprep.subr.mxu0 0.0
    %7051 = vmatpush1.msra.mxu0 0.0
    %7052 = vmatprep.subr.mxu0 0.0
    %7053 = vmatpush1.msra.mxu0 0.0
    %7054 = vmatprep.subr.mxu0 0.0
    %7055 = vmatpush1.msra.mxu0 0.0
    %7056 = vmatprep.subr.mxu0 0.0
    %7057 = vmatpush1.msra.mxu0 0.0
    %7058 = vmatprep.subr.mxu0 0.0
    %7059 = vmatpush1.msra.mxu0 0.0
    %7060 = vmatprep.subr.mxu0 0.0
    %7061 = vmatpush1.msra.mxu0 0.0
    %7062 = vmatprep.subr.mxu0 0.0
    %7063 = vmatpush1.msra.mxu0 0.0
    %7064 = vmatprep.subr.mxu0 0.0
    %7065 = vmatpush1.msra.mxu0 0.0
    %7066 = vmatprep.subr.mxu0 0.0
    %7067 = vmatpush1.msra.mxu0 0.0
    %7068 = vmatprep.subr.mxu0 0.0
    %7069 = vmatpush1.msra.mxu0 0.0
    %7070 = vmatprep.subr.mxu0 0.0
    %7071 = vmatpush1.msra.mxu0 0.0
    %7072 = vmatprep.subr.mxu0 0.0
    %7073 = vmatpush1.msra.mxu0 0.0
    %7074 = vmatprep.subr.mxu0 0.0
    %7075 = vmatpush1.msra.mxu0 0.0
    %7076 = vmatprep.subr.mxu0 0.0
    %7077 = vmatpush1.msra.mxu0 0.0
    %7078 = vmatprep.subr.mxu0 0.0
    %7079 = vmatpush1.msra.mxu0 0.0
    %7080 = vmatprep.subr.mxu0 0.0
    %7081 = vmatpush1.msra.mxu0 0.0
    %7082 = vmatprep.subr.mxu0 0.0
    %7083 = vmatpush1.msra.mxu0 0.0
    %7084 = vmatprep.subr.mxu0 0.0
    %7085 = vmatpush1.msra.mxu0 0.0
    %7086 = vmatprep.subr.mxu0 0.0
    %7087 = vmatpush1.msra.mxu0 0.0
    %7088 = vmatprep.subr.mxu0 0.0
    %7089 = vmatpush1.msra.mxu0 0.0
    %7090 = vmatprep.subr.mxu0 0.0
    %7091 = vmatpush1.msra.mxu0 0.0
    %7092 = vmatprep.subr.mxu0 0.0
    %7093 = vmatpush1.msra.mxu0 0.0
    %7094 = vmatprep.subr.mxu0 0.0
    %7095 = vmatpush1.msra.mxu0 0.0
    %7096 = vmatprep.subr.mxu0 0.0
    %7097 = vmatpush1.msra.mxu0 0.0
    %7098 = vmatprep.subr.mxu0 0.0
    %7099 = vmatpush1.msra.mxu0 0.0
    %7100 = vmatprep.subr.mxu0 0.0
    %7101 = vmatpush1.msra.mxu0 0.0
    %7102 = vmatprep.subr.mxu0 0.0
    %7103 = vmatpush1.msra.mxu0 0.0
    %7104 = vmatprep.subr.mxu0 0.0
    %7105 = vmatpush1.msra.mxu0 0.0
    %7106 = vmatprep.mubr.f32.mxu0 0.0
    %7107 = vmatmul.mubr.f32.gmra.mrb[0].mxu0 %v7040
    %v7108 = vpop.f32.mrb[0].mxu0
    %v7109 = vadd.f32 0.0, %v7108
    %v7110 = vpop.f32.mrb[0].mxu0
    %v7111 = vadd.f32 0.0, %v7110
    %7112 = vdwg.mxu0
    %7113 = vmatprep.subr.mxu0 %v7034
    %7114 = vmatpush1.msra.mxu0 %v7033
    %7115 = vmatprep.subr.mxu0 %v7038
    %7116 = vmatpush1.msra.mxu0 %v7037
    %7117 = vmatprep.subr.mxu0 0.0
    %7118 = vmatpush1.msra.mxu0 0.0
    %7119 = vmatprep.subr.mxu0 0.0
    %7120 = vmatpush1.msra.mxu0 0.0
    %7121 = vmatprep.subr.mxu0 0.0
    %7122 = vmatpush1.msra.mxu0 0.0
    %7123 = vmatprep.subr.mxu0 0.0
    %7124 = vmatpush1.msra.mxu0 0.0
    %7125 = vmatprep.subr.mxu0 0.0
    %7126 = vmatpush1.msra.mxu0 0.0
    %7127 = vmatprep.subr.mxu0 0.0
    %7128 = vmatpush1.msra.mxu0 0.0
    %7129 = vmatprep.subr.mxu0 0.0
    %7130 = vmatpush1.msra.mxu0 0.0
    %7131 = vmatprep.subr.mxu0 0.0
    %7132 = vmatpush1.msra.mxu0 0.0
    %7133 = vmatprep.subr.mxu0 0.0
    %7134 = vmatpush1.msra.mxu0 0.0
    %7135 = vmatprep.subr.mxu0 0.0
    %7136 = vmatpush1.msra.mxu0 0.0
    %7137 = vmatprep.subr.mxu0 0.0
    %7138 = vmatpush1.msra.mxu0 0.0
    %7139 = vmatprep.subr.mxu0 0.0
    %7140 = vmatpush1.msra.mxu0 0.0
    %7141 = vmatprep.subr.mxu0 0.0
    %7142 = vmatpush1.msra.mxu0 0.0
    %7143 = vmatprep.subr.mxu0 0.0
    %7144 = vmatpush1.msra.mxu0 0.0
    %7145 = vmatprep.subr.mxu0 0.0
    %7146 = vmatpush1.msra.mxu0 0.0
    %7147 = vmatprep.subr.mxu0 0.0
    %7148 = vmatpush1.msra.mxu0 0.0
    %7149 = vmatprep.subr.mxu0 0.0
    %7150 = vmatpush1.msra.mxu0 0.0
    %7151 = vmatprep.subr.mxu0 0.0
    %7152 = vmatpush1.msra.mxu0 0.0
    %7153 = vmatprep.subr.mxu0 0.0
    %7154 = vmatpush1.msra.mxu0 0.0
    %7155 = vmatprep.subr.mxu0 0.0
    %7156 = vmatpush1.msra.mxu0 0.0
    %7157 = vmatprep.subr.mxu0 0.0
    %7158 = vmatpush1.msra.mxu0 0.0
    %7159 = vmatprep.subr.mxu0 0.0
    %7160 = vmatpush1.msra.mxu0 0.0
    %7161 = vmatprep.subr.mxu0 0.0
    %7162 = vmatpush1.msra.mxu0 0.0
    %7163 = vmatprep.subr.mxu0 0.0
    %7164 = vmatpush1.msra.mxu0 0.0
    %7165 = vmatprep.subr.mxu0 0.0
    %7166 = vmatpush1.msra.mxu0 0.0
    %7167 = vmatprep.subr.mxu0 0.0
    %7168 = vmatpush1.msra.mxu0 0.0
    %7169 = vmatprep.subr.mxu0 0.0
    %7170 = vmatpush1.msra.mxu0 0.0
    %7171 = vmatprep.subr.mxu0 0.0
    %7172 = vmatpush1.msra.mxu0 0.0
    %7173 = vmatprep.subr.mxu0 0.0
    %7174 = vmatpush1.msra.mxu0 0.0
    %7175 = vmatprep.subr.mxu0 0.0
    %7176 = vmatpush1.msra.mxu0 0.0
    %7177 = vmatprep.mubr.f32.mxu0 0.0
    %7178 = vmatmul.mubr.f32.gmra.mrb[0].mxu0 %v7040
    %v7179 = vpop.f32.mrb[0].mxu0
    %v7180 = vadd.f32 0.0, %v7179
    %v7181 = vpop.f32.mrb[0].mxu0
    %v7182 = vadd.f32 0.0, %v7181
    %7183 = vdwg.mxu0
    %v7184 = vadd.f32 %v6951, %v7109
    %v7185 = vadd.f32 %v6952, %v7111
    %v7186 = vadd.f32 %v6953, %v7180
    %v7187 = vadd.f32 %v6954, %v7182
    %v7188 = vld [vmem:[%s8] sm:$0xf]
    %v7190 = vlaneseq
    %v7191 = vshrl.u32 %v7190, 7
    %v7192 = vsub.s32 0, %v7191
    %v7193 = vrot.slane %v7188, %v7192
    %v7194 = vlaneseq
    %v7195 = vshrl.u32 %v7194, 7
    %v7196 = vsub.s32 1, %v7195
    %v7197 = vrot.slane %v7188, %v7196
    %v7198 = vlaneseq
    %v7199 = vshrl.u32 %v7198, 7
    %v7200 = vsub.s32 2, %v7199
    %v7201 = vrot.slane %v7188, %v7200
    %v7202 = vlaneseq
    %v7203 = vshrl.u32 %v7202, 7
    %v7204 = vsub.s32 3, %v7203
    %v7205 = vrot.slane %v7188, %v7204
    %v7210 = vadd.f32 %v7184, %v7193
    %v7211 = vadd.f32 %v7185, %v7197
    %v7212 = vadd.f32 %v7186, %v7201
    %v7213 = vadd.f32 %v7187, %v7205
    %vm7214 = vcmask 1041408
    %v7215 = vsel %vm7214, %v7210, 0.0
    %v7216 = vrot.slane %v7215, 4
    %v7217 = vadd.f32 %v7215, %v7216
    %v7218 = vrot.slane %v7217, 2
    %v7219 = vadd.f32 %v7217, %v7218
    %v7220 = vrot.slane %v7219, 1
    %v7221 = vadd.f32 %v7219, %v7220
    %v7222 = vsel %vm7214, %v7211, 0.0
    %v7223 = vrot.slane %v7222, 4
    %v7224 = vadd.f32 %v7222, %v7223
    %v7225 = vrot.slane %v7224, 2
    %v7226 = vadd.f32 %v7224, %v7225
    %v7227 = vrot.slane %v7226, 1
    %v7228 = vadd.f32 %v7226, %v7227
    %v7229 = vsel %vm7214, %v7212, 0.0
    %v7230 = vrot.slane %v7229, 4
    %v7231 = vadd.f32 %v7229, %v7230
    %v7232 = vrot.slane %v7231, 2
    %v7233 = vadd.f32 %v7231, %v7232
    %v7234 = vrot.slane %v7233, 1
    %v7235 = vadd.f32 %v7233, %v7234
    %v7236 = vsel %vm7214, %v7213, 0.0
    %v7237 = vrot.slane %v7236, 4
    %v7238 = vadd.f32 %v7236, %v7237
    %v7239 = vrot.slane %v7238, 2
    %v7240 = vadd.f32 %v7238, %v7239
    %v7241 = vrot.slane %v7240, 1
    %v7242 = vadd.f32 %v7240, %v7241
    %v7243 = vrcp.pop 2.0
    %v7244 = vmul.f32 %v7221, %v7243
    %v7245 = vmul.f32 %v7228, %v7243
    %v7246 = vmul.f32 %v7235, %v7243
    %v7247 = vmul.f32 %v7242, %v7243
    %v7248 = vsub.f32 %v7210, %v7244
    %v7249 = vsub.f32 %v7211, %v7245
    %v7250 = vsub.f32 %v7212, %v7246
    %v7251 = vsub.f32 %v7213, %v7247
    %v7252 = vmul.f32 %v7248, %v7248
    %v7253 = vmul.f32 %v7249, %v7249
    %v7254 = vmul.f32 %v7250, %v7250
    %v7255 = vmul.f32 %v7251, %v7251
    %v7256 = vsel %vm7214, %v7252, 0.0
    %v7257 = vrot.slane %v7256, 4
    %v7258 = vadd.f32 %v7256, %v7257
    %v7259 = vrot.slane %v7258, 2
    %v7260 = vadd.f32 %v7258, %v7259
    %v7261 = vrot.slane %v7260, 1
    %v7262 = vadd.f32 %v7260, %v7261
    %v7263 = vsel %vm7214, %v7253, 0.0
    %v7264 = vrot.slane %v7263, 4
    %v7265 = vadd.f32 %v7263, %v7264
    %v7266 = vrot.slane %v7265, 2
    %v7267 = vadd.f32 %v7265, %v7266
    %v7268 = vrot.slane %v7267, 1
    %v7269 = vadd.f32 %v7267, %v7268
    %v7270 = vsel %vm7214, %v7254, 0.0
    %v7271 = vrot.slane %v7270, 4
    %v7272 = vadd.f32 %v7270, %v7271
    %v7273 = vrot.slane %v7272, 2
    %v7274 = vadd.f32 %v7272, %v7273
    %v7275 = vrot.slane %v7274, 1
    %v7276 = vadd.f32 %v7274, %v7275
    %v7277 = vsel %vm7214, %v7255, 0.0
    %v7278 = vrot.slane %v7277, 4
    %v7279 = vadd.f32 %v7277, %v7278
    %v7280 = vrot.slane %v7279, 2
    %v7281 = vadd.f32 %v7279, %v7280
    %v7282 = vrot.slane %v7281, 1
    %v7283 = vadd.f32 %v7281, %v7282
    %v7284 = vmul.f32 %v7262, %v7243
    %v7285 = vmul.f32 %v7269, %v7243
    %v7286 = vmul.f32 %v7276, %v7243
    %v7287 = vmul.f32 %v7283, %v7243
    %v7288 = vld [vmem:[%s9] sm:$0xf]
    %v7289 = vadd.f32 %v7284, 1e-05
    %v7290 = vadd.f32 %v7285, 1e-05
    %v7291 = vadd.f32 %v7286, 1e-05
    %v7292 = vadd.f32 %v7287, 1e-05
    %v7293 = vrsqrt.pop %v7289
    %v7294 = vrsqrt.pop %v7290
    %v7295 = vrsqrt.pop %v7291
    %v7296 = vrsqrt.pop %v7292
    %v7301 = vcombine.low %v7293, %v7294
    %v7302 = vcombine.low %v7295, %v7296
    %v7304 = vunpack.c.l.s4 1966171168
    %v7305 = vunpack.c.0.s8 %v7304
    %v7306 = vlaneseq
    %v7307 = vshrl.u32 %v7306, 7
    %v7308 = vsub.s32 %v7305, %v7307
    %v7309 = vrot.slane %v7301, %v7308
    %v7311 = vunpack.c.l.s4 1966171168
    %v7312 = vunpack.c.0.s8 %v7311
    %v7313 = vlaneseq
    %v7314 = vshrl.u32 %v7313, 7
    %v7315 = vsub.s32 %v7312, %v7314
    %v7316 = vrot.slane %v7302, %v7315
    %v7317 = vcombine.low %v7309, %v7316
    %v7319 = vunpack.c.l.s4 1966171168
    %v7320 = vunpack.c.0.s8 %v7319
    %v7321 = vlaneseq
    %v7322 = vshrl.u32 %v7321, 7
    %v7323 = vsub.s32 %v7320, %v7322
    %v7324 = vrot.slane %v7317, %v7323
    %v7326 = vmul.f32 %v7288, %v7324
    %v7328 = vlaneseq
    %v7329 = vshrl.u32 %v7328, 7
    %v7330 = vsub.s32 0, %v7329
    %v7331 = vrot.slane %v7326, %v7330
    %v7332 = vlaneseq
    %v7333 = vshrl.u32 %v7332, 7
    %v7334 = vsub.s32 1, %v7333
    %v7335 = vrot.slane %v7326, %v7334
    %v7336 = vlaneseq
    %v7337 = vshrl.u32 %v7336, 7
    %v7338 = vsub.s32 2, %v7337
    %v7339 = vrot.slane %v7326, %v7338
    %v7340 = vlaneseq
    %v7341 = vshrl.u32 %v7340, 7
    %v7342 = vsub.s32 3, %v7341
    %v7343 = vrot.slane %v7326, %v7342
    %v7348 = vmul.f32 %v7248, %v7331
    %v7349 = vmul.f32 %v7249, %v7335
    %v7350 = vmul.f32 %v7250, %v7339
    %v7351 = vmul.f32 %v7251, %v7343
    %v7352 = vld [vmem:[%s10] sm:$0xf]
    %v7354 = vlaneseq
    %v7355 = vshrl.u32 %v7354, 7
    %v7356 = vsub.s32 0, %v7355
    %v7357 = vrot.slane %v7352, %v7356
    %v7358 = vlaneseq
    %v7359 = vshrl.u32 %v7358, 7
    %v7360 = vsub.s32 1, %v7359
    %v7361 = vrot.slane %v7352, %v7360
    %v7362 = vlaneseq
    %v7363 = vshrl.u32 %v7362, 7
    %v7364 = vsub.s32 2, %v7363
    %v7365 = vrot.slane %v7352, %v7364
    %v7366 = vlaneseq
    %v7367 = vshrl.u32 %v7366, 7
    %v7368 = vsub.s32 3, %v7367
    %v7369 = vrot.slane %v7352, %v7368
    %v7374 = vadd.f32 %v7348, %v7357
    %v7375 = vadd.f32 %v7349, %v7361
    %v7376 = vadd.f32 %v7350, %v7365
    %v7377 = vadd.f32 %v7351, %v7369
    %vm7378 = vcmp.ge.f32.partialorder %v7374, 0.0
    %vm7379 = vcmp.ge.f32.partialorder %v7375, 0.0
    %vm7380 = vcmp.ge.f32.partialorder %v7376, 0.0
    %vm7381 = vcmp.ge.f32.partialorder %v7377, 0.0
    %v7382 = vmul.f32 %v7374, 0.2
    %v7383 = vmul.f32 %v7375, 0.2
    %v7384 = vmul.f32 %v7376, 0.2
    %v7385 = vmul.f32 %v7377, 0.2
    %v7386 = vsel %vm7378, %v7374, %v7382
    %v7387 = vsel %vm7379, %v7375, %v7383
    %v7388 = vsel %vm7380, %v7376, %v7384
    %v7389 = vsel %vm7381, %v7377, %v7385
    %v7394 = vcombine.low %v7386, %v7387
    %v7395 = vcombine.low %v7388, %v7389
    %v7397 = vunpack.c.l.s4 1983009808
    %v7398 = vunpack.c.0.s8 %v7397
    %v7399 = vlaneseq
    %v7400 = vshrl.u32 %v7399, 7
    %v7401 = vsub.s32 %v7398, %v7400
    %v7402 = vrot.slane %v7394, %v7401
    %v7404 = vunpack.c.l.s4 1983009808
    %v7405 = vunpack.c.0.s8 %v7404
    %v7406 = vlaneseq
    %v7407 = vshrl.u32 %v7406, 7
    %v7408 = vsub.s32 %v7405, %v7407
    %v7409 = vrot.slane %v7395, %v7408
    %v7410 = vcombine.low %v7402, %v7409
    %7412 = vst [vmem:[#allocation3] sm:$0xff] %v7410
    %v7413 = vld [vmem:[%s11] sm:$0xf]
    %v7415 = vlaneseq
    %v7416 = vshrl.u32 %v7415, 7
    %v7417 = vsub.s32 0, %v7416
    %v7418 = vrot.slane %v7413, %v7417
    %v7419 = vlaneseq
    %v7420 = vshrl.u32 %v7419, 7
    %v7421 = vsub.s32 1, %v7420
    %v7422 = vrot.slane %v7413, %v7421
    %v7423 = vlaneseq
    %v7424 = vshrl.u32 %v7423, 7
    %v7425 = vsub.s32 2, %v7424
    %v7426 = vrot.slane %v7413, %v7425
    %v7427 = vlaneseq
    %v7428 = vshrl.u32 %v7427, 7
    %v7429 = vsub.s32 3, %v7428
    %v7430 = vrot.slane %v7413, %v7429
    %v7435 = vmul.f32 %v7386, %v7418
    %v7436 = vmul.f32 %v7387, %v7422
    %v7437 = vmul.f32 %v7388, %v7426
    %v7438 = vmul.f32 %v7389, %v7430
    %v7439 = vsel %vm7214, %v7435, 0.0
    %v7440 = vsel %vm7214, %v7436, 0.0
    %v7441 = vadd.f32 %v7439, %v7440
    %v7442 = vsel %vm7214, %v7437, 0.0
    %v7443 = vadd.f32 %v7441, %v7442
    %v7444 = vsel %vm7214, %v7438, 0.0
    %v7445 = vadd.f32 %v7443, %v7444
    %7446 = vadd.xlane.f32.xlu0 %v7445
    %v7447 = vpop.xlane.xlu0 %7446
    %v7448 = vld [vmem:[#allocation2] sm:$0x1]
    %v7450 = vlaneseq
    %v7451 = vshrl.u32 %v7450, 7
    %v7452 = vsub.s32 0, %v7451
    %v7453 = vrot.slane %v7448, %v7452
    %v7455 = vadd.f32 %v7447, %v7453
    %v7456 = vxor.u32 %v7455, 2147483648
    %v7457 = vmul.f32 %v7456, 1.442695
    %v7458 = vpow.pop %v7457
    %v7459 = vadd.f32 %v7458, 1.0
    %v7460 = vrcp.pop %v7459
    %v7461 = vmul.f32 1.0, %v7460
    %7463 = vset.pattern.permute.xlu0 0
    %7464 = vperm.xlu0 %7463, %v7461
    %v7465 = vpop.permute.xlu0 %7464
    %7467 = vst [vmem:[%s14] sm:$0x3] %v7465
    // Predicated region
    $region54: #{discriminator_forward.1} parent=1 // pred_check
      _
    $region55: #{discriminator_forward.1} parent=1 // pred_check_branch
      %7469 = sbr.rel (0) target = $region57
    $region56: #{discriminator_forward.1} parent=1 // pred_region
      %s7471 = ssub.s32 128, 128
      %7472 = vsyncadd [#allocation4], %s7471
      %s7474 = sshll.u32 [#allocation3], 4
      %s7475 = int_to_ptr.vmem [resolvable:$true] %s7474
      %7477 = dma.vmem_to_hbm [thread:$0]  %s7475, 128, %s13, [#allocation4]
    $region57: #{discriminator_forward.1} parent=1 // pred_fallthru
      _
    // Predicated region
    $region58: #{discriminator_forward.1} parent=1 // pred_check
      _
    $region59: #{discriminator_forward.1} parent=1 // pred_check_branch
      %7479 = sbr.rel (0) target = $region61
    $region60: #{discriminator_forward.1} parent=1 // pred_region
      _
    $region61: #{discriminator_forward.1} parent=1 // pred_fallthru
      _
    // Predicated region
    $region62: #{discriminator_forward.1} parent=1 // pred_check
      _
    $region63: #{discriminator_forward.1} parent=1 // pred_check_branch
      %7481 = sbr.rel (0) target = $region65
    $region64: #{discriminator_forward.1} parent=1 // pred_region
      %7482 = dma.done [#allocation4], 128
    $region65: #{discriminator_forward.1} parent=1 // pred_fallthru
      _
    // Predicated region
    $region66: #{discriminator_forward.1} parent=1 // pred_check
      _
    $region67: #{discriminator_forward.1} parent=1 // pred_check_branch
      %7484 = sbr.rel (0) target = $region69
    $region68: #{discriminator_forward.1} parent=1 // pred_region
      _
    $region69: #{discriminator_forward.1} parent=1 // pred_fallthru
      _
    %7485 = vsyncpa [#allocation4], 1

</llo_original>
